<compile_context>
chip_gen: v6e
topology: v6e:2x2x1
jax: 0.10.0
libtpu: 0.0.40
codegen_flags: <defaults>
</compile_context>

<pallas_src>
import functools

import jax
import jax.numpy as jnp
from jax.experimental import pallas as pl
from jax.experimental.pallas import tpu as pltpu


Z_DIM = 100
Z_PAD = 128            # fc1 K padded to the 128-lane width
H1, H2, H3 = 256, 512, 1024
OUT = 784
OUT_PAD = 896          # 7 * 128: lane-dense output slab (unmasked vst)
BN_EPS = 1e-5
MAX_TILE = 512         # amortizes grid-step overhead; ~15 MiB footprint


def _round_up(x, m):
    return ((x + m - 1) // m) * m


def _bf16_epilogue_ok():
    """bf16 VPU/EUP epilogue only on v6e/v7x; older gens lack bf16 VALU/EUP."""
    try:
        kind = jax.devices()[0].device_kind.lower()
    except Exception:
        return True
    return ("v6" in kind) or ("v7" in kind)


def _pick_tiling(batch):
    """Pick (batch tile TB, number of grid steps nb).

    * nb >= 2 whenever it helps, so both v7x TensorCores get work
      ('parallel' grid axis -> megacore sharding).
    * Balanced tiles (ceil(B / nb)) limit padded-row waste for awkward B.
    * TB is a multiple of 16 (bf16 sublane packing, clean 2-way sub-split)
      and capped at MAX_TILE.
    """
    target_nb = max(2, pl.cdiv(batch, MAX_TILE))
    tb = min(MAX_TILE, _round_up(pl.cdiv(batch, target_nb), 16))
    nb = pl.cdiv(batch, tb)
    return tb, nb


def _generator_kernel(x_ref,
                      w1_ref, b1_ref,
                      w2_ref, b2_ref,
                      w3_ref, b3_ref,
                      w4_ref, b4_ref,
                      o_ref,
                      *, n_sub, edt):
    """Fused 4-layer MLP on one batch tile.

    Weights are bf16 (MXU-native); matmuls accumulate in f32.  The per-layer
    epilogue (bias + LeakyReLU, final tanh) runs in `edt` (bf16 on v6e/v7x,
    f32 on v5e).  The tile is split into `n_sub` independent row sub-tiles so
    the MXU work of one sub-tile can overlap the VPU/EUP epilogue of the
    other.
    """

    def leaky_relu(v):
        return jnp.maximum(v, 0.2 * v)        # 2 VALU ops vs 3 for where()

    # Hoisted once per tile (tiny casts).
    b1 = b1_ref[...].astype(edt)
    b2 = b2_ref[...].astype(edt)
    b3 = b3_ref[...].astype(edt)
    b4 = b4_ref[...].astype(edt)

    def layer(h, w_ref, b):
        acc = jnp.dot(h.astype(jnp.bfloat16), w_ref[...],
                      preferred_element_type=jnp.float32)
        return acc.astype(edt) + b

    sub = x_ref.shape[0] // n_sub
    for s in range(n_sub):                     # static unroll: independent chains
        lo, hi = s * sub, (s + 1) * sub
        h = x_ref[lo:hi, :]                    # (sub, 128) bf16 latent
        h = leaky_relu(layer(h, w1_ref, b1))   # fc1 + folded bn1 (+ dropout=id)
        h = leaky_relu(layer(h, w2_ref, b2))   # fc2 + folded bn2
        h = leaky_relu(layer(h, w3_ref, b3))   # fc3 + folded bn3
        o = jnp.tanh(layer(h, w4_ref, b4))     # fc4 + tanh
        o_ref[lo:hi, :] = o.astype(o_ref.dtype)


@jax.jit
def generator_forward(z, kernel_params):
    """z: (B, Z_DIM) float32 latent.  Returns (B, 1, 28, 28) float32."""
    (w1, b1, w2, b2, w3, b3, w4, b4) = kernel_params

    B = z.shape[0]
    TB, nb = _pick_tiling(B)
    B_pad = nb * TB
    n_sub = 2 if TB % 32 == 0 else 1          # sub-tiles stay (16,128)-aligned
    edt = jnp.bfloat16 if _bf16_epilogue_ok() else jnp.float32

    # Pad latent: batch -> B_pad, features 100 -> 128 (w1's extra rows are
    # zero, so the math is exact).  bf16 halves the input DMA.
    zp = jnp.zeros((B_pad, Z_PAD), jnp.bfloat16)
    zp = zp.at[:B, :Z_DIM].set(z.astype(jnp.bfloat16))

    flops = 2 * B_pad * (Z_PAD * H1 + H1 * H2 + H2 * H3 + H3 * OUT_PAD)
    bytes_accessed = (
        (w1.size + w2.size + w3.size + w4.size) * 2        # bf16 weights
        + (b1.size + b2.size + b3.size + b4.size) * 4      # f32 biases
        + zp.size * 2 + B_pad * OUT_PAD * 2)               # bf16 activations

    def batch_spec(ncols):
        return pl.BlockSpec((TB, ncols), lambda i: (i, 0))

    def resident_spec(shape):
        # Constant block index: weights/biases stay VMEM-resident across tiles.
        return pl.BlockSpec(shape, lambda i: (0, 0))

    out = pl.pallas_call(
        functools.partial(_generator_kernel, n_sub=n_sub, edt=edt),
        out_shape=jax.ShapeDtypeStruct((B_pad, OUT_PAD), jnp.bfloat16),
        grid=(nb,),
        in_specs=[
            batch_spec(Z_PAD),
            resident_spec(w1.shape), resident_spec(b1.shape),
            resident_spec(w2.shape), resident_spec(b2.shape),
            resident_spec(w3.shape), resident_spec(b3.shape),
            resident_spec(w4.shape), resident_spec(b4.shape),
        ],
        out_specs=batch_spec(OUT_PAD),
        compiler_params=pltpu.CompilerParams(
            dimension_semantics=("parallel",),          # megacore sharding
            vmem_limit_bytes=32 * 1024 * 1024),         # fits v5e/v6e/v7x
        cost_estimate=pl.CostEstimate(
            flops=flops,
            transcendentals=B_pad * OUT_PAD,
            bytes_accessed=bytes_accessed),
    )(zp, w1, b1, w2, b2, w3, b3, w4, b4)

    # Drop padded rows/cols, back to f32, then out.view(B, 1, 28, 28).
    return out[:B, :OUT].astype(jnp.float32).reshape(B, 1, 28, 28)


def init_params(key):
    """Deterministic PyTorch-like raw parameters (f32, un-padded).

    Linear weights stored as (in, out) so the kernel does x @ W directly
    (PyTorch stores (out, in) and computes x @ W.T — same math).
    BatchNorm1d params: (gamma, beta, running_mean, running_var).
    """
    ks = jax.random.split(key, 20)

    def linear(kw, kb, fan_in, fan_out):
        bound = 1.0 / jnp.sqrt(fan_in)
        w = jax.random.uniform(kw, (fan_in, fan_out), jnp.float32, -bound, bound)
        b = jax.random.uniform(kb, (fan_out,), jnp.float32, -bound, bound)
        return w, b

    def bn(kg, kb, km, kv, feat):
        gamma = 1.0 + 0.1 * jax.random.normal(kg, (feat,), jnp.float32)
        beta = 0.1 * jax.random.normal(kb, (feat,), jnp.float32)
        mean = 0.05 * jax.random.normal(km, (feat,), jnp.float32)
        var = 1.0 + 0.1 * jax.random.uniform(kv, (feat,), jnp.float32)
        return gamma, beta, mean, var

    w1, b1 = linear(ks[0], ks[1], Z_DIM, H1)
    bn1 = bn(ks[2], ks[3], ks[4], ks[5], H1)
    w2, b2 = linear(ks[6], ks[7], H1, H2)
    bn2 = bn(ks[8], ks[9], ks[10], ks[11], H2)
    w3, b3 = linear(ks[12], ks[13], H2, H3)
    bn3 = bn(ks[14], ks[15], ks[16], ks[17], H3)
    w4, b4 = linear(ks[18], ks[19], H3, OUT)

    return dict(w1=w1, b1=b1, bn1=bn1,
                w2=w2, b2=b2, bn2=bn2,
                w3=w3, b3=b3, bn3=bn3,
                w4=w4, b4=b4)


def prepare_kernel_params(p):
    """Fold eval-mode BatchNorm1d into the preceding Linear, pad to
    lane-aligned shapes, and cast weight matrices to bfloat16."""

    def fold(w, b, bn_params):
        gamma, beta, mean, var = bn_params
        scale = gamma / jnp.sqrt(var + BN_EPS)            # (out,)
        w_f = w * scale[None, :]
        b_f = b * scale + (beta - mean * scale)
        return w_f, b_f

    w1, b1 = fold(p["w1"], p["b1"], p["bn1"])
    w2, b2 = fold(p["w2"], p["b2"], p["bn2"])
    w3, b3 = fold(p["w3"], p["b3"], p["bn3"])
    w4, b4 = p["w4"], p["b4"]

    # Pad fc1's K (100 -> 128) with zero rows; fc4's N (784 -> 896) with zero cols.
    w1 = jnp.zeros((Z_PAD, H1), jnp.float32).at[:Z_DIM, :].set(w1)
    w4 = jnp.zeros((H3, OUT_PAD), jnp.float32).at[:, :OUT].set(w4)
    b4 = jnp.zeros((OUT_PAD,), jnp.float32).at[:OUT].set(b4)

    def pack(w, b):
        return w.astype(jnp.bfloat16), b.reshape(1, -1).astype(jnp.float32)

    return (*pack(w1, b1), *pack(w2, b2), *pack(w3, b3), *pack(w4, b4))


def _reference_forward(z, p):
    """Pure-JAX f32 reference (eval-mode PyTorch semantics)."""

    def lrelu(v):
        return jnp.where(v > 0, v, 0.2 * v)

    def bn(x, bn_params):
        gamma, beta, mean, var = bn_params
        return (x - mean) / jnp.sqrt(var + BN_EPS) * gamma + beta

    h = lrelu(bn(z @ p["w1"] + p["b1"], p["bn1"]))
    h = lrelu(bn(h @ p["w2"] + p["b2"], p["bn2"]))
    h = lrelu(bn(h @ p["w3"] + p["b3"], p["bn3"]))
    o = jnp.tanh(h @ p["w4"] + p["b4"])
    return o.reshape(z.shape[0], 1, 28, 28)


if __name__ == "__main__":
    key = jax.random.PRNGKey(0)
    k_z, k_p = jax.random.split(key)

    # B=64 -> TB=32, nb=2 (both tiles / cores), n_sub=2 (intra-tile interleave).
    B = 64
    z = jax.random.normal(k_z, (B, Z_DIM), jnp.float32)

    raw_params = init_params(k_p)
    kernel_params = prepare_kernel_params(raw_params)

    out = jax.block_until_ready(generator_forward(z, kernel_params))

    assert out.shape == (B, 1, 28, 28), out.shape
    assert out.dtype == jnp.float32

    ref = _reference_forward(z, raw_params)
    err = float(jnp.max(jnp.abs(out - ref)))
    # bf16 weights/activations/epilogue vs. f32 reference -> relaxed tolerance.
    assert err < 7.5e-2, f"max abs error {err}"

    print("KERNEL_OK")
</pallas_src>

<mosaic_0001>
module attributes {stable_mosaic.version = 11 : i64} {
  func.func @_generator_kernel(%arg0: i32, %arg1: memref<32x128xbf16, #tpu.memory_space<vmem>>, %arg2: memref<128x256xbf16, #tpu.memory_space<vmem>>, %arg3: memref<1x256xf32, #tpu.memory_space<vmem>>, %arg4: memref<256x512xbf16, #tpu.memory_space<vmem>>, %arg5: memref<1x512xf32, #tpu.memory_space<vmem>>, %arg6: memref<512x1024xbf16, #tpu.memory_space<vmem>>, %arg7: memref<1x1024xf32, #tpu.memory_space<vmem>>, %arg8: memref<1024x896xbf16, #tpu.memory_space<vmem>>, %arg9: memref<1x896xf32, #tpu.memory_space<vmem>>, %arg10: memref<32x896xbf16, #tpu.memory_space<vmem>>) attributes {dimension_semantics = [#tpu.dimension_semantics<parallel>], iteration_bounds = array<i64: 2>, scalar_prefetch = 0 : i64, scratch_operands = 0 : i64, tpu.core_type = #tpu.core_type<tc>, window_params = [{transform_indices = @transform_0, window_bounds = array<i64: 32, 128>}, {pipeline_mode = #tpu.pipeline_mode<synchronous>, transform_indices = @transform_1, window_bounds = array<i64: 128, 256>}, {pipeline_mode = #tpu.pipeline_mode<synchronous>, transform_indices = @transform_2, window_bounds = array<i64: 1, 256>}, {pipeline_mode = #tpu.pipeline_mode<synchronous>, transform_indices = @transform_3, window_bounds = array<i64: 256, 512>}, {pipeline_mode = #tpu.pipeline_mode<synchronous>, transform_indices = @transform_4, window_bounds = array<i64: 1, 512>}, {pipeline_mode = #tpu.pipeline_mode<synchronous>, transform_indices = @transform_5, window_bounds = array<i64: 512, 1024>}, {pipeline_mode = #tpu.pipeline_mode<synchronous>, transform_indices = @transform_6, window_bounds = array<i64: 1, 1024>}, {pipeline_mode = #tpu.pipeline_mode<synchronous>, transform_indices = @transform_7, window_bounds = array<i64: 1024, 896>}, {pipeline_mode = #tpu.pipeline_mode<synchronous>, transform_indices = @transform_8, window_bounds = array<i64: 1, 896>}, {transform_indices = @transform_9, window_bounds = array<i64: 32, 896>}]} {
    %c0 = arith.constant 0 : index
    %c0_0 = arith.constant 0 : index
    %0 = vector.load %arg3[%c0, %c0_0] : memref<1x256xf32, #tpu.memory_space<vmem>>, vector<1x256xf32>
    %c0_1 = arith.constant 0 : index
    %c0_2 = arith.constant 0 : index
    %1 = vector.load %arg5[%c0_1, %c0_2] : memref<1x512xf32, #tpu.memory_space<vmem>>, vector<1x512xf32>
    %c0_3 = arith.constant 0 : index
    %c0_4 = arith.constant 0 : index
    %2 = vector.load %arg7[%c0_3, %c0_4] : memref<1x1024xf32, #tpu.memory_space<vmem>>, vector<1x1024xf32>
    %c0_5 = arith.constant 0 : index
    %c0_6 = arith.constant 0 : index
    %3 = vector.load %arg9[%c0_5, %c0_6] : memref<1x896xf32, #tpu.memory_space<vmem>>, vector<1x896xf32>
    %c0_7 = arith.constant 0 : index
    %c0_8 = arith.constant 0 : index
    %4 = vector.load %arg1[%c0_7, %c0_8] : memref<32x128xbf16, #tpu.memory_space<vmem>>, vector<16x128xbf16>
    %c0_9 = arith.constant 0 : index
    %c0_10 = arith.constant 0 : index
    %5 = vector.load %arg2[%c0_9, %c0_10] : memref<128x256xbf16, #tpu.memory_space<vmem>>, vector<128x256xbf16>
    %cst = arith.constant dense<0.000000e+00> : vector<16x256xf32>
    %6 = tpu.matmul %4, %5, %cst {dimension_numbers = #tpu.dot_dimension_numbers<[1], [0], [0], [1], [0, 0, 1, 1], [], []>} : vector<16x128xbf16>, vector<128x256xbf16>, vector<16x256xf32> -> vector<16x256xf32>
    %7 = vector.broadcast %0 : vector<1x256xf32> to vector<16x256xf32>
    %8 = arith.addf %6, %7 : vector<16x256xf32>
    %cst_11 = arith.constant 2.000000e-01 : f32
    %9 = vector.broadcast %cst_11 : f32 to vector<16x256xf32>
    %10 = arith.mulf %9, %8 : vector<16x256xf32>
    %11 = arith.maximumf %8, %10 : vector<16x256xf32>
    %12 = arith.truncf %11 : vector<16x256xf32> to vector<16x256xbf16>
    %c0_12 = arith.constant 0 : index
    %c0_13 = arith.constant 0 : index
    %13 = vector.load %arg4[%c0_12, %c0_13] : memref<256x512xbf16, #tpu.memory_space<vmem>>, vector<256x512xbf16>
    %cst_14 = arith.constant dense<0.000000e+00> : vector<16x512xf32>
    %14 = tpu.matmul %12, %13, %cst_14 {dimension_numbers = #tpu.dot_dimension_numbers<[1], [0], [0], [1], [0, 0, 1, 1], [], []>} : vector<16x256xbf16>, vector<256x512xbf16>, vector<16x512xf32> -> vector<16x512xf32>
    %15 = vector.broadcast %1 : vector<1x512xf32> to vector<16x512xf32>
    %16 = arith.addf %14, %15 : vector<16x512xf32>
    %cst_15 = arith.constant 2.000000e-01 : f32
    %17 = vector.broadcast %cst_15 : f32 to vector<16x512xf32>
    %18 = arith.mulf %17, %16 : vector<16x512xf32>
    %19 = arith.maximumf %16, %18 : vector<16x512xf32>
    %20 = arith.truncf %19 : vector<16x512xf32> to vector<16x512xbf16>
    %c0_16 = arith.constant 0 : index
    %c0_17 = arith.constant 0 : index
    %21 = vector.load %arg6[%c0_16, %c0_17] : memref<512x1024xbf16, #tpu.memory_space<vmem>>, vector<512x1024xbf16>
    %cst_18 = arith.constant dense<0.000000e+00> : vector<16x1024xf32>
    %22 = tpu.matmul %20, %21, %cst_18 {dimension_numbers = #tpu.dot_dimension_numbers<[1], [0], [0], [1], [0, 0, 1, 1], [], []>} : vector<16x512xbf16>, vector<512x1024xbf16>, vector<16x1024xf32> -> vector<16x1024xf32>
    %23 = vector.broadcast %2 : vector<1x1024xf32> to vector<16x1024xf32>
    %24 = arith.addf %22, %23 : vector<16x1024xf32>
    %cst_19 = arith.constant 2.000000e-01 : f32
    %25 = vector.broadcast %cst_19 : f32 to vector<16x1024xf32>
    %26 = arith.mulf %25, %24 : vector<16x1024xf32>
    %27 = arith.maximumf %24, %26 : vector<16x1024xf32>
    %28 = arith.truncf %27 : vector<16x1024xf32> to vector<16x1024xbf16>
    %c0_20 = arith.constant 0 : index
    %c0_21 = arith.constant 0 : index
    %29 = vector.load %arg8[%c0_20, %c0_21] : memref<1024x896xbf16, #tpu.memory_space<vmem>>, vector<1024x896xbf16>
    %cst_22 = arith.constant dense<0.000000e+00> : vector<16x896xf32>
    %30 = tpu.matmul %28, %29, %cst_22 {dimension_numbers = #tpu.dot_dimension_numbers<[1], [0], [0], [1], [0, 0, 1, 1], [], []>} : vector<16x1024xbf16>, vector<1024x896xbf16>, vector<16x896xf32> -> vector<16x896xf32>
    %31 = vector.broadcast %3 : vector<1x896xf32> to vector<16x896xf32>
    %32 = arith.addf %30, %31 : vector<16x896xf32>
    %33 = math.tanh %32 : vector<16x896xf32>
    %34 = arith.truncf %33 : vector<16x896xf32> to vector<16x896xbf16>
    %c0_23 = arith.constant 0 : index
    %c0_24 = arith.constant 0 : index
    %35 = vector.load %arg10[%c0_23, %c0_24] : memref<32x896xbf16, #tpu.memory_space<vmem>>, vector<16x896xbf16>
    tpu.vector_store %arg10[%c0_23, %c0_24], %34 {strides = array<i32>} : memref<32x896xbf16, #tpu.memory_space<vmem>>, vector<16x896xbf16>,
    %c16 = arith.constant 16 : index
    %c0_25 = arith.constant 0 : index
    %36 = vector.load %arg1[%c16, %c0_25] : memref<32x128xbf16, #tpu.memory_space<vmem>>, vector<16x128xbf16>
    %c0_26 = arith.constant 0 : index
    %c0_27 = arith.constant 0 : index
    %37 = vector.load %arg2[%c0_26, %c0_27] : memref<128x256xbf16, #tpu.memory_space<vmem>>, vector<128x256xbf16>
    %cst_28 = arith.constant dense<0.000000e+00> : vector<16x256xf32>
    %38 = tpu.matmul %36, %37, %cst_28 {dimension_numbers = #tpu.dot_dimension_numbers<[1], [0], [0], [1], [0, 0, 1, 1], [], []>} : vector<16x128xbf16>, vector<128x256xbf16>, vector<16x256xf32> -> vector<16x256xf32>
    %39 = vector.broadcast %0 : vector<1x256xf32> to vector<16x256xf32>
    %40 = arith.addf %38, %39 : vector<16x256xf32>
    %cst_29 = arith.constant 2.000000e-01 : f32
    %41 = vector.broadcast %cst_29 : f32 to vector<16x256xf32>
    %42 = arith.mulf %41, %40 : vector<16x256xf32>
    %43 = arith.maximumf %40, %42 : vector<16x256xf32>
    %44 = arith.truncf %43 : vector<16x256xf32> to vector<16x256xbf16>
    %c0_30 = arith.constant 0 : index
    %c0_31 = arith.constant 0 : index
    %45 = vector.load %arg4[%c0_30, %c0_31] : memref<256x512xbf16, #tpu.memory_space<vmem>>, vector<256x512xbf16>
    %cst_32 = arith.constant dense<0.000000e+00> : vector<16x512xf32>
    %46 = tpu.matmul %44, %45, %cst_32 {dimension_numbers = #tpu.dot_dimension_numbers<[1], [0], [0], [1], [0, 0, 1, 1], [], []>} : vector<16x256xbf16>, vector<256x512xbf16>, vector<16x512xf32> -> vector<16x512xf32>
    %47 = vector.broadcast %1 : vector<1x512xf32> to vector<16x512xf32>
    %48 = arith.addf %46, %47 : vector<16x512xf32>
    %cst_33 = arith.constant 2.000000e-01 : f32
    %49 = vector.broadcast %cst_33 : f32 to vector<16x512xf32>
    %50 = arith.mulf %49, %48 : vector<16x512xf32>
    %51 = arith.maximumf %48, %50 : vector<16x512xf32>
    %52 = arith.truncf %51 : vector<16x512xf32> to vector<16x512xbf16>
    %c0_34 = arith.constant 0 : index
    %c0_35 = arith.constant 0 : index
    %53 = vector.load %arg6[%c0_34, %c0_35] : memref<512x1024xbf16, #tpu.memory_space<vmem>>, vector<512x1024xbf16>
    %cst_36 = arith.constant dense<0.000000e+00> : vector<16x1024xf32>
    %54 = tpu.matmul %52, %53, %cst_36 {dimension_numbers = #tpu.dot_dimension_numbers<[1], [0], [0], [1], [0, 0, 1, 1], [], []>} : vector<16x512xbf16>, vector<512x1024xbf16>, vector<16x1024xf32> -> vector<16x1024xf32>
    %55 = vector.broadcast %2 : vector<1x1024xf32> to vector<16x1024xf32>
    %56 = arith.addf %54, %55 : vector<16x1024xf32>
    %cst_37 = arith.constant 2.000000e-01 : f32
    %57 = vector.broadcast %cst_37 : f32 to vector<16x1024xf32>
    %58 = arith.mulf %57, %56 : vector<16x1024xf32>
    %59 = arith.maximumf %56, %58 : vector<16x1024xf32>
    %60 = arith.truncf %59 : vector<16x1024xf32> to vector<16x1024xbf16>
    %c0_38 = arith.constant 0 : index
    %c0_39 = arith.constant 0 : index
    %61 = vector.load %arg8[%c0_38, %c0_39] : memref<1024x896xbf16, #tpu.memory_space<vmem>>, vector<1024x896xbf16>
    %cst_40 = arith.constant dense<0.000000e+00> : vector<16x896xf32>
    %62 = tpu.matmul %60, %61, %cst_40 {dimension_numbers = #tpu.dot_dimension_numbers<[1], [0], [0], [1], [0, 0, 1, 1], [], []>} : vector<16x1024xbf16>, vector<1024x896xbf16>, vector<16x896xf32> -> vector<16x896xf32>
    %63 = vector.broadcast %3 : vector<1x896xf32> to vector<16x896xf32>
    %64 = arith.addf %62, %63 : vector<16x896xf32>
    %65 = math.tanh %64 : vector<16x896xf32>
    %66 = arith.truncf %65 : vector<16x896xf32> to vector<16x896xbf16>
    %c16_41 = arith.constant 16 : index
    %c0_42 = arith.constant 0 : index
    %67 = vector.load %arg10[%c16_41, %c0_42] : memref<32x896xbf16, #tpu.memory_space<vmem>>, vector<16x896xbf16>
    tpu.vector_store %arg10[%c16_41, %c0_42], %66 {strides = array<i32>} : memref<32x896xbf16, #tpu.memory_space<vmem>>, vector<16x896xbf16>,
    return
  }
  func.func @transform_0(%arg0: i32) -> (i32, i32) {
    %c0_i32 = arith.constant 0 : i32
    %c0_i32_0 = arith.constant 0 : i32
    return %arg0, %c0_i32 : i32, i32
  }
  func.func @transform_1(%arg0: i32) -> (i32, i32) {
    %c0_i32 = arith.constant 0 : i32
    %c0_i32_0 = arith.constant 0 : i32
    %c0_i32_1 = arith.constant 0 : i32
    return %c0_i32, %c0_i32_0 : i32, i32
  }
  func.func @transform_2(%arg0: i32) -> (i32, i32) {
    %c0_i32 = arith.constant 0 : i32
    %c0_i32_0 = arith.constant 0 : i32
    %c0_i32_1 = arith.constant 0 : i32
    return %c0_i32, %c0_i32_0 : i32, i32
  }
  func.func @transform_3(%arg0: i32) -> (i32, i32) {
    %c0_i32 = arith.constant 0 : i32
    %c0_i32_0 = arith.constant 0 : i32
    %c0_i32_1 = arith.constant 0 : i32
    return %c0_i32, %c0_i32_0 : i32, i32
  }
  func.func @transform_4(%arg0: i32) -> (i32, i32) {
    %c0_i32 = arith.constant 0 : i32
    %c0_i32_0 = arith.constant 0 : i32
    %c0_i32_1 = arith.constant 0 : i32
    return %c0_i32, %c0_i32_0 : i32, i32
  }
  func.func @transform_5(%arg0: i32) -> (i32, i32) {
    %c0_i32 = arith.constant 0 : i32
    %c0_i32_0 = arith.constant 0 : i32
    %c0_i32_1 = arith.constant 0 : i32
    return %c0_i32, %c0_i32_0 : i32, i32
  }
  func.func @transform_6(%arg0: i32) -> (i32, i32) {
    %c0_i32 = arith.constant 0 : i32
    %c0_i32_0 = arith.constant 0 : i32
    %c0_i32_1 = arith.constant 0 : i32
    return %c0_i32, %c0_i32_0 : i32, i32
  }
  func.func @transform_7(%arg0: i32) -> (i32, i32) {
    %c0_i32 = arith.constant 0 : i32
    %c0_i32_0 = arith.constant 0 : i32
    %c0_i32_1 = arith.constant 0 : i32
    return %c0_i32, %c0_i32_0 : i32, i32
  }
  func.func @transform_8(%arg0: i32) -> (i32, i32) {
    %c0_i32 = arith.constant 0 : i32
    %c0_i32_0 = arith.constant 0 : i32
    %c0_i32_1 = arith.constant 0 : i32
    return %c0_i32, %c0_i32_0 : i32, i32
  }
  func.func @transform_9(%arg0: i32) -> (i32, i32) {
    %c0_i32 = arith.constant 0 : i32
    %c0_i32_0 = arith.constant 0 : i32
    return %arg0, %c0_i32 : i32, i32
  }
}

</mosaic_0001>

<llo_original>
// kernel: generator_forward.1
$region0: #{generator_forward.1}
  #allocation0 [shape = 'u32[]', space=smem, size = 0x4, offset = 0x4, fixed_abs, tag = 'smem constant byte address 0x4 - core index']
  #allocation1 [shape = 'u32[144,128]{1,0:T(1,128)}', space=vmem, size = 0x12000, scoped, tag = 'internal scratch']
  %s0 = inlined_call_operand.vmem [shape: bf16[64,128], index: 0, kind: input, shape index: {}]
  %s1 = inlined_call_operand.hbm [shape: bf16[128,256], index: 1, kind: input, shape index: {}]
  %s2 = inlined_call_operand.hbm [shape: f32[1,256], index: 2, kind: input, shape index: {}]
  %s3 = inlined_call_operand.hbm [shape: bf16[256,512], index: 3, kind: input, shape index: {}]
  %s4 = inlined_call_operand.hbm [shape: f32[1,512], index: 4, kind: input, shape index: {}]
  %s5 = inlined_call_operand.hbm [shape: bf16[512,1024], index: 5, kind: input, shape index: {}]
  %s6 = inlined_call_operand.hbm [shape: f32[1,1024], index: 6, kind: input, shape index: {}]
  %s7 = inlined_call_operand.hbm [shape: bf16[1024,896], index: 7, kind: input, shape index: {}]
  %s8 = inlined_call_operand.hbm [shape: f32[1,896], index: 8, kind: input, shape index: {}]
  %s9 = inlined_call_operand.vmem [shape: bf16[64,896], index: 9, kind: output, shape index: {}]
  %s10 = sld [smem:[#allocation0]]
  $region101: #{generator_forward.1} parent=0
    _
  %s12 = ssub.s32 1, %s10
  %s13 = scalar_select 0, %s12, %s10
  $region1: #{generator_forward.1} parent=0
    #allocation2 [shape = 'u8[65536]{0}', space=vmem, size = 0x10000, scoped, tag = 'input window, operand 1, single buffered']
    #allocation3 [shape = 's32[2]{0}', space=sflag, size = 0x8, scoped, tag = 'scoped memory for generator_forward.1']
    #allocation4 [shape = 'u8[1024]{0}', space=vmem, size = 0x400, scoped, tag = 'input window, operand 2, single buffered']
    #allocation5 [shape = 's32[1]{0}', space=sflag, size = 0x4, scoped, tag = 'scoped memory for generator_forward.1']
    #allocation6 [shape = 'u8[262144]{0}', space=vmem, size = 0x40000, scoped, tag = 'input window, operand 3, single buffered']
    #allocation7 [shape = 'u8[2048]{0}', space=vmem, size = 0x800, scoped, tag = 'input window, operand 4, single buffered']
    #allocation8 [shape = 's32[1]{0}', space=sflag, size = 0x4, scoped, tag = 'scoped memory for generator_forward.1']
    #allocation9 [shape = 'u8[1048576]{0}', space=vmem, size = 0x100000, scoped, tag = 'input window, operand 5, single buffered']
    #allocation10 [shape = 'u8[4096]{0}', space=vmem, size = 0x1000, scoped, tag = 'input window, operand 6, single buffered']
    #allocation11 [shape = 's32[1]{0}', space=sflag, size = 0x4, scoped, tag = 'scoped memory for generator_forward.1']
    #allocation12 [shape = 'u8[1835008]{0}', space=vmem, size = 0x1c0000, scoped, tag = 'input window, operand 7, single buffered']
    #allocation13 [shape = 'u8[3584]{0}', space=vmem, size = 0x1000, scoped, tag = 'input window, operand 8, single buffered']
    #allocation14 [shape = 's32[1]{0}', space=sflag, size = 0x4, scoped, tag = 'scoped memory for generator_forward.1']
    %14 = vsyncpa [#allocation3], 0
    %15 = vsyncpa [#allocation5], 0
    %16 = vsyncpa [#allocation8], 0
    %17 = vsyncpa [#allocation11], 0
    %18 = vsyncpa [#allocation14], 0
    loop: start=0, step=1, limit=4
    $region2: #{generator_forward.1} parent=1 // loop_pre_header
      _
    $region3: #{generator_forward.1} parent=1 // loop_header
      %s20 = sphi 0, %s24
      %p21 = scmp.ge.s32.totalorder %s20, 4
      %s30 = sphi 0, %s32
      %s33 = sphi 0, %s30
      %s34 = sphi 0, %s33
      %s50 = sphi 0, %s34
      %s54 = sphi 0, %s54
      %s56 = sphi 0, %s54
      %s57 = sphi 0, %s56
      %s71 = sphi 0, %s57
      %s75 = sphi 0, %s75
      %s77 = sphi 0, %s75
      %s78 = sphi 0, %s77
      %s92 = sphi 0, %s78
      %s96 = sphi 0, %s96
      %s98 = sphi 0, %s96
      %s99 = sphi 0, %s98
      %s113 = sphi 0, %s99
      %s117 = sphi 0, %s117
      %s119 = sphi 0, %s117
      %s120 = sphi 0, %s119
      %s134 = sphi 0, %s120
      %s138 = sphi 0, %s138
      %s140 = sphi 0, %s138
      %s141 = sphi 0, %s140
      %s155 = sphi 0, %s141
      %s159 = sphi 0, %s159
      %s161 = sphi 0, %s159
      %s162 = sphi 0, %s161
      %s176 = sphi 0, %s162
      %s180 = sphi 0, %s180
      %s182 = sphi 0, %s180
      %s183 = sphi 0, %s182
      %s197 = sphi 0, %s183
      %s201 = sphi 0, %s201
      %s203 = sphi 0, %s201
      %s204 = sphi 0, %s203
      %s218 = sphi 0, %s204
      %s224 = sphi 0, %s226
      %s227 = sphi 0, %s224
      %s228 = sphi 0, %s227
      %s244 = sphi 0, %s228
    $region4: #{generator_forward.1} parent=1 // loop_header_branch
      %23 = sbr.rel (%p21) target = $region8
    $region5: #{generator_forward.1} parent=1 // loop_body
      %s25 = ssub.s32 %s20, 1
      %s26 = ssub.s32 %s20, 2
      %s27 = sadd.s32 %s20, 1
      %s28 = ssub.s32 %s20, %s27
      %p29 = scmp.eq.s32.totalorder %s28, 0
      %s31 = sadd.s32 %s30, 1
      %s32 = scalar_select %p29, %s30, %s31
      %p35 = pneg %p29
      %p36 = scmp.eq.s32.totalorder %s20, 1
      %p37 = por %p35, %p36
      %p38 = scmp.ne.s32.totalorder %s30, %s33
      %p39 = scmp.eq.s32.totalorder %s20, 0
      %p40 = por %p38, %p39
      %p41 = scmp.ne.s32.totalorder %s30, %s33
      %p42 = scmp.eq.s32.totalorder %s25, 1
      %p43 = por %p41, %p42
      %p44 = scmp.ne.s32.totalorder %s33, %s34
      %p45 = scmp.eq.s32.totalorder %s25, 0
      %p46 = por %p44, %p45
      %p47 = scmp.ne.s32.totalorder %s33, %s34
      %p48 = scmp.eq.s32.totalorder %s26, 1
      %p49 = por %p47, %p48
      %p51 = scmp.ne.s32.totalorder %s34, %s50
      %p52 = scmp.eq.s32.totalorder %s26, 0
      %p53 = por %p51, %p52
      %s55 = sadd.s32 %s54, 1
      %p58 = scmp.eq.s32.totalorder %s20, 1
      %p59 = scmp.ne.s32.totalorder %s54, %s56
      %p60 = scmp.eq.s32.totalorder %s20, 0
      %p61 = por %p59, %p60
      %p62 = scmp.ne.s32.totalorder %s54, %s56
      %p63 = scmp.eq.s32.totalorder %s25, 1
      %p64 = por %p62, %p63
      %p65 = scmp.ne.s32.totalorder %s56, %s57
      %p66 = scmp.eq.s32.totalorder %s25, 0
      %p67 = por %p65, %p66
      %p68 = scmp.ne.s32.totalorder %s56, %s57
      %p69 = scmp.eq.s32.totalorder %s26, 1
      %p70 = por %p68, %p69
      %p72 = scmp.ne.s32.totalorder %s57, %s71
      %p73 = scmp.eq.s32.totalorder %s26, 0
      %p74 = por %p72, %p73
      %s76 = sadd.s32 %s75, 1
      %p79 = scmp.eq.s32.totalorder %s20, 1
      %p80 = scmp.ne.s32.totalorder %s75, %s77
      %p81 = scmp.eq.s32.totalorder %s20, 0
      %p82 = por %p80, %p81
      %p83 = scmp.ne.s32.totalorder %s75, %s77
      %p84 = scmp.eq.s32.totalorder %s25, 1
      %p85 = por %p83, %p84
      %p86 = scmp.ne.s32.totalorder %s77, %s78
      %p87 = scmp.eq.s32.totalorder %s25, 0
      %p88 = por %p86, %p87
      %p89 = scmp.ne.s32.totalorder %s77, %s78
      %p90 = scmp.eq.s32.totalorder %s26, 1
      %p91 = por %p89, %p90
      %p93 = scmp.ne.s32.totalorder %s78, %s92
      %p94 = scmp.eq.s32.totalorder %s26, 0
      %p95 = por %p93, %p94
      %s97 = sadd.s32 %s96, 1
      %p100 = scmp.eq.s32.totalorder %s20, 1
      %p101 = scmp.ne.s32.totalorder %s96, %s98
      %p102 = scmp.eq.s32.totalorder %s20, 0
      %p103 = por %p101, %p102
      %p104 = scmp.ne.s32.totalorder %s96, %s98
      %p105 = scmp.eq.s32.totalorder %s25, 1
      %p106 = por %p104, %p105
      %p107 = scmp.ne.s32.totalorder %s98, %s99
      %p108 = scmp.eq.s32.totalorder %s25, 0
      %p109 = por %p107, %p108
      %p110 = scmp.ne.s32.totalorder %s98, %s99
      %p111 = scmp.eq.s32.totalorder %s26, 1
      %p112 = por %p110, %p111
      %p114 = scmp.ne.s32.totalorder %s99, %s113
      %p115 = scmp.eq.s32.totalorder %s26, 0
      %p116 = por %p114, %p115
      %s118 = sadd.s32 %s117, 1
      %p121 = scmp.eq.s32.totalorder %s20, 1
      %p122 = scmp.ne.s32.totalorder %s117, %s119
      %p123 = scmp.eq.s32.totalorder %s20, 0
      %p124 = por %p122, %p123
      %p125 = scmp.ne.s32.totalorder %s117, %s119
      %p126 = scmp.eq.s32.totalorder %s25, 1
      %p127 = por %p125, %p126
      %p128 = scmp.ne.s32.totalorder %s119, %s120
      %p129 = scmp.eq.s32.totalorder %s25, 0
      %p130 = por %p128, %p129
      %p131 = scmp.ne.s32.totalorder %s119, %s120
      %p132 = scmp.eq.s32.totalorder %s26, 1
      %p133 = por %p131, %p132
      %p135 = scmp.ne.s32.totalorder %s120, %s134
      %p136 = scmp.eq.s32.totalorder %s26, 0
      %p137 = por %p135, %p136
      %s139 = sadd.s32 %s138, 1
      %p142 = scmp.eq.s32.totalorder %s20, 1
      %p143 = scmp.ne.s32.totalorder %s138, %s140
      %p144 = scmp.eq.s32.totalorder %s20, 0
      %p145 = por %p143, %p144
      %p146 = scmp.ne.s32.totalorder %s138, %s140
      %p147 = scmp.eq.s32.totalorder %s25, 1
      %p148 = por %p146, %p147
      %p149 = scmp.ne.s32.totalorder %s140, %s141
      %p150 = scmp.eq.s32.totalorder %s25, 0
      %p151 = por %p149, %p150
      %p152 = scmp.ne.s32.totalorder %s140, %s141
      %p153 = scmp.eq.s32.totalorder %s26, 1
      %p154 = por %p152, %p153
      %p156 = scmp.ne.s32.totalorder %s141, %s155
      %p157 = scmp.eq.s32.totalorder %s26, 0
      %p158 = por %p156, %p157
      %s160 = sadd.s32 %s159, 1
      %p163 = scmp.eq.s32.totalorder %s20, 1
      %p164 = scmp.ne.s32.totalorder %s159, %s161
      %p165 = scmp.eq.s32.totalorder %s20, 0
      %p166 = por %p164, %p165
      %p167 = scmp.ne.s32.totalorder %s159, %s161
      %p168 = scmp.eq.s32.totalorder %s25, 1
      %p169 = por %p167, %p168
      %p170 = scmp.ne.s32.totalorder %s161, %s162
      %p171 = scmp.eq.s32.totalorder %s25, 0
      %p172 = por %p170, %p171
      %p173 = scmp.ne.s32.totalorder %s161, %s162
      %p174 = scmp.eq.s32.totalorder %s26, 1
      %p175 = por %p173, %p174
      %p177 = scmp.ne.s32.totalorder %s162, %s176
      %p178 = scmp.eq.s32.totalorder %s26, 0
      %p179 = por %p177, %p178
      %s181 = sadd.s32 %s180, 1
      %p184 = scmp.eq.s32.totalorder %s20, 1
      %p185 = scmp.ne.s32.totalorder %s180, %s182
      %p186 = scmp.eq.s32.totalorder %s20, 0
      %p187 = por %p185, %p186
      %p188 = scmp.ne.s32.totalorder %s180, %s182
      %p189 = scmp.eq.s32.totalorder %s25, 1
      %p190 = por %p188, %p189
      %p191 = scmp.ne.s32.totalorder %s182, %s183
      %p192 = scmp.eq.s32.totalorder %s25, 0
      %p193 = por %p191, %p192
      %p194 = scmp.ne.s32.totalorder %s182, %s183
      %p195 = scmp.eq.s32.totalorder %s26, 1
      %p196 = por %p194, %p195
      %p198 = scmp.ne.s32.totalorder %s183, %s197
      %p199 = scmp.eq.s32.totalorder %s26, 0
      %p200 = por %p198, %p199
      %s202 = sadd.s32 %s201, 1
      %p205 = scmp.eq.s32.totalorder %s20, 1
      %p206 = scmp.ne.s32.totalorder %s201, %s203
      %p207 = scmp.eq.s32.totalorder %s20, 0
      %p208 = por %p206, %p207
      %p209 = scmp.ne.s32.totalorder %s201, %s203
      %p210 = scmp.eq.s32.totalorder %s25, 1
      %p211 = por %p209, %p210
      %p212 = scmp.ne.s32.totalorder %s203, %s204
      %p213 = scmp.eq.s32.totalorder %s25, 0
      %p214 = por %p212, %p213
      %p215 = scmp.ne.s32.totalorder %s203, %s204
      %p216 = scmp.eq.s32.totalorder %s26, 1
      %p217 = por %p215, %p216
      %p219 = scmp.ne.s32.totalorder %s204, %s218
      %p220 = scmp.eq.s32.totalorder %s26, 0
      %p221 = por %p219, %p220
      %s222 = ssub.s32 %s20, %s27
      %p223 = scmp.eq.s32.totalorder %s222, 0
      %s225 = sadd.s32 %s224, 1
      %s226 = scalar_select %p223, %s224, %s225
      %p229 = pneg %p223
      %p230 = scmp.eq.s32.totalorder %s20, 1
      %p231 = por %p229, %p230
      %p232 = scmp.ne.s32.totalorder %s224, %s227
      %p233 = scmp.eq.s32.totalorder %s20, 0
      %p234 = por %p232, %p233
      %p235 = scmp.ne.s32.totalorder %s224, %s227
      %p236 = scmp.eq.s32.totalorder %s25, 1
      %p237 = por %p235, %p236
      %p238 = scmp.ne.s32.totalorder %s227, %s228
      %p239 = scmp.eq.s32.totalorder %s25, 0
      %p240 = por %p238, %p239
      %p241 = scmp.ne.s32.totalorder %s227, %s228
      %p242 = scmp.eq.s32.totalorder %s26, 1
      %p243 = por %p241, %p242
      %p245 = scmp.ne.s32.totalorder %s228, %s244
      %p246 = scmp.eq.s32.totalorder %s26, 0
      %p247 = por %p245, %p246
      %p248 = scmp.le.s32.totalorder 1, %s20
      %p249 = scmp.lt.s32.totalorder %s20, 3
      %p250 = pnand %p248, %p249
      %p251 = pneg %p250
      // Predicated region
      $region9: #{generator_forward.1} parent=5 // pred_check
        _
      $region10: #{generator_forward.1} parent=5 // pred_check_branch
        %253 = sbr.rel (%p250) target = $region12
      $region11: #{generator_forward.1} parent=5 // pred_region
        %s254 = ssub.s32 %s20, 1
        // Predicated region
        $region13: #{generator_forward.1} parent=11 // pred_check
          %p255 = pneg %p67
        $region14: #{generator_forward.1} parent=11 // pred_check_branch
          %257 = sbr.rel (%p255) target = $region16
        $region15: #{generator_forward.1} parent=11 // pred_region
          %s259 = ssub.s32 2048, 2048
          %260 = vsyncadd [#allocation3], %s259
          %s261 = sshll.u32 [#allocation2], 4
          %s262 = int_to_ptr.vmem [resolvable:$true] %s261
          %267 = dma.hbm_to_vmem [thread:$0]  %s1, 2048, %s262, [#allocation3], 128, 128, 8
        $region16: #{generator_forward.1} parent=11 // pred_fallthru
          _
        // Predicated region
        $region17: #{generator_forward.1} parent=11 // pred_check
          %p268 = pneg %p88
        $region18: #{generator_forward.1} parent=11 // pred_check_branch
          %270 = sbr.rel (%p268) target = $region20
        $region19: #{generator_forward.1} parent=11 // pred_region
          %s272 = ssub.s32 32, 32
          %273 = vsyncadd [#allocation5], %s272
          %s275 = sshll.u32 [#allocation4], 4
          %s276 = int_to_ptr.vmem [resolvable:$true] %s275
          %278 = dma.hbm_to_vmem [thread:$0]  %s2, 32, %s276, [#allocation5]
        $region20: #{generator_forward.1} parent=11 // pred_fallthru
          _
        // Predicated region
        $region21: #{generator_forward.1} parent=11 // pred_check
          %p279 = pneg %p109
        $region22: #{generator_forward.1} parent=11 // pred_check_branch
          %281 = sbr.rel (%p279) target = $region24
        $region23: #{generator_forward.1} parent=11 // pred_region
          %s283 = ssub.s32 8192, 8192
          %284 = vsyncadd [#allocation5], %s283
          %s285 = sshll.u32 [#allocation6], 4
          %s286 = int_to_ptr.vmem [resolvable:$true] %s285
          %291 = dma.hbm_to_vmem [thread:$0]  %s3, 8192, %s286, [#allocation5], 256, 256, 16
        $region24: #{generator_forward.1} parent=11 // pred_fallthru
          _
        // Predicated region
        $region25: #{generator_forward.1} parent=11 // pred_check
          %p292 = pneg %p130
        $region26: #{generator_forward.1} parent=11 // pred_check_branch
          %294 = sbr.rel (%p292) target = $region28
        $region27: #{generator_forward.1} parent=11 // pred_region
          %s296 = ssub.s32 64, 64
          %297 = vsyncadd [#allocation8], %s296
          %s299 = sshll.u32 [#allocation7], 4
          %s300 = int_to_ptr.vmem [resolvable:$true] %s299
          %302 = dma.hbm_to_vmem [thread:$0]  %s4, 64, %s300, [#allocation8]
        $region28: #{generator_forward.1} parent=11 // pred_fallthru
          _
        // Predicated region
        $region29: #{generator_forward.1} parent=11 // pred_check
          %p303 = pneg %p151
        $region30: #{generator_forward.1} parent=11 // pred_check_branch
          %305 = sbr.rel (%p303) target = $region32
        $region31: #{generator_forward.1} parent=11 // pred_region
          %s307 = ssub.s32 32768, 32768
          %308 = vsyncadd [#allocation8], %s307
          %s309 = sshll.u32 [#allocation9], 4
          %s310 = int_to_ptr.vmem [resolvable:$true] %s309
          %315 = dma.hbm_to_vmem [thread:$0]  %s5, 32768, %s310, [#allocation8], 512, 512, 32
        $region32: #{generator_forward.1} parent=11 // pred_fallthru
          _
        // Predicated region
        $region33: #{generator_forward.1} parent=11 // pred_check
          %p316 = pneg %p172
        $region34: #{generator_forward.1} parent=11 // pred_check_branch
          %318 = sbr.rel (%p316) target = $region36
        $region35: #{generator_forward.1} parent=11 // pred_region
          %s320 = ssub.s32 128, 128
          %321 = vsyncadd [#allocation11], %s320
          %s323 = sshll.u32 [#allocation10], 4
          %s324 = int_to_ptr.vmem [resolvable:$true] %s323
          %326 = dma.hbm_to_vmem [thread:$0]  %s6, 128, %s324, [#allocation11]
        $region36: #{generator_forward.1} parent=11 // pred_fallthru
          _
        // Predicated region
        $region37: #{generator_forward.1} parent=11 // pred_check
          %p327 = pneg %p193
        $region38: #{generator_forward.1} parent=11 // pred_check_branch
          %329 = sbr.rel (%p327) target = $region40
        $region39: #{generator_forward.1} parent=11 // pred_region
          %s331 = ssub.s32 57344, 57344
          %332 = vsyncadd [#allocation11], %s331
          %s333 = sshll.u32 [#allocation12], 4
          %s334 = int_to_ptr.vmem [resolvable:$true] %s333
          %339 = dma.hbm_to_vmem [thread:$0]  %s7, 57344, %s334, [#allocation11], 448, 448, 28
        $region40: #{generator_forward.1} parent=11 // pred_fallthru
          _
        // Predicated region
        $region41: #{generator_forward.1} parent=11 // pred_check
          %p340 = pneg %p214
        $region42: #{generator_forward.1} parent=11 // pred_check_branch
          %342 = sbr.rel (%p340) target = $region44
        $region43: #{generator_forward.1} parent=11 // pred_region
          %s344 = ssub.s32 112, 112
          %345 = vsyncadd [#allocation14], %s344
          %s347 = sshll.u32 [#allocation13], 4
          %s348 = int_to_ptr.vmem [resolvable:$true] %s347
          %350 = dma.hbm_to_vmem [thread:$0]  %s8, 112, %s348, [#allocation14]
        $region44: #{generator_forward.1} parent=11 // pred_fallthru
          _
      $region12: #{generator_forward.1} parent=5 // pred_fallthru
        _
      %p351 = scmp.lt.s32.totalorder %s20, 2
      // Predicated region
      $region45: #{generator_forward.1} parent=5 // pred_check
        %p352 = pneg %p351
      $region46: #{generator_forward.1} parent=5 // pred_check_branch
        %354 = sbr.rel (%p352) target = $region48
      $region47: #{generator_forward.1} parent=5 // pred_region
        // Predicated region
        $region49: #{generator_forward.1} parent=47 // pred_check
          %p355 = pneg %p40
        $region50: #{generator_forward.1} parent=47 // pred_check_branch
          %357 = sbr.rel (%p355) target = $region52
        $region51: #{generator_forward.1} parent=47 // pred_region
          %s358 = smul.u32 4, %s20
          %p359 = scmp.lt.s32.totalorder %s358, 7
          %s360 = scalar_select %p359, %s358, 7
          %s361 = smul.addr %s360, 4
          %s362 = scalar_lea.vmem %s0, %s361
          %s363 = smul.u32 4, %s20
        $region52: #{generator_forward.1} parent=47 // pred_fallthru
          _
      $region48: #{generator_forward.1} parent=5 // pred_fallthru
        _
      %p364 = scmp.le.s32.totalorder 1, %s20
      %p365 = scmp.lt.s32.totalorder %s20, 3
      %p366 = pnand %p364, %p365
      %p367 = pneg %p366
      // Predicated region
      $region53: #{generator_forward.1} parent=5 // pred_check
        _
      $region54: #{generator_forward.1} parent=5 // pred_check_branch
        %369 = sbr.rel (%p366) target = $region56
      $region55: #{generator_forward.1} parent=5 // pred_region
        %s370 = ssub.s32 %s20, 1
        // Predicated region
        $region57: #{generator_forward.1} parent=55 // pred_check
          %p371 = pneg %p67
        $region58: #{generator_forward.1} parent=55 // pred_check_branch
          %373 = sbr.rel (%p371) target = $region60
        $region59: #{generator_forward.1} parent=55 // pred_region
          %374 = dma.done [#allocation3], 2048
        $region60: #{generator_forward.1} parent=55 // pred_fallthru
          _
        // Predicated region
        $region61: #{generator_forward.1} parent=55 // pred_check
          %p375 = pneg %p88
        $region62: #{generator_forward.1} parent=55 // pred_check_branch
          %377 = sbr.rel (%p375) target = $region64
        $region63: #{generator_forward.1} parent=55 // pred_region
          %378 = dma.done [#allocation5], 32
        $region64: #{generator_forward.1} parent=55 // pred_fallthru
          _
        // Predicated region
        $region65: #{generator_forward.1} parent=55 // pred_check
          %p379 = pneg %p109
        $region66: #{generator_forward.1} parent=55 // pred_check_branch
          %381 = sbr.rel (%p379) target = $region68
        $region67: #{generator_forward.1} parent=55 // pred_region
          %382 = dma.done [#allocation5], 8192
        $region68: #{generator_forward.1} parent=55 // pred_fallthru
          _
        // Predicated region
        $region69: #{generator_forward.1} parent=55 // pred_check
          %p383 = pneg %p130
        $region70: #{generator_forward.1} parent=55 // pred_check_branch
          %385 = sbr.rel (%p383) target = $region72
        $region71: #{generator_forward.1} parent=55 // pred_region
          %386 = dma.done [#allocation8], 64
        $region72: #{generator_forward.1} parent=55 // pred_fallthru
          _
        // Predicated region
        $region73: #{generator_forward.1} parent=55 // pred_check
          %p387 = pneg %p151
        $region74: #{generator_forward.1} parent=55 // pred_check_branch
          %389 = sbr.rel (%p387) target = $region76
        $region75: #{generator_forward.1} parent=55 // pred_region
          %390 = dma.done [#allocation8], 32768
        $region76: #{generator_forward.1} parent=55 // pred_fallthru
          _
        // Predicated region
        $region77: #{generator_forward.1} parent=55 // pred_check
          %p391 = pneg %p172
        $region78: #{generator_forward.1} parent=55 // pred_check_branch
          %393 = sbr.rel (%p391) target = $region80
        $region79: #{generator_forward.1} parent=55 // pred_region
          %394 = dma.done [#allocation11], 128
        $region80: #{generator_forward.1} parent=55 // pred_fallthru
          _
        // Predicated region
        $region81: #{generator_forward.1} parent=55 // pred_check
          %p395 = pneg %p193
        $region82: #{generator_forward.1} parent=55 // pred_check_branch
          %397 = sbr.rel (%p395) target = $region84
        $region83: #{generator_forward.1} parent=55 // pred_region
          %398 = dma.done [#allocation11], 57344
        $region84: #{generator_forward.1} parent=55 // pred_fallthru
          _
        // Predicated region
        $region85: #{generator_forward.1} parent=55 // pred_check
          %p399 = pneg %p214
        $region86: #{generator_forward.1} parent=55 // pred_check_branch
          %401 = sbr.rel (%p399) target = $region88
        $region87: #{generator_forward.1} parent=55 // pred_region
          %402 = dma.done [#allocation14], 112
        $region88: #{generator_forward.1} parent=55 // pred_fallthru
          _
        %s403 = smul.u32 4, %s25
        %p404 = scmp.lt.s32.totalorder %s403, 7
        %s405 = scalar_select %p404, %s403, 7
        %s406 = smul.addr %s405, 4
        %s407 = scalar_lea.vmem %s0, %s406
        %p408 = pneg %p46
        %p409 = pneg %p43
        %p410 = pneg %p67
        %p411 = pneg %p64
        %p412 = pneg %p88
        %p413 = pneg %p85
        %p414 = pneg %p109
        %p415 = pneg %p106
        %p416 = pneg %p130
        %p417 = pneg %p127
        %p418 = pneg %p151
        %p419 = pneg %p148
        %p420 = pneg %p172
        %p421 = pneg %p169
        %p422 = pneg %p193
        %p423 = pneg %p190
        %p424 = pneg %p214
        %p425 = pneg %p211
        %p426 = pneg %p240
        %p427 = pneg %p237
        %s428 = smul.u32 4, %s25
        %p429 = scmp.lt.s32.totalorder %s428, 7
        %s430 = scalar_select %p429, %s428, 7
        %s431 = smul.addr %s430, 7
        %s432 = smul.addr %s431, 4
        %s433 = scalar_lea.vmem %s9, %s432
        %s434 = smul.u32 4, %s25
        %p435 = scmp.lt.s32.totalorder %s434, 7
        %s436 = scalar_select %p435, %s434, 7
        %s437 = smul.addr %s436, 4
        %s438 = scalar_lea.vmem %s0, %s437
        %s439 = smul.u32 4, %s25
        %s440 = smul.u32 4, %s25
        %p441 = scmp.lt.s32.totalorder %s440, 7
        %s442 = scalar_select %p441, %s440, 7
        %s443 = smul.addr %s442, 7
        %s444 = smul.addr %s443, 4
        %s445 = scalar_lea.vmem %s9, %s444
        %s446 = smul.u32 4, %s25
        %v448 = vld [vmem:[#allocation4] sm:$0x3]
        %v449 = vld [vmem:[#allocation7] sm:$0xf]
        %v450 = vld [vmem:[#allocation10] sm:$0xff]
        %v451 = vld [vmem:[#allocation13] sm:$0xff]
        %v452 = vld [vmem:[%s438] sm:$0xf]
        %v453 = vld [vmem:[%s438 + $0x4] sm:$0xf]
        %v454 = vld [vmem:[#allocation2] sm:$0xff]
        %v455 = vld [vmem:[#allocation2 + $0x8] sm:$0xff]
        %v456 = vld [vmem:[#allocation2 + $0x10] sm:$0xff]
        %v457 = vld [vmem:[#allocation2 + $0x18] sm:$0xff]
        %v458 = vld [vmem:[#allocation2 + $0x20] sm:$0xff]
        %v459 = vld [vmem:[#allocation2 + $0x28] sm:$0xff]
        %v460 = vld [vmem:[#allocation2 + $0x30] sm:$0xff]
        %v461 = vld [vmem:[#allocation2 + $0x38] sm:$0xff]
        %v462 = vld [vmem:[#allocation2 + $0x40] sm:$0xff]
        %v463 = vld [vmem:[#allocation2 + $0x48] sm:$0xff]
        %v464 = vld [vmem:[#allocation2 + $0x50] sm:$0xff]
        %v465 = vld [vmem:[#allocation2 + $0x58] sm:$0xff]
        %v466 = vld [vmem:[#allocation2 + $0x60] sm:$0xff]
        %v467 = vld [vmem:[#allocation2 + $0x68] sm:$0xff]
        %v468 = vld [vmem:[#allocation2 + $0x70] sm:$0xff]
        %v469 = vld [vmem:[#allocation2 + $0x78] sm:$0xff]
        %v471 = vlaneseq
        %v472 = vshrl.u32 %v471, 7
        %v473 = vsub.s32 0, %v472
        %v474 = vrot.slane %v448, %v473
        %v475 = vlaneseq
        %v476 = vshrl.u32 %v475, 7
        %v477 = vsub.s32 1, %v476
        %v478 = vrot.slane %v448, %v477
        %v483 = vunpack.c.l.b16 %v452
        %v484 = vunpack.c.l.b16 %v453
        %v485 = vpack.c.b16 %v484, %v483
        %v503 = vunpack.c.l.b16 %v454
        %v504 = vunpack.c.h.b16 %v454
        %v505 = vunpack.c.l.b16 %v455
        %v506 = vunpack.c.h.b16 %v455
        %v507 = vunpack.c.l.b16 %v456
        %v508 = vunpack.c.h.b16 %v456
        %v509 = vunpack.c.l.b16 %v457
        %v510 = vunpack.c.h.b16 %v457
        %v511 = vunpack.c.l.b16 %v458
        %v512 = vunpack.c.h.b16 %v458
        %v513 = vunpack.c.l.b16 %v459
        %v514 = vunpack.c.h.b16 %v459
        %v515 = vunpack.c.l.b16 %v460
        %v516 = vunpack.c.h.b16 %v460
        %v517 = vunpack.c.l.b16 %v461
        %v518 = vunpack.c.h.b16 %v461
        %v519 = vunpack.c.l.b16 %v462
        %v520 = vunpack.c.h.b16 %v462
        %v521 = vunpack.c.l.b16 %v463
        %v522 = vunpack.c.h.b16 %v463
        %v523 = vunpack.c.l.b16 %v464
        %v524 = vunpack.c.h.b16 %v464
        %v525 = vunpack.c.l.b16 %v465
        %v526 = vunpack.c.h.b16 %v465
        %v527 = vunpack.c.l.b16 %v466
        %v528 = vunpack.c.h.b16 %v466
        %v529 = vunpack.c.l.b16 %v467
        %v530 = vunpack.c.h.b16 %v467
        %v531 = vunpack.c.l.b16 %v468
        %v532 = vunpack.c.h.b16 %v468
        %v533 = vunpack.c.l.b16 %v469
        %v534 = vunpack.c.h.b16 %v469
        %v535 = vpack.c.b16 %v505, %v503
        %v536 = vpack.c.b16 %v506, %v504
        %v537 = vpack.c.b16 %v509, %v507
        %v538 = vpack.c.b16 %v510, %v508
        %v539 = vpack.c.b16 %v513, %v511
        %v540 = vpack.c.b16 %v514, %v512
        %v541 = vpack.c.b16 %v517, %v515
        %v542 = vpack.c.b16 %v518, %v516
        %v543 = vpack.c.b16 %v521, %v519
        %v544 = vpack.c.b16 %v522, %v520
        %v545 = vpack.c.b16 %v525, %v523
        %v546 = vpack.c.b16 %v526, %v524
        %v547 = vpack.c.b16 %v529, %v527
        %v548 = vpack.c.b16 %v530, %v528
        %v549 = vpack.c.b16 %v533, %v531
        %v550 = vpack.c.b16 %v534, %v532
        %567 = vmatprep.subr.bf16.mxu0 %v550
        %568 = vmatpush1.bf16.msra.mxu0 %v549
        %569 = vmatprep.subr.bf16.mxu0 %v548
        %570 = vmatpush1.bf16.msra.mxu0 %v547
        %571 = vmatprep.subr.bf16.mxu0 %v546
        %572 = vmatpush1.bf16.msra.mxu0 %v545
        %573 = vmatprep.subr.bf16.mxu0 %v544
        %574 = vmatpush1.bf16.msra.mxu0 %v543
        %575 = vmatprep.subr.bf16.mxu0 %v542
        %576 = vmatpush1.bf16.msra.mxu0 %v541
        %577 = vmatprep.subr.bf16.mxu0 %v540
        %578 = vmatpush1.bf16.msra.mxu0 %v539
        %579 = vmatprep.subr.bf16.mxu0 %v538
        %580 = vmatpush1.bf16.msra.mxu0 %v537
        %581 = vmatprep.subr.bf16.mxu0 %v536
        %582 = vmatpush1.bf16.msra.mxu0 %v535
        %583 = vmatprep.subr.bf16.mxu0 0
        %584 = vmatpush2.bf16.msra.mxu0 0
        %585 = vmatprep.subr.bf16.mxu0 0
        %586 = vmatpush2.bf16.msra.mxu0 0
        %587 = vmatprep.subr.bf16.mxu0 0
        %588 = vmatpush2.bf16.msra.mxu0 0
        %589 = vmatprep.subr.bf16.mxu0 0
        %590 = vmatpush2.bf16.msra.mxu0 0
        %591 = vmatprep.subr.bf16.mxu0 0
        %592 = vmatpush2.bf16.msra.mxu0 0
        %593 = vmatprep.subr.bf16.mxu0 0
        %594 = vmatpush2.bf16.msra.mxu0 0
        %595 = vmatprep.subr.bf16.mxu0 0
        %596 = vmatpush2.bf16.msra.mxu0 0
        %597 = vmatprep.subr.bf16.mxu0 0
        %598 = vmatpush2.bf16.msra.mxu0 0
        %599 = vmatprep.mubr.bf16.mxu0 0
        %600 = vmatmul.mubr.bf16.gmra.mxu0 %v485
        %v601 = vpop.f32.mrf.mxu0
        %v602 = vadd.f32 %v474, %v601
        %v603 = vpop.f32.mrf.mxu0
        %v604 = vadd.f32 %v478, %v603
        %v605 = vpop.f32.mrf.mxu0
        %v606 = vadd.f32 %v474, %v605
        %v607 = vpop.f32.mrf.mxu0
        %v608 = vadd.f32 %v478, %v607
        %609 = vdwg.mxu0
        %v610 = vmul.f32 %v602, 0.2
        %v611 = vmul.f32 %v604, 0.2
        %v612 = vmul.f32 %v606, 0.2
        %v613 = vmul.f32 %v608, 0.2
        %v614 = vmax.f32 %v602, %v610
        %v615 = vmax.f32 %v604, %v611
        %v616 = vmax.f32 %v606, %v612
        %v617 = vmax.f32 %v608, %v613
        %v618 = vpack.c.bf16 %v616, %v614
        %v619 = vpack.c.bf16 %v617, %v615
        %v620 = vld [vmem:[#allocation6] sm:$0xff]
        %v621 = vld [vmem:[#allocation6 + $0x8] sm:$0xff]
        %v622 = vld [vmem:[#allocation6 + $0x10] sm:$0xff]
        %v623 = vld [vmem:[#allocation6 + $0x18] sm:$0xff]
        %v624 = vld [vmem:[#allocation6 + $0x20] sm:$0xff]
        %v625 = vld [vmem:[#allocation6 + $0x28] sm:$0xff]
        %v626 = vld [vmem:[#allocation6 + $0x30] sm:$0xff]
        %v627 = vld [vmem:[#allocation6 + $0x38] sm:$0xff]
        %v628 = vld [vmem:[#allocation6 + $0x40] sm:$0xff]
        %v629 = vld [vmem:[#allocation6 + $0x48] sm:$0xff]
        %v630 = vld [vmem:[#allocation6 + $0x50] sm:$0xff]
        %v631 = vld [vmem:[#allocation6 + $0x58] sm:$0xff]
        %v632 = vld [vmem:[#allocation6 + $0x60] sm:$0xff]
        %v633 = vld [vmem:[#allocation6 + $0x68] sm:$0xff]
        %v634 = vld [vmem:[#allocation6 + $0x70] sm:$0xff]
        %v635 = vld [vmem:[#allocation6 + $0x78] sm:$0xff]
        %v636 = vld [vmem:[#allocation6 + $0x80] sm:$0xff]
        %v637 = vld [vmem:[#allocation6 + $0x88] sm:$0xff]
        %v638 = vld [vmem:[#allocation6 + $0x90] sm:$0xff]
        %v639 = vld [vmem:[#allocation6 + $0x98] sm:$0xff]
        %v640 = vld [vmem:[#allocation6 + $0xa0] sm:$0xff]
        %v641 = vld [vmem:[#allocation6 + $0xa8] sm:$0xff]
        %v642 = vld [vmem:[#allocation6 + $0xb0] sm:$0xff]
        %v643 = vld [vmem:[#allocation6 + $0xb8] sm:$0xff]
        %v644 = vld [vmem:[#allocation6 + $0xc0] sm:$0xff]
        %v645 = vld [vmem:[#allocation6 + $0xc8] sm:$0xff]
        %v646 = vld [vmem:[#allocation6 + $0xd0] sm:$0xff]
        %v647 = vld [vmem:[#allocation6 + $0xd8] sm:$0xff]
        %v648 = vld [vmem:[#allocation6 + $0xe0] sm:$0xff]
        %v649 = vld [vmem:[#allocation6 + $0xe8] sm:$0xff]
        %v650 = vld [vmem:[#allocation6 + $0xf0] sm:$0xff]
        %v651 = vld [vmem:[#allocation6 + $0xf8] sm:$0xff]
        %v652 = vld [vmem:[#allocation6 + $0x100] sm:$0xff]
        %v653 = vld [vmem:[#allocation6 + $0x108] sm:$0xff]
        %v654 = vld [vmem:[#allocation6 + $0x110] sm:$0xff]
        %v655 = vld [vmem:[#allocation6 + $0x118] sm:$0xff]
        %v656 = vld [vmem:[#allocation6 + $0x120] sm:$0xff]
        %v657 = vld [vmem:[#allocation6 + $0x128] sm:$0xff]
        %v658 = vld [vmem:[#allocation6 + $0x130] sm:$0xff]
        %v659 = vld [vmem:[#allocation6 + $0x138] sm:$0xff]
        %v660 = vld [vmem:[#allocation6 + $0x140] sm:$0xff]
        %v661 = vld [vmem:[#allocation6 + $0x148] sm:$0xff]
        %v662 = vld [vmem:[#allocation6 + $0x150] sm:$0xff]
        %v663 = vld [vmem:[#allocation6 + $0x158] sm:$0xff]
        %v664 = vld [vmem:[#allocation6 + $0x160] sm:$0xff]
        %v665 = vld [vmem:[#allocation6 + $0x168] sm:$0xff]
        %v666 = vld [vmem:[#allocation6 + $0x170] sm:$0xff]
        %v667 = vld [vmem:[#allocation6 + $0x178] sm:$0xff]
        %v668 = vld [vmem:[#allocation6 + $0x180] sm:$0xff]
        %v669 = vld [vmem:[#allocation6 + $0x188] sm:$0xff]
        %v670 = vld [vmem:[#allocation6 + $0x190] sm:$0xff]
        %v671 = vld [vmem:[#allocation6 + $0x198] sm:$0xff]
        %v672 = vld [vmem:[#allocation6 + $0x1a0] sm:$0xff]
        %v673 = vld [vmem:[#allocation6 + $0x1a8] sm:$0xff]
        %v674 = vld [vmem:[#allocation6 + $0x1b0] sm:$0xff]
        %v675 = vld [vmem:[#allocation6 + $0x1b8] sm:$0xff]
        %v676 = vld [vmem:[#allocation6 + $0x1c0] sm:$0xff]
        %v677 = vld [vmem:[#allocation6 + $0x1c8] sm:$0xff]
        %v678 = vld [vmem:[#allocation6 + $0x1d0] sm:$0xff]
        %v679 = vld [vmem:[#allocation6 + $0x1d8] sm:$0xff]
        %v680 = vld [vmem:[#allocation6 + $0x1e0] sm:$0xff]
        %v681 = vld [vmem:[#allocation6 + $0x1e8] sm:$0xff]
        %v682 = vld [vmem:[#allocation6 + $0x1f0] sm:$0xff]
        %v683 = vld [vmem:[#allocation6 + $0x1f8] sm:$0xff]
        %v685 = vlaneseq
        %v686 = vshrl.u32 %v685, 7
        %v687 = vsub.s32 0, %v686
        %v688 = vrot.slane %v449, %v687
        %v689 = vlaneseq
        %v690 = vshrl.u32 %v689, 7
        %v691 = vsub.s32 1, %v690
        %v692 = vrot.slane %v449, %v691
        %v693 = vlaneseq
        %v694 = vshrl.u32 %v693, 7
        %v695 = vsub.s32 2, %v694
        %v696 = vrot.slane %v449, %v695
        %v697 = vlaneseq
        %v698 = vshrl.u32 %v697, 7
        %v699 = vsub.s32 3, %v698
        %v700 = vrot.slane %v449, %v699
        %v769 = vunpack.c.l.b16 %v620
        %v770 = vunpack.c.h.b16 %v620
        %v771 = vunpack.c.l.b16 %v621
        %v772 = vunpack.c.h.b16 %v621
        %v773 = vunpack.c.l.b16 %v622
        %v774 = vunpack.c.h.b16 %v622
        %v775 = vunpack.c.l.b16 %v623
        %v776 = vunpack.c.h.b16 %v623
        %v777 = vunpack.c.l.b16 %v624
        %v778 = vunpack.c.h.b16 %v624
        %v779 = vunpack.c.l.b16 %v625
        %v780 = vunpack.c.h.b16 %v625
        %v781 = vunpack.c.l.b16 %v626
        %v782 = vunpack.c.h.b16 %v626
        %v783 = vunpack.c.l.b16 %v627
        %v784 = vunpack.c.h.b16 %v627
        %v785 = vunpack.c.l.b16 %v628
        %v786 = vunpack.c.h.b16 %v628
        %v787 = vunpack.c.l.b16 %v629
        %v788 = vunpack.c.h.b16 %v629
        %v789 = vunpack.c.l.b16 %v630
        %v790 = vunpack.c.h.b16 %v630
        %v791 = vunpack.c.l.b16 %v631
        %v792 = vunpack.c.h.b16 %v631
        %v793 = vunpack.c.l.b16 %v632
        %v794 = vunpack.c.h.b16 %v632
        %v795 = vunpack.c.l.b16 %v633
        %v796 = vunpack.c.h.b16 %v633
        %v797 = vunpack.c.l.b16 %v634
        %v798 = vunpack.c.h.b16 %v634
        %v799 = vunpack.c.l.b16 %v635
        %v800 = vunpack.c.h.b16 %v635
        %v801 = vunpack.c.l.b16 %v636
        %v802 = vunpack.c.h.b16 %v636
        %v803 = vunpack.c.l.b16 %v637
        %v804 = vunpack.c.h.b16 %v637
        %v805 = vunpack.c.l.b16 %v638
        %v806 = vunpack.c.h.b16 %v638
        %v807 = vunpack.c.l.b16 %v639
        %v808 = vunpack.c.h.b16 %v639
        %v809 = vunpack.c.l.b16 %v640
        %v810 = vunpack.c.h.b16 %v640
        %v811 = vunpack.c.l.b16 %v641
        %v812 = vunpack.c.h.b16 %v641
        %v813 = vunpack.c.l.b16 %v642
        %v814 = vunpack.c.h.b16 %v642
        %v815 = vunpack.c.l.b16 %v643
        %v816 = vunpack.c.h.b16 %v643
        %v817 = vunpack.c.l.b16 %v644
        %v818 = vunpack.c.h.b16 %v644
        %v819 = vunpack.c.l.b16 %v645
        %v820 = vunpack.c.h.b16 %v645
        %v821 = vunpack.c.l.b16 %v646
        %v822 = vunpack.c.h.b16 %v646
        %v823 = vunpack.c.l.b16 %v647
        %v824 = vunpack.c.h.b16 %v647
        %v825 = vunpack.c.l.b16 %v648
        %v826 = vunpack.c.h.b16 %v648
        %v827 = vunpack.c.l.b16 %v649
        %v828 = vunpack.c.h.b16 %v649
        %v829 = vunpack.c.l.b16 %v650
        %v830 = vunpack.c.h.b16 %v650
        %v831 = vunpack.c.l.b16 %v651
        %v832 = vunpack.c.h.b16 %v651
        %v833 = vunpack.c.l.b16 %v652
        %v834 = vunpack.c.h.b16 %v652
        %v835 = vunpack.c.l.b16 %v653
        %v836 = vunpack.c.h.b16 %v653
        %v837 = vunpack.c.l.b16 %v654
        %v838 = vunpack.c.h.b16 %v654
        %v839 = vunpack.c.l.b16 %v655
        %v840 = vunpack.c.h.b16 %v655
        %v841 = vunpack.c.l.b16 %v656
        %v842 = vunpack.c.h.b16 %v656
        %v843 = vunpack.c.l.b16 %v657
        %v844 = vunpack.c.h.b16 %v657
        %v845 = vunpack.c.l.b16 %v658
        %v846 = vunpack.c.h.b16 %v658
        %v847 = vunpack.c.l.b16 %v659
        %v848 = vunpack.c.h.b16 %v659
        %v849 = vunpack.c.l.b16 %v660
        %v850 = vunpack.c.h.b16 %v660
        %v851 = vunpack.c.l.b16 %v661
        %v852 = vunpack.c.h.b16 %v661
        %v853 = vunpack.c.l.b16 %v662
        %v854 = vunpack.c.h.b16 %v662
        %v855 = vunpack.c.l.b16 %v663
        %v856 = vunpack.c.h.b16 %v663
        %v857 = vunpack.c.l.b16 %v664
        %v858 = vunpack.c.h.b16 %v664
        %v859 = vunpack.c.l.b16 %v665
        %v860 = vunpack.c.h.b16 %v665
        %v861 = vunpack.c.l.b16 %v666
        %v862 = vunpack.c.h.b16 %v666
        %v863 = vunpack.c.l.b16 %v667
        %v864 = vunpack.c.h.b16 %v667
        %v865 = vunpack.c.l.b16 %v668
        %v866 = vunpack.c.h.b16 %v668
        %v867 = vunpack.c.l.b16 %v669
        %v868 = vunpack.c.h.b16 %v669
        %v869 = vunpack.c.l.b16 %v670
        %v870 = vunpack.c.h.b16 %v670
        %v871 = vunpack.c.l.b16 %v671
        %v872 = vunpack.c.h.b16 %v671
        %v873 = vunpack.c.l.b16 %v672
        %v874 = vunpack.c.h.b16 %v672
        %v875 = vunpack.c.l.b16 %v673
        %v876 = vunpack.c.h.b16 %v673
        %v877 = vunpack.c.l.b16 %v674
        %v878 = vunpack.c.h.b16 %v674
        %v879 = vunpack.c.l.b16 %v675
        %v880 = vunpack.c.h.b16 %v675
        %v881 = vunpack.c.l.b16 %v676
        %v882 = vunpack.c.h.b16 %v676
        %v883 = vunpack.c.l.b16 %v677
        %v884 = vunpack.c.h.b16 %v677
        %v885 = vunpack.c.l.b16 %v678
        %v886 = vunpack.c.h.b16 %v678
        %v887 = vunpack.c.l.b16 %v679
        %v888 = vunpack.c.h.b16 %v679
        %v889 = vunpack.c.l.b16 %v680
        %v890 = vunpack.c.h.b16 %v680
        %v891 = vunpack.c.l.b16 %v681
        %v892 = vunpack.c.h.b16 %v681
        %v893 = vunpack.c.l.b16 %v682
        %v894 = vunpack.c.h.b16 %v682
        %v895 = vunpack.c.l.b16 %v683
        %v896 = vunpack.c.h.b16 %v683
        %v897 = vpack.c.b16 %v773, %v769
        %v898 = vpack.c.b16 %v774, %v770
        %v899 = vpack.c.b16 %v775, %v771
        %v900 = vpack.c.b16 %v776, %v772
        %v901 = vpack.c.b16 %v781, %v777
        %v902 = vpack.c.b16 %v782, %v778
        %v903 = vpack.c.b16 %v783, %v779
        %v904 = vpack.c.b16 %v784, %v780
        %v905 = vpack.c.b16 %v789, %v785
        %v906 = vpack.c.b16 %v790, %v786
        %v907 = vpack.c.b16 %v791, %v787
        %v908 = vpack.c.b16 %v792, %v788
        %v909 = vpack.c.b16 %v797, %v793
        %v910 = vpack.c.b16 %v798, %v794
        %v911 = vpack.c.b16 %v799, %v795
        %v912 = vpack.c.b16 %v800, %v796
        %v913 = vpack.c.b16 %v805, %v801
        %v914 = vpack.c.b16 %v806, %v802
        %v915 = vpack.c.b16 %v807, %v803
        %v916 = vpack.c.b16 %v808, %v804
        %v917 = vpack.c.b16 %v813, %v809
        %v918 = vpack.c.b16 %v814, %v810
        %v919 = vpack.c.b16 %v815, %v811
        %v920 = vpack.c.b16 %v816, %v812
        %v921 = vpack.c.b16 %v821, %v817
        %v922 = vpack.c.b16 %v822, %v818
        %v923 = vpack.c.b16 %v823, %v819
        %v924 = vpack.c.b16 %v824, %v820
        %v925 = vpack.c.b16 %v829, %v825
        %v926 = vpack.c.b16 %v830, %v826
        %v927 = vpack.c.b16 %v831, %v827
        %v928 = vpack.c.b16 %v832, %v828
        %v929 = vpack.c.b16 %v837, %v833
        %v930 = vpack.c.b16 %v838, %v834
        %v931 = vpack.c.b16 %v839, %v835
        %v932 = vpack.c.b16 %v840, %v836
        %v933 = vpack.c.b16 %v845, %v841
        %v934 = vpack.c.b16 %v846, %v842
        %v935 = vpack.c.b16 %v847, %v843
        %v936 = vpack.c.b16 %v848, %v844
        %v937 = vpack.c.b16 %v853, %v849
        %v938 = vpack.c.b16 %v854, %v850
        %v939 = vpack.c.b16 %v855, %v851
        %v940 = vpack.c.b16 %v856, %v852
        %v941 = vpack.c.b16 %v861, %v857
        %v942 = vpack.c.b16 %v862, %v858
        %v943 = vpack.c.b16 %v863, %v859
        %v944 = vpack.c.b16 %v864, %v860
        %v945 = vpack.c.b16 %v869, %v865
        %v946 = vpack.c.b16 %v870, %v866
        %v947 = vpack.c.b16 %v871, %v867
        %v948 = vpack.c.b16 %v872, %v868
        %v949 = vpack.c.b16 %v877, %v873
        %v950 = vpack.c.b16 %v878, %v874
        %v951 = vpack.c.b16 %v879, %v875
        %v952 = vpack.c.b16 %v880, %v876
        %v953 = vpack.c.b16 %v885, %v881
        %v954 = vpack.c.b16 %v886, %v882
        %v955 = vpack.c.b16 %v887, %v883
        %v956 = vpack.c.b16 %v888, %v884
        %v957 = vpack.c.b16 %v893, %v889
        %v958 = vpack.c.b16 %v894, %v890
        %v959 = vpack.c.b16 %v895, %v891
        %v960 = vpack.c.b16 %v896, %v892
        %1025 = vmatprep.subr.bf16.mxu0 %v926
        %1026 = vmatpush1.bf16.msra.mxu0 %v925
        %1027 = vmatprep.subr.bf16.mxu0 %v922
        %1028 = vmatpush1.bf16.msra.mxu0 %v921
        %1029 = vmatprep.subr.bf16.mxu0 %v918
        %1030 = vmatpush1.bf16.msra.mxu0 %v917
        %1031 = vmatprep.subr.bf16.mxu0 %v914
        %1032 = vmatpush1.bf16.msra.mxu0 %v913
        %1033 = vmatprep.subr.bf16.mxu0 %v910
        %1034 = vmatpush1.bf16.msra.mxu0 %v909
        %1035 = vmatprep.subr.bf16.mxu0 %v906
        %1036 = vmatpush1.bf16.msra.mxu0 %v905
        %1037 = vmatprep.subr.bf16.mxu0 %v902
        %1038 = vmatpush1.bf16.msra.mxu0 %v901
        %1039 = vmatprep.subr.bf16.mxu0 %v898
        %1040 = vmatpush1.bf16.msra.mxu0 %v897
        %1041 = vmatprep.subr.bf16.mxu0 %v958
        %1042 = vmatpush2.bf16.msra.mxu0 %v957
        %1043 = vmatprep.subr.bf16.mxu0 %v954
        %1044 = vmatpush2.bf16.msra.mxu0 %v953
        %1045 = vmatprep.subr.bf16.mxu0 %v950
        %1046 = vmatpush2.bf16.msra.mxu0 %v949
        %1047 = vmatprep.subr.bf16.mxu0 %v946
        %1048 = vmatpush2.bf16.msra.mxu0 %v945
        %1049 = vmatprep.subr.bf16.mxu0 %v942
        %1050 = vmatpush2.bf16.msra.mxu0 %v941
        %1051 = vmatprep.subr.bf16.mxu0 %v938
        %1052 = vmatpush2.bf16.msra.mxu0 %v937
        %1053 = vmatprep.subr.bf16.mxu0 %v934
        %1054 = vmatpush2.bf16.msra.mxu0 %v933
        %1055 = vmatprep.subr.bf16.mxu0 %v930
        %1056 = vmatpush2.bf16.msra.mxu0 %v929
        %1057 = vmatprep.mubr.bf16.mxu0 %v619
        %1058 = vmatmul.mubr.bf16.gmra.mxu0 %v618
        %v1059 = vpop.f32.mrf.mxu0
        %v1060 = vadd.f32 %v688, %v1059
        %v1061 = vpop.f32.mrf.mxu0
        %v1062 = vadd.f32 %v692, %v1061
        %v1063 = vpop.f32.mrf.mxu0
        %v1064 = vadd.f32 %v688, %v1063
        %v1065 = vpop.f32.mrf.mxu0
        %v1066 = vadd.f32 %v692, %v1065
        %1067 = vdwg.mxu0
        %1068 = vmatprep.subr.bf16.mxu0 %v928
        %1069 = vmatpush1.bf16.msra.mxu0 %v927
        %1070 = vmatprep.subr.bf16.mxu0 %v924
        %1071 = vmatpush1.bf16.msra.mxu0 %v923
        %1072 = vmatprep.subr.bf16.mxu0 %v920
        %1073 = vmatpush1.bf16.msra.mxu0 %v919
        %1074 = vmatprep.subr.bf16.mxu0 %v916
        %1075 = vmatpush1.bf16.msra.mxu0 %v915
        %1076 = vmatprep.subr.bf16.mxu0 %v912
        %1077 = vmatpush1.bf16.msra.mxu0 %v911
        %1078 = vmatprep.subr.bf16.mxu0 %v908
        %1079 = vmatpush1.bf16.msra.mxu0 %v907
        %1080 = vmatprep.subr.bf16.mxu0 %v904
        %1081 = vmatpush1.bf16.msra.mxu0 %v903
        %1082 = vmatprep.subr.bf16.mxu0 %v900
        %1083 = vmatpush1.bf16.msra.mxu0 %v899
        %1084 = vmatprep.subr.bf16.mxu0 %v960
        %1085 = vmatpush2.bf16.msra.mxu0 %v959
        %1086 = vmatprep.subr.bf16.mxu0 %v956
        %1087 = vmatpush2.bf16.msra.mxu0 %v955
        %1088 = vmatprep.subr.bf16.mxu0 %v952
        %1089 = vmatpush2.bf16.msra.mxu0 %v951
        %1090 = vmatprep.subr.bf16.mxu0 %v948
        %1091 = vmatpush2.bf16.msra.mxu0 %v947
        %1092 = vmatprep.subr.bf16.mxu0 %v944
        %1093 = vmatpush2.bf16.msra.mxu0 %v943
        %1094 = vmatprep.subr.bf16.mxu0 %v940
        %1095 = vmatpush2.bf16.msra.mxu0 %v939
        %1096 = vmatprep.subr.bf16.mxu0 %v936
        %1097 = vmatpush2.bf16.msra.mxu0 %v935
        %1098 = vmatprep.subr.bf16.mxu0 %v932
        %1099 = vmatpush2.bf16.msra.mxu0 %v931
        %1100 = vmatprep.mubr.bf16.mxu0 %v619
        %1101 = vmatmul.mubr.bf16.gmra.mxu0 %v618
        %v1102 = vpop.f32.mrf.mxu0
        %v1103 = vadd.f32 %v696, %v1102
        %v1104 = vpop.f32.mrf.mxu0
        %v1105 = vadd.f32 %v700, %v1104
        %v1106 = vpop.f32.mrf.mxu0
        %v1107 = vadd.f32 %v696, %v1106
        %v1108 = vpop.f32.mrf.mxu0
        %v1109 = vadd.f32 %v700, %v1108
        %1110 = vdwg.mxu0
        %v1111 = vmul.f32 %v1060, 0.2
        %v1112 = vmul.f32 %v1062, 0.2
        %v1113 = vmul.f32 %v1103, 0.2
        %v1114 = vmul.f32 %v1105, 0.2
        %v1115 = vmul.f32 %v1064, 0.2
        %v1116 = vmul.f32 %v1066, 0.2
        %v1117 = vmul.f32 %v1107, 0.2
        %v1118 = vmul.f32 %v1109, 0.2
        %v1119 = vmax.f32 %v1060, %v1111
        %v1120 = vmax.f32 %v1062, %v1112
        %v1121 = vmax.f32 %v1103, %v1113
        %v1122 = vmax.f32 %v1105, %v1114
        %v1123 = vmax.f32 %v1064, %v1115
        %v1124 = vmax.f32 %v1066, %v1116
        %v1125 = vmax.f32 %v1107, %v1117
        %v1126 = vmax.f32 %v1109, %v1118
        %v1127 = vpack.c.bf16 %v1123, %v1119
        %v1128 = vpack.c.bf16 %v1124, %v1120
        %v1129 = vpack.c.bf16 %v1125, %v1121
        %v1130 = vpack.c.bf16 %v1126, %v1122
        %v1131 = vld [vmem:[#allocation9] sm:$0xff]
        %v1132 = vld [vmem:[#allocation9 + $0x8] sm:$0xff]
        %v1133 = vld [vmem:[#allocation9 + $0x10] sm:$0xff]
        %v1134 = vld [vmem:[#allocation9 + $0x18] sm:$0xff]
        %v1135 = vld [vmem:[#allocation9 + $0x20] sm:$0xff]
        %v1136 = vld [vmem:[#allocation9 + $0x28] sm:$0xff]
        %v1137 = vld [vmem:[#allocation9 + $0x30] sm:$0xff]
        %v1138 = vld [vmem:[#allocation9 + $0x38] sm:$0xff]
        %v1139 = vld [vmem:[#allocation9 + $0x40] sm:$0xff]
        %v1140 = vld [vmem:[#allocation9 + $0x48] sm:$0xff]
        %v1141 = vld [vmem:[#allocation9 + $0x50] sm:$0xff]
        %v1142 = vld [vmem:[#allocation9 + $0x58] sm:$0xff]
        %v1143 = vld [vmem:[#allocation9 + $0x60] sm:$0xff]
        %v1144 = vld [vmem:[#allocation9 + $0x68] sm:$0xff]
        %v1145 = vld [vmem:[#allocation9 + $0x70] sm:$0xff]
        %v1146 = vld [vmem:[#allocation9 + $0x78] sm:$0xff]
        %v1147 = vld [vmem:[#allocation9 + $0x80] sm:$0xff]
        %v1148 = vld [vmem:[#allocation9 + $0x88] sm:$0xff]
        %v1149 = vld [vmem:[#allocation9 + $0x90] sm:$0xff]
        %v1150 = vld [vmem:[#allocation9 + $0x98] sm:$0xff]
        %v1151 = vld [vmem:[#allocation9 + $0xa0] sm:$0xff]
        %v1152 = vld [vmem:[#allocation9 + $0xa8] sm:$0xff]
        %v1153 = vld [vmem:[#allocation9 + $0xb0] sm:$0xff]
        %v1154 = vld [vmem:[#allocation9 + $0xb8] sm:$0xff]
        %v1155 = vld [vmem:[#allocation9 + $0xc0] sm:$0xff]
        %v1156 = vld [vmem:[#allocation9 + $0xc8] sm:$0xff]
        %v1157 = vld [vmem:[#allocation9 + $0xd0] sm:$0xff]
        %v1158 = vld [vmem:[#allocation9 + $0xd8] sm:$0xff]
        %v1159 = vld [vmem:[#allocation9 + $0xe0] sm:$0xff]
        %v1160 = vld [vmem:[#allocation9 + $0xe8] sm:$0xff]
        %v1161 = vld [vmem:[#allocation9 + $0xf0] sm:$0xff]
        %v1162 = vld [vmem:[#allocation9 + $0xf8] sm:$0xff]
        %v1163 = vld [vmem:[#allocation9 + $0x100] sm:$0xff]
        %v1164 = vld [vmem:[#allocation9 + $0x108] sm:$0xff]
        %v1165 = vld [vmem:[#allocation9 + $0x110] sm:$0xff]
        %v1166 = vld [vmem:[#allocation9 + $0x118] sm:$0xff]
        %v1167 = vld [vmem:[#allocation9 + $0x120] sm:$0xff]
        %v1168 = vld [vmem:[#allocation9 + $0x128] sm:$0xff]
        %v1169 = vld [vmem:[#allocation9 + $0x130] sm:$0xff]
        %v1170 = vld [vmem:[#allocation9 + $0x138] sm:$0xff]
        %v1171 = vld [vmem:[#allocation9 + $0x140] sm:$0xff]
        %v1172 = vld [vmem:[#allocation9 + $0x148] sm:$0xff]
        %v1173 = vld [vmem:[#allocation9 + $0x150] sm:$0xff]
        %v1174 = vld [vmem:[#allocation9 + $0x158] sm:$0xff]
        %v1175 = vld [vmem:[#allocation9 + $0x160] sm:$0xff]
        %v1176 = vld [vmem:[#allocation9 + $0x168] sm:$0xff]
        %v1177 = vld [vmem:[#allocation9 + $0x170] sm:$0xff]
        %v1178 = vld [vmem:[#allocation9 + $0x178] sm:$0xff]
        %v1179 = vld [vmem:[#allocation9 + $0x180] sm:$0xff]
        %v1180 = vld [vmem:[#allocation9 + $0x188] sm:$0xff]
        %v1181 = vld [vmem:[#allocation9 + $0x190] sm:$0xff]
        %v1182 = vld [vmem:[#allocation9 + $0x198] sm:$0xff]
        %v1183 = vld [vmem:[#allocation9 + $0x1a0] sm:$0xff]
        %v1184 = vld [vmem:[#allocation9 + $0x1a8] sm:$0xff]
        %v1185 = vld [vmem:[#allocation9 + $0x1b0] sm:$0xff]
        %v1186 = vld [vmem:[#allocation9 + $0x1b8] sm:$0xff]
        %v1187 = vld [vmem:[#allocation9 + $0x1c0] sm:$0xff]
        %v1188 = vld [vmem:[#allocation9 + $0x1c8] sm:$0xff]
        %v1189 = vld [vmem:[#allocation9 + $0x1d0] sm:$0xff]
        %v1190 = vld [vmem:[#allocation9 + $0x1d8] sm:$0xff]
        %v1191 = vld [vmem:[#allocation9 + $0x1e0] sm:$0xff]
        %v1192 = vld [vmem:[#allocation9 + $0x1e8] sm:$0xff]
        %v1193 = vld [vmem:[#allocation9 + $0x1f0] sm:$0xff]
        %v1194 = vld [vmem:[#allocation9 + $0x1f8] sm:$0xff]
        %v1195 = vld [vmem:[#allocation9 + $0x200] sm:$0xff]
        %v1196 = vld [vmem:[#allocation9 + $0x208] sm:$0xff]
        %v1197 = vld [vmem:[#allocation9 + $0x210] sm:$0xff]
        %v1198 = vld [vmem:[#allocation9 + $0x218] sm:$0xff]
        %v1199 = vld [vmem:[#allocation9 + $0x220] sm:$0xff]
        %v1200 = vld [vmem:[#allocation9 + $0x228] sm:$0xff]
        %v1201 = vld [vmem:[#allocation9 + $0x230] sm:$0xff]
        %v1202 = vld [vmem:[#allocation9 + $0x238] sm:$0xff]
        %v1203 = vld [vmem:[#allocation9 + $0x240] sm:$0xff]
        %v1204 = vld [vmem:[#allocation9 + $0x248] sm:$0xff]
        %v1205 = vld [vmem:[#allocation9 + $0x250] sm:$0xff]
        %v1206 = vld [vmem:[#allocation9 + $0x258] sm:$0xff]
        %v1207 = vld [vmem:[#allocation9 + $0x260] sm:$0xff]
        %v1208 = vld [vmem:[#allocation9 + $0x268] sm:$0xff]
        %v1209 = vld [vmem:[#allocation9 + $0x270] sm:$0xff]
        %v1210 = vld [vmem:[#allocation9 + $0x278] sm:$0xff]
        %v1211 = vld [vmem:[#allocation9 + $0x280] sm:$0xff]
        %v1212 = vld [vmem:[#allocation9 + $0x288] sm:$0xff]
        %v1213 = vld [vmem:[#allocation9 + $0x290] sm:$0xff]
        %v1214 = vld [vmem:[#allocation9 + $0x298] sm:$0xff]
        %v1215 = vld [vmem:[#allocation9 + $0x2a0] sm:$0xff]
        %v1216 = vld [vmem:[#allocation9 + $0x2a8] sm:$0xff]
        %v1217 = vld [vmem:[#allocation9 + $0x2b0] sm:$0xff]
        %v1218 = vld [vmem:[#allocation9 + $0x2b8] sm:$0xff]
        %v1219 = vld [vmem:[#allocation9 + $0x2c0] sm:$0xff]
        %v1220 = vld [vmem:[#allocation9 + $0x2c8] sm:$0xff]
        %v1221 = vld [vmem:[#allocation9 + $0x2d0] sm:$0xff]
        %v1222 = vld [vmem:[#allocation9 + $0x2d8] sm:$0xff]
        %v1223 = vld [vmem:[#allocation9 + $0x2e0] sm:$0xff]
        %v1224 = vld [vmem:[#allocation9 + $0x2e8] sm:$0xff]
        %v1225 = vld [vmem:[#allocation9 + $0x2f0] sm:$0xff]
        %v1226 = vld [vmem:[#allocation9 + $0x2f8] sm:$0xff]
        %v1227 = vld [vmem:[#allocation9 + $0x300] sm:$0xff]
        %v1228 = vld [vmem:[#allocation9 + $0x308] sm:$0xff]
        %v1229 = vld [vmem:[#allocation9 + $0x310] sm:$0xff]
        %v1230 = vld [vmem:[#allocation9 + $0x318] sm:$0xff]
        %v1231 = vld [vmem:[#allocation9 + $0x320] sm:$0xff]
        %v1232 = vld [vmem:[#allocation9 + $0x328] sm:$0xff]
        %v1233 = vld [vmem:[#allocation9 + $0x330] sm:$0xff]
        %v1234 = vld [vmem:[#allocation9 + $0x338] sm:$0xff]
        %v1235 = vld [vmem:[#allocation9 + $0x340] sm:$0xff]
        %v1236 = vld [vmem:[#allocation9 + $0x348] sm:$0xff]
        %v1237 = vld [vmem:[#allocation9 + $0x350] sm:$0xff]
        %v1238 = vld [vmem:[#allocation9 + $0x358] sm:$0xff]
        %v1239 = vld [vmem:[#allocation9 + $0x360] sm:$0xff]
        %v1240 = vld [vmem:[#allocation9 + $0x368] sm:$0xff]
        %v1241 = vld [vmem:[#allocation9 + $0x370] sm:$0xff]
        %v1242 = vld [vmem:[#allocation9 + $0x378] sm:$0xff]
        %v1243 = vld [vmem:[#allocation9 + $0x380] sm:$0xff]
        %v1244 = vld [vmem:[#allocation9 + $0x388] sm:$0xff]
        %v1245 = vld [vmem:[#allocation9 + $0x390] sm:$0xff]
        %v1246 = vld [vmem:[#allocation9 + $0x398] sm:$0xff]
        %v1247 = vld [vmem:[#allocation9 + $0x3a0] sm:$0xff]
        %v1248 = vld [vmem:[#allocation9 + $0x3a8] sm:$0xff]
        %v1249 = vld [vmem:[#allocation9 + $0x3b0] sm:$0xff]
        %v1250 = vld [vmem:[#allocation9 + $0x3b8] sm:$0xff]
        %v1251 = vld [vmem:[#allocation9 + $0x3c0] sm:$0xff]
        %v1252 = vld [vmem:[#allocation9 + $0x3c8] sm:$0xff]
        %v1253 = vld [vmem:[#allocation9 + $0x3d0] sm:$0xff]
        %v1254 = vld [vmem:[#allocation9 + $0x3d8] sm:$0xff]
        %v1255 = vld [vmem:[#allocation9 + $0x3e0] sm:$0xff]
        %v1256 = vld [vmem:[#allocation9 + $0x3e8] sm:$0xff]
        %v1257 = vld [vmem:[#allocation9 + $0x3f0] sm:$0xff]
        %v1258 = vld [vmem:[#allocation9 + $0x3f8] sm:$0xff]
        %v1259 = vld [vmem:[#allocation9 + $0x400] sm:$0xff]
        %v1260 = vld [vmem:[#allocation9 + $0x408] sm:$0xff]
        %v1261 = vld [vmem:[#allocation9 + $0x410] sm:$0xff]
        %v1262 = vld [vmem:[#allocation9 + $0x418] sm:$0xff]
        %v1263 = vld [vmem:[#allocation9 + $0x420] sm:$0xff]
        %v1264 = vld [vmem:[#allocation9 + $0x428] sm:$0xff]
        %v1265 = vld [vmem:[#allocation9 + $0x430] sm:$0xff]
        %v1266 = vld [vmem:[#allocation9 + $0x438] sm:$0xff]
        %v1267 = vld [vmem:[#allocation9 + $0x440] sm:$0xff]
        %v1268 = vld [vmem:[#allocation9 + $0x448] sm:$0xff]
        %v1269 = vld [vmem:[#allocation9 + $0x450] sm:$0xff]
        %v1270 = vld [vmem:[#allocation9 + $0x458] sm:$0xff]
        %v1271 = vld [vmem:[#allocation9 + $0x460] sm:$0xff]
        %v1272 = vld [vmem:[#allocation9 + $0x468] sm:$0xff]
        %v1273 = vld [vmem:[#allocation9 + $0x470] sm:$0xff]
        %v1274 = vld [vmem:[#allocation9 + $0x478] sm:$0xff]
        %v1275 = vld [vmem:[#allocation9 + $0x480] sm:$0xff]
        %v1276 = vld [vmem:[#allocation9 + $0x488] sm:$0xff]
        %v1277 = vld [vmem:[#allocation9 + $0x490] sm:$0xff]
        %v1278 = vld [vmem:[#allocation9 + $0x498] sm:$0xff]
        %v1279 = vld [vmem:[#allocation9 + $0x4a0] sm:$0xff]
        %v1280 = vld [vmem:[#allocation9 + $0x4a8] sm:$0xff]
        %v1281 = vld [vmem:[#allocation9 + $0x4b0] sm:$0xff]
        %v1282 = vld [vmem:[#allocation9 + $0x4b8] sm:$0xff]
        %v1283 = vld [vmem:[#allocation9 + $0x4c0] sm:$0xff]
        %v1284 = vld [vmem:[#allocation9 + $0x4c8] sm:$0xff]
        %v1285 = vld [vmem:[#allocation9 + $0x4d0] sm:$0xff]
        %v1286 = vld [vmem:[#allocation9 + $0x4d8] sm:$0xff]
        %v1287 = vld [vmem:[#allocation9 + $0x4e0] sm:$0xff]
        %v1288 = vld [vmem:[#allocation9 + $0x4e8] sm:$0xff]
        %v1289 = vld [vmem:[#allocation9 + $0x4f0] sm:$0xff]
        %v1290 = vld [vmem:[#allocation9 + $0x4f8] sm:$0xff]
        %v1291 = vld [vmem:[#allocation9 + $0x500] sm:$0xff]
        %v1292 = vld [vmem:[#allocation9 + $0x508] sm:$0xff]
        %v1293 = vld [vmem:[#allocation9 + $0x510] sm:$0xff]
        %v1294 = vld [vmem:[#allocation9 + $0x518] sm:$0xff]
        %v1295 = vld [vmem:[#allocation9 + $0x520] sm:$0xff]
        %v1296 = vld [vmem:[#allocation9 + $0x528] sm:$0xff]
        %v1297 = vld [vmem:[#allocation9 + $0x530] sm:$0xff]
        %v1298 = vld [vmem:[#allocation9 + $0x538] sm:$0xff]
        %v1299 = vld [vmem:[#allocation9 + $0x540] sm:$0xff]
        %v1300 = vld [vmem:[#allocation9 + $0x548] sm:$0xff]
        %v1301 = vld [vmem:[#allocation9 + $0x550] sm:$0xff]
        %v1302 = vld [vmem:[#allocation9 + $0x558] sm:$0xff]
        %v1303 = vld [vmem:[#allocation9 + $0x560] sm:$0xff]
        %v1304 = vld [vmem:[#allocation9 + $0x568] sm:$0xff]
        %v1305 = vld [vmem:[#allocation9 + $0x570] sm:$0xff]
        %v1306 = vld [vmem:[#allocation9 + $0x578] sm:$0xff]
        %v1307 = vld [vmem:[#allocation9 + $0x580] sm:$0xff]
        %v1308 = vld [vmem:[#allocation9 + $0x588] sm:$0xff]
        %v1309 = vld [vmem:[#allocation9 + $0x590] sm:$0xff]
        %v1310 = vld [vmem:[#allocation9 + $0x598] sm:$0xff]
        %v1311 = vld [vmem:[#allocation9 + $0x5a0] sm:$0xff]
        %v1312 = vld [vmem:[#allocation9 + $0x5a8] sm:$0xff]
        %v1313 = vld [vmem:[#allocation9 + $0x5b0] sm:$0xff]
        %v1314 = vld [vmem:[#allocation9 + $0x5b8] sm:$0xff]
        %v1315 = vld [vmem:[#allocation9 + $0x5c0] sm:$0xff]
        %v1316 = vld [vmem:[#allocation9 + $0x5c8] sm:$0xff]
        %v1317 = vld [vmem:[#allocation9 + $0x5d0] sm:$0xff]
        %v1318 = vld [vmem:[#allocation9 + $0x5d8] sm:$0xff]
        %v1319 = vld [vmem:[#allocation9 + $0x5e0] sm:$0xff]
        %v1320 = vld [vmem:[#allocation9 + $0x5e8] sm:$0xff]
        %v1321 = vld [vmem:[#allocation9 + $0x5f0] sm:$0xff]
        %v1322 = vld [vmem:[#allocation9 + $0x5f8] sm:$0xff]
        %v1323 = vld [vmem:[#allocation9 + $0x600] sm:$0xff]
        %v1324 = vld [vmem:[#allocation9 + $0x608] sm:$0xff]
        %v1325 = vld [vmem:[#allocation9 + $0x610] sm:$0xff]
        %v1326 = vld [vmem:[#allocation9 + $0x618] sm:$0xff]
        %v1327 = vld [vmem:[#allocation9 + $0x620] sm:$0xff]
        %v1328 = vld [vmem:[#allocation9 + $0x628] sm:$0xff]
        %v1329 = vld [vmem:[#allocation9 + $0x630] sm:$0xff]
        %v1330 = vld [vmem:[#allocation9 + $0x638] sm:$0xff]
        %v1331 = vld [vmem:[#allocation9 + $0x640] sm:$0xff]
        %v1332 = vld [vmem:[#allocation9 + $0x648] sm:$0xff]
        %v1333 = vld [vmem:[#allocation9 + $0x650] sm:$0xff]
        %v1334 = vld [vmem:[#allocation9 + $0x658] sm:$0xff]
        %v1335 = vld [vmem:[#allocation9 + $0x660] sm:$0xff]
        %v1336 = vld [vmem:[#allocation9 + $0x668] sm:$0xff]
        %v1337 = vld [vmem:[#allocation9 + $0x670] sm:$0xff]
        %v1338 = vld [vmem:[#allocation9 + $0x678] sm:$0xff]
        %v1339 = vld [vmem:[#allocation9 + $0x680] sm:$0xff]
        %v1340 = vld [vmem:[#allocation9 + $0x688] sm:$0xff]
        %v1341 = vld [vmem:[#allocation9 + $0x690] sm:$0xff]
        %v1342 = vld [vmem:[#allocation9 + $0x698] sm:$0xff]
        %v1343 = vld [vmem:[#allocation9 + $0x6a0] sm:$0xff]
        %v1344 = vld [vmem:[#allocation9 + $0x6a8] sm:$0xff]
        %v1345 = vld [vmem:[#allocation9 + $0x6b0] sm:$0xff]
        %v1346 = vld [vmem:[#allocation9 + $0x6b8] sm:$0xff]
        %v1347 = vld [vmem:[#allocation9 + $0x6c0] sm:$0xff]
        %v1348 = vld [vmem:[#allocation9 + $0x6c8] sm:$0xff]
        %v1349 = vld [vmem:[#allocation9 + $0x6d0] sm:$0xff]
        %v1350 = vld [vmem:[#allocation9 + $0x6d8] sm:$0xff]
        %v1351 = vld [vmem:[#allocation9 + $0x6e0] sm:$0xff]
        %v1352 = vld [vmem:[#allocation9 + $0x6e8] sm:$0xff]
        %v1353 = vld [vmem:[#allocation9 + $0x6f0] sm:$0xff]
        %v1354 = vld [vmem:[#allocation9 + $0x6f8] sm:$0xff]
        %v1355 = vld [vmem:[#allocation9 + $0x700] sm:$0xff]
        %v1356 = vld [vmem:[#allocation9 + $0x708] sm:$0xff]
        %v1357 = vld [vmem:[#allocation9 + $0x710] sm:$0xff]
        %v1358 = vld [vmem:[#allocation9 + $0x718] sm:$0xff]
        %v1359 = vld [vmem:[#allocation9 + $0x720] sm:$0xff]
        %v1360 = vld [vmem:[#allocation9 + $0x728] sm:$0xff]
        %v1361 = vld [vmem:[#allocation9 + $0x730] sm:$0xff]
        %v1362 = vld [vmem:[#allocation9 + $0x738] sm:$0xff]
        %v1363 = vld [vmem:[#allocation9 + $0x740] sm:$0xff]
        %v1364 = vld [vmem:[#allocation9 + $0x748] sm:$0xff]
        %v1365 = vld [vmem:[#allocation9 + $0x750] sm:$0xff]
        %v1366 = vld [vmem:[#allocation9 + $0x758] sm:$0xff]
        %v1367 = vld [vmem:[#allocation9 + $0x760] sm:$0xff]
        %v1368 = vld [vmem:[#allocation9 + $0x768] sm:$0xff]
        %v1369 = vld [vmem:[#allocation9 + $0x770] sm:$0xff]
        %v1370 = vld [vmem:[#allocation9 + $0x778] sm:$0xff]
        %v1371 = vld [vmem:[#allocation9 + $0x780] sm:$0xff]
        %v1372 = vld [vmem:[#allocation9 + $0x788] sm:$0xff]
        %v1373 = vld [vmem:[#allocation9 + $0x790] sm:$0xff]
        %v1374 = vld [vmem:[#allocation9 + $0x798] sm:$0xff]
        %v1375 = vld [vmem:[#allocation9 + $0x7a0] sm:$0xff]
        %v1376 = vld [vmem:[#allocation9 + $0x7a8] sm:$0xff]
        %v1377 = vld [vmem:[#allocation9 + $0x7b0] sm:$0xff]
        %v1378 = vld [vmem:[#allocation9 + $0x7b8] sm:$0xff]
        %v1379 = vld [vmem:[#allocation9 + $0x7c0] sm:$0xff]
        %v1380 = vld [vmem:[#allocation9 + $0x7c8] sm:$0xff]
        %v1381 = vld [vmem:[#allocation9 + $0x7d0] sm:$0xff]
        %v1382 = vld [vmem:[#allocation9 + $0x7d8] sm:$0xff]
        %v1383 = vld [vmem:[#allocation9 + $0x7e0] sm:$0xff]
        %v1384 = vld [vmem:[#allocation9 + $0x7e8] sm:$0xff]
        %v1385 = vld [vmem:[#allocation9 + $0x7f0] sm:$0xff]
        %v1386 = vld [vmem:[#allocation9 + $0x7f8] sm:$0xff]
        %v1388 = vlaneseq
        %v1389 = vshrl.u32 %v1388, 7
        %v1390 = vsub.s32 0, %v1389
        %v1391 = vrot.slane %v450, %v1390
        %v1392 = vlaneseq
        %v1393 = vshrl.u32 %v1392, 7
        %v1394 = vsub.s32 1, %v1393
        %v1395 = vrot.slane %v450, %v1394
        %v1396 = vlaneseq
        %v1397 = vshrl.u32 %v1396, 7
        %v1398 = vsub.s32 2, %v1397
        %v1399 = vrot.slane %v450, %v1398
        %v1400 = vlaneseq
        %v1401 = vshrl.u32 %v1400, 7
        %v1402 = vsub.s32 3, %v1401
        %v1403 = vrot.slane %v450, %v1402
        %v1404 = vlaneseq
        %v1405 = vshrl.u32 %v1404, 7
        %v1406 = vsub.s32 4, %v1405
        %v1407 = vrot.slane %v450, %v1406
        %v1408 = vlaneseq
        %v1409 = vshrl.u32 %v1408, 7
        %v1410 = vsub.s32 5, %v1409
        %v1411 = vrot.slane %v450, %v1410
        %v1412 = vlaneseq
        %v1413 = vshrl.u32 %v1412, 7
        %v1414 = vsub.s32 6, %v1413
        %v1415 = vrot.slane %v450, %v1414
        %v1416 = vlaneseq
        %v1417 = vshrl.u32 %v1416, 7
        %v1418 = vsub.s32 7, %v1417
        %v1419 = vrot.slane %v450, %v1418
        %v1684 = vunpack.c.l.b16 %v1131
        %v1685 = vunpack.c.h.b16 %v1131
        %v1686 = vunpack.c.l.b16 %v1132
        %v1687 = vunpack.c.h.b16 %v1132
        %v1688 = vunpack.c.l.b16 %v1133
        %v1689 = vunpack.c.h.b16 %v1133
        %v1690 = vunpack.c.l.b16 %v1134
        %v1691 = vunpack.c.h.b16 %v1134
        %v1692 = vunpack.c.l.b16 %v1135
        %v1693 = vunpack.c.h.b16 %v1135
        %v1694 = vunpack.c.l.b16 %v1136
        %v1695 = vunpack.c.h.b16 %v1136
        %v1696 = vunpack.c.l.b16 %v1137
        %v1697 = vunpack.c.h.b16 %v1137
        %v1698 = vunpack.c.l.b16 %v1138
        %v1699 = vunpack.c.h.b16 %v1138
        %v1700 = vunpack.c.l.b16 %v1139
        %v1701 = vunpack.c.h.b16 %v1139
        %v1702 = vunpack.c.l.b16 %v1140
        %v1703 = vunpack.c.h.b16 %v1140
        %v1704 = vunpack.c.l.b16 %v1141
        %v1705 = vunpack.c.h.b16 %v1141
        %v1706 = vunpack.c.l.b16 %v1142
        %v1707 = vunpack.c.h.b16 %v1142
        %v1708 = vunpack.c.l.b16 %v1143
        %v1709 = vunpack.c.h.b16 %v1143
        %v1710 = vunpack.c.l.b16 %v1144
        %v1711 = vunpack.c.h.b16 %v1144
        %v1712 = vunpack.c.l.b16 %v1145
        %v1713 = vunpack.c.h.b16 %v1145
        %v1714 = vunpack.c.l.b16 %v1146
        %v1715 = vunpack.c.h.b16 %v1146
        %v1716 = vunpack.c.l.b16 %v1147
        %v1717 = vunpack.c.h.b16 %v1147
        %v1718 = vunpack.c.l.b16 %v1148
        %v1719 = vunpack.c.h.b16 %v1148
        %v1720 = vunpack.c.l.b16 %v1149
        %v1721 = vunpack.c.h.b16 %v1149
        %v1722 = vunpack.c.l.b16 %v1150
        %v1723 = vunpack.c.h.b16 %v1150
        %v1724 = vunpack.c.l.b16 %v1151
        %v1725 = vunpack.c.h.b16 %v1151
        %v1726 = vunpack.c.l.b16 %v1152
        %v1727 = vunpack.c.h.b16 %v1152
        %v1728 = vunpack.c.l.b16 %v1153
        %v1729 = vunpack.c.h.b16 %v1153
        %v1730 = vunpack.c.l.b16 %v1154
        %v1731 = vunpack.c.h.b16 %v1154
        %v1732 = vunpack.c.l.b16 %v1155
        %v1733 = vunpack.c.h.b16 %v1155
        %v1734 = vunpack.c.l.b16 %v1156
        %v1735 = vunpack.c.h.b16 %v1156
        %v1736 = vunpack.c.l.b16 %v1157
        %v1737 = vunpack.c.h.b16 %v1157
        %v1738 = vunpack.c.l.b16 %v1158
        %v1739 = vunpack.c.h.b16 %v1158
        %v1740 = vunpack.c.l.b16 %v1159
        %v1741 = vunpack.c.h.b16 %v1159
        %v1742 = vunpack.c.l.b16 %v1160
        %v1743 = vunpack.c.h.b16 %v1160
        %v1744 = vunpack.c.l.b16 %v1161
        %v1745 = vunpack.c.h.b16 %v1161
        %v1746 = vunpack.c.l.b16 %v1162
        %v1747 = vunpack.c.h.b16 %v1162
        %v1748 = vunpack.c.l.b16 %v1163
        %v1749 = vunpack.c.h.b16 %v1163
        %v1750 = vunpack.c.l.b16 %v1164
        %v1751 = vunpack.c.h.b16 %v1164
        %v1752 = vunpack.c.l.b16 %v1165
        %v1753 = vunpack.c.h.b16 %v1165
        %v1754 = vunpack.c.l.b16 %v1166
        %v1755 = vunpack.c.h.b16 %v1166
        %v1756 = vunpack.c.l.b16 %v1167
        %v1757 = vunpack.c.h.b16 %v1167
        %v1758 = vunpack.c.l.b16 %v1168
        %v1759 = vunpack.c.h.b16 %v1168
        %v1760 = vunpack.c.l.b16 %v1169
        %v1761 = vunpack.c.h.b16 %v1169
        %v1762 = vunpack.c.l.b16 %v1170
        %v1763 = vunpack.c.h.b16 %v1170
        %v1764 = vunpack.c.l.b16 %v1171
        %v1765 = vunpack.c.h.b16 %v1171
        %v1766 = vunpack.c.l.b16 %v1172
        %v1767 = vunpack.c.h.b16 %v1172
        %v1768 = vunpack.c.l.b16 %v1173
        %v1769 = vunpack.c.h.b16 %v1173
        %v1770 = vunpack.c.l.b16 %v1174
        %v1771 = vunpack.c.h.b16 %v1174
        %v1772 = vunpack.c.l.b16 %v1175
        %v1773 = vunpack.c.h.b16 %v1175
        %v1774 = vunpack.c.l.b16 %v1176
        %v1775 = vunpack.c.h.b16 %v1176
        %v1776 = vunpack.c.l.b16 %v1177
        %v1777 = vunpack.c.h.b16 %v1177
        %v1778 = vunpack.c.l.b16 %v1178
        %v1779 = vunpack.c.h.b16 %v1178
        %v1780 = vunpack.c.l.b16 %v1179
        %v1781 = vunpack.c.h.b16 %v1179
        %v1782 = vunpack.c.l.b16 %v1180
        %v1783 = vunpack.c.h.b16 %v1180
        %v1784 = vunpack.c.l.b16 %v1181
        %v1785 = vunpack.c.h.b16 %v1181
        %v1786 = vunpack.c.l.b16 %v1182
        %v1787 = vunpack.c.h.b16 %v1182
        %v1788 = vunpack.c.l.b16 %v1183
        %v1789 = vunpack.c.h.b16 %v1183
        %v1790 = vunpack.c.l.b16 %v1184
        %v1791 = vunpack.c.h.b16 %v1184
        %v1792 = vunpack.c.l.b16 %v1185
        %v1793 = vunpack.c.h.b16 %v1185
        %v1794 = vunpack.c.l.b16 %v1186
        %v1795 = vunpack.c.h.b16 %v1186
        %v1796 = vunpack.c.l.b16 %v1187
        %v1797 = vunpack.c.h.b16 %v1187
        %v1798 = vunpack.c.l.b16 %v1188
        %v1799 = vunpack.c.h.b16 %v1188
        %v1800 = vunpack.c.l.b16 %v1189
        %v1801 = vunpack.c.h.b16 %v1189
        %v1802 = vunpack.c.l.b16 %v1190
        %v1803 = vunpack.c.h.b16 %v1190
        %v1804 = vunpack.c.l.b16 %v1191
        %v1805 = vunpack.c.h.b16 %v1191
        %v1806 = vunpack.c.l.b16 %v1192
        %v1807 = vunpack.c.h.b16 %v1192
        %v1808 = vunpack.c.l.b16 %v1193
        %v1809 = vunpack.c.h.b16 %v1193
        %v1810 = vunpack.c.l.b16 %v1194
        %v1811 = vunpack.c.h.b16 %v1194
        %v1812 = vunpack.c.l.b16 %v1195
        %v1813 = vunpack.c.h.b16 %v1195
        %v1814 = vunpack.c.l.b16 %v1196
        %v1815 = vunpack.c.h.b16 %v1196
        %v1816 = vunpack.c.l.b16 %v1197
        %v1817 = vunpack.c.h.b16 %v1197
        %v1818 = vunpack.c.l.b16 %v1198
        %v1819 = vunpack.c.h.b16 %v1198
        %v1820 = vunpack.c.l.b16 %v1199
        %v1821 = vunpack.c.h.b16 %v1199
        %v1822 = vunpack.c.l.b16 %v1200
        %v1823 = vunpack.c.h.b16 %v1200
        %v1824 = vunpack.c.l.b16 %v1201
        %v1825 = vunpack.c.h.b16 %v1201
        %v1826 = vunpack.c.l.b16 %v1202
        %v1827 = vunpack.c.h.b16 %v1202
        %v1828 = vunpack.c.l.b16 %v1203
        %v1829 = vunpack.c.h.b16 %v1203
        %v1830 = vunpack.c.l.b16 %v1204
        %v1831 = vunpack.c.h.b16 %v1204
        %v1832 = vunpack.c.l.b16 %v1205
        %v1833 = vunpack.c.h.b16 %v1205
        %v1834 = vunpack.c.l.b16 %v1206
        %v1835 = vunpack.c.h.b16 %v1206
        %v1836 = vunpack.c.l.b16 %v1207
        %v1837 = vunpack.c.h.b16 %v1207
        %v1838 = vunpack.c.l.b16 %v1208
        %v1839 = vunpack.c.h.b16 %v1208
        %v1840 = vunpack.c.l.b16 %v1209
        %v1841 = vunpack.c.h.b16 %v1209
        %v1842 = vunpack.c.l.b16 %v1210
        %v1843 = vunpack.c.h.b16 %v1210
        %v1844 = vunpack.c.l.b16 %v1211
        %v1845 = vunpack.c.h.b16 %v1211
        %v1846 = vunpack.c.l.b16 %v1212
        %v1847 = vunpack.c.h.b16 %v1212
        %v1848 = vunpack.c.l.b16 %v1213
        %v1849 = vunpack.c.h.b16 %v1213
        %v1850 = vunpack.c.l.b16 %v1214
        %v1851 = vunpack.c.h.b16 %v1214
        %v1852 = vunpack.c.l.b16 %v1215
        %v1853 = vunpack.c.h.b16 %v1215
        %v1854 = vunpack.c.l.b16 %v1216
        %v1855 = vunpack.c.h.b16 %v1216
        %v1856 = vunpack.c.l.b16 %v1217
        %v1857 = vunpack.c.h.b16 %v1217
        %v1858 = vunpack.c.l.b16 %v1218
        %v1859 = vunpack.c.h.b16 %v1218
        %v1860 = vunpack.c.l.b16 %v1219
        %v1861 = vunpack.c.h.b16 %v1219
        %v1862 = vunpack.c.l.b16 %v1220
        %v1863 = vunpack.c.h.b16 %v1220
        %v1864 = vunpack.c.l.b16 %v1221
        %v1865 = vunpack.c.h.b16 %v1221
        %v1866 = vunpack.c.l.b16 %v1222
        %v1867 = vunpack.c.h.b16 %v1222
        %v1868 = vunpack.c.l.b16 %v1223
        %v1869 = vunpack.c.h.b16 %v1223
        %v1870 = vunpack.c.l.b16 %v1224
        %v1871 = vunpack.c.h.b16 %v1224
        %v1872 = vunpack.c.l.b16 %v1225
        %v1873 = vunpack.c.h.b16 %v1225
        %v1874 = vunpack.c.l.b16 %v1226
        %v1875 = vunpack.c.h.b16 %v1226
        %v1876 = vunpack.c.l.b16 %v1227
        %v1877 = vunpack.c.h.b16 %v1227
        %v1878 = vunpack.c.l.b16 %v1228
        %v1879 = vunpack.c.h.b16 %v1228
        %v1880 = vunpack.c.l.b16 %v1229
        %v1881 = vunpack.c.h.b16 %v1229
        %v1882 = vunpack.c.l.b16 %v1230
        %v1883 = vunpack.c.h.b16 %v1230
        %v1884 = vunpack.c.l.b16 %v1231
        %v1885 = vunpack.c.h.b16 %v1231
        %v1886 = vunpack.c.l.b16 %v1232
        %v1887 = vunpack.c.h.b16 %v1232
        %v1888 = vunpack.c.l.b16 %v1233
        %v1889 = vunpack.c.h.b16 %v1233
        %v1890 = vunpack.c.l.b16 %v1234
        %v1891 = vunpack.c.h.b16 %v1234
        %v1892 = vunpack.c.l.b16 %v1235
        %v1893 = vunpack.c.h.b16 %v1235
        %v1894 = vunpack.c.l.b16 %v1236
        %v1895 = vunpack.c.h.b16 %v1236
        %v1896 = vunpack.c.l.b16 %v1237
        %v1897 = vunpack.c.h.b16 %v1237
        %v1898 = vunpack.c.l.b16 %v1238
        %v1899 = vunpack.c.h.b16 %v1238
        %v1900 = vunpack.c.l.b16 %v1239
        %v1901 = vunpack.c.h.b16 %v1239
        %v1902 = vunpack.c.l.b16 %v1240
        %v1903 = vunpack.c.h.b16 %v1240
        %v1904 = vunpack.c.l.b16 %v1241
        %v1905 = vunpack.c.h.b16 %v1241
        %v1906 = vunpack.c.l.b16 %v1242
        %v1907 = vunpack.c.h.b16 %v1242
        %v1908 = vunpack.c.l.b16 %v1243
        %v1909 = vunpack.c.h.b16 %v1243
        %v1910 = vunpack.c.l.b16 %v1244
        %v1911 = vunpack.c.h.b16 %v1244
        %v1912 = vunpack.c.l.b16 %v1245
        %v1913 = vunpack.c.h.b16 %v1245
        %v1914 = vunpack.c.l.b16 %v1246
        %v1915 = vunpack.c.h.b16 %v1246
        %v1916 = vunpack.c.l.b16 %v1247
        %v1917 = vunpack.c.h.b16 %v1247
        %v1918 = vunpack.c.l.b16 %v1248
        %v1919 = vunpack.c.h.b16 %v1248
        %v1920 = vunpack.c.l.b16 %v1249
        %v1921 = vunpack.c.h.b16 %v1249
        %v1922 = vunpack.c.l.b16 %v1250
        %v1923 = vunpack.c.h.b16 %v1250
        %v1924 = vunpack.c.l.b16 %v1251
        %v1925 = vunpack.c.h.b16 %v1251
        %v1926 = vunpack.c.l.b16 %v1252
        %v1927 = vunpack.c.h.b16 %v1252
        %v1928 = vunpack.c.l.b16 %v1253
        %v1929 = vunpack.c.h.b16 %v1253
        %v1930 = vunpack.c.l.b16 %v1254
        %v1931 = vunpack.c.h.b16 %v1254
        %v1932 = vunpack.c.l.b16 %v1255
        %v1933 = vunpack.c.h.b16 %v1255
        %v1934 = vunpack.c.l.b16 %v1256
        %v1935 = vunpack.c.h.b16 %v1256
        %v1936 = vunpack.c.l.b16 %v1257
        %v1937 = vunpack.c.h.b16 %v1257
        %v1938 = vunpack.c.l.b16 %v1258
        %v1939 = vunpack.c.h.b16 %v1258
        %v1940 = vunpack.c.l.b16 %v1259
        %v1941 = vunpack.c.h.b16 %v1259
        %v1942 = vunpack.c.l.b16 %v1260
        %v1943 = vunpack.c.h.b16 %v1260
        %v1944 = vunpack.c.l.b16 %v1261
        %v1945 = vunpack.c.h.b16 %v1261
        %v1946 = vunpack.c.l.b16 %v1262
        %v1947 = vunpack.c.h.b16 %v1262
        %v1948 = vunpack.c.l.b16 %v1263
        %v1949 = vunpack.c.h.b16 %v1263
        %v1950 = vunpack.c.l.b16 %v1264
        %v1951 = vunpack.c.h.b16 %v1264
        %v1952 = vunpack.c.l.b16 %v1265
        %v1953 = vunpack.c.h.b16 %v1265
        %v1954 = vunpack.c.l.b16 %v1266
        %v1955 = vunpack.c.h.b16 %v1266
        %v1956 = vunpack.c.l.b16 %v1267
        %v1957 = vunpack.c.h.b16 %v1267
        %v1958 = vunpack.c.l.b16 %v1268
        %v1959 = vunpack.c.h.b16 %v1268
        %v1960 = vunpack.c.l.b16 %v1269
        %v1961 = vunpack.c.h.b16 %v1269
        %v1962 = vunpack.c.l.b16 %v1270
        %v1963 = vunpack.c.h.b16 %v1270
        %v1964 = vunpack.c.l.b16 %v1271
        %v1965 = vunpack.c.h.b16 %v1271
        %v1966 = vunpack.c.l.b16 %v1272
        %v1967 = vunpack.c.h.b16 %v1272
        %v1968 = vunpack.c.l.b16 %v1273
        %v1969 = vunpack.c.h.b16 %v1273
        %v1970 = vunpack.c.l.b16 %v1274
        %v1971 = vunpack.c.h.b16 %v1274
        %v1972 = vunpack.c.l.b16 %v1275
        %v1973 = vunpack.c.h.b16 %v1275
        %v1974 = vunpack.c.l.b16 %v1276
        %v1975 = vunpack.c.h.b16 %v1276
        %v1976 = vunpack.c.l.b16 %v1277
        %v1977 = vunpack.c.h.b16 %v1277
        %v1978 = vunpack.c.l.b16 %v1278
        %v1979 = vunpack.c.h.b16 %v1278
        %v1980 = vunpack.c.l.b16 %v1279
        %v1981 = vunpack.c.h.b16 %v1279
        %v1982 = vunpack.c.l.b16 %v1280
        %v1983 = vunpack.c.h.b16 %v1280
        %v1984 = vunpack.c.l.b16 %v1281
        %v1985 = vunpack.c.h.b16 %v1281
        %v1986 = vunpack.c.l.b16 %v1282
        %v1987 = vunpack.c.h.b16 %v1282
        %v1988 = vunpack.c.l.b16 %v1283
        %v1989 = vunpack.c.h.b16 %v1283
        %v1990 = vunpack.c.l.b16 %v1284
        %v1991 = vunpack.c.h.b16 %v1284
        %v1992 = vunpack.c.l.b16 %v1285
        %v1993 = vunpack.c.h.b16 %v1285
        %v1994 = vunpack.c.l.b16 %v1286
        %v1995 = vunpack.c.h.b16 %v1286
        %v1996 = vunpack.c.l.b16 %v1287
        %v1997 = vunpack.c.h.b16 %v1287
        %v1998 = vunpack.c.l.b16 %v1288
        %v1999 = vunpack.c.h.b16 %v1288
        %v2000 = vunpack.c.l.b16 %v1289
        %v2001 = vunpack.c.h.b16 %v1289
        %v2002 = vunpack.c.l.b16 %v1290
        %v2003 = vunpack.c.h.b16 %v1290
        %v2004 = vunpack.c.l.b16 %v1291
        %v2005 = vunpack.c.h.b16 %v1291
        %v2006 = vunpack.c.l.b16 %v1292
        %v2007 = vunpack.c.h.b16 %v1292
        %v2008 = vunpack.c.l.b16 %v1293
        %v2009 = vunpack.c.h.b16 %v1293
        %v2010 = vunpack.c.l.b16 %v1294
        %v2011 = vunpack.c.h.b16 %v1294
        %v2012 = vunpack.c.l.b16 %v1295
        %v2013 = vunpack.c.h.b16 %v1295
        %v2014 = vunpack.c.l.b16 %v1296
        %v2015 = vunpack.c.h.b16 %v1296
        %v2016 = vunpack.c.l.b16 %v1297
        %v2017 = vunpack.c.h.b16 %v1297
        %v2018 = vunpack.c.l.b16 %v1298
        %v2019 = vunpack.c.h.b16 %v1298
        %v2020 = vunpack.c.l.b16 %v1299
        %v2021 = vunpack.c.h.b16 %v1299
        %v2022 = vunpack.c.l.b16 %v1300
        %v2023 = vunpack.c.h.b16 %v1300
        %v2024 = vunpack.c.l.b16 %v1301
        %v2025 = vunpack.c.h.b16 %v1301
        %v2026 = vunpack.c.l.b16 %v1302
        %v2027 = vunpack.c.h.b16 %v1302
        %v2028 = vunpack.c.l.b16 %v1303
        %v2029 = vunpack.c.h.b16 %v1303
        %v2030 = vunpack.c.l.b16 %v1304
        %v2031 = vunpack.c.h.b16 %v1304
        %v2032 = vunpack.c.l.b16 %v1305
        %v2033 = vunpack.c.h.b16 %v1305
        %v2034 = vunpack.c.l.b16 %v1306
        %v2035 = vunpack.c.h.b16 %v1306
        %v2036 = vunpack.c.l.b16 %v1307
        %v2037 = vunpack.c.h.b16 %v1307
        %v2038 = vunpack.c.l.b16 %v1308
        %v2039 = vunpack.c.h.b16 %v1308
        %v2040 = vunpack.c.l.b16 %v1309
        %v2041 = vunpack.c.h.b16 %v1309
        %v2042 = vunpack.c.l.b16 %v1310
        %v2043 = vunpack.c.h.b16 %v1310
        %v2044 = vunpack.c.l.b16 %v1311
        %v2045 = vunpack.c.h.b16 %v1311
        %v2046 = vunpack.c.l.b16 %v1312
        %v2047 = vunpack.c.h.b16 %v1312
        %v2048 = vunpack.c.l.b16 %v1313
        %v2049 = vunpack.c.h.b16 %v1313
        %v2050 = vunpack.c.l.b16 %v1314
        %v2051 = vunpack.c.h.b16 %v1314
        %v2052 = vunpack.c.l.b16 %v1315
        %v2053 = vunpack.c.h.b16 %v1315
        %v2054 = vunpack.c.l.b16 %v1316
        %v2055 = vunpack.c.h.b16 %v1316
        %v2056 = vunpack.c.l.b16 %v1317
        %v2057 = vunpack.c.h.b16 %v1317
        %v2058 = vunpack.c.l.b16 %v1318
        %v2059 = vunpack.c.h.b16 %v1318
        %v2060 = vunpack.c.l.b16 %v1319
        %v2061 = vunpack.c.h.b16 %v1319
        %v2062 = vunpack.c.l.b16 %v1320
        %v2063 = vunpack.c.h.b16 %v1320
        %v2064 = vunpack.c.l.b16 %v1321
        %v2065 = vunpack.c.h.b16 %v1321
        %v2066 = vunpack.c.l.b16 %v1322
        %v2067 = vunpack.c.h.b16 %v1322
        %v2068 = vunpack.c.l.b16 %v1323
        %v2069 = vunpack.c.h.b16 %v1323
        %v2070 = vunpack.c.l.b16 %v1324
        %v2071 = vunpack.c.h.b16 %v1324
        %v2072 = vunpack.c.l.b16 %v1325
        %v2073 = vunpack.c.h.b16 %v1325
        %v2074 = vunpack.c.l.b16 %v1326
        %v2075 = vunpack.c.h.b16 %v1326
        %v2076 = vunpack.c.l.b16 %v1327
        %v2077 = vunpack.c.h.b16 %v1327
        %v2078 = vunpack.c.l.b16 %v1328
        %v2079 = vunpack.c.h.b16 %v1328
        %v2080 = vunpack.c.l.b16 %v1329
        %v2081 = vunpack.c.h.b16 %v1329
        %v2082 = vunpack.c.l.b16 %v1330
        %v2083 = vunpack.c.h.b16 %v1330
        %v2084 = vunpack.c.l.b16 %v1331
        %v2085 = vunpack.c.h.b16 %v1331
        %v2086 = vunpack.c.l.b16 %v1332
        %v2087 = vunpack.c.h.b16 %v1332
        %v2088 = vunpack.c.l.b16 %v1333
        %v2089 = vunpack.c.h.b16 %v1333
        %v2090 = vunpack.c.l.b16 %v1334
        %v2091 = vunpack.c.h.b16 %v1334
        %v2092 = vunpack.c.l.b16 %v1335
        %v2093 = vunpack.c.h.b16 %v1335
        %v2094 = vunpack.c.l.b16 %v1336
        %v2095 = vunpack.c.h.b16 %v1336
        %v2096 = vunpack.c.l.b16 %v1337
        %v2097 = vunpack.c.h.b16 %v1337
        %v2098 = vunpack.c.l.b16 %v1338
        %v2099 = vunpack.c.h.b16 %v1338
        %v2100 = vunpack.c.l.b16 %v1339
        %v2101 = vunpack.c.h.b16 %v1339
        %v2102 = vunpack.c.l.b16 %v1340
        %v2103 = vunpack.c.h.b16 %v1340
        %v2104 = vunpack.c.l.b16 %v1341
        %v2105 = vunpack.c.h.b16 %v1341
        %v2106 = vunpack.c.l.b16 %v1342
        %v2107 = vunpack.c.h.b16 %v1342
        %v2108 = vunpack.c.l.b16 %v1343
        %v2109 = vunpack.c.h.b16 %v1343
        %v2110 = vunpack.c.l.b16 %v1344
        %v2111 = vunpack.c.h.b16 %v1344
        %v2112 = vunpack.c.l.b16 %v1345
        %v2113 = vunpack.c.h.b16 %v1345
        %v2114 = vunpack.c.l.b16 %v1346
        %v2115 = vunpack.c.h.b16 %v1346
        %v2116 = vunpack.c.l.b16 %v1347
        %v2117 = vunpack.c.h.b16 %v1347
        %v2118 = vunpack.c.l.b16 %v1348
        %v2119 = vunpack.c.h.b16 %v1348
        %v2120 = vunpack.c.l.b16 %v1349
        %v2121 = vunpack.c.h.b16 %v1349
        %v2122 = vunpack.c.l.b16 %v1350
        %v2123 = vunpack.c.h.b16 %v1350
        %v2124 = vunpack.c.l.b16 %v1351
        %v2125 = vunpack.c.h.b16 %v1351
        %v2126 = vunpack.c.l.b16 %v1352
        %v2127 = vunpack.c.h.b16 %v1352
        %v2128 = vunpack.c.l.b16 %v1353
        %v2129 = vunpack.c.h.b16 %v1353
        %v2130 = vunpack.c.l.b16 %v1354
        %v2131 = vunpack.c.h.b16 %v1354
        %v2132 = vunpack.c.l.b16 %v1355
        %v2133 = vunpack.c.h.b16 %v1355
        %v2134 = vunpack.c.l.b16 %v1356
        %v2135 = vunpack.c.h.b16 %v1356
        %v2136 = vunpack.c.l.b16 %v1357
        %v2137 = vunpack.c.h.b16 %v1357
        %v2138 = vunpack.c.l.b16 %v1358
        %v2139 = vunpack.c.h.b16 %v1358
        %v2140 = vunpack.c.l.b16 %v1359
        %v2141 = vunpack.c.h.b16 %v1359
        %v2142 = vunpack.c.l.b16 %v1360
        %v2143 = vunpack.c.h.b16 %v1360
        %v2144 = vunpack.c.l.b16 %v1361
        %v2145 = vunpack.c.h.b16 %v1361
        %v2146 = vunpack.c.l.b16 %v1362
        %v2147 = vunpack.c.h.b16 %v1362
        %v2148 = vunpack.c.l.b16 %v1363
        %v2149 = vunpack.c.h.b16 %v1363
        %v2150 = vunpack.c.l.b16 %v1364
        %v2151 = vunpack.c.h.b16 %v1364
        %v2152 = vunpack.c.l.b16 %v1365
        %v2153 = vunpack.c.h.b16 %v1365
        %v2154 = vunpack.c.l.b16 %v1366
        %v2155 = vunpack.c.h.b16 %v1366
        %v2156 = vunpack.c.l.b16 %v1367
        %v2157 = vunpack.c.h.b16 %v1367
        %v2158 = vunpack.c.l.b16 %v1368
        %v2159 = vunpack.c.h.b16 %v1368
        %v2160 = vunpack.c.l.b16 %v1369
        %v2161 = vunpack.c.h.b16 %v1369
        %v2162 = vunpack.c.l.b16 %v1370
        %v2163 = vunpack.c.h.b16 %v1370
        %v2164 = vunpack.c.l.b16 %v1371
        %v2165 = vunpack.c.h.b16 %v1371
        %v2166 = vunpack.c.l.b16 %v1372
        %v2167 = vunpack.c.h.b16 %v1372
        %v2168 = vunpack.c.l.b16 %v1373
        %v2169 = vunpack.c.h.b16 %v1373
        %v2170 = vunpack.c.l.b16 %v1374
        %v2171 = vunpack.c.h.b16 %v1374
        %v2172 = vunpack.c.l.b16 %v1375
        %v2173 = vunpack.c.h.b16 %v1375
        %v2174 = vunpack.c.l.b16 %v1376
        %v2175 = vunpack.c.h.b16 %v1376
        %v2176 = vunpack.c.l.b16 %v1377
        %v2177 = vunpack.c.h.b16 %v1377
        %v2178 = vunpack.c.l.b16 %v1378
        %v2179 = vunpack.c.h.b16 %v1378
        %v2180 = vunpack.c.l.b16 %v1379
        %v2181 = vunpack.c.h.b16 %v1379
        %v2182 = vunpack.c.l.b16 %v1380
        %v2183 = vunpack.c.h.b16 %v1380
        %v2184 = vunpack.c.l.b16 %v1381
        %v2185 = vunpack.c.h.b16 %v1381
        %v2186 = vunpack.c.l.b16 %v1382
        %v2187 = vunpack.c.h.b16 %v1382
        %v2188 = vunpack.c.l.b16 %v1383
        %v2189 = vunpack.c.h.b16 %v1383
        %v2190 = vunpack.c.l.b16 %v1384
        %v2191 = vunpack.c.h.b16 %v1384
        %v2192 = vunpack.c.l.b16 %v1385
        %v2193 = vunpack.c.h.b16 %v1385
        %v2194 = vunpack.c.l.b16 %v1386
        %v2195 = vunpack.c.h.b16 %v1386
        %v2196 = vpack.c.b16 %v1692, %v1684
        %v2197 = vpack.c.b16 %v1693, %v1685
        %v2198 = vpack.c.b16 %v1694, %v1686
        %v2199 = vpack.c.b16 %v1695, %v1687
        %v2200 = vpack.c.b16 %v1696, %v1688
        %v2201 = vpack.c.b16 %v1697, %v1689
        %v2202 = vpack.c.b16 %v1698, %v1690
        %v2203 = vpack.c.b16 %v1699, %v1691
        %v2204 = vpack.c.b16 %v1708, %v1700
        %v2205 = vpack.c.b16 %v1709, %v1701
        %v2206 = vpack.c.b16 %v1710, %v1702
        %v2207 = vpack.c.b16 %v1711, %v1703
        %v2208 = vpack.c.b16 %v1712, %v1704
        %v2209 = vpack.c.b16 %v1713, %v1705
        %v2210 = vpack.c.b16 %v1714, %v1706
        %v2211 = vpack.c.b16 %v1715, %v1707
        %v2212 = vpack.c.b16 %v1724, %v1716
        %v2213 = vpack.c.b16 %v1725, %v1717
        %v2214 = vpack.c.b16 %v1726, %v1718
        %v2215 = vpack.c.b16 %v1727, %v1719
        %v2216 = vpack.c.b16 %v1728, %v1720
        %v2217 = vpack.c.b16 %v1729, %v1721
        %v2218 = vpack.c.b16 %v1730, %v1722
        %v2219 = vpack.c.b16 %v1731, %v1723
        %v2220 = vpack.c.b16 %v1740, %v1732
        %v2221 = vpack.c.b16 %v1741, %v1733
        %v2222 = vpack.c.b16 %v1742, %v1734
        %v2223 = vpack.c.b16 %v1743, %v1735
        %v2224 = vpack.c.b16 %v1744, %v1736
        %v2225 = vpack.c.b16 %v1745, %v1737
        %v2226 = vpack.c.b16 %v1746, %v1738
        %v2227 = vpack.c.b16 %v1747, %v1739
        %v2228 = vpack.c.b16 %v1756, %v1748
        %v2229 = vpack.c.b16 %v1757, %v1749
        %v2230 = vpack.c.b16 %v1758, %v1750
        %v2231 = vpack.c.b16 %v1759, %v1751
        %v2232 = vpack.c.b16 %v1760, %v1752
        %v2233 = vpack.c.b16 %v1761, %v1753
        %v2234 = vpack.c.b16 %v1762, %v1754
        %v2235 = vpack.c.b16 %v1763, %v1755
        %v2236 = vpack.c.b16 %v1772, %v1764
        %v2237 = vpack.c.b16 %v1773, %v1765
        %v2238 = vpack.c.b16 %v1774, %v1766
        %v2239 = vpack.c.b16 %v1775, %v1767
        %v2240 = vpack.c.b16 %v1776, %v1768
        %v2241 = vpack.c.b16 %v1777, %v1769
        %v2242 = vpack.c.b16 %v1778, %v1770
        %v2243 = vpack.c.b16 %v1779, %v1771
        %v2244 = vpack.c.b16 %v1788, %v1780
        %v2245 = vpack.c.b16 %v1789, %v1781
        %v2246 = vpack.c.b16 %v1790, %v1782
        %v2247 = vpack.c.b16 %v1791, %v1783
        %v2248 = vpack.c.b16 %v1792, %v1784
        %v2249 = vpack.c.b16 %v1793, %v1785
        %v2250 = vpack.c.b16 %v1794, %v1786
        %v2251 = vpack.c.b16 %v1795, %v1787
        %v2252 = vpack.c.b16 %v1804, %v1796
        %v2253 = vpack.c.b16 %v1805, %v1797
        %v2254 = vpack.c.b16 %v1806, %v1798
        %v2255 = vpack.c.b16 %v1807, %v1799
        %v2256 = vpack.c.b16 %v1808, %v1800
        %v2257 = vpack.c.b16 %v1809, %v1801
        %v2258 = vpack.c.b16 %v1810, %v1802
        %v2259 = vpack.c.b16 %v1811, %v1803
        %v2260 = vpack.c.b16 %v1820, %v1812
        %v2261 = vpack.c.b16 %v1821, %v1813
        %v2262 = vpack.c.b16 %v1822, %v1814
        %v2263 = vpack.c.b16 %v1823, %v1815
        %v2264 = vpack.c.b16 %v1824, %v1816
        %v2265 = vpack.c.b16 %v1825, %v1817
        %v2266 = vpack.c.b16 %v1826, %v1818
        %v2267 = vpack.c.b16 %v1827, %v1819
        %v2268 = vpack.c.b16 %v1836, %v1828
        %v2269 = vpack.c.b16 %v1837, %v1829
        %v2270 = vpack.c.b16 %v1838, %v1830
        %v2271 = vpack.c.b16 %v1839, %v1831
        %v2272 = vpack.c.b16 %v1840, %v1832
        %v2273 = vpack.c.b16 %v1841, %v1833
        %v2274 = vpack.c.b16 %v1842, %v1834
        %v2275 = vpack.c.b16 %v1843, %v1835
        %v2276 = vpack.c.b16 %v1852, %v1844
        %v2277 = vpack.c.b16 %v1853, %v1845
        %v2278 = vpack.c.b16 %v1854, %v1846
        %v2279 = vpack.c.b16 %v1855, %v1847
        %v2280 = vpack.c.b16 %v1856, %v1848
        %v2281 = vpack.c.b16 %v1857, %v1849
        %v2282 = vpack.c.b16 %v1858, %v1850
        %v2283 = vpack.c.b16 %v1859, %v1851
        %v2284 = vpack.c.b16 %v1868, %v1860
        %v2285 = vpack.c.b16 %v1869, %v1861
        %v2286 = vpack.c.b16 %v1870, %v1862
        %v2287 = vpack.c.b16 %v1871, %v1863
        %v2288 = vpack.c.b16 %v1872, %v1864
        %v2289 = vpack.c.b16 %v1873, %v1865
        %v2290 = vpack.c.b16 %v1874, %v1866
        %v2291 = vpack.c.b16 %v1875, %v1867
        %v2292 = vpack.c.b16 %v1884, %v1876
        %v2293 = vpack.c.b16 %v1885, %v1877
        %v2294 = vpack.c.b16 %v1886, %v1878
        %v2295 = vpack.c.b16 %v1887, %v1879
        %v2296 = vpack.c.b16 %v1888, %v1880
        %v2297 = vpack.c.b16 %v1889, %v1881
        %v2298 = vpack.c.b16 %v1890, %v1882
        %v2299 = vpack.c.b16 %v1891, %v1883
        %v2300 = vpack.c.b16 %v1900, %v1892
        %v2301 = vpack.c.b16 %v1901, %v1893
        %v2302 = vpack.c.b16 %v1902, %v1894
        %v2303 = vpack.c.b16 %v1903, %v1895
        %v2304 = vpack.c.b16 %v1904, %v1896
        %v2305 = vpack.c.b16 %v1905, %v1897
        %v2306 = vpack.c.b16 %v1906, %v1898
        %v2307 = vpack.c.b16 %v1907, %v1899
        %v2308 = vpack.c.b16 %v1916, %v1908
        %v2309 = vpack.c.b16 %v1917, %v1909
        %v2310 = vpack.c.b16 %v1918, %v1910
        %v2311 = vpack.c.b16 %v1919, %v1911
        %v2312 = vpack.c.b16 %v1920, %v1912
        %v2313 = vpack.c.b16 %v1921, %v1913
        %v2314 = vpack.c.b16 %v1922, %v1914
        %v2315 = vpack.c.b16 %v1923, %v1915
        %v2316 = vpack.c.b16 %v1932, %v1924
        %v2317 = vpack.c.b16 %v1933, %v1925
        %v2318 = vpack.c.b16 %v1934, %v1926
        %v2319 = vpack.c.b16 %v1935, %v1927
        %v2320 = vpack.c.b16 %v1936, %v1928
        %v2321 = vpack.c.b16 %v1937, %v1929
        %v2322 = vpack.c.b16 %v1938, %v1930
        %v2323 = vpack.c.b16 %v1939, %v1931
        %v2324 = vpack.c.b16 %v1948, %v1940
        %v2325 = vpack.c.b16 %v1949, %v1941
        %v2326 = vpack.c.b16 %v1950, %v1942
        %v2327 = vpack.c.b16 %v1951, %v1943
        %v2328 = vpack.c.b16 %v1952, %v1944
        %v2329 = vpack.c.b16 %v1953, %v1945
        %v2330 = vpack.c.b16 %v1954, %v1946
        %v2331 = vpack.c.b16 %v1955, %v1947
        %v2332 = vpack.c.b16 %v1964, %v1956
        %v2333 = vpack.c.b16 %v1965, %v1957
        %v2334 = vpack.c.b16 %v1966, %v1958
        %v2335 = vpack.c.b16 %v1967, %v1959
        %v2336 = vpack.c.b16 %v1968, %v1960
        %v2337 = vpack.c.b16 %v1969, %v1961
        %v2338 = vpack.c.b16 %v1970, %v1962
        %v2339 = vpack.c.b16 %v1971, %v1963
        %v2340 = vpack.c.b16 %v1980, %v1972
        %v2341 = vpack.c.b16 %v1981, %v1973
        %v2342 = vpack.c.b16 %v1982, %v1974
        %v2343 = vpack.c.b16 %v1983, %v1975
        %v2344 = vpack.c.b16 %v1984, %v1976
        %v2345 = vpack.c.b16 %v1985, %v1977
        %v2346 = vpack.c.b16 %v1986, %v1978
        %v2347 = vpack.c.b16 %v1987, %v1979
        %v2348 = vpack.c.b16 %v1996, %v1988
        %v2349 = vpack.c.b16 %v1997, %v1989
        %v2350 = vpack.c.b16 %v1998, %v1990
        %v2351 = vpack.c.b16 %v1999, %v1991
        %v2352 = vpack.c.b16 %v2000, %v1992
        %v2353 = vpack.c.b16 %v2001, %v1993
        %v2354 = vpack.c.b16 %v2002, %v1994
        %v2355 = vpack.c.b16 %v2003, %v1995
        %v2356 = vpack.c.b16 %v2012, %v2004
        %v2357 = vpack.c.b16 %v2013, %v2005
        %v2358 = vpack.c.b16 %v2014, %v2006
        %v2359 = vpack.c.b16 %v2015, %v2007
        %v2360 = vpack.c.b16 %v2016, %v2008
        %v2361 = vpack.c.b16 %v2017, %v2009
        %v2362 = vpack.c.b16 %v2018, %v2010
        %v2363 = vpack.c.b16 %v2019, %v2011
        %v2364 = vpack.c.b16 %v2028, %v2020
        %v2365 = vpack.c.b16 %v2029, %v2021
        %v2366 = vpack.c.b16 %v2030, %v2022
        %v2367 = vpack.c.b16 %v2031, %v2023
        %v2368 = vpack.c.b16 %v2032, %v2024
        %v2369 = vpack.c.b16 %v2033, %v2025
        %v2370 = vpack.c.b16 %v2034, %v2026
        %v2371 = vpack.c.b16 %v2035, %v2027
        %v2372 = vpack.c.b16 %v2044, %v2036
        %v2373 = vpack.c.b16 %v2045, %v2037
        %v2374 = vpack.c.b16 %v2046, %v2038
        %v2375 = vpack.c.b16 %v2047, %v2039
        %v2376 = vpack.c.b16 %v2048, %v2040
        %v2377 = vpack.c.b16 %v2049, %v2041
        %v2378 = vpack.c.b16 %v2050, %v2042
        %v2379 = vpack.c.b16 %v2051, %v2043
        %v2380 = vpack.c.b16 %v2060, %v2052
        %v2381 = vpack.c.b16 %v2061, %v2053
        %v2382 = vpack.c.b16 %v2062, %v2054
        %v2383 = vpack.c.b16 %v2063, %v2055
        %v2384 = vpack.c.b16 %v2064, %v2056
        %v2385 = vpack.c.b16 %v2065, %v2057
        %v2386 = vpack.c.b16 %v2066, %v2058
        %v2387 = vpack.c.b16 %v2067, %v2059
        %v2388 = vpack.c.b16 %v2076, %v2068
        %v2389 = vpack.c.b16 %v2077, %v2069
        %v2390 = vpack.c.b16 %v2078, %v2070
        %v2391 = vpack.c.b16 %v2079, %v2071
        %v2392 = vpack.c.b16 %v2080, %v2072
        %v2393 = vpack.c.b16 %v2081, %v2073
        %v2394 = vpack.c.b16 %v2082, %v2074
        %v2395 = vpack.c.b16 %v2083, %v2075
        %v2396 = vpack.c.b16 %v2092, %v2084
        %v2397 = vpack.c.b16 %v2093, %v2085
        %v2398 = vpack.c.b16 %v2094, %v2086
        %v2399 = vpack.c.b16 %v2095, %v2087
        %v2400 = vpack.c.b16 %v2096, %v2088
        %v2401 = vpack.c.b16 %v2097, %v2089
        %v2402 = vpack.c.b16 %v2098, %v2090
        %v2403 = vpack.c.b16 %v2099, %v2091
        %v2404 = vpack.c.b16 %v2108, %v2100
        %v2405 = vpack.c.b16 %v2109, %v2101
        %v2406 = vpack.c.b16 %v2110, %v2102
        %v2407 = vpack.c.b16 %v2111, %v2103
        %v2408 = vpack.c.b16 %v2112, %v2104
        %v2409 = vpack.c.b16 %v2113, %v2105
        %v2410 = vpack.c.b16 %v2114, %v2106
        %v2411 = vpack.c.b16 %v2115, %v2107
        %v2412 = vpack.c.b16 %v2124, %v2116
        %v2413 = vpack.c.b16 %v2125, %v2117
        %v2414 = vpack.c.b16 %v2126, %v2118
        %v2415 = vpack.c.b16 %v2127, %v2119
        %v2416 = vpack.c.b16 %v2128, %v2120
        %v2417 = vpack.c.b16 %v2129, %v2121
        %v2418 = vpack.c.b16 %v2130, %v2122
        %v2419 = vpack.c.b16 %v2131, %v2123
        %v2420 = vpack.c.b16 %v2140, %v2132
        %v2421 = vpack.c.b16 %v2141, %v2133
        %v2422 = vpack.c.b16 %v2142, %v2134
        %v2423 = vpack.c.b16 %v2143, %v2135
        %v2424 = vpack.c.b16 %v2144, %v2136
        %v2425 = vpack.c.b16 %v2145, %v2137
        %v2426 = vpack.c.b16 %v2146, %v2138
        %v2427 = vpack.c.b16 %v2147, %v2139
        %v2428 = vpack.c.b16 %v2156, %v2148
        %v2429 = vpack.c.b16 %v2157, %v2149
        %v2430 = vpack.c.b16 %v2158, %v2150
        %v2431 = vpack.c.b16 %v2159, %v2151
        %v2432 = vpack.c.b16 %v2160, %v2152
        %v2433 = vpack.c.b16 %v2161, %v2153
        %v2434 = vpack.c.b16 %v2162, %v2154
        %v2435 = vpack.c.b16 %v2163, %v2155
        %v2436 = vpack.c.b16 %v2172, %v2164
        %v2437 = vpack.c.b16 %v2173, %v2165
        %v2438 = vpack.c.b16 %v2174, %v2166
        %v2439 = vpack.c.b16 %v2175, %v2167
        %v2440 = vpack.c.b16 %v2176, %v2168
        %v2441 = vpack.c.b16 %v2177, %v2169
        %v2442 = vpack.c.b16 %v2178, %v2170
        %v2443 = vpack.c.b16 %v2179, %v2171
        %v2444 = vpack.c.b16 %v2188, %v2180
        %v2445 = vpack.c.b16 %v2189, %v2181
        %v2446 = vpack.c.b16 %v2190, %v2182
        %v2447 = vpack.c.b16 %v2191, %v2183
        %v2448 = vpack.c.b16 %v2192, %v2184
        %v2449 = vpack.c.b16 %v2193, %v2185
        %v2450 = vpack.c.b16 %v2194, %v2186
        %v2451 = vpack.c.b16 %v2195, %v2187
        %2708 = vmatprep.subr.bf16.mxu0 %v2253
        %2709 = vmatpush1.bf16.msra.mxu0 %v2252
        %2710 = vmatprep.subr.bf16.mxu0 %v2245
        %2711 = vmatpush1.bf16.msra.mxu0 %v2244
        %2712 = vmatprep.subr.bf16.mxu0 %v2237
        %2713 = vmatpush1.bf16.msra.mxu0 %v2236
        %2714 = vmatprep.subr.bf16.mxu0 %v2229
        %2715 = vmatpush1.bf16.msra.mxu0 %v2228
        %2716 = vmatprep.subr.bf16.mxu0 %v2221
        %2717 = vmatpush1.bf16.msra.mxu0 %v2220
        %2718 = vmatprep.subr.bf16.mxu0 %v2213
        %2719 = vmatpush1.bf16.msra.mxu0 %v2212
        %2720 = vmatprep.subr.bf16.mxu0 %v2205
        %2721 = vmatpush1.bf16.msra.mxu0 %v2204
        %2722 = vmatprep.subr.bf16.mxu0 %v2197
        %2723 = vmatpush1.bf16.msra.mxu0 %v2196
        %2724 = vmatprep.subr.bf16.mxu0 %v2317
        %2725 = vmatpush2.bf16.msra.mxu0 %v2316
        %2726 = vmatprep.subr.bf16.mxu0 %v2309
        %2727 = vmatpush2.bf16.msra.mxu0 %v2308
        %2728 = vmatprep.subr.bf16.mxu0 %v2301
        %2729 = vmatpush2.bf16.msra.mxu0 %v2300
        %2730 = vmatprep.subr.bf16.mxu0 %v2293
        %2731 = vmatpush2.bf16.msra.mxu0 %v2292
        %2732 = vmatprep.subr.bf16.mxu0 %v2285
        %2733 = vmatpush2.bf16.msra.mxu0 %v2284
        %2734 = vmatprep.subr.bf16.mxu0 %v2277
        %2735 = vmatpush2.bf16.msra.mxu0 %v2276
        %2736 = vmatprep.subr.bf16.mxu0 %v2269
        %2737 = vmatpush2.bf16.msra.mxu0 %v2268
        %2738 = vmatprep.subr.bf16.mxu0 %v2261
        %2739 = vmatpush2.bf16.msra.mxu0 %v2260
        %2740 = vmatprep.mubr.bf16.mxu0 %v1128
        %2741 = vmatmul.mubr.bf16.gmra.mxu0 %v1127
        %v2742 = vpop.f32.mrf.mxu0
        %v2743 = vadd.f32 %v1391, %v2742
        %v2744 = vpop.f32.mrf.mxu0
        %v2745 = vadd.f32 %v1395, %v2744
        %v2746 = vpop.f32.mrf.mxu0
        %v2747 = vadd.f32 %v1391, %v2746
        %v2748 = vpop.f32.mrf.mxu0
        %v2749 = vadd.f32 %v1395, %v2748
        %2750 = vdwg.mxu0
        %2751 = vmatprep.subr.bf16.mxu0 %v2381
        %2752 = vmatpush1.bf16.msra.mxu0 %v2380
        %2753 = vmatprep.subr.bf16.mxu0 %v2373
        %2754 = vmatpush1.bf16.msra.mxu0 %v2372
        %2755 = vmatprep.subr.bf16.mxu0 %v2365
        %2756 = vmatpush1.bf16.msra.mxu0 %v2364
        %2757 = vmatprep.subr.bf16.mxu0 %v2357
        %2758 = vmatpush1.bf16.msra.mxu0 %v2356
        %2759 = vmatprep.subr.bf16.mxu0 %v2349
        %2760 = vmatpush1.bf16.msra.mxu0 %v2348
        %2761 = vmatprep.subr.bf16.mxu0 %v2341
        %2762 = vmatpush1.bf16.msra.mxu0 %v2340
        %2763 = vmatprep.subr.bf16.mxu0 %v2333
        %2764 = vmatpush1.bf16.msra.mxu0 %v2332
        %2765 = vmatprep.subr.bf16.mxu0 %v2325
        %2766 = vmatpush1.bf16.msra.mxu0 %v2324
        %2767 = vmatprep.subr.bf16.mxu0 %v2445
        %2768 = vmatpush2.bf16.msra.mxu0 %v2444
        %2769 = vmatprep.subr.bf16.mxu0 %v2437
        %2770 = vmatpush2.bf16.msra.mxu0 %v2436
        %2771 = vmatprep.subr.bf16.mxu0 %v2429
        %2772 = vmatpush2.bf16.msra.mxu0 %v2428
        %2773 = vmatprep.subr.bf16.mxu0 %v2421
        %2774 = vmatpush2.bf16.msra.mxu0 %v2420
        %2775 = vmatprep.subr.bf16.mxu0 %v2413
        %2776 = vmatpush2.bf16.msra.mxu0 %v2412
        %2777 = vmatprep.subr.bf16.mxu0 %v2405
        %2778 = vmatpush2.bf16.msra.mxu0 %v2404
        %2779 = vmatprep.subr.bf16.mxu0 %v2397
        %2780 = vmatpush2.bf16.msra.mxu0 %v2396
        %2781 = vmatprep.subr.bf16.mxu0 %v2389
        %2782 = vmatpush2.bf16.msra.mxu0 %v2388
        %2783 = vmatprep.mubr.bf16.mxu0 %v1130
        %2784 = vmatmul.mubr.bf16.gmra.mxu0 %v1129
        %v2785 = vpop.f32.mrf.mxu0
        %v2786 = vadd.f32 %v2743, %v2785
        %v2787 = vpop.f32.mrf.mxu0
        %v2788 = vadd.f32 %v2745, %v2787
        %v2789 = vpop.f32.mrf.mxu0
        %v2790 = vadd.f32 %v2747, %v2789
        %v2791 = vpop.f32.mrf.mxu0
        %v2792 = vadd.f32 %v2749, %v2791
        %2793 = vdwg.mxu0
        %2794 = vmatprep.subr.bf16.mxu0 %v2255
        %2795 = vmatpush1.bf16.msra.mxu0 %v2254
        %2796 = vmatprep.subr.bf16.mxu0 %v2247
        %2797 = vmatpush1.bf16.msra.mxu0 %v2246
        %2798 = vmatprep.subr.bf16.mxu0 %v2239
        %2799 = vmatpush1.bf16.msra.mxu0 %v2238
        %2800 = vmatprep.subr.bf16.mxu0 %v2231
        %2801 = vmatpush1.bf16.msra.mxu0 %v2230
        %2802 = vmatprep.subr.bf16.mxu0 %v2223
        %2803 = vmatpush1.bf16.msra.mxu0 %v2222
        %2804 = vmatprep.subr.bf16.mxu0 %v2215
        %2805 = vmatpush1.bf16.msra.mxu0 %v2214
        %2806 = vmatprep.subr.bf16.mxu0 %v2207
        %2807 = vmatpush1.bf16.msra.mxu0 %v2206
        %2808 = vmatprep.subr.bf16.mxu0 %v2199
        %2809 = vmatpush1.bf16.msra.mxu0 %v2198
        %2810 = vmatprep.subr.bf16.mxu0 %v2319
        %2811 = vmatpush2.bf16.msra.mxu0 %v2318
        %2812 = vmatprep.subr.bf16.mxu0 %v2311
        %2813 = vmatpush2.bf16.msra.mxu0 %v2310
        %2814 = vmatprep.subr.bf16.mxu0 %v2303
        %2815 = vmatpush2.bf16.msra.mxu0 %v2302
        %2816 = vmatprep.subr.bf16.mxu0 %v2295
        %2817 = vmatpush2.bf16.msra.mxu0 %v2294
        %2818 = vmatprep.subr.bf16.mxu0 %v2287
        %2819 = vmatpush2.bf16.msra.mxu0 %v2286
        %2820 = vmatprep.subr.bf16.mxu0 %v2279
        %2821 = vmatpush2.bf16.msra.mxu0 %v2278
        %2822 = vmatprep.subr.bf16.mxu0 %v2271
        %2823 = vmatpush2.bf16.msra.mxu0 %v2270
        %2824 = vmatprep.subr.bf16.mxu0 %v2263
        %2825 = vmatpush2.bf16.msra.mxu0 %v2262
        %2826 = vmatprep.mubr.bf16.mxu0 %v1128
        %2827 = vmatmul.mubr.bf16.gmra.mxu0 %v1127
        %v2828 = vpop.f32.mrf.mxu0
        %v2829 = vadd.f32 %v1399, %v2828
        %v2830 = vpop.f32.mrf.mxu0
        %v2831 = vadd.f32 %v1403, %v2830
        %v2832 = vpop.f32.mrf.mxu0
        %v2833 = vadd.f32 %v1399, %v2832
        %v2834 = vpop.f32.mrf.mxu0
        %v2835 = vadd.f32 %v1403, %v2834
        %2836 = vdwg.mxu0
        %2837 = vmatprep.subr.bf16.mxu0 %v2383
        %2838 = vmatpush1.bf16.msra.mxu0 %v2382
        %2839 = vmatprep.subr.bf16.mxu0 %v2375
        %2840 = vmatpush1.bf16.msra.mxu0 %v2374
        %2841 = vmatprep.subr.bf16.mxu0 %v2367
        %2842 = vmatpush1.bf16.msra.mxu0 %v2366
        %2843 = vmatprep.subr.bf16.mxu0 %v2359
        %2844 = vmatpush1.bf16.msra.mxu0 %v2358
        %2845 = vmatprep.subr.bf16.mxu0 %v2351
        %2846 = vmatpush1.bf16.msra.mxu0 %v2350
        %2847 = vmatprep.subr.bf16.mxu0 %v2343
        %2848 = vmatpush1.bf16.msra.mxu0 %v2342
        %2849 = vmatprep.subr.bf16.mxu0 %v2335
        %2850 = vmatpush1.bf16.msra.mxu0 %v2334
        %2851 = vmatprep.subr.bf16.mxu0 %v2327
        %2852 = vmatpush1.bf16.msra.mxu0 %v2326
        %2853 = vmatprep.subr.bf16.mxu0 %v2447
        %2854 = vmatpush2.bf16.msra.mxu0 %v2446
        %2855 = vmatprep.subr.bf16.mxu0 %v2439
        %2856 = vmatpush2.bf16.msra.mxu0 %v2438
        %2857 = vmatprep.subr.bf16.mxu0 %v2431
        %2858 = vmatpush2.bf16.msra.mxu0 %v2430
        %2859 = vmatprep.subr.bf16.mxu0 %v2423
        %2860 = vmatpush2.bf16.msra.mxu0 %v2422
        %2861 = vmatprep.subr.bf16.mxu0 %v2415
        %2862 = vmatpush2.bf16.msra.mxu0 %v2414
        %2863 = vmatprep.subr.bf16.mxu0 %v2407
        %2864 = vmatpush2.bf16.msra.mxu0 %v2406
        %2865 = vmatprep.subr.bf16.mxu0 %v2399
        %2866 = vmatpush2.bf16.msra.mxu0 %v2398
        %2867 = vmatprep.subr.bf16.mxu0 %v2391
        %2868 = vmatpush2.bf16.msra.mxu0 %v2390
        %2869 = vmatprep.mubr.bf16.mxu0 %v1130
        %2870 = vmatmul.mubr.bf16.gmra.mxu0 %v1129
        %v2871 = vpop.f32.mrf.mxu0
        %v2872 = vadd.f32 %v2829, %v2871
        %v2873 = vpop.f32.mrf.mxu0
        %v2874 = vadd.f32 %v2831, %v2873
        %v2875 = vpop.f32.mrf.mxu0
        %v2876 = vadd.f32 %v2833, %v2875
        %v2877 = vpop.f32.mrf.mxu0
        %v2878 = vadd.f32 %v2835, %v2877
        %2879 = vdwg.mxu0
        %2880 = vmatprep.subr.bf16.mxu0 %v2257
        %2881 = vmatpush1.bf16.msra.mxu0 %v2256
        %2882 = vmatprep.subr.bf16.mxu0 %v2249
        %2883 = vmatpush1.bf16.msra.mxu0 %v2248
        %2884 = vmatprep.subr.bf16.mxu0 %v2241
        %2885 = vmatpush1.bf16.msra.mxu0 %v2240
        %2886 = vmatprep.subr.bf16.mxu0 %v2233
        %2887 = vmatpush1.bf16.msra.mxu0 %v2232
        %2888 = vmatprep.subr.bf16.mxu0 %v2225
        %2889 = vmatpush1.bf16.msra.mxu0 %v2224
        %2890 = vmatprep.subr.bf16.mxu0 %v2217
        %2891 = vmatpush1.bf16.msra.mxu0 %v2216
        %2892 = vmatprep.subr.bf16.mxu0 %v2209
        %2893 = vmatpush1.bf16.msra.mxu0 %v2208
        %2894 = vmatprep.subr.bf16.mxu0 %v2201
        %2895 = vmatpush1.bf16.msra.mxu0 %v2200
        %2896 = vmatprep.subr.bf16.mxu0 %v2321
        %2897 = vmatpush2.bf16.msra.mxu0 %v2320
        %2898 = vmatprep.subr.bf16.mxu0 %v2313
        %2899 = vmatpush2.bf16.msra.mxu0 %v2312
        %2900 = vmatprep.subr.bf16.mxu0 %v2305
        %2901 = vmatpush2.bf16.msra.mxu0 %v2304
        %2902 = vmatprep.subr.bf16.mxu0 %v2297
        %2903 = vmatpush2.bf16.msra.mxu0 %v2296
        %2904 = vmatprep.subr.bf16.mxu0 %v2289
        %2905 = vmatpush2.bf16.msra.mxu0 %v2288
        %2906 = vmatprep.subr.bf16.mxu0 %v2281
        %2907 = vmatpush2.bf16.msra.mxu0 %v2280
        %2908 = vmatprep.subr.bf16.mxu0 %v2273
        %2909 = vmatpush2.bf16.msra.mxu0 %v2272
        %2910 = vmatprep.subr.bf16.mxu0 %v2265
        %2911 = vmatpush2.bf16.msra.mxu0 %v2264
        %2912 = vmatprep.mubr.bf16.mxu0 %v1128
        %2913 = vmatmul.mubr.bf16.gmra.mxu0 %v1127
        %v2914 = vpop.f32.mrf.mxu0
        %v2915 = vadd.f32 %v1407, %v2914
        %v2916 = vpop.f32.mrf.mxu0
        %v2917 = vadd.f32 %v1411, %v2916
        %v2918 = vpop.f32.mrf.mxu0
        %v2919 = vadd.f32 %v1407, %v2918
        %v2920 = vpop.f32.mrf.mxu0
        %v2921 = vadd.f32 %v1411, %v2920
        %2922 = vdwg.mxu0
        %2923 = vmatprep.subr.bf16.mxu0 %v2385
        %2924 = vmatpush1.bf16.msra.mxu0 %v2384
        %2925 = vmatprep.subr.bf16.mxu0 %v2377
        %2926 = vmatpush1.bf16.msra.mxu0 %v2376
        %2927 = vmatprep.subr.bf16.mxu0 %v2369
        %2928 = vmatpush1.bf16.msra.mxu0 %v2368
        %2929 = vmatprep.subr.bf16.mxu0 %v2361
        %2930 = vmatpush1.bf16.msra.mxu0 %v2360
        %2931 = vmatprep.subr.bf16.mxu0 %v2353
        %2932 = vmatpush1.bf16.msra.mxu0 %v2352
        %2933 = vmatprep.subr.bf16.mxu0 %v2345
        %2934 = vmatpush1.bf16.msra.mxu0 %v2344
        %2935 = vmatprep.subr.bf16.mxu0 %v2337
        %2936 = vmatpush1.bf16.msra.mxu0 %v2336
        %2937 = vmatprep.subr.bf16.mxu0 %v2329
        %2938 = vmatpush1.bf16.msra.mxu0 %v2328
        %2939 = vmatprep.subr.bf16.mxu0 %v2449
        %2940 = vmatpush2.bf16.msra.mxu0 %v2448
        %2941 = vmatprep.subr.bf16.mxu0 %v2441
        %2942 = vmatpush2.bf16.msra.mxu0 %v2440
        %2943 = vmatprep.subr.bf16.mxu0 %v2433
        %2944 = vmatpush2.bf16.msra.mxu0 %v2432
        %2945 = vmatprep.subr.bf16.mxu0 %v2425
        %2946 = vmatpush2.bf16.msra.mxu0 %v2424
        %2947 = vmatprep.subr.bf16.mxu0 %v2417
        %2948 = vmatpush2.bf16.msra.mxu0 %v2416
        %2949 = vmatprep.subr.bf16.mxu0 %v2409
        %2950 = vmatpush2.bf16.msra.mxu0 %v2408
        %2951 = vmatprep.subr.bf16.mxu0 %v2401
        %2952 = vmatpush2.bf16.msra.mxu0 %v2400
        %2953 = vmatprep.subr.bf16.mxu0 %v2393
        %2954 = vmatpush2.bf16.msra.mxu0 %v2392
        %2955 = vmatprep.mubr.bf16.mxu0 %v1130
        %2956 = vmatmul.mubr.bf16.gmra.mxu0 %v1129
        %v2957 = vpop.f32.mrf.mxu0
        %v2958 = vadd.f32 %v2915, %v2957
        %v2959 = vpop.f32.mrf.mxu0
        %v2960 = vadd.f32 %v2917, %v2959
        %v2961 = vpop.f32.mrf.mxu0
        %v2962 = vadd.f32 %v2919, %v2961
        %v2963 = vpop.f32.mrf.mxu0
        %v2964 = vadd.f32 %v2921, %v2963
        %2965 = vdwg.mxu0
        %2966 = vmatprep.subr.bf16.mxu0 %v2259
        %2967 = vmatpush1.bf16.msra.mxu0 %v2258
        %2968 = vmatprep.subr.bf16.mxu0 %v2251
        %2969 = vmatpush1.bf16.msra.mxu0 %v2250
        %2970 = vmatprep.subr.bf16.mxu0 %v2243
        %2971 = vmatpush1.bf16.msra.mxu0 %v2242
        %2972 = vmatprep.subr.bf16.mxu0 %v2235
        %2973 = vmatpush1.bf16.msra.mxu0 %v2234
        %2974 = vmatprep.subr.bf16.mxu0 %v2227
        %2975 = vmatpush1.bf16.msra.mxu0 %v2226
        %2976 = vmatprep.subr.bf16.mxu0 %v2219
        %2977 = vmatpush1.bf16.msra.mxu0 %v2218
        %2978 = vmatprep.subr.bf16.mxu0 %v2211
        %2979 = vmatpush1.bf16.msra.mxu0 %v2210
        %2980 = vmatprep.subr.bf16.mxu0 %v2203
        %2981 = vmatpush1.bf16.msra.mxu0 %v2202
        %2982 = vmatprep.subr.bf16.mxu0 %v2323
        %2983 = vmatpush2.bf16.msra.mxu0 %v2322
        %2984 = vmatprep.subr.bf16.mxu0 %v2315
        %2985 = vmatpush2.bf16.msra.mxu0 %v2314
        %2986 = vmatprep.subr.bf16.mxu0 %v2307
        %2987 = vmatpush2.bf16.msra.mxu0 %v2306
        %2988 = vmatprep.subr.bf16.mxu0 %v2299
        %2989 = vmatpush2.bf16.msra.mxu0 %v2298
        %2990 = vmatprep.subr.bf16.mxu0 %v2291
        %2991 = vmatpush2.bf16.msra.mxu0 %v2290
        %2992 = vmatprep.subr.bf16.mxu0 %v2283
        %2993 = vmatpush2.bf16.msra.mxu0 %v2282
        %2994 = vmatprep.subr.bf16.mxu0 %v2275
        %2995 = vmatpush2.bf16.msra.mxu0 %v2274
        %2996 = vmatprep.subr.bf16.mxu0 %v2267
        %2997 = vmatpush2.bf16.msra.mxu0 %v2266
        %2998 = vmatprep.mubr.bf16.mxu0 %v1128
        %2999 = vmatmul.mubr.bf16.gmra.mxu0 %v1127
        %v3000 = vpop.f32.mrf.mxu0
        %v3001 = vadd.f32 %v1415, %v3000
        %v3002 = vpop.f32.mrf.mxu0
        %v3003 = vadd.f32 %v1419, %v3002
        %v3004 = vpop.f32.mrf.mxu0
        %v3005 = vadd.f32 %v1415, %v3004
        %v3006 = vpop.f32.mrf.mxu0
        %v3007 = vadd.f32 %v1419, %v3006
        %3008 = vdwg.mxu0
        %3009 = vmatprep.subr.bf16.mxu0 %v2387
        %3010 = vmatpush1.bf16.msra.mxu0 %v2386
        %3011 = vmatprep.subr.bf16.mxu0 %v2379
        %3012 = vmatpush1.bf16.msra.mxu0 %v2378
        %3013 = vmatprep.subr.bf16.mxu0 %v2371
        %3014 = vmatpush1.bf16.msra.mxu0 %v2370
        %3015 = vmatprep.subr.bf16.mxu0 %v2363
        %3016 = vmatpush1.bf16.msra.mxu0 %v2362
        %3017 = vmatprep.subr.bf16.mxu0 %v2355
        %3018 = vmatpush1.bf16.msra.mxu0 %v2354
        %3019 = vmatprep.subr.bf16.mxu0 %v2347
        %3020 = vmatpush1.bf16.msra.mxu0 %v2346
        %3021 = vmatprep.subr.bf16.mxu0 %v2339
        %3022 = vmatpush1.bf16.msra.mxu0 %v2338
        %3023 = vmatprep.subr.bf16.mxu0 %v2331
        %3024 = vmatpush1.bf16.msra.mxu0 %v2330
        %3025 = vmatprep.subr.bf16.mxu0 %v2451
        %3026 = vmatpush2.bf16.msra.mxu0 %v2450
        %3027 = vmatprep.subr.bf16.mxu0 %v2443
        %3028 = vmatpush2.bf16.msra.mxu0 %v2442
        %3029 = vmatprep.subr.bf16.mxu0 %v2435
        %3030 = vmatpush2.bf16.msra.mxu0 %v2434
        %3031 = vmatprep.subr.bf16.mxu0 %v2427
        %3032 = vmatpush2.bf16.msra.mxu0 %v2426
        %3033 = vmatprep.subr.bf16.mxu0 %v2419
        %3034 = vmatpush2.bf16.msra.mxu0 %v2418
        %3035 = vmatprep.subr.bf16.mxu0 %v2411
        %3036 = vmatpush2.bf16.msra.mxu0 %v2410
        %3037 = vmatprep.subr.bf16.mxu0 %v2403
        %3038 = vmatpush2.bf16.msra.mxu0 %v2402
        %3039 = vmatprep.subr.bf16.mxu0 %v2395
        %3040 = vmatpush2.bf16.msra.mxu0 %v2394
        %3041 = vmatprep.mubr.bf16.mxu0 %v1130
        %3042 = vmatmul.mubr.bf16.gmra.mxu0 %v1129
        %v3043 = vpop.f32.mrf.mxu0
        %v3044 = vadd.f32 %v3001, %v3043
        %v3045 = vpop.f32.mrf.mxu0
        %v3046 = vadd.f32 %v3003, %v3045
        %v3047 = vpop.f32.mrf.mxu0
        %v3048 = vadd.f32 %v3005, %v3047
        %v3049 = vpop.f32.mrf.mxu0
        %v3050 = vadd.f32 %v3007, %v3049
        %3051 = vdwg.mxu0
        %v3052 = vmul.f32 %v2786, 0.2
        %v3053 = vmul.f32 %v2788, 0.2
        %v3054 = vmul.f32 %v2872, 0.2
        %v3055 = vmul.f32 %v2874, 0.2
        %v3056 = vmul.f32 %v2958, 0.2
        %v3057 = vmul.f32 %v2960, 0.2
        %v3058 = vmul.f32 %v3044, 0.2
        %v3059 = vmul.f32 %v3046, 0.2
        %v3060 = vmul.f32 %v2790, 0.2
        %v3061 = vmul.f32 %v2792, 0.2
        %v3062 = vmul.f32 %v2876, 0.2
        %v3063 = vmul.f32 %v2878, 0.2
        %v3064 = vmul.f32 %v2962, 0.2
        %v3065 = vmul.f32 %v2964, 0.2
        %v3066 = vmul.f32 %v3048, 0.2
        %v3067 = vmul.f32 %v3050, 0.2
        %v3068 = vmax.f32 %v2786, %v3052
        %v3069 = vmax.f32 %v2788, %v3053
        %v3070 = vmax.f32 %v2872, %v3054
        %v3071 = vmax.f32 %v2874, %v3055
        %v3072 = vmax.f32 %v2958, %v3056
        %v3073 = vmax.f32 %v2960, %v3057
        %v3074 = vmax.f32 %v3044, %v3058
        %v3075 = vmax.f32 %v3046, %v3059
        %v3076 = vmax.f32 %v2790, %v3060
        %v3077 = vmax.f32 %v2792, %v3061
        %v3078 = vmax.f32 %v2876, %v3062
        %v3079 = vmax.f32 %v2878, %v3063
        %v3080 = vmax.f32 %v2962, %v3064
        %v3081 = vmax.f32 %v2964, %v3065
        %v3082 = vmax.f32 %v3048, %v3066
        %v3083 = vmax.f32 %v3050, %v3067
        %v3084 = vpack.c.bf16 %v3076, %v3068
        %v3085 = vpack.c.bf16 %v3077, %v3069
        %v3086 = vpack.c.bf16 %v3078, %v3070
        %v3087 = vpack.c.bf16 %v3079, %v3071
        %v3088 = vpack.c.bf16 %v3080, %v3072
        %v3089 = vpack.c.bf16 %v3081, %v3073
        %v3090 = vpack.c.bf16 %v3082, %v3074
        %v3091 = vpack.c.bf16 %v3083, %v3075
        %v3092 = vld [vmem:[#allocation12] sm:$0xff]
        %v3093 = vld [vmem:[#allocation12 + $0x8] sm:$0xff]
        %v3094 = vld [vmem:[#allocation12 + $0x10] sm:$0xff]
        %v3095 = vld [vmem:[#allocation12 + $0x18] sm:$0xf]
        %v3096 = vld [vmem:[#allocation12 + $0x1c] sm:$0xff]
        %v3097 = vld [vmem:[#allocation12 + $0x24] sm:$0xff]
        %v3098 = vld [vmem:[#allocation12 + $0x2c] sm:$0xff]
        %v3099 = vld [vmem:[#allocation12 + $0x34] sm:$0xf]
        %v3100 = vld [vmem:[#allocation12 + $0x38] sm:$0xff]
        %v3101 = vld [vmem:[#allocation12 + $0x40] sm:$0xff]
        %v3102 = vld [vmem:[#allocation12 + $0x48] sm:$0xff]
        %v3103 = vld [vmem:[#allocation12 + $0x50] sm:$0xf]
        %v3104 = vld [vmem:[#allocation12 + $0x54] sm:$0xff]
        %v3105 = vld [vmem:[#allocation12 + $0x5c] sm:$0xff]
        %v3106 = vld [vmem:[#allocation12 + $0x64] sm:$0xff]
        %v3107 = vld [vmem:[#allocation12 + $0x6c] sm:$0xf]
        %v3108 = vld [vmem:[#allocation12 + $0x70] sm:$0xff]
        %v3109 = vld [vmem:[#allocation12 + $0x78] sm:$0xff]
        %v3110 = vld [vmem:[#allocation12 + $0x80] sm:$0xff]
        %v3111 = vld [vmem:[#allocation12 + $0x88] sm:$0xf]
        %v3112 = vld [vmem:[#allocation12 + $0x8c] sm:$0xff]
        %v3113 = vld [vmem:[#allocation12 + $0x94] sm:$0xff]
        %v3114 = vld [vmem:[#allocation12 + $0x9c] sm:$0xff]
        %v3115 = vld [vmem:[#allocation12 + $0xa4] sm:$0xf]
        %v3116 = vld [vmem:[#allocation12 + $0xa8] sm:$0xff]
        %v3117 = vld [vmem:[#allocation12 + $0xb0] sm:$0xff]
        %v3118 = vld [vmem:[#allocation12 + $0xb8] sm:$0xff]
        %v3119 = vld [vmem:[#allocation12 + $0xc0] sm:$0xf]
        %v3120 = vld [vmem:[#allocation12 + $0xc4] sm:$0xff]
        %v3121 = vld [vmem:[#allocation12 + $0xcc] sm:$0xff]
        %v3122 = vld [vmem:[#allocation12 + $0xd4] sm:$0xff]
        %v3123 = vld [vmem:[#allocation12 + $0xdc] sm:$0xf]
        %v3124 = vld [vmem:[#allocation12 + $0xe0] sm:$0xff]
        %v3125 = vld [vmem:[#allocation12 + $0xe8] sm:$0xff]
        %v3126 = vld [vmem:[#allocation12 + $0xf0] sm:$0xff]
        %v3127 = vld [vmem:[#allocation12 + $0xf8] sm:$0xf]
        %v3128 = vld [vmem:[#allocation12 + $0xfc] sm:$0xff]
        %v3129 = vld [vmem:[#allocation12 + $0x104] sm:$0xff]
        %v3130 = vld [vmem:[#allocation12 + $0x10c] sm:$0xff]
        %v3131 = vld [vmem:[#allocation12 + $0x114] sm:$0xf]
        %v3132 = vld [vmem:[#allocation12 + $0x118] sm:$0xff]
        %v3133 = vld [vmem:[#allocation12 + $0x120] sm:$0xff]
        %v3134 = vld [vmem:[#allocation12 + $0x128] sm:$0xff]
        %v3135 = vld [vmem:[#allocation12 + $0x130] sm:$0xf]
        %v3136 = vld [vmem:[#allocation12 + $0x134] sm:$0xff]
        %v3137 = vld [vmem:[#allocation12 + $0x13c] sm:$0xff]
        %v3138 = vld [vmem:[#allocation12 + $0x144] sm:$0xff]
        %v3139 = vld [vmem:[#allocation12 + $0x14c] sm:$0xf]
        %v3140 = vld [vmem:[#allocation12 + $0x150] sm:$0xff]
        %v3141 = vld [vmem:[#allocation12 + $0x158] sm:$0xff]
        %v3142 = vld [vmem:[#allocation12 + $0x160] sm:$0xff]
        %v3143 = vld [vmem:[#allocation12 + $0x168] sm:$0xf]
        %v3144 = vld [vmem:[#allocation12 + $0x16c] sm:$0xff]
        %v3145 = vld [vmem:[#allocation12 + $0x174] sm:$0xff]
        %v3146 = vld [vmem:[#allocation12 + $0x17c] sm:$0xff]
        %v3147 = vld [vmem:[#allocation12 + $0x184] sm:$0xf]
        %v3148 = vld [vmem:[#allocation12 + $0x188] sm:$0xff]
        %v3149 = vld [vmem:[#allocation12 + $0x190] sm:$0xff]
        %v3150 = vld [vmem:[#allocation12 + $0x198] sm:$0xff]
        %v3151 = vld [vmem:[#allocation12 + $0x1a0] sm:$0xf]
        %v3152 = vld [vmem:[#allocation12 + $0x1a4] sm:$0xff]
        %v3153 = vld [vmem:[#allocation12 + $0x1ac] sm:$0xff]
        %v3154 = vld [vmem:[#allocation12 + $0x1b4] sm:$0xff]
        %v3155 = vld [vmem:[#allocation12 + $0x1bc] sm:$0xf]
        %v3156 = vld [vmem:[#allocation12 + $0x1c0] sm:$0xff]
        %v3157 = vld [vmem:[#allocation12 + $0x1c8] sm:$0xff]
        %v3158 = vld [vmem:[#allocation12 + $0x1d0] sm:$0xff]
        %v3159 = vld [vmem:[#allocation12 + $0x1d8] sm:$0xf]
        %v3160 = vld [vmem:[#allocation12 + $0x1dc] sm:$0xff]
        %v3161 = vld [vmem:[#allocation12 + $0x1e4] sm:$0xff]
        %v3162 = vld [vmem:[#allocation12 + $0x1ec] sm:$0xff]
        %v3163 = vld [vmem:[#allocation12 + $0x1f4] sm:$0xf]
        %v3164 = vld [vmem:[#allocation12 + $0x1f8] sm:$0xff]
        %v3165 = vld [vmem:[#allocation12 + $0x200] sm:$0xff]
        %v3166 = vld [vmem:[#allocation12 + $0x208] sm:$0xff]
        %v3167 = vld [vmem:[#allocation12 + $0x210] sm:$0xf]
        %v3168 = vld [vmem:[#allocation12 + $0x214] sm:$0xff]
        %v3169 = vld [vmem:[#allocation12 + $0x21c] sm:$0xff]
        %v3170 = vld [vmem:[#allocation12 + $0x224] sm:$0xff]
        %v3171 = vld [vmem:[#allocation12 + $0x22c] sm:$0xf]
        %v3172 = vld [vmem:[#allocation12 + $0x230] sm:$0xff]
        %v3173 = vld [vmem:[#allocation12 + $0x238] sm:$0xff]
        %v3174 = vld [vmem:[#allocation12 + $0x240] sm:$0xff]
        %v3175 = vld [vmem:[#allocation12 + $0x248] sm:$0xf]
        %v3176 = vld [vmem:[#allocation12 + $0x24c] sm:$0xff]
        %v3177 = vld [vmem:[#allocation12 + $0x254] sm:$0xff]
        %v3178 = vld [vmem:[#allocation12 + $0x25c] sm:$0xff]
        %v3179 = vld [vmem:[#allocation12 + $0x264] sm:$0xf]
        %v3180 = vld [vmem:[#allocation12 + $0x268] sm:$0xff]
        %v3181 = vld [vmem:[#allocation12 + $0x270] sm:$0xff]
        %v3182 = vld [vmem:[#allocation12 + $0x278] sm:$0xff]
        %v3183 = vld [vmem:[#allocation12 + $0x280] sm:$0xf]
        %v3184 = vld [vmem:[#allocation12 + $0x284] sm:$0xff]
        %v3185 = vld [vmem:[#allocation12 + $0x28c] sm:$0xff]
        %v3186 = vld [vmem:[#allocation12 + $0x294] sm:$0xff]
        %v3187 = vld [vmem:[#allocation12 + $0x29c] sm:$0xf]
        %v3188 = vld [vmem:[#allocation12 + $0x2a0] sm:$0xff]
        %v3189 = vld [vmem:[#allocation12 + $0x2a8] sm:$0xff]
        %v3190 = vld [vmem:[#allocation12 + $0x2b0] sm:$0xff]
        %v3191 = vld [vmem:[#allocation12 + $0x2b8] sm:$0xf]
        %v3192 = vld [vmem:[#allocation12 + $0x2bc] sm:$0xff]
        %v3193 = vld [vmem:[#allocation12 + $0x2c4] sm:$0xff]
        %v3194 = vld [vmem:[#allocation12 + $0x2cc] sm:$0xff]
        %v3195 = vld [vmem:[#allocation12 + $0x2d4] sm:$0xf]
        %v3196 = vld [vmem:[#allocation12 + $0x2d8] sm:$0xff]
        %v3197 = vld [vmem:[#allocation12 + $0x2e0] sm:$0xff]
        %v3198 = vld [vmem:[#allocation12 + $0x2e8] sm:$0xff]
        %v3199 = vld [vmem:[#allocation12 + $0x2f0] sm:$0xf]
        %v3200 = vld [vmem:[#allocation12 + $0x2f4] sm:$0xff]
        %v3201 = vld [vmem:[#allocation12 + $0x2fc] sm:$0xff]
        %v3202 = vld [vmem:[#allocation12 + $0x304] sm:$0xff]
        %v3203 = vld [vmem:[#allocation12 + $0x30c] sm:$0xf]
        %v3204 = vld [vmem:[#allocation12 + $0x310] sm:$0xff]
        %v3205 = vld [vmem:[#allocation12 + $0x318] sm:$0xff]
        %v3206 = vld [vmem:[#allocation12 + $0x320] sm:$0xff]
        %v3207 = vld [vmem:[#allocation12 + $0x328] sm:$0xf]
        %v3208 = vld [vmem:[#allocation12 + $0x32c] sm:$0xff]
        %v3209 = vld [vmem:[#allocation12 + $0x334] sm:$0xff]
        %v3210 = vld [vmem:[#allocation12 + $0x33c] sm:$0xff]
        %v3211 = vld [vmem:[#allocation12 + $0x344] sm:$0xf]
        %v3212 = vld [vmem:[#allocation12 + $0x348] sm:$0xff]
        %v3213 = vld [vmem:[#allocation12 + $0x350] sm:$0xff]
        %v3214 = vld [vmem:[#allocation12 + $0x358] sm:$0xff]
        %v3215 = vld [vmem:[#allocation12 + $0x360] sm:$0xf]
        %v3216 = vld [vmem:[#allocation12 + $0x364] sm:$0xff]
        %v3217 = vld [vmem:[#allocation12 + $0x36c] sm:$0xff]
        %v3218 = vld [vmem:[#allocation12 + $0x374] sm:$0xff]
        %v3219 = vld [vmem:[#allocation12 + $0x37c] sm:$0xf]
        %v3220 = vld [vmem:[#allocation12 + $0x380] sm:$0xff]
        %v3221 = vld [vmem:[#allocation12 + $0x388] sm:$0xff]
        %v3222 = vld [vmem:[#allocation12 + $0x390] sm:$0xff]
        %v3223 = vld [vmem:[#allocation12 + $0x398] sm:$0xf]
        %v3224 = vld [vmem:[#allocation12 + $0x39c] sm:$0xff]
        %v3225 = vld [vmem:[#allocation12 + $0x3a4] sm:$0xff]
        %v3226 = vld [vmem:[#allocation12 + $0x3ac] sm:$0xff]
        %v3227 = vld [vmem:[#allocation12 + $0x3b4] sm:$0xf]
        %v3228 = vld [vmem:[#allocation12 + $0x3b8] sm:$0xff]
        %v3229 = vld [vmem:[#allocation12 + $0x3c0] sm:$0xff]
        %v3230 = vld [vmem:[#allocation12 + $0x3c8] sm:$0xff]
        %v3231 = vld [vmem:[#allocation12 + $0x3d0] sm:$0xf]
        %v3232 = vld [vmem:[#allocation12 + $0x3d4] sm:$0xff]
        %v3233 = vld [vmem:[#allocation12 + $0x3dc] sm:$0xff]
        %v3234 = vld [vmem:[#allocation12 + $0x3e4] sm:$0xff]
        %v3235 = vld [vmem:[#allocation12 + $0x3ec] sm:$0xf]
        %v3236 = vld [vmem:[#allocation12 + $0x3f0] sm:$0xff]
        %v3237 = vld [vmem:[#allocation12 + $0x3f8] sm:$0xff]
        %v3238 = vld [vmem:[#allocation12 + $0x400] sm:$0xff]
        %v3239 = vld [vmem:[#allocation12 + $0x408] sm:$0xf]
        %v3240 = vld [vmem:[#allocation12 + $0x40c] sm:$0xff]
        %v3241 = vld [vmem:[#allocation12 + $0x414] sm:$0xff]
        %v3242 = vld [vmem:[#allocation12 + $0x41c] sm:$0xff]
        %v3243 = vld [vmem:[#allocation12 + $0x424] sm:$0xf]
        %v3244 = vld [vmem:[#allocation12 + $0x428] sm:$0xff]
        %v3245 = vld [vmem:[#allocation12 + $0x430] sm:$0xff]
        %v3246 = vld [vmem:[#allocation12 + $0x438] sm:$0xff]
        %v3247 = vld [vmem:[#allocation12 + $0x440] sm:$0xf]
        %v3248 = vld [vmem:[#allocation12 + $0x444] sm:$0xff]
        %v3249 = vld [vmem:[#allocation12 + $0x44c] sm:$0xff]
        %v3250 = vld [vmem:[#allocation12 + $0x454] sm:$0xff]
        %v3251 = vld [vmem:[#allocation12 + $0x45c] sm:$0xf]
        %v3252 = vld [vmem:[#allocation12 + $0x460] sm:$0xff]
        %v3253 = vld [vmem:[#allocation12 + $0x468] sm:$0xff]
        %v3254 = vld [vmem:[#allocation12 + $0x470] sm:$0xff]
        %v3255 = vld [vmem:[#allocation12 + $0x478] sm:$0xf]
        %v3256 = vld [vmem:[#allocation12 + $0x47c] sm:$0xff]
        %v3257 = vld [vmem:[#allocation12 + $0x484] sm:$0xff]
        %v3258 = vld [vmem:[#allocation12 + $0x48c] sm:$0xff]
        %v3259 = vld [vmem:[#allocation12 + $0x494] sm:$0xf]
        %v3260 = vld [vmem:[#allocation12 + $0x498] sm:$0xff]
        %v3261 = vld [vmem:[#allocation12 + $0x4a0] sm:$0xff]
        %v3262 = vld [vmem:[#allocation12 + $0x4a8] sm:$0xff]
        %v3263 = vld [vmem:[#allocation12 + $0x4b0] sm:$0xf]
        %v3264 = vld [vmem:[#allocation12 + $0x4b4] sm:$0xff]
        %v3265 = vld [vmem:[#allocation12 + $0x4bc] sm:$0xff]
        %v3266 = vld [vmem:[#allocation12 + $0x4c4] sm:$0xff]
        %v3267 = vld [vmem:[#allocation12 + $0x4cc] sm:$0xf]
        %v3268 = vld [vmem:[#allocation12 + $0x4d0] sm:$0xff]
        %v3269 = vld [vmem:[#allocation12 + $0x4d8] sm:$0xff]
        %v3270 = vld [vmem:[#allocation12 + $0x4e0] sm:$0xff]
        %v3271 = vld [vmem:[#allocation12 + $0x4e8] sm:$0xf]
        %v3272 = vld [vmem:[#allocation12 + $0x4ec] sm:$0xff]
        %v3273 = vld [vmem:[#allocation12 + $0x4f4] sm:$0xff]
        %v3274 = vld [vmem:[#allocation12 + $0x4fc] sm:$0xff]
        %v3275 = vld [vmem:[#allocation12 + $0x504] sm:$0xf]
        %v3276 = vld [vmem:[#allocation12 + $0x508] sm:$0xff]
        %v3277 = vld [vmem:[#allocation12 + $0x510] sm:$0xff]
        %v3278 = vld [vmem:[#allocation12 + $0x518] sm:$0xff]
        %v3279 = vld [vmem:[#allocation12 + $0x520] sm:$0xf]
        %v3280 = vld [vmem:[#allocation12 + $0x524] sm:$0xff]
        %v3281 = vld [vmem:[#allocation12 + $0x52c] sm:$0xff]
        %v3282 = vld [vmem:[#allocation12 + $0x534] sm:$0xff]
        %v3283 = vld [vmem:[#allocation12 + $0x53c] sm:$0xf]
        %v3284 = vld [vmem:[#allocation12 + $0x540] sm:$0xff]
        %v3285 = vld [vmem:[#allocation12 + $0x548] sm:$0xff]
        %v3286 = vld [vmem:[#allocation12 + $0x550] sm:$0xff]
        %v3287 = vld [vmem:[#allocation12 + $0x558] sm:$0xf]
        %v3288 = vld [vmem:[#allocation12 + $0x55c] sm:$0xff]
        %v3289 = vld [vmem:[#allocation12 + $0x564] sm:$0xff]
        %v3290 = vld [vmem:[#allocation12 + $0x56c] sm:$0xff]
        %v3291 = vld [vmem:[#allocation12 + $0x574] sm:$0xf]
        %v3292 = vld [vmem:[#allocation12 + $0x578] sm:$0xff]
        %v3293 = vld [vmem:[#allocation12 + $0x580] sm:$0xff]
        %v3294 = vld [vmem:[#allocation12 + $0x588] sm:$0xff]
        %v3295 = vld [vmem:[#allocation12 + $0x590] sm:$0xf]
        %v3296 = vld [vmem:[#allocation12 + $0x594] sm:$0xff]
        %v3297 = vld [vmem:[#allocation12 + $0x59c] sm:$0xff]
        %v3298 = vld [vmem:[#allocation12 + $0x5a4] sm:$0xff]
        %v3299 = vld [vmem:[#allocation12 + $0x5ac] sm:$0xf]
        %v3300 = vld [vmem:[#allocation12 + $0x5b0] sm:$0xff]
        %v3301 = vld [vmem:[#allocation12 + $0x5b8] sm:$0xff]
        %v3302 = vld [vmem:[#allocation12 + $0x5c0] sm:$0xff]
        %v3303 = vld [vmem:[#allocation12 + $0x5c8] sm:$0xf]
        %v3304 = vld [vmem:[#allocation12 + $0x5cc] sm:$0xff]
        %v3305 = vld [vmem:[#allocation12 + $0x5d4] sm:$0xff]
        %v3306 = vld [vmem:[#allocation12 + $0x5dc] sm:$0xff]
        %v3307 = vld [vmem:[#allocation12 + $0x5e4] sm:$0xf]
        %v3308 = vld [vmem:[#allocation12 + $0x5e8] sm:$0xff]
        %v3309 = vld [vmem:[#allocation12 + $0x5f0] sm:$0xff]
        %v3310 = vld [vmem:[#allocation12 + $0x5f8] sm:$0xff]
        %v3311 = vld [vmem:[#allocation12 + $0x600] sm:$0xf]
        %v3312 = vld [vmem:[#allocation12 + $0x604] sm:$0xff]
        %v3313 = vld [vmem:[#allocation12 + $0x60c] sm:$0xff]
        %v3314 = vld [vmem:[#allocation12 + $0x614] sm:$0xff]
        %v3315 = vld [vmem:[#allocation12 + $0x61c] sm:$0xf]
        %v3316 = vld [vmem:[#allocation12 + $0x620] sm:$0xff]
        %v3317 = vld [vmem:[#allocation12 + $0x628] sm:$0xff]
        %v3318 = vld [vmem:[#allocation12 + $0x630] sm:$0xff]
        %v3319 = vld [vmem:[#allocation12 + $0x638] sm:$0xf]
        %v3320 = vld [vmem:[#allocation12 + $0x63c] sm:$0xff]
        %v3321 = vld [vmem:[#allocation12 + $0x644] sm:$0xff]
        %v3322 = vld [vmem:[#allocation12 + $0x64c] sm:$0xff]
        %v3323 = vld [vmem:[#allocation12 + $0x654] sm:$0xf]
        %v3324 = vld [vmem:[#allocation12 + $0x658] sm:$0xff]
        %v3325 = vld [vmem:[#allocation12 + $0x660] sm:$0xff]
        %v3326 = vld [vmem:[#allocation12 + $0x668] sm:$0xff]
        %v3327 = vld [vmem:[#allocation12 + $0x670] sm:$0xf]
        %v3328 = vld [vmem:[#allocation12 + $0x674] sm:$0xff]
        %v3329 = vld [vmem:[#allocation12 + $0x67c] sm:$0xff]
        %v3330 = vld [vmem:[#allocation12 + $0x684] sm:$0xff]
        %v3331 = vld [vmem:[#allocation12 + $0x68c] sm:$0xf]
        %v3332 = vld [vmem:[#allocation12 + $0x690] sm:$0xff]
        %v3333 = vld [vmem:[#allocation12 + $0x698] sm:$0xff]
        %v3334 = vld [vmem:[#allocation12 + $0x6a0] sm:$0xff]
        %v3335 = vld [vmem:[#allocation12 + $0x6a8] sm:$0xf]
        %v3336 = vld [vmem:[#allocation12 + $0x6ac] sm:$0xff]
        %v3337 = vld [vmem:[#allocation12 + $0x6b4] sm:$0xff]
        %v3338 = vld [vmem:[#allocation12 + $0x6bc] sm:$0xff]
        %v3339 = vld [vmem:[#allocation12 + $0x6c4] sm:$0xf]
        %v3340 = vld [vmem:[#allocation12 + $0x6c8] sm:$0xff]
        %v3341 = vld [vmem:[#allocation12 + $0x6d0] sm:$0xff]
        %v3342 = vld [vmem:[#allocation12 + $0x6d8] sm:$0xff]
        %v3343 = vld [vmem:[#allocation12 + $0x6e0] sm:$0xf]
        %v3344 = vld [vmem:[#allocation12 + $0x6e4] sm:$0xff]
        %v3345 = vld [vmem:[#allocation12 + $0x6ec] sm:$0xff]
        %v3346 = vld [vmem:[#allocation12 + $0x6f4] sm:$0xff]
        %v3347 = vld [vmem:[#allocation12 + $0x6fc] sm:$0xf]
        %v3348 = vld [vmem:[#allocation12 + $0x700] sm:$0xff]
        %v3349 = vld [vmem:[#allocation12 + $0x708] sm:$0xff]
        %v3350 = vld [vmem:[#allocation12 + $0x710] sm:$0xff]
        %v3351 = vld [vmem:[#allocation12 + $0x718] sm:$0xf]
        %v3352 = vld [vmem:[#allocation12 + $0x71c] sm:$0xff]
        %v3353 = vld [vmem:[#allocation12 + $0x724] sm:$0xff]
        %v3354 = vld [vmem:[#allocation12 + $0x72c] sm:$0xff]
        %v3355 = vld [vmem:[#allocation12 + $0x734] sm:$0xf]
        %v3356 = vld [vmem:[#allocation12 + $0x738] sm:$0xff]
        %v3357 = vld [vmem:[#allocation12 + $0x740] sm:$0xff]
        %v3358 = vld [vmem:[#allocation12 + $0x748] sm:$0xff]
        %v3359 = vld [vmem:[#allocation12 + $0x750] sm:$0xf]
        %v3360 = vld [vmem:[#allocation12 + $0x754] sm:$0xff]
        %v3361 = vld [vmem:[#allocation12 + $0x75c] sm:$0xff]
        %v3362 = vld [vmem:[#allocation12 + $0x764] sm:$0xff]
        %v3363 = vld [vmem:[#allocation12 + $0x76c] sm:$0xf]
        %v3364 = vld [vmem:[#allocation12 + $0x770] sm:$0xff]
        %v3365 = vld [vmem:[#allocation12 + $0x778] sm:$0xff]
        %v3366 = vld [vmem:[#allocation12 + $0x780] sm:$0xff]
        %v3367 = vld [vmem:[#allocation12 + $0x788] sm:$0xf]
        %v3368 = vld [vmem:[#allocation12 + $0x78c] sm:$0xff]
        %v3369 = vld [vmem:[#allocation12 + $0x794] sm:$0xff]
        %v3370 = vld [vmem:[#allocation12 + $0x79c] sm:$0xff]
        %v3371 = vld [vmem:[#allocation12 + $0x7a4] sm:$0xf]
        %v3372 = vld [vmem:[#allocation12 + $0x7a8] sm:$0xff]
        %v3373 = vld [vmem:[#allocation12 + $0x7b0] sm:$0xff]
        %v3374 = vld [vmem:[#allocation12 + $0x7b8] sm:$0xff]
        %v3375 = vld [vmem:[#allocation12 + $0x7c0] sm:$0xf]
        %v3376 = vld [vmem:[#allocation12 + $0x7c4] sm:$0xff]
        %v3377 = vld [vmem:[#allocation12 + $0x7cc] sm:$0xff]
        %v3378 = vld [vmem:[#allocation12 + $0x7d4] sm:$0xff]
        %v3379 = vld [vmem:[#allocation12 + $0x7dc] sm:$0xf]
        %v3380 = vld [vmem:[#allocation12 + $0x7e0] sm:$0xff]
        %v3381 = vld [vmem:[#allocation12 + $0x7e8] sm:$0xff]
        %v3382 = vld [vmem:[#allocation12 + $0x7f0] sm:$0xff]
        %v3383 = vld [vmem:[#allocation12 + $0x7f8] sm:$0xf]
        %v3384 = vld [vmem:[#allocation12 + $0x7fc] sm:$0xff]
        %v3385 = vld [vmem:[#allocation12 + $0x804] sm:$0xff]
        %v3386 = vld [vmem:[#allocation12 + $0x80c] sm:$0xff]
        %v3387 = vld [vmem:[#allocation12 + $0x814] sm:$0xf]
        %v3388 = vld [vmem:[#allocation12 + $0x818] sm:$0xff]
        %v3389 = vld [vmem:[#allocation12 + $0x820] sm:$0xff]
        %v3390 = vld [vmem:[#allocation12 + $0x828] sm:$0xff]
        %v3391 = vld [vmem:[#allocation12 + $0x830] sm:$0xf]
        %v3392 = vld [vmem:[#allocation12 + $0x834] sm:$0xff]
        %v3393 = vld [vmem:[#allocation12 + $0x83c] sm:$0xff]
        %v3394 = vld [vmem:[#allocation12 + $0x844] sm:$0xff]
        %v3395 = vld [vmem:[#allocation12 + $0x84c] sm:$0xf]
        %v3396 = vld [vmem:[#allocation12 + $0x850] sm:$0xff]
        %v3397 = vld [vmem:[#allocation12 + $0x858] sm:$0xff]
        %v3398 = vld [vmem:[#allocation12 + $0x860] sm:$0xff]
        %v3399 = vld [vmem:[#allocation12 + $0x868] sm:$0xf]
        %v3400 = vld [vmem:[#allocation12 + $0x86c] sm:$0xff]
        %v3401 = vld [vmem:[#allocation12 + $0x874] sm:$0xff]
        %v3402 = vld [vmem:[#allocation12 + $0x87c] sm:$0xff]
        %v3403 = vld [vmem:[#allocation12 + $0x884] sm:$0xf]
        %v3404 = vld [vmem:[#allocation12 + $0x888] sm:$0xff]
        %v3405 = vld [vmem:[#allocation12 + $0x890] sm:$0xff]
        %v3406 = vld [vmem:[#allocation12 + $0x898] sm:$0xff]
        %v3407 = vld [vmem:[#allocation12 + $0x8a0] sm:$0xf]
        %v3408 = vld [vmem:[#allocation12 + $0x8a4] sm:$0xff]
        %v3409 = vld [vmem:[#allocation12 + $0x8ac] sm:$0xff]
        %v3410 = vld [vmem:[#allocation12 + $0x8b4] sm:$0xff]
        %v3411 = vld [vmem:[#allocation12 + $0x8bc] sm:$0xf]
        %v3412 = vld [vmem:[#allocation12 + $0x8c0] sm:$0xff]
        %v3413 = vld [vmem:[#allocation12 + $0x8c8] sm:$0xff]
        %v3414 = vld [vmem:[#allocation12 + $0x8d0] sm:$0xff]
        %v3415 = vld [vmem:[#allocation12 + $0x8d8] sm:$0xf]
        %v3416 = vld [vmem:[#allocation12 + $0x8dc] sm:$0xff]
        %v3417 = vld [vmem:[#allocation12 + $0x8e4] sm:$0xff]
        %v3418 = vld [vmem:[#allocation12 + $0x8ec] sm:$0xff]
        %v3419 = vld [vmem:[#allocation12 + $0x8f4] sm:$0xf]
        %v3420 = vld [vmem:[#allocation12 + $0x8f8] sm:$0xff]
        %v3421 = vld [vmem:[#allocation12 + $0x900] sm:$0xff]
        %v3422 = vld [vmem:[#allocation12 + $0x908] sm:$0xff]
        %v3423 = vld [vmem:[#allocation12 + $0x910] sm:$0xf]
        %v3424 = vld [vmem:[#allocation12 + $0x914] sm:$0xff]
        %v3425 = vld [vmem:[#allocation12 + $0x91c] sm:$0xff]
        %v3426 = vld [vmem:[#allocation12 + $0x924] sm:$0xff]
        %v3427 = vld [vmem:[#allocation12 + $0x92c] sm:$0xf]
        %v3428 = vld [vmem:[#allocation12 + $0x930] sm:$0xff]
        %v3429 = vld [vmem:[#allocation12 + $0x938] sm:$0xff]
        %v3430 = vld [vmem:[#allocation12 + $0x940] sm:$0xff]
        %v3431 = vld [vmem:[#allocation12 + $0x948] sm:$0xf]
        %v3432 = vld [vmem:[#allocation12 + $0x94c] sm:$0xff]
        %v3433 = vld [vmem:[#allocation12 + $0x954] sm:$0xff]
        %v3434 = vld [vmem:[#allocation12 + $0x95c] sm:$0xff]
        %v3435 = vld [vmem:[#allocation12 + $0x964] sm:$0xf]
        %v3436 = vld [vmem:[#allocation12 + $0x968] sm:$0xff]
        %v3437 = vld [vmem:[#allocation12 + $0x970] sm:$0xff]
        %v3438 = vld [vmem:[#allocation12 + $0x978] sm:$0xff]
        %v3439 = vld [vmem:[#allocation12 + $0x980] sm:$0xf]
        %v3440 = vld [vmem:[#allocation12 + $0x984] sm:$0xff]
        %v3441 = vld [vmem:[#allocation12 + $0x98c] sm:$0xff]
        %v3442 = vld [vmem:[#allocation12 + $0x994] sm:$0xff]
        %v3443 = vld [vmem:[#allocation12 + $0x99c] sm:$0xf]
        %v3444 = vld [vmem:[#allocation12 + $0x9a0] sm:$0xff]
        %v3445 = vld [vmem:[#allocation12 + $0x9a8] sm:$0xff]
        %v3446 = vld [vmem:[#allocation12 + $0x9b0] sm:$0xff]
        %v3447 = vld [vmem:[#allocation12 + $0x9b8] sm:$0xf]
        %v3448 = vld [vmem:[#allocation12 + $0x9bc] sm:$0xff]
        %v3449 = vld [vmem:[#allocation12 + $0x9c4] sm:$0xff]
        %v3450 = vld [vmem:[#allocation12 + $0x9cc] sm:$0xff]
        %v3451 = vld [vmem:[#allocation12 + $0x9d4] sm:$0xf]
        %v3452 = vld [vmem:[#allocation12 + $0x9d8] sm:$0xff]
        %v3453 = vld [vmem:[#allocation12 + $0x9e0] sm:$0xff]
        %v3454 = vld [vmem:[#allocation12 + $0x9e8] sm:$0xff]
        %v3455 = vld [vmem:[#allocation12 + $0x9f0] sm:$0xf]
        %v3456 = vld [vmem:[#allocation12 + $0x9f4] sm:$0xff]
        %v3457 = vld [vmem:[#allocation12 + $0x9fc] sm:$0xff]
        %v3458 = vld [vmem:[#allocation12 + $0xa04] sm:$0xff]
        %v3459 = vld [vmem:[#allocation12 + $0xa0c] sm:$0xf]
        %v3460 = vld [vmem:[#allocation12 + $0xa10] sm:$0xff]
        %v3461 = vld [vmem:[#allocation12 + $0xa18] sm:$0xff]
        %v3462 = vld [vmem:[#allocation12 + $0xa20] sm:$0xff]
        %v3463 = vld [vmem:[#allocation12 + $0xa28] sm:$0xf]
        %v3464 = vld [vmem:[#allocation12 + $0xa2c] sm:$0xff]
        %v3465 = vld [vmem:[#allocation12 + $0xa34] sm:$0xff]
        %v3466 = vld [vmem:[#allocation12 + $0xa3c] sm:$0xff]
        %v3467 = vld [vmem:[#allocation12 + $0xa44] sm:$0xf]
        %v3468 = vld [vmem:[#allocation12 + $0xa48] sm:$0xff]
        %v3469 = vld [vmem:[#allocation12 + $0xa50] sm:$0xff]
        %v3470 = vld [vmem:[#allocation12 + $0xa58] sm:$0xff]
        %v3471 = vld [vmem:[#allocation12 + $0xa60] sm:$0xf]
        %v3472 = vld [vmem:[#allocation12 + $0xa64] sm:$0xff]
        %v3473 = vld [vmem:[#allocation12 + $0xa6c] sm:$0xff]
        %v3474 = vld [vmem:[#allocation12 + $0xa74] sm:$0xff]
        %v3475 = vld [vmem:[#allocation12 + $0xa7c] sm:$0xf]
        %v3476 = vld [vmem:[#allocation12 + $0xa80] sm:$0xff]
        %v3477 = vld [vmem:[#allocation12 + $0xa88] sm:$0xff]
        %v3478 = vld [vmem:[#allocation12 + $0xa90] sm:$0xff]
        %v3479 = vld [vmem:[#allocation12 + $0xa98] sm:$0xf]
        %v3480 = vld [vmem:[#allocation12 + $0xa9c] sm:$0xff]
        %v3481 = vld [vmem:[#allocation12 + $0xaa4] sm:$0xff]
        %v3482 = vld [vmem:[#allocation12 + $0xaac] sm:$0xff]
        %v3483 = vld [vmem:[#allocation12 + $0xab4] sm:$0xf]
        %v3484 = vld [vmem:[#allocation12 + $0xab8] sm:$0xff]
        %v3485 = vld [vmem:[#allocation12 + $0xac0] sm:$0xff]
        %v3486 = vld [vmem:[#allocation12 + $0xac8] sm:$0xff]
        %v3487 = vld [vmem:[#allocation12 + $0xad0] sm:$0xf]
        %v3488 = vld [vmem:[#allocation12 + $0xad4] sm:$0xff]
        %v3489 = vld [vmem:[#allocation12 + $0xadc] sm:$0xff]
        %v3490 = vld [vmem:[#allocation12 + $0xae4] sm:$0xff]
        %v3491 = vld [vmem:[#allocation12 + $0xaec] sm:$0xf]
        %v3492 = vld [vmem:[#allocation12 + $0xaf0] sm:$0xff]
        %v3493 = vld [vmem:[#allocation12 + $0xaf8] sm:$0xff]
        %v3494 = vld [vmem:[#allocation12 + $0xb00] sm:$0xff]
        %v3495 = vld [vmem:[#allocation12 + $0xb08] sm:$0xf]
        %v3496 = vld [vmem:[#allocation12 + $0xb0c] sm:$0xff]
        %v3497 = vld [vmem:[#allocation12 + $0xb14] sm:$0xff]
        %v3498 = vld [vmem:[#allocation12 + $0xb1c] sm:$0xff]
        %v3499 = vld [vmem:[#allocation12 + $0xb24] sm:$0xf]
        %v3500 = vld [vmem:[#allocation12 + $0xb28] sm:$0xff]
        %v3501 = vld [vmem:[#allocation12 + $0xb30] sm:$0xff]
        %v3502 = vld [vmem:[#allocation12 + $0xb38] sm:$0xff]
        %v3503 = vld [vmem:[#allocation12 + $0xb40] sm:$0xf]
        %v3504 = vld [vmem:[#allocation12 + $0xb44] sm:$0xff]
        %v3505 = vld [vmem:[#allocation12 + $0xb4c] sm:$0xff]
        %v3506 = vld [vmem:[#allocation12 + $0xb54] sm:$0xff]
        %v3507 = vld [vmem:[#allocation12 + $0xb5c] sm:$0xf]
        %v3508 = vld [vmem:[#allocation12 + $0xb60] sm:$0xff]
        %v3509 = vld [vmem:[#allocation12 + $0xb68] sm:$0xff]
        %v3510 = vld [vmem:[#allocation12 + $0xb70] sm:$0xff]
        %v3511 = vld [vmem:[#allocation12 + $0xb78] sm:$0xf]
        %v3512 = vld [vmem:[#allocation12 + $0xb7c] sm:$0xff]
        %v3513 = vld [vmem:[#allocation12 + $0xb84] sm:$0xff]
        %v3514 = vld [vmem:[#allocation12 + $0xb8c] sm:$0xff]
        %v3515 = vld [vmem:[#allocation12 + $0xb94] sm:$0xf]
        %v3516 = vld [vmem:[#allocation12 + $0xb98] sm:$0xff]
        %v3517 = vld [vmem:[#allocation12 + $0xba0] sm:$0xff]
        %v3518 = vld [vmem:[#allocation12 + $0xba8] sm:$0xff]
        %v3519 = vld [vmem:[#allocation12 + $0xbb0] sm:$0xf]
        %v3520 = vld [vmem:[#allocation12 + $0xbb4] sm:$0xff]
        %v3521 = vld [vmem:[#allocation12 + $0xbbc] sm:$0xff]
        %v3522 = vld [vmem:[#allocation12 + $0xbc4] sm:$0xff]
        %v3523 = vld [vmem:[#allocation12 + $0xbcc] sm:$0xf]
        %v3524 = vld [vmem:[#allocation12 + $0xbd0] sm:$0xff]
        %v3525 = vld [vmem:[#allocation12 + $0xbd8] sm:$0xff]
        %v3526 = vld [vmem:[#allocation12 + $0xbe0] sm:$0xff]
        %v3527 = vld [vmem:[#allocation12 + $0xbe8] sm:$0xf]
        %v3528 = vld [vmem:[#allocation12 + $0xbec] sm:$0xff]
        %v3529 = vld [vmem:[#allocation12 + $0xbf4] sm:$0xff]
        %v3530 = vld [vmem:[#allocation12 + $0xbfc] sm:$0xff]
        %v3531 = vld [vmem:[#allocation12 + $0xc04] sm:$0xf]
        %v3532 = vld [vmem:[#allocation12 + $0xc08] sm:$0xff]
        %v3533 = vld [vmem:[#allocation12 + $0xc10] sm:$0xff]
        %v3534 = vld [vmem:[#allocation12 + $0xc18] sm:$0xff]
        %v3535 = vld [vmem:[#allocation12 + $0xc20] sm:$0xf]
        %v3536 = vld [vmem:[#allocation12 + $0xc24] sm:$0xff]
        %v3537 = vld [vmem:[#allocation12 + $0xc2c] sm:$0xff]
        %v3538 = vld [vmem:[#allocation12 + $0xc34] sm:$0xff]
        %v3539 = vld [vmem:[#allocation12 + $0xc3c] sm:$0xf]
        %v3540 = vld [vmem:[#allocation12 + $0xc40] sm:$0xff]
        %v3541 = vld [vmem:[#allocation12 + $0xc48] sm:$0xff]
        %v3542 = vld [vmem:[#allocation12 + $0xc50] sm:$0xff]
        %v3543 = vld [vmem:[#allocation12 + $0xc58] sm:$0xf]
        %v3544 = vld [vmem:[#allocation12 + $0xc5c] sm:$0xff]
        %v3545 = vld [vmem:[#allocation12 + $0xc64] sm:$0xff]
        %v3546 = vld [vmem:[#allocation12 + $0xc6c] sm:$0xff]
        %v3547 = vld [vmem:[#allocation12 + $0xc74] sm:$0xf]
        %v3548 = vld [vmem:[#allocation12 + $0xc78] sm:$0xff]
        %v3549 = vld [vmem:[#allocation12 + $0xc80] sm:$0xff]
        %v3550 = vld [vmem:[#allocation12 + $0xc88] sm:$0xff]
        %v3551 = vld [vmem:[#allocation12 + $0xc90] sm:$0xf]
        %v3552 = vld [vmem:[#allocation12 + $0xc94] sm:$0xff]
        %v3553 = vld [vmem:[#allocation12 + $0xc9c] sm:$0xff]
        %v3554 = vld [vmem:[#allocation12 + $0xca4] sm:$0xff]
        %v3555 = vld [vmem:[#allocation12 + $0xcac] sm:$0xf]
        %v3556 = vld [vmem:[#allocation12 + $0xcb0] sm:$0xff]
        %v3557 = vld [vmem:[#allocation12 + $0xcb8] sm:$0xff]
        %v3558 = vld [vmem:[#allocation12 + $0xcc0] sm:$0xff]
        %v3559 = vld [vmem:[#allocation12 + $0xcc8] sm:$0xf]
        %v3560 = vld [vmem:[#allocation12 + $0xccc] sm:$0xff]
        %v3561 = vld [vmem:[#allocation12 + $0xcd4] sm:$0xff]
        %v3562 = vld [vmem:[#allocation12 + $0xcdc] sm:$0xff]
        %v3563 = vld [vmem:[#allocation12 + $0xce4] sm:$0xf]
        %v3564 = vld [vmem:[#allocation12 + $0xce8] sm:$0xff]
        %v3565 = vld [vmem:[#allocation12 + $0xcf0] sm:$0xff]
        %v3566 = vld [vmem:[#allocation12 + $0xcf8] sm:$0xff]
        %v3567 = vld [vmem:[#allocation12 + $0xd00] sm:$0xf]
        %v3568 = vld [vmem:[#allocation12 + $0xd04] sm:$0xff]
        %v3569 = vld [vmem:[#allocation12 + $0xd0c] sm:$0xff]
        %v3570 = vld [vmem:[#allocation12 + $0xd14] sm:$0xff]
        %v3571 = vld [vmem:[#allocation12 + $0xd1c] sm:$0xf]
        %v3572 = vld [vmem:[#allocation12 + $0xd20] sm:$0xff]
        %v3573 = vld [vmem:[#allocation12 + $0xd28] sm:$0xff]
        %v3574 = vld [vmem:[#allocation12 + $0xd30] sm:$0xff]
        %v3575 = vld [vmem:[#allocation12 + $0xd38] sm:$0xf]
        %v3576 = vld [vmem:[#allocation12 + $0xd3c] sm:$0xff]
        %v3577 = vld [vmem:[#allocation12 + $0xd44] sm:$0xff]
        %v3578 = vld [vmem:[#allocation12 + $0xd4c] sm:$0xff]
        %v3579 = vld [vmem:[#allocation12 + $0xd54] sm:$0xf]
        %v3580 = vld [vmem:[#allocation12 + $0xd58] sm:$0xff]
        %v3581 = vld [vmem:[#allocation12 + $0xd60] sm:$0xff]
        %v3582 = vld [vmem:[#allocation12 + $0xd68] sm:$0xff]
        %v3583 = vld [vmem:[#allocation12 + $0xd70] sm:$0xf]
        %v3584 = vld [vmem:[#allocation12 + $0xd74] sm:$0xff]
        %v3585 = vld [vmem:[#allocation12 + $0xd7c] sm:$0xff]
        %v3586 = vld [vmem:[#allocation12 + $0xd84] sm:$0xff]
        %v3587 = vld [vmem:[#allocation12 + $0xd8c] sm:$0xf]
        %v3588 = vld [vmem:[#allocation12 + $0xd90] sm:$0xff]
        %v3589 = vld [vmem:[#allocation12 + $0xd98] sm:$0xff]
        %v3590 = vld [vmem:[#allocation12 + $0xda0] sm:$0xff]
        %v3591 = vld [vmem:[#allocation12 + $0xda8] sm:$0xf]
        %v3592 = vld [vmem:[#allocation12 + $0xdac] sm:$0xff]
        %v3593 = vld [vmem:[#allocation12 + $0xdb4] sm:$0xff]
        %v3594 = vld [vmem:[#allocation12 + $0xdbc] sm:$0xff]
        %v3595 = vld [vmem:[#allocation12 + $0xdc4] sm:$0xf]
        %v3596 = vld [vmem:[#allocation12 + $0xdc8] sm:$0xff]
        %v3597 = vld [vmem:[#allocation12 + $0xdd0] sm:$0xff]
        %v3598 = vld [vmem:[#allocation12 + $0xdd8] sm:$0xff]
        %v3599 = vld [vmem:[#allocation12 + $0xde0] sm:$0xf]
        %v3600 = vld [vmem:[#allocation12 + $0xde4] sm:$0xff]
        %v3601 = vld [vmem:[#allocation12 + $0xdec] sm:$0xff]
        %v3602 = vld [vmem:[#allocation12 + $0xdf4] sm:$0xff]
        %v3603 = vld [vmem:[#allocation12 + $0xdfc] sm:$0xf]
        %v3605 = vlaneseq
        %v3606 = vshrl.u32 %v3605, 7
        %v3607 = vsub.s32 0, %v3606
        %v3608 = vrot.slane %v451, %v3607
        %v3609 = vlaneseq
        %v3610 = vshrl.u32 %v3609, 7
        %v3611 = vsub.s32 1, %v3610
        %v3612 = vrot.slane %v451, %v3611
        %v3613 = vlaneseq
        %v3614 = vshrl.u32 %v3613, 7
        %v3615 = vsub.s32 2, %v3614
        %v3616 = vrot.slane %v451, %v3615
        %v3617 = vlaneseq
        %v3618 = vshrl.u32 %v3617, 7
        %v3619 = vsub.s32 3, %v3618
        %v3620 = vrot.slane %v451, %v3619
        %v3621 = vlaneseq
        %v3622 = vshrl.u32 %v3621, 7
        %v3623 = vsub.s32 4, %v3622
        %v3624 = vrot.slane %v451, %v3623
        %v3625 = vlaneseq
        %v3626 = vshrl.u32 %v3625, 7
        %v3627 = vsub.s32 5, %v3626
        %v3628 = vrot.slane %v451, %v3627
        %v3629 = vlaneseq
        %v3630 = vshrl.u32 %v3629, 7
        %v3631 = vsub.s32 6, %v3630
        %v3632 = vrot.slane %v451, %v3631
        %v4152 = vunpack.c.l.b16 %v3092
        %v4153 = vunpack.c.h.b16 %v3092
        %v4154 = vunpack.c.l.b16 %v3093
        %v4155 = vunpack.c.h.b16 %v3093
        %v4156 = vunpack.c.l.b16 %v3094
        %v4157 = vunpack.c.h.b16 %v3094
        %v4158 = vunpack.c.l.b16 %v3095
        %v4159 = vunpack.c.l.b16 %v3096
        %v4160 = vunpack.c.h.b16 %v3096
        %v4161 = vunpack.c.l.b16 %v3097
        %v4162 = vunpack.c.h.b16 %v3097
        %v4163 = vunpack.c.l.b16 %v3098
        %v4164 = vunpack.c.h.b16 %v3098
        %v4165 = vunpack.c.l.b16 %v3099
        %v4166 = vunpack.c.l.b16 %v3100
        %v4167 = vunpack.c.h.b16 %v3100
        %v4168 = vunpack.c.l.b16 %v3101
        %v4169 = vunpack.c.h.b16 %v3101
        %v4170 = vunpack.c.l.b16 %v3102
        %v4171 = vunpack.c.h.b16 %v3102
        %v4172 = vunpack.c.l.b16 %v3103
        %v4173 = vunpack.c.l.b16 %v3104
        %v4174 = vunpack.c.h.b16 %v3104
        %v4175 = vunpack.c.l.b16 %v3105
        %v4176 = vunpack.c.h.b16 %v3105
        %v4177 = vunpack.c.l.b16 %v3106
        %v4178 = vunpack.c.h.b16 %v3106
        %v4179 = vunpack.c.l.b16 %v3107
        %v4180 = vunpack.c.l.b16 %v3108
        %v4181 = vunpack.c.h.b16 %v3108
        %v4182 = vunpack.c.l.b16 %v3109
        %v4183 = vunpack.c.h.b16 %v3109
        %v4184 = vunpack.c.l.b16 %v3110
        %v4185 = vunpack.c.h.b16 %v3110
        %v4186 = vunpack.c.l.b16 %v3111
        %v4187 = vunpack.c.l.b16 %v3112
        %v4188 = vunpack.c.h.b16 %v3112
        %v4189 = vunpack.c.l.b16 %v3113
        %v4190 = vunpack.c.h.b16 %v3113
        %v4191 = vunpack.c.l.b16 %v3114
        %v4192 = vunpack.c.h.b16 %v3114
        %v4193 = vunpack.c.l.b16 %v3115
        %v4194 = vunpack.c.l.b16 %v3116
        %v4195 = vunpack.c.h.b16 %v3116
        %v4196 = vunpack.c.l.b16 %v3117
        %v4197 = vunpack.c.h.b16 %v3117
        %v4198 = vunpack.c.l.b16 %v3118
        %v4199 = vunpack.c.h.b16 %v3118
        %v4200 = vunpack.c.l.b16 %v3119
        %v4201 = vunpack.c.l.b16 %v3120
        %v4202 = vunpack.c.h.b16 %v3120
        %v4203 = vunpack.c.l.b16 %v3121
        %v4204 = vunpack.c.h.b16 %v3121
        %v4205 = vunpack.c.l.b16 %v3122
        %v4206 = vunpack.c.h.b16 %v3122
        %v4207 = vunpack.c.l.b16 %v3123
        %v4208 = vunpack.c.l.b16 %v3124
        %v4209 = vunpack.c.h.b16 %v3124
        %v4210 = vunpack.c.l.b16 %v3125
        %v4211 = vunpack.c.h.b16 %v3125
        %v4212 = vunpack.c.l.b16 %v3126
        %v4213 = vunpack.c.h.b16 %v3126
        %v4214 = vunpack.c.l.b16 %v3127
        %v4215 = vunpack.c.l.b16 %v3128
        %v4216 = vunpack.c.h.b16 %v3128
        %v4217 = vunpack.c.l.b16 %v3129
        %v4218 = vunpack.c.h.b16 %v3129
        %v4219 = vunpack.c.l.b16 %v3130
        %v4220 = vunpack.c.h.b16 %v3130
        %v4221 = vunpack.c.l.b16 %v3131
        %v4222 = vunpack.c.l.b16 %v3132
        %v4223 = vunpack.c.h.b16 %v3132
        %v4224 = vunpack.c.l.b16 %v3133
        %v4225 = vunpack.c.h.b16 %v3133
        %v4226 = vunpack.c.l.b16 %v3134
        %v4227 = vunpack.c.h.b16 %v3134
        %v4228 = vunpack.c.l.b16 %v3135
        %v4229 = vunpack.c.l.b16 %v3136
        %v4230 = vunpack.c.h.b16 %v3136
        %v4231 = vunpack.c.l.b16 %v3137
        %v4232 = vunpack.c.h.b16 %v3137
        %v4233 = vunpack.c.l.b16 %v3138
        %v4234 = vunpack.c.h.b16 %v3138
        %v4235 = vunpack.c.l.b16 %v3139
        %v4236 = vunpack.c.l.b16 %v3140
        %v4237 = vunpack.c.h.b16 %v3140
        %v4238 = vunpack.c.l.b16 %v3141
        %v4239 = vunpack.c.h.b16 %v3141
        %v4240 = vunpack.c.l.b16 %v3142
        %v4241 = vunpack.c.h.b16 %v3142
        %v4242 = vunpack.c.l.b16 %v3143
        %v4243 = vunpack.c.l.b16 %v3144
        %v4244 = vunpack.c.h.b16 %v3144
        %v4245 = vunpack.c.l.b16 %v3145
        %v4246 = vunpack.c.h.b16 %v3145
        %v4247 = vunpack.c.l.b16 %v3146
        %v4248 = vunpack.c.h.b16 %v3146
        %v4249 = vunpack.c.l.b16 %v3147
        %v4250 = vunpack.c.l.b16 %v3148
        %v4251 = vunpack.c.h.b16 %v3148
        %v4252 = vunpack.c.l.b16 %v3149
        %v4253 = vunpack.c.h.b16 %v3149
        %v4254 = vunpack.c.l.b16 %v3150
        %v4255 = vunpack.c.h.b16 %v3150
        %v4256 = vunpack.c.l.b16 %v3151
        %v4257 = vunpack.c.l.b16 %v3152
        %v4258 = vunpack.c.h.b16 %v3152
        %v4259 = vunpack.c.l.b16 %v3153
        %v4260 = vunpack.c.h.b16 %v3153
        %v4261 = vunpack.c.l.b16 %v3154
        %v4262 = vunpack.c.h.b16 %v3154
        %v4263 = vunpack.c.l.b16 %v3155
        %v4264 = vunpack.c.l.b16 %v3156
        %v4265 = vunpack.c.h.b16 %v3156
        %v4266 = vunpack.c.l.b16 %v3157
        %v4267 = vunpack.c.h.b16 %v3157
        %v4268 = vunpack.c.l.b16 %v3158
        %v4269 = vunpack.c.h.b16 %v3158
        %v4270 = vunpack.c.l.b16 %v3159
        %v4271 = vunpack.c.l.b16 %v3160
        %v4272 = vunpack.c.h.b16 %v3160
        %v4273 = vunpack.c.l.b16 %v3161
        %v4274 = vunpack.c.h.b16 %v3161
        %v4275 = vunpack.c.l.b16 %v3162
        %v4276 = vunpack.c.h.b16 %v3162
        %v4277 = vunpack.c.l.b16 %v3163
        %v4278 = vunpack.c.l.b16 %v3164
        %v4279 = vunpack.c.h.b16 %v3164
        %v4280 = vunpack.c.l.b16 %v3165
        %v4281 = vunpack.c.h.b16 %v3165
        %v4282 = vunpack.c.l.b16 %v3166
        %v4283 = vunpack.c.h.b16 %v3166
        %v4284 = vunpack.c.l.b16 %v3167
        %v4285 = vunpack.c.l.b16 %v3168
        %v4286 = vunpack.c.h.b16 %v3168
        %v4287 = vunpack.c.l.b16 %v3169
        %v4288 = vunpack.c.h.b16 %v3169
        %v4289 = vunpack.c.l.b16 %v3170
        %v4290 = vunpack.c.h.b16 %v3170
        %v4291 = vunpack.c.l.b16 %v3171
        %v4292 = vunpack.c.l.b16 %v3172
        %v4293 = vunpack.c.h.b16 %v3172
        %v4294 = vunpack.c.l.b16 %v3173
        %v4295 = vunpack.c.h.b16 %v3173
        %v4296 = vunpack.c.l.b16 %v3174
        %v4297 = vunpack.c.h.b16 %v3174
        %v4298 = vunpack.c.l.b16 %v3175
        %v4299 = vunpack.c.l.b16 %v3176
        %v4300 = vunpack.c.h.b16 %v3176
        %v4301 = vunpack.c.l.b16 %v3177
        %v4302 = vunpack.c.h.b16 %v3177
        %v4303 = vunpack.c.l.b16 %v3178
        %v4304 = vunpack.c.h.b16 %v3178
        %v4305 = vunpack.c.l.b16 %v3179
        %v4306 = vunpack.c.l.b16 %v3180
        %v4307 = vunpack.c.h.b16 %v3180
        %v4308 = vunpack.c.l.b16 %v3181
        %v4309 = vunpack.c.h.b16 %v3181
        %v4310 = vunpack.c.l.b16 %v3182
        %v4311 = vunpack.c.h.b16 %v3182
        %v4312 = vunpack.c.l.b16 %v3183
        %v4313 = vunpack.c.l.b16 %v3184
        %v4314 = vunpack.c.h.b16 %v3184
        %v4315 = vunpack.c.l.b16 %v3185
        %v4316 = vunpack.c.h.b16 %v3185
        %v4317 = vunpack.c.l.b16 %v3186
        %v4318 = vunpack.c.h.b16 %v3186
        %v4319 = vunpack.c.l.b16 %v3187
        %v4320 = vunpack.c.l.b16 %v3188
        %v4321 = vunpack.c.h.b16 %v3188
        %v4322 = vunpack.c.l.b16 %v3189
        %v4323 = vunpack.c.h.b16 %v3189
        %v4324 = vunpack.c.l.b16 %v3190
        %v4325 = vunpack.c.h.b16 %v3190
        %v4326 = vunpack.c.l.b16 %v3191
        %v4327 = vunpack.c.l.b16 %v3192
        %v4328 = vunpack.c.h.b16 %v3192
        %v4329 = vunpack.c.l.b16 %v3193
        %v4330 = vunpack.c.h.b16 %v3193
        %v4331 = vunpack.c.l.b16 %v3194
        %v4332 = vunpack.c.h.b16 %v3194
        %v4333 = vunpack.c.l.b16 %v3195
        %v4334 = vunpack.c.l.b16 %v3196
        %v4335 = vunpack.c.h.b16 %v3196
        %v4336 = vunpack.c.l.b16 %v3197
        %v4337 = vunpack.c.h.b16 %v3197
        %v4338 = vunpack.c.l.b16 %v3198
        %v4339 = vunpack.c.h.b16 %v3198
        %v4340 = vunpack.c.l.b16 %v3199
        %v4341 = vunpack.c.l.b16 %v3200
        %v4342 = vunpack.c.h.b16 %v3200
        %v4343 = vunpack.c.l.b16 %v3201
        %v4344 = vunpack.c.h.b16 %v3201
        %v4345 = vunpack.c.l.b16 %v3202
        %v4346 = vunpack.c.h.b16 %v3202
        %v4347 = vunpack.c.l.b16 %v3203
        %v4348 = vunpack.c.l.b16 %v3204
        %v4349 = vunpack.c.h.b16 %v3204
        %v4350 = vunpack.c.l.b16 %v3205
        %v4351 = vunpack.c.h.b16 %v3205
        %v4352 = vunpack.c.l.b16 %v3206
        %v4353 = vunpack.c.h.b16 %v3206
        %v4354 = vunpack.c.l.b16 %v3207
        %v4355 = vunpack.c.l.b16 %v3208
        %v4356 = vunpack.c.h.b16 %v3208
        %v4357 = vunpack.c.l.b16 %v3209
        %v4358 = vunpack.c.h.b16 %v3209
        %v4359 = vunpack.c.l.b16 %v3210
        %v4360 = vunpack.c.h.b16 %v3210
        %v4361 = vunpack.c.l.b16 %v3211
        %v4362 = vunpack.c.l.b16 %v3212
        %v4363 = vunpack.c.h.b16 %v3212
        %v4364 = vunpack.c.l.b16 %v3213
        %v4365 = vunpack.c.h.b16 %v3213
        %v4366 = vunpack.c.l.b16 %v3214
        %v4367 = vunpack.c.h.b16 %v3214
        %v4368 = vunpack.c.l.b16 %v3215
        %v4369 = vunpack.c.l.b16 %v3216
        %v4370 = vunpack.c.h.b16 %v3216
        %v4371 = vunpack.c.l.b16 %v3217
        %v4372 = vunpack.c.h.b16 %v3217
        %v4373 = vunpack.c.l.b16 %v3218
        %v4374 = vunpack.c.h.b16 %v3218
        %v4375 = vunpack.c.l.b16 %v3219
        %v4376 = vunpack.c.l.b16 %v3220
        %v4377 = vunpack.c.h.b16 %v3220
        %v4378 = vunpack.c.l.b16 %v3221
        %v4379 = vunpack.c.h.b16 %v3221
        %v4380 = vunpack.c.l.b16 %v3222
        %v4381 = vunpack.c.h.b16 %v3222
        %v4382 = vunpack.c.l.b16 %v3223
        %v4383 = vunpack.c.l.b16 %v3224
        %v4384 = vunpack.c.h.b16 %v3224
        %v4385 = vunpack.c.l.b16 %v3225
        %v4386 = vunpack.c.h.b16 %v3225
        %v4387 = vunpack.c.l.b16 %v3226
        %v4388 = vunpack.c.h.b16 %v3226
        %v4389 = vunpack.c.l.b16 %v3227
        %v4390 = vunpack.c.l.b16 %v3228
        %v4391 = vunpack.c.h.b16 %v3228
        %v4392 = vunpack.c.l.b16 %v3229
        %v4393 = vunpack.c.h.b16 %v3229
        %v4394 = vunpack.c.l.b16 %v3230
        %v4395 = vunpack.c.h.b16 %v3230
        %v4396 = vunpack.c.l.b16 %v3231
        %v4397 = vunpack.c.l.b16 %v3232
        %v4398 = vunpack.c.h.b16 %v3232
        %v4399 = vunpack.c.l.b16 %v3233
        %v4400 = vunpack.c.h.b16 %v3233
        %v4401 = vunpack.c.l.b16 %v3234
        %v4402 = vunpack.c.h.b16 %v3234
        %v4403 = vunpack.c.l.b16 %v3235
        %v4404 = vunpack.c.l.b16 %v3236
        %v4405 = vunpack.c.h.b16 %v3236
        %v4406 = vunpack.c.l.b16 %v3237
        %v4407 = vunpack.c.h.b16 %v3237
        %v4408 = vunpack.c.l.b16 %v3238
        %v4409 = vunpack.c.h.b16 %v3238
        %v4410 = vunpack.c.l.b16 %v3239
        %v4411 = vunpack.c.l.b16 %v3240
        %v4412 = vunpack.c.h.b16 %v3240
        %v4413 = vunpack.c.l.b16 %v3241
        %v4414 = vunpack.c.h.b16 %v3241
        %v4415 = vunpack.c.l.b16 %v3242
        %v4416 = vunpack.c.h.b16 %v3242
        %v4417 = vunpack.c.l.b16 %v3243
        %v4418 = vunpack.c.l.b16 %v3244
        %v4419 = vunpack.c.h.b16 %v3244
        %v4420 = vunpack.c.l.b16 %v3245
        %v4421 = vunpack.c.h.b16 %v3245
        %v4422 = vunpack.c.l.b16 %v3246
        %v4423 = vunpack.c.h.b16 %v3246
        %v4424 = vunpack.c.l.b16 %v3247
        %v4425 = vunpack.c.l.b16 %v3248
        %v4426 = vunpack.c.h.b16 %v3248
        %v4427 = vunpack.c.l.b16 %v3249
        %v4428 = vunpack.c.h.b16 %v3249
        %v4429 = vunpack.c.l.b16 %v3250
        %v4430 = vunpack.c.h.b16 %v3250
        %v4431 = vunpack.c.l.b16 %v3251
        %v4432 = vunpack.c.l.b16 %v3252
        %v4433 = vunpack.c.h.b16 %v3252
        %v4434 = vunpack.c.l.b16 %v3253
        %v4435 = vunpack.c.h.b16 %v3253
        %v4436 = vunpack.c.l.b16 %v3254
        %v4437 = vunpack.c.h.b16 %v3254
        %v4438 = vunpack.c.l.b16 %v3255
        %v4439 = vunpack.c.l.b16 %v3256
        %v4440 = vunpack.c.h.b16 %v3256
        %v4441 = vunpack.c.l.b16 %v3257
        %v4442 = vunpack.c.h.b16 %v3257
        %v4443 = vunpack.c.l.b16 %v3258
        %v4444 = vunpack.c.h.b16 %v3258
        %v4445 = vunpack.c.l.b16 %v3259
        %v4446 = vunpack.c.l.b16 %v3260
        %v4447 = vunpack.c.h.b16 %v3260
        %v4448 = vunpack.c.l.b16 %v3261
        %v4449 = vunpack.c.h.b16 %v3261
        %v4450 = vunpack.c.l.b16 %v3262
        %v4451 = vunpack.c.h.b16 %v3262
        %v4452 = vunpack.c.l.b16 %v3263
        %v4453 = vunpack.c.l.b16 %v3264
        %v4454 = vunpack.c.h.b16 %v3264
        %v4455 = vunpack.c.l.b16 %v3265
        %v4456 = vunpack.c.h.b16 %v3265
        %v4457 = vunpack.c.l.b16 %v3266
        %v4458 = vunpack.c.h.b16 %v3266
        %v4459 = vunpack.c.l.b16 %v3267
        %v4460 = vunpack.c.l.b16 %v3268
        %v4461 = vunpack.c.h.b16 %v3268
        %v4462 = vunpack.c.l.b16 %v3269
        %v4463 = vunpack.c.h.b16 %v3269
        %v4464 = vunpack.c.l.b16 %v3270
        %v4465 = vunpack.c.h.b16 %v3270
        %v4466 = vunpack.c.l.b16 %v3271
        %v4467 = vunpack.c.l.b16 %v3272
        %v4468 = vunpack.c.h.b16 %v3272
        %v4469 = vunpack.c.l.b16 %v3273
        %v4470 = vunpack.c.h.b16 %v3273
        %v4471 = vunpack.c.l.b16 %v3274
        %v4472 = vunpack.c.h.b16 %v3274
        %v4473 = vunpack.c.l.b16 %v3275
        %v4474 = vunpack.c.l.b16 %v3276
        %v4475 = vunpack.c.h.b16 %v3276
        %v4476 = vunpack.c.l.b16 %v3277
        %v4477 = vunpack.c.h.b16 %v3277
        %v4478 = vunpack.c.l.b16 %v3278
        %v4479 = vunpack.c.h.b16 %v3278
        %v4480 = vunpack.c.l.b16 %v3279
        %v4481 = vunpack.c.l.b16 %v3280
        %v4482 = vunpack.c.h.b16 %v3280
        %v4483 = vunpack.c.l.b16 %v3281
        %v4484 = vunpack.c.h.b16 %v3281
        %v4485 = vunpack.c.l.b16 %v3282
        %v4486 = vunpack.c.h.b16 %v3282
        %v4487 = vunpack.c.l.b16 %v3283
        %v4488 = vunpack.c.l.b16 %v3284
        %v4489 = vunpack.c.h.b16 %v3284
        %v4490 = vunpack.c.l.b16 %v3285
        %v4491 = vunpack.c.h.b16 %v3285
        %v4492 = vunpack.c.l.b16 %v3286
        %v4493 = vunpack.c.h.b16 %v3286
        %v4494 = vunpack.c.l.b16 %v3287
        %v4495 = vunpack.c.l.b16 %v3288
        %v4496 = vunpack.c.h.b16 %v3288
        %v4497 = vunpack.c.l.b16 %v3289
        %v4498 = vunpack.c.h.b16 %v3289
        %v4499 = vunpack.c.l.b16 %v3290
        %v4500 = vunpack.c.h.b16 %v3290
        %v4501 = vunpack.c.l.b16 %v3291
        %v4502 = vunpack.c.l.b16 %v3292
        %v4503 = vunpack.c.h.b16 %v3292
        %v4504 = vunpack.c.l.b16 %v3293
        %v4505 = vunpack.c.h.b16 %v3293
        %v4506 = vunpack.c.l.b16 %v3294
        %v4507 = vunpack.c.h.b16 %v3294
        %v4508 = vunpack.c.l.b16 %v3295
        %v4509 = vunpack.c.l.b16 %v3296
        %v4510 = vunpack.c.h.b16 %v3296
        %v4511 = vunpack.c.l.b16 %v3297
        %v4512 = vunpack.c.h.b16 %v3297
        %v4513 = vunpack.c.l.b16 %v3298
        %v4514 = vunpack.c.h.b16 %v3298
        %v4515 = vunpack.c.l.b16 %v3299
        %v4516 = vunpack.c.l.b16 %v3300
        %v4517 = vunpack.c.h.b16 %v3300
        %v4518 = vunpack.c.l.b16 %v3301
        %v4519 = vunpack.c.h.b16 %v3301
        %v4520 = vunpack.c.l.b16 %v3302
        %v4521 = vunpack.c.h.b16 %v3302
        %v4522 = vunpack.c.l.b16 %v3303
        %v4523 = vunpack.c.l.b16 %v3304
        %v4524 = vunpack.c.h.b16 %v3304
        %v4525 = vunpack.c.l.b16 %v3305
        %v4526 = vunpack.c.h.b16 %v3305
        %v4527 = vunpack.c.l.b16 %v3306
        %v4528 = vunpack.c.h.b16 %v3306
        %v4529 = vunpack.c.l.b16 %v3307
        %v4530 = vunpack.c.l.b16 %v3308
        %v4531 = vunpack.c.h.b16 %v3308
        %v4532 = vunpack.c.l.b16 %v3309
        %v4533 = vunpack.c.h.b16 %v3309
        %v4534 = vunpack.c.l.b16 %v3310
        %v4535 = vunpack.c.h.b16 %v3310
        %v4536 = vunpack.c.l.b16 %v3311
        %v4537 = vunpack.c.l.b16 %v3312
        %v4538 = vunpack.c.h.b16 %v3312
        %v4539 = vunpack.c.l.b16 %v3313
        %v4540 = vunpack.c.h.b16 %v3313
        %v4541 = vunpack.c.l.b16 %v3314
        %v4542 = vunpack.c.h.b16 %v3314
        %v4543 = vunpack.c.l.b16 %v3315
        %v4544 = vunpack.c.l.b16 %v3316
        %v4545 = vunpack.c.h.b16 %v3316
        %v4546 = vunpack.c.l.b16 %v3317
        %v4547 = vunpack.c.h.b16 %v3317
        %v4548 = vunpack.c.l.b16 %v3318
        %v4549 = vunpack.c.h.b16 %v3318
        %v4550 = vunpack.c.l.b16 %v3319
        %v4551 = vunpack.c.l.b16 %v3320
        %v4552 = vunpack.c.h.b16 %v3320
        %v4553 = vunpack.c.l.b16 %v3321
        %v4554 = vunpack.c.h.b16 %v3321
        %v4555 = vunpack.c.l.b16 %v3322
        %v4556 = vunpack.c.h.b16 %v3322
        %v4557 = vunpack.c.l.b16 %v3323
        %v4558 = vunpack.c.l.b16 %v3324
        %v4559 = vunpack.c.h.b16 %v3324
        %v4560 = vunpack.c.l.b16 %v3325
        %v4561 = vunpack.c.h.b16 %v3325
        %v4562 = vunpack.c.l.b16 %v3326
        %v4563 = vunpack.c.h.b16 %v3326
        %v4564 = vunpack.c.l.b16 %v3327
        %v4565 = vunpack.c.l.b16 %v3328
        %v4566 = vunpack.c.h.b16 %v3328
        %v4567 = vunpack.c.l.b16 %v3329
        %v4568 = vunpack.c.h.b16 %v3329
        %v4569 = vunpack.c.l.b16 %v3330
        %v4570 = vunpack.c.h.b16 %v3330
        %v4571 = vunpack.c.l.b16 %v3331
        %v4572 = vunpack.c.l.b16 %v3332
        %v4573 = vunpack.c.h.b16 %v3332
        %v4574 = vunpack.c.l.b16 %v3333
        %v4575 = vunpack.c.h.b16 %v3333
        %v4576 = vunpack.c.l.b16 %v3334
        %v4577 = vunpack.c.h.b16 %v3334
        %v4578 = vunpack.c.l.b16 %v3335
        %v4579 = vunpack.c.l.b16 %v3336
        %v4580 = vunpack.c.h.b16 %v3336
        %v4581 = vunpack.c.l.b16 %v3337
        %v4582 = vunpack.c.h.b16 %v3337
        %v4583 = vunpack.c.l.b16 %v3338
        %v4584 = vunpack.c.h.b16 %v3338
        %v4585 = vunpack.c.l.b16 %v3339
        %v4586 = vunpack.c.l.b16 %v3340
        %v4587 = vunpack.c.h.b16 %v3340
        %v4588 = vunpack.c.l.b16 %v3341
        %v4589 = vunpack.c.h.b16 %v3341
        %v4590 = vunpack.c.l.b16 %v3342
        %v4591 = vunpack.c.h.b16 %v3342
        %v4592 = vunpack.c.l.b16 %v3343
        %v4593 = vunpack.c.l.b16 %v3344
        %v4594 = vunpack.c.h.b16 %v3344
        %v4595 = vunpack.c.l.b16 %v3345
        %v4596 = vunpack.c.h.b16 %v3345
        %v4597 = vunpack.c.l.b16 %v3346
        %v4598 = vunpack.c.h.b16 %v3346
        %v4599 = vunpack.c.l.b16 %v3347
        %v4600 = vunpack.c.l.b16 %v3348
        %v4601 = vunpack.c.h.b16 %v3348
        %v4602 = vunpack.c.l.b16 %v3349
        %v4603 = vunpack.c.h.b16 %v3349
        %v4604 = vunpack.c.l.b16 %v3350
        %v4605 = vunpack.c.h.b16 %v3350
        %v4606 = vunpack.c.l.b16 %v3351
        %v4607 = vunpack.c.l.b16 %v3352
        %v4608 = vunpack.c.h.b16 %v3352
        %v4609 = vunpack.c.l.b16 %v3353
        %v4610 = vunpack.c.h.b16 %v3353
        %v4611 = vunpack.c.l.b16 %v3354
        %v4612 = vunpack.c.h.b16 %v3354
        %v4613 = vunpack.c.l.b16 %v3355
        %v4614 = vunpack.c.l.b16 %v3356
        %v4615 = vunpack.c.h.b16 %v3356
        %v4616 = vunpack.c.l.b16 %v3357
        %v4617 = vunpack.c.h.b16 %v3357
        %v4618 = vunpack.c.l.b16 %v3358
        %v4619 = vunpack.c.h.b16 %v3358
        %v4620 = vunpack.c.l.b16 %v3359
        %v4621 = vunpack.c.l.b16 %v3360
        %v4622 = vunpack.c.h.b16 %v3360
        %v4623 = vunpack.c.l.b16 %v3361
        %v4624 = vunpack.c.h.b16 %v3361
        %v4625 = vunpack.c.l.b16 %v3362
        %v4626 = vunpack.c.h.b16 %v3362
        %v4627 = vunpack.c.l.b16 %v3363
        %v4628 = vunpack.c.l.b16 %v3364
        %v4629 = vunpack.c.h.b16 %v3364
        %v4630 = vunpack.c.l.b16 %v3365
        %v4631 = vunpack.c.h.b16 %v3365
        %v4632 = vunpack.c.l.b16 %v3366
        %v4633 = vunpack.c.h.b16 %v3366
        %v4634 = vunpack.c.l.b16 %v3367
        %v4635 = vunpack.c.l.b16 %v3368
        %v4636 = vunpack.c.h.b16 %v3368
        %v4637 = vunpack.c.l.b16 %v3369
        %v4638 = vunpack.c.h.b16 %v3369
        %v4639 = vunpack.c.l.b16 %v3370
        %v4640 = vunpack.c.h.b16 %v3370
        %v4641 = vunpack.c.l.b16 %v3371
        %v4642 = vunpack.c.l.b16 %v3372
        %v4643 = vunpack.c.h.b16 %v3372
        %v4644 = vunpack.c.l.b16 %v3373
        %v4645 = vunpack.c.h.b16 %v3373
        %v4646 = vunpack.c.l.b16 %v3374
        %v4647 = vunpack.c.h.b16 %v3374
        %v4648 = vunpack.c.l.b16 %v3375
        %v4649 = vunpack.c.l.b16 %v3376
        %v4650 = vunpack.c.h.b16 %v3376
        %v4651 = vunpack.c.l.b16 %v3377
        %v4652 = vunpack.c.h.b16 %v3377
        %v4653 = vunpack.c.l.b16 %v3378
        %v4654 = vunpack.c.h.b16 %v3378
        %v4655 = vunpack.c.l.b16 %v3379
        %v4656 = vunpack.c.l.b16 %v3380
        %v4657 = vunpack.c.h.b16 %v3380
        %v4658 = vunpack.c.l.b16 %v3381
        %v4659 = vunpack.c.h.b16 %v3381
        %v4660 = vunpack.c.l.b16 %v3382
        %v4661 = vunpack.c.h.b16 %v3382
        %v4662 = vunpack.c.l.b16 %v3383
        %v4663 = vunpack.c.l.b16 %v3384
        %v4664 = vunpack.c.h.b16 %v3384
        %v4665 = vunpack.c.l.b16 %v3385
        %v4666 = vunpack.c.h.b16 %v3385
        %v4667 = vunpack.c.l.b16 %v3386
        %v4668 = vunpack.c.h.b16 %v3386
        %v4669 = vunpack.c.l.b16 %v3387
        %v4670 = vunpack.c.l.b16 %v3388
        %v4671 = vunpack.c.h.b16 %v3388
        %v4672 = vunpack.c.l.b16 %v3389
        %v4673 = vunpack.c.h.b16 %v3389
        %v4674 = vunpack.c.l.b16 %v3390
        %v4675 = vunpack.c.h.b16 %v3390
        %v4676 = vunpack.c.l.b16 %v3391
        %v4677 = vunpack.c.l.b16 %v3392
        %v4678 = vunpack.c.h.b16 %v3392
        %v4679 = vunpack.c.l.b16 %v3393
        %v4680 = vunpack.c.h.b16 %v3393
        %v4681 = vunpack.c.l.b16 %v3394
        %v4682 = vunpack.c.h.b16 %v3394
        %v4683 = vunpack.c.l.b16 %v3395
        %v4684 = vunpack.c.l.b16 %v3396
        %v4685 = vunpack.c.h.b16 %v3396
        %v4686 = vunpack.c.l.b16 %v3397
        %v4687 = vunpack.c.h.b16 %v3397
        %v4688 = vunpack.c.l.b16 %v3398
        %v4689 = vunpack.c.h.b16 %v3398
        %v4690 = vunpack.c.l.b16 %v3399
        %v4691 = vunpack.c.l.b16 %v3400
        %v4692 = vunpack.c.h.b16 %v3400
        %v4693 = vunpack.c.l.b16 %v3401
        %v4694 = vunpack.c.h.b16 %v3401
        %v4695 = vunpack.c.l.b16 %v3402
        %v4696 = vunpack.c.h.b16 %v3402
        %v4697 = vunpack.c.l.b16 %v3403
        %v4698 = vunpack.c.l.b16 %v3404
        %v4699 = vunpack.c.h.b16 %v3404
        %v4700 = vunpack.c.l.b16 %v3405
        %v4701 = vunpack.c.h.b16 %v3405
        %v4702 = vunpack.c.l.b16 %v3406
        %v4703 = vunpack.c.h.b16 %v3406
        %v4704 = vunpack.c.l.b16 %v3407
        %v4705 = vunpack.c.l.b16 %v3408
        %v4706 = vunpack.c.h.b16 %v3408
        %v4707 = vunpack.c.l.b16 %v3409
        %v4708 = vunpack.c.h.b16 %v3409
        %v4709 = vunpack.c.l.b16 %v3410
        %v4710 = vunpack.c.h.b16 %v3410
        %v4711 = vunpack.c.l.b16 %v3411
        %v4712 = vunpack.c.l.b16 %v3412
        %v4713 = vunpack.c.h.b16 %v3412
        %v4714 = vunpack.c.l.b16 %v3413
        %v4715 = vunpack.c.h.b16 %v3413
        %v4716 = vunpack.c.l.b16 %v3414
        %v4717 = vunpack.c.h.b16 %v3414
        %v4718 = vunpack.c.l.b16 %v3415
        %v4719 = vunpack.c.l.b16 %v3416
        %v4720 = vunpack.c.h.b16 %v3416
        %v4721 = vunpack.c.l.b16 %v3417
        %v4722 = vunpack.c.h.b16 %v3417
        %v4723 = vunpack.c.l.b16 %v3418
        %v4724 = vunpack.c.h.b16 %v3418
        %v4725 = vunpack.c.l.b16 %v3419
        %v4726 = vunpack.c.l.b16 %v3420
        %v4727 = vunpack.c.h.b16 %v3420
        %v4728 = vunpack.c.l.b16 %v3421
        %v4729 = vunpack.c.h.b16 %v3421
        %v4730 = vunpack.c.l.b16 %v3422
        %v4731 = vunpack.c.h.b16 %v3422
        %v4732 = vunpack.c.l.b16 %v3423
        %v4733 = vunpack.c.l.b16 %v3424
        %v4734 = vunpack.c.h.b16 %v3424
        %v4735 = vunpack.c.l.b16 %v3425
        %v4736 = vunpack.c.h.b16 %v3425
        %v4737 = vunpack.c.l.b16 %v3426
        %v4738 = vunpack.c.h.b16 %v3426
        %v4739 = vunpack.c.l.b16 %v3427
        %v4740 = vunpack.c.l.b16 %v3428
        %v4741 = vunpack.c.h.b16 %v3428
        %v4742 = vunpack.c.l.b16 %v3429
        %v4743 = vunpack.c.h.b16 %v3429
        %v4744 = vunpack.c.l.b16 %v3430
        %v4745 = vunpack.c.h.b16 %v3430
        %v4746 = vunpack.c.l.b16 %v3431
        %v4747 = vunpack.c.l.b16 %v3432
        %v4748 = vunpack.c.h.b16 %v3432
        %v4749 = vunpack.c.l.b16 %v3433
        %v4750 = vunpack.c.h.b16 %v3433
        %v4751 = vunpack.c.l.b16 %v3434
        %v4752 = vunpack.c.h.b16 %v3434
        %v4753 = vunpack.c.l.b16 %v3435
        %v4754 = vunpack.c.l.b16 %v3436
        %v4755 = vunpack.c.h.b16 %v3436
        %v4756 = vunpack.c.l.b16 %v3437
        %v4757 = vunpack.c.h.b16 %v3437
        %v4758 = vunpack.c.l.b16 %v3438
        %v4759 = vunpack.c.h.b16 %v3438
        %v4760 = vunpack.c.l.b16 %v3439
        %v4761 = vunpack.c.l.b16 %v3440
        %v4762 = vunpack.c.h.b16 %v3440
        %v4763 = vunpack.c.l.b16 %v3441
        %v4764 = vunpack.c.h.b16 %v3441
        %v4765 = vunpack.c.l.b16 %v3442
        %v4766 = vunpack.c.h.b16 %v3442
        %v4767 = vunpack.c.l.b16 %v3443
        %v4768 = vunpack.c.l.b16 %v3444
        %v4769 = vunpack.c.h.b16 %v3444
        %v4770 = vunpack.c.l.b16 %v3445
        %v4771 = vunpack.c.h.b16 %v3445
        %v4772 = vunpack.c.l.b16 %v3446
        %v4773 = vunpack.c.h.b16 %v3446
        %v4774 = vunpack.c.l.b16 %v3447
        %v4775 = vunpack.c.l.b16 %v3448
        %v4776 = vunpack.c.h.b16 %v3448
        %v4777 = vunpack.c.l.b16 %v3449
        %v4778 = vunpack.c.h.b16 %v3449
        %v4779 = vunpack.c.l.b16 %v3450
        %v4780 = vunpack.c.h.b16 %v3450
        %v4781 = vunpack.c.l.b16 %v3451
        %v4782 = vunpack.c.l.b16 %v3452
        %v4783 = vunpack.c.h.b16 %v3452
        %v4784 = vunpack.c.l.b16 %v3453
        %v4785 = vunpack.c.h.b16 %v3453
        %v4786 = vunpack.c.l.b16 %v3454
        %v4787 = vunpack.c.h.b16 %v3454
        %v4788 = vunpack.c.l.b16 %v3455
        %v4789 = vunpack.c.l.b16 %v3456
        %v4790 = vunpack.c.h.b16 %v3456
        %v4791 = vunpack.c.l.b16 %v3457
        %v4792 = vunpack.c.h.b16 %v3457
        %v4793 = vunpack.c.l.b16 %v3458
        %v4794 = vunpack.c.h.b16 %v3458
        %v4795 = vunpack.c.l.b16 %v3459
        %v4796 = vunpack.c.l.b16 %v3460
        %v4797 = vunpack.c.h.b16 %v3460
        %v4798 = vunpack.c.l.b16 %v3461
        %v4799 = vunpack.c.h.b16 %v3461
        %v4800 = vunpack.c.l.b16 %v3462
        %v4801 = vunpack.c.h.b16 %v3462
        %v4802 = vunpack.c.l.b16 %v3463
        %v4803 = vunpack.c.l.b16 %v3464
        %v4804 = vunpack.c.h.b16 %v3464
        %v4805 = vunpack.c.l.b16 %v3465
        %v4806 = vunpack.c.h.b16 %v3465
        %v4807 = vunpack.c.l.b16 %v3466
        %v4808 = vunpack.c.h.b16 %v3466
        %v4809 = vunpack.c.l.b16 %v3467
        %v4810 = vunpack.c.l.b16 %v3468
        %v4811 = vunpack.c.h.b16 %v3468
        %v4812 = vunpack.c.l.b16 %v3469
        %v4813 = vunpack.c.h.b16 %v3469
        %v4814 = vunpack.c.l.b16 %v3470
        %v4815 = vunpack.c.h.b16 %v3470
        %v4816 = vunpack.c.l.b16 %v3471
        %v4817 = vunpack.c.l.b16 %v3472
        %v4818 = vunpack.c.h.b16 %v3472
        %v4819 = vunpack.c.l.b16 %v3473
        %v4820 = vunpack.c.h.b16 %v3473
        %v4821 = vunpack.c.l.b16 %v3474
        %v4822 = vunpack.c.h.b16 %v3474
        %v4823 = vunpack.c.l.b16 %v3475
        %v4824 = vunpack.c.l.b16 %v3476
        %v4825 = vunpack.c.h.b16 %v3476
        %v4826 = vunpack.c.l.b16 %v3477
        %v4827 = vunpack.c.h.b16 %v3477
        %v4828 = vunpack.c.l.b16 %v3478
        %v4829 = vunpack.c.h.b16 %v3478
        %v4830 = vunpack.c.l.b16 %v3479
        %v4831 = vunpack.c.l.b16 %v3480
        %v4832 = vunpack.c.h.b16 %v3480
        %v4833 = vunpack.c.l.b16 %v3481
        %v4834 = vunpack.c.h.b16 %v3481
        %v4835 = vunpack.c.l.b16 %v3482
        %v4836 = vunpack.c.h.b16 %v3482
        %v4837 = vunpack.c.l.b16 %v3483
        %v4838 = vunpack.c.l.b16 %v3484
        %v4839 = vunpack.c.h.b16 %v3484
        %v4840 = vunpack.c.l.b16 %v3485
        %v4841 = vunpack.c.h.b16 %v3485
        %v4842 = vunpack.c.l.b16 %v3486
        %v4843 = vunpack.c.h.b16 %v3486
        %v4844 = vunpack.c.l.b16 %v3487
        %v4845 = vunpack.c.l.b16 %v3488
        %v4846 = vunpack.c.h.b16 %v3488
        %v4847 = vunpack.c.l.b16 %v3489
        %v4848 = vunpack.c.h.b16 %v3489
        %v4849 = vunpack.c.l.b16 %v3490
        %v4850 = vunpack.c.h.b16 %v3490
        %v4851 = vunpack.c.l.b16 %v3491
        %v4852 = vunpack.c.l.b16 %v3492
        %v4853 = vunpack.c.h.b16 %v3492
        %v4854 = vunpack.c.l.b16 %v3493
        %v4855 = vunpack.c.h.b16 %v3493
        %v4856 = vunpack.c.l.b16 %v3494
        %v4857 = vunpack.c.h.b16 %v3494
        %v4858 = vunpack.c.l.b16 %v3495
        %v4859 = vunpack.c.l.b16 %v3496
        %v4860 = vunpack.c.h.b16 %v3496
        %v4861 = vunpack.c.l.b16 %v3497
        %v4862 = vunpack.c.h.b16 %v3497
        %v4863 = vunpack.c.l.b16 %v3498
        %v4864 = vunpack.c.h.b16 %v3498
        %v4865 = vunpack.c.l.b16 %v3499
        %v4866 = vunpack.c.l.b16 %v3500
        %v4867 = vunpack.c.h.b16 %v3500
        %v4868 = vunpack.c.l.b16 %v3501
        %v4869 = vunpack.c.h.b16 %v3501
        %v4870 = vunpack.c.l.b16 %v3502
        %v4871 = vunpack.c.h.b16 %v3502
        %v4872 = vunpack.c.l.b16 %v3503
        %v4873 = vunpack.c.l.b16 %v3504
        %v4874 = vunpack.c.h.b16 %v3504
        %v4875 = vunpack.c.l.b16 %v3505
        %v4876 = vunpack.c.h.b16 %v3505
        %v4877 = vunpack.c.l.b16 %v3506
        %v4878 = vunpack.c.h.b16 %v3506
        %v4879 = vunpack.c.l.b16 %v3507
        %v4880 = vunpack.c.l.b16 %v3508
        %v4881 = vunpack.c.h.b16 %v3508
        %v4882 = vunpack.c.l.b16 %v3509
        %v4883 = vunpack.c.h.b16 %v3509
        %v4884 = vunpack.c.l.b16 %v3510
        %v4885 = vunpack.c.h.b16 %v3510
        %v4886 = vunpack.c.l.b16 %v3511
        %v4887 = vunpack.c.l.b16 %v3512
        %v4888 = vunpack.c.h.b16 %v3512
        %v4889 = vunpack.c.l.b16 %v3513
        %v4890 = vunpack.c.h.b16 %v3513
        %v4891 = vunpack.c.l.b16 %v3514
        %v4892 = vunpack.c.h.b16 %v3514
        %v4893 = vunpack.c.l.b16 %v3515
        %v4894 = vunpack.c.l.b16 %v3516
        %v4895 = vunpack.c.h.b16 %v3516
        %v4896 = vunpack.c.l.b16 %v3517
        %v4897 = vunpack.c.h.b16 %v3517
        %v4898 = vunpack.c.l.b16 %v3518
        %v4899 = vunpack.c.h.b16 %v3518
        %v4900 = vunpack.c.l.b16 %v3519
        %v4901 = vunpack.c.l.b16 %v3520
        %v4902 = vunpack.c.h.b16 %v3520
        %v4903 = vunpack.c.l.b16 %v3521
        %v4904 = vunpack.c.h.b16 %v3521
        %v4905 = vunpack.c.l.b16 %v3522
        %v4906 = vunpack.c.h.b16 %v3522
        %v4907 = vunpack.c.l.b16 %v3523
        %v4908 = vunpack.c.l.b16 %v3524
        %v4909 = vunpack.c.h.b16 %v3524
        %v4910 = vunpack.c.l.b16 %v3525
        %v4911 = vunpack.c.h.b16 %v3525
        %v4912 = vunpack.c.l.b16 %v3526
        %v4913 = vunpack.c.h.b16 %v3526
        %v4914 = vunpack.c.l.b16 %v3527
        %v4915 = vunpack.c.l.b16 %v3528
        %v4916 = vunpack.c.h.b16 %v3528
        %v4917 = vunpack.c.l.b16 %v3529
        %v4918 = vunpack.c.h.b16 %v3529
        %v4919 = vunpack.c.l.b16 %v3530
        %v4920 = vunpack.c.h.b16 %v3530
        %v4921 = vunpack.c.l.b16 %v3531
        %v4922 = vunpack.c.l.b16 %v3532
        %v4923 = vunpack.c.h.b16 %v3532
        %v4924 = vunpack.c.l.b16 %v3533
        %v4925 = vunpack.c.h.b16 %v3533
        %v4926 = vunpack.c.l.b16 %v3534
        %v4927 = vunpack.c.h.b16 %v3534
        %v4928 = vunpack.c.l.b16 %v3535
        %v4929 = vunpack.c.l.b16 %v3536
        %v4930 = vunpack.c.h.b16 %v3536
        %v4931 = vunpack.c.l.b16 %v3537
        %v4932 = vunpack.c.h.b16 %v3537
        %v4933 = vunpack.c.l.b16 %v3538
        %v4934 = vunpack.c.h.b16 %v3538
        %v4935 = vunpack.c.l.b16 %v3539
        %v4936 = vunpack.c.l.b16 %v3540
        %v4937 = vunpack.c.h.b16 %v3540
        %v4938 = vunpack.c.l.b16 %v3541
        %v4939 = vunpack.c.h.b16 %v3541
        %v4940 = vunpack.c.l.b16 %v3542
        %v4941 = vunpack.c.h.b16 %v3542
        %v4942 = vunpack.c.l.b16 %v3543
        %v4943 = vunpack.c.l.b16 %v3544
        %v4944 = vunpack.c.h.b16 %v3544
        %v4945 = vunpack.c.l.b16 %v3545
        %v4946 = vunpack.c.h.b16 %v3545
        %v4947 = vunpack.c.l.b16 %v3546
        %v4948 = vunpack.c.h.b16 %v3546
        %v4949 = vunpack.c.l.b16 %v3547
        %v4950 = vunpack.c.l.b16 %v3548
        %v4951 = vunpack.c.h.b16 %v3548
        %v4952 = vunpack.c.l.b16 %v3549
        %v4953 = vunpack.c.h.b16 %v3549
        %v4954 = vunpack.c.l.b16 %v3550
        %v4955 = vunpack.c.h.b16 %v3550
        %v4956 = vunpack.c.l.b16 %v3551
        %v4957 = vunpack.c.l.b16 %v3552
        %v4958 = vunpack.c.h.b16 %v3552
        %v4959 = vunpack.c.l.b16 %v3553
        %v4960 = vunpack.c.h.b16 %v3553
        %v4961 = vunpack.c.l.b16 %v3554
        %v4962 = vunpack.c.h.b16 %v3554
        %v4963 = vunpack.c.l.b16 %v3555
        %v4964 = vunpack.c.l.b16 %v3556
        %v4965 = vunpack.c.h.b16 %v3556
        %v4966 = vunpack.c.l.b16 %v3557
        %v4967 = vunpack.c.h.b16 %v3557
        %v4968 = vunpack.c.l.b16 %v3558
        %v4969 = vunpack.c.h.b16 %v3558
        %v4970 = vunpack.c.l.b16 %v3559
        %v4971 = vunpack.c.l.b16 %v3560
        %v4972 = vunpack.c.h.b16 %v3560
        %v4973 = vunpack.c.l.b16 %v3561
        %v4974 = vunpack.c.h.b16 %v3561
        %v4975 = vunpack.c.l.b16 %v3562
        %v4976 = vunpack.c.h.b16 %v3562
        %v4977 = vunpack.c.l.b16 %v3563
        %v4978 = vunpack.c.l.b16 %v3564
        %v4979 = vunpack.c.h.b16 %v3564
        %v4980 = vunpack.c.l.b16 %v3565
        %v4981 = vunpack.c.h.b16 %v3565
        %v4982 = vunpack.c.l.b16 %v3566
        %v4983 = vunpack.c.h.b16 %v3566
        %v4984 = vunpack.c.l.b16 %v3567
        %v4985 = vunpack.c.l.b16 %v3568
        %v4986 = vunpack.c.h.b16 %v3568
        %v4987 = vunpack.c.l.b16 %v3569
        %v4988 = vunpack.c.h.b16 %v3569
        %v4989 = vunpack.c.l.b16 %v3570
        %v4990 = vunpack.c.h.b16 %v3570
        %v4991 = vunpack.c.l.b16 %v3571
        %v4992 = vunpack.c.l.b16 %v3572
        %v4993 = vunpack.c.h.b16 %v3572
        %v4994 = vunpack.c.l.b16 %v3573
        %v4995 = vunpack.c.h.b16 %v3573
        %v4996 = vunpack.c.l.b16 %v3574
        %v4997 = vunpack.c.h.b16 %v3574
        %v4998 = vunpack.c.l.b16 %v3575
        %v4999 = vunpack.c.l.b16 %v3576
        %v5000 = vunpack.c.h.b16 %v3576
        %v5001 = vunpack.c.l.b16 %v3577
        %v5002 = vunpack.c.h.b16 %v3577
        %v5003 = vunpack.c.l.b16 %v3578
        %v5004 = vunpack.c.h.b16 %v3578
        %v5005 = vunpack.c.l.b16 %v3579
        %v5006 = vunpack.c.l.b16 %v3580
        %v5007 = vunpack.c.h.b16 %v3580
        %v5008 = vunpack.c.l.b16 %v3581
        %v5009 = vunpack.c.h.b16 %v3581
        %v5010 = vunpack.c.l.b16 %v3582
        %v5011 = vunpack.c.h.b16 %v3582
        %v5012 = vunpack.c.l.b16 %v3583
        %v5013 = vunpack.c.l.b16 %v3584
        %v5014 = vunpack.c.h.b16 %v3584
        %v5015 = vunpack.c.l.b16 %v3585
        %v5016 = vunpack.c.h.b16 %v3585
        %v5017 = vunpack.c.l.b16 %v3586
        %v5018 = vunpack.c.h.b16 %v3586
        %v5019 = vunpack.c.l.b16 %v3587
        %v5020 = vunpack.c.l.b16 %v3588
        %v5021 = vunpack.c.h.b16 %v3588
        %v5022 = vunpack.c.l.b16 %v3589
        %v5023 = vunpack.c.h.b16 %v3589
        %v5024 = vunpack.c.l.b16 %v3590
        %v5025 = vunpack.c.h.b16 %v3590
        %v5026 = vunpack.c.l.b16 %v3591
        %v5027 = vunpack.c.l.b16 %v3592
        %v5028 = vunpack.c.h.b16 %v3592
        %v5029 = vunpack.c.l.b16 %v3593
        %v5030 = vunpack.c.h.b16 %v3593
        %v5031 = vunpack.c.l.b16 %v3594
        %v5032 = vunpack.c.h.b16 %v3594
        %v5033 = vunpack.c.l.b16 %v3595
        %v5034 = vunpack.c.l.b16 %v3596
        %v5035 = vunpack.c.h.b16 %v3596
        %v5036 = vunpack.c.l.b16 %v3597
        %v5037 = vunpack.c.h.b16 %v3597
        %v5038 = vunpack.c.l.b16 %v3598
        %v5039 = vunpack.c.h.b16 %v3598
        %v5040 = vunpack.c.l.b16 %v3599
        %v5041 = vunpack.c.l.b16 %v3600
        %v5042 = vunpack.c.h.b16 %v3600
        %v5043 = vunpack.c.l.b16 %v3601
        %v5044 = vunpack.c.h.b16 %v3601
        %v5045 = vunpack.c.l.b16 %v3602
        %v5046 = vunpack.c.h.b16 %v3602
        %v5047 = vunpack.c.l.b16 %v3603
        %v5048 = vpack.c.b16 %v4159, %v4152
        %v5049 = vpack.c.b16 %v4160, %v4153
        %v5050 = vpack.c.b16 %v4161, %v4154
        %v5051 = vpack.c.b16 %v4162, %v4155
        %v5052 = vpack.c.b16 %v4163, %v4156
        %v5053 = vpack.c.b16 %v4164, %v4157
        %v5054 = vpack.c.b16 %v4165, %v4158
        %v5055 = vpack.c.b16 %v4173, %v4166
        %v5056 = vpack.c.b16 %v4174, %v4167
        %v5057 = vpack.c.b16 %v4175, %v4168
        %v5058 = vpack.c.b16 %v4176, %v4169
        %v5059 = vpack.c.b16 %v4177, %v4170
        %v5060 = vpack.c.b16 %v4178, %v4171
        %v5061 = vpack.c.b16 %v4179, %v4172
        %v5062 = vpack.c.b16 %v4187, %v4180
        %v5063 = vpack.c.b16 %v4188, %v4181
        %v5064 = vpack.c.b16 %v4189, %v4182
        %v5065 = vpack.c.b16 %v4190, %v4183
        %v5066 = vpack.c.b16 %v4191, %v4184
        %v5067 = vpack.c.b16 %v4192, %v4185
        %v5068 = vpack.c.b16 %v4193, %v4186
        %v5069 = vpack.c.b16 %v4201, %v4194
        %v5070 = vpack.c.b16 %v4202, %v4195
        %v5071 = vpack.c.b16 %v4203, %v4196
        %v5072 = vpack.c.b16 %v4204, %v4197
        %v5073 = vpack.c.b16 %v4205, %v4198
        %v5074 = vpack.c.b16 %v4206, %v4199
        %v5075 = vpack.c.b16 %v4207, %v4200
        %v5076 = vpack.c.b16 %v4215, %v4208
        %v5077 = vpack.c.b16 %v4216, %v4209
        %v5078 = vpack.c.b16 %v4217, %v4210
        %v5079 = vpack.c.b16 %v4218, %v4211
        %v5080 = vpack.c.b16 %v4219, %v4212
        %v5081 = vpack.c.b16 %v4220, %v4213
        %v5082 = vpack.c.b16 %v4221, %v4214
        %v5083 = vpack.c.b16 %v4229, %v4222
        %v5084 = vpack.c.b16 %v4230, %v4223
        %v5085 = vpack.c.b16 %v4231, %v4224
        %v5086 = vpack.c.b16 %v4232, %v4225
        %v5087 = vpack.c.b16 %v4233, %v4226
        %v5088 = vpack.c.b16 %v4234, %v4227
        %v5089 = vpack.c.b16 %v4235, %v4228
        %v5090 = vpack.c.b16 %v4243, %v4236
        %v5091 = vpack.c.b16 %v4244, %v4237
        %v5092 = vpack.c.b16 %v4245, %v4238
        %v5093 = vpack.c.b16 %v4246, %v4239
        %v5094 = vpack.c.b16 %v4247, %v4240
        %v5095 = vpack.c.b16 %v4248, %v4241
        %v5096 = vpack.c.b16 %v4249, %v4242
        %v5097 = vpack.c.b16 %v4257, %v4250
        %v5098 = vpack.c.b16 %v4258, %v4251
        %v5099 = vpack.c.b16 %v4259, %v4252
        %v5100 = vpack.c.b16 %v4260, %v4253
        %v5101 = vpack.c.b16 %v4261, %v4254
        %v5102 = vpack.c.b16 %v4262, %v4255
        %v5103 = vpack.c.b16 %v4263, %v4256
        %v5104 = vpack.c.b16 %v4271, %v4264
        %v5105 = vpack.c.b16 %v4272, %v4265
        %v5106 = vpack.c.b16 %v4273, %v4266
        %v5107 = vpack.c.b16 %v4274, %v4267
        %v5108 = vpack.c.b16 %v4275, %v4268
        %v5109 = vpack.c.b16 %v4276, %v4269
        %v5110 = vpack.c.b16 %v4277, %v4270
        %v5111 = vpack.c.b16 %v4285, %v4278
        %v5112 = vpack.c.b16 %v4286, %v4279
        %v5113 = vpack.c.b16 %v4287, %v4280
        %v5114 = vpack.c.b16 %v4288, %v4281
        %v5115 = vpack.c.b16 %v4289, %v4282
        %v5116 = vpack.c.b16 %v4290, %v4283
        %v5117 = vpack.c.b16 %v4291, %v4284
        %v5118 = vpack.c.b16 %v4299, %v4292
        %v5119 = vpack.c.b16 %v4300, %v4293
        %v5120 = vpack.c.b16 %v4301, %v4294
        %v5121 = vpack.c.b16 %v4302, %v4295
        %v5122 = vpack.c.b16 %v4303, %v4296
        %v5123 = vpack.c.b16 %v4304, %v4297
        %v5124 = vpack.c.b16 %v4305, %v4298
        %v5125 = vpack.c.b16 %v4313, %v4306
        %v5126 = vpack.c.b16 %v4314, %v4307
        %v5127 = vpack.c.b16 %v4315, %v4308
        %v5128 = vpack.c.b16 %v4316, %v4309
        %v5129 = vpack.c.b16 %v4317, %v4310
        %v5130 = vpack.c.b16 %v4318, %v4311
        %v5131 = vpack.c.b16 %v4319, %v4312
        %v5132 = vpack.c.b16 %v4327, %v4320
        %v5133 = vpack.c.b16 %v4328, %v4321
        %v5134 = vpack.c.b16 %v4329, %v4322
        %v5135 = vpack.c.b16 %v4330, %v4323
        %v5136 = vpack.c.b16 %v4331, %v4324
        %v5137 = vpack.c.b16 %v4332, %v4325
        %v5138 = vpack.c.b16 %v4333, %v4326
        %v5139 = vpack.c.b16 %v4341, %v4334
        %v5140 = vpack.c.b16 %v4342, %v4335
        %v5141 = vpack.c.b16 %v4343, %v4336
        %v5142 = vpack.c.b16 %v4344, %v4337
        %v5143 = vpack.c.b16 %v4345, %v4338
        %v5144 = vpack.c.b16 %v4346, %v4339
        %v5145 = vpack.c.b16 %v4347, %v4340
        %v5146 = vpack.c.b16 %v4355, %v4348
        %v5147 = vpack.c.b16 %v4356, %v4349
        %v5148 = vpack.c.b16 %v4357, %v4350
        %v5149 = vpack.c.b16 %v4358, %v4351
        %v5150 = vpack.c.b16 %v4359, %v4352
        %v5151 = vpack.c.b16 %v4360, %v4353
        %v5152 = vpack.c.b16 %v4361, %v4354
        %v5153 = vpack.c.b16 %v4369, %v4362
        %v5154 = vpack.c.b16 %v4370, %v4363
        %v5155 = vpack.c.b16 %v4371, %v4364
        %v5156 = vpack.c.b16 %v4372, %v4365
        %v5157 = vpack.c.b16 %v4373, %v4366
        %v5158 = vpack.c.b16 %v4374, %v4367
        %v5159 = vpack.c.b16 %v4375, %v4368
        %v5160 = vpack.c.b16 %v4383, %v4376
        %v5161 = vpack.c.b16 %v4384, %v4377
        %v5162 = vpack.c.b16 %v4385, %v4378
        %v5163 = vpack.c.b16 %v4386, %v4379
        %v5164 = vpack.c.b16 %v4387, %v4380
        %v5165 = vpack.c.b16 %v4388, %v4381
        %v5166 = vpack.c.b16 %v4389, %v4382
        %v5167 = vpack.c.b16 %v4397, %v4390
        %v5168 = vpack.c.b16 %v4398, %v4391
        %v5169 = vpack.c.b16 %v4399, %v4392
        %v5170 = vpack.c.b16 %v4400, %v4393
        %v5171 = vpack.c.b16 %v4401, %v4394
        %v5172 = vpack.c.b16 %v4402, %v4395
        %v5173 = vpack.c.b16 %v4403, %v4396
        %v5174 = vpack.c.b16 %v4411, %v4404
        %v5175 = vpack.c.b16 %v4412, %v4405
        %v5176 = vpack.c.b16 %v4413, %v4406
        %v5177 = vpack.c.b16 %v4414, %v4407
        %v5178 = vpack.c.b16 %v4415, %v4408
        %v5179 = vpack.c.b16 %v4416, %v4409
        %v5180 = vpack.c.b16 %v4417, %v4410
        %v5181 = vpack.c.b16 %v4425, %v4418
        %v5182 = vpack.c.b16 %v4426, %v4419
        %v5183 = vpack.c.b16 %v4427, %v4420
        %v5184 = vpack.c.b16 %v4428, %v4421
        %v5185 = vpack.c.b16 %v4429, %v4422
        %v5186 = vpack.c.b16 %v4430, %v4423
        %v5187 = vpack.c.b16 %v4431, %v4424
        %v5188 = vpack.c.b16 %v4439, %v4432
        %v5189 = vpack.c.b16 %v4440, %v4433
        %v5190 = vpack.c.b16 %v4441, %v4434
        %v5191 = vpack.c.b16 %v4442, %v4435
        %v5192 = vpack.c.b16 %v4443, %v4436
        %v5193 = vpack.c.b16 %v4444, %v4437
        %v5194 = vpack.c.b16 %v4445, %v4438
        %v5195 = vpack.c.b16 %v4453, %v4446
        %v5196 = vpack.c.b16 %v4454, %v4447
        %v5197 = vpack.c.b16 %v4455, %v4448
        %v5198 = vpack.c.b16 %v4456, %v4449
        %v5199 = vpack.c.b16 %v4457, %v4450
        %v5200 = vpack.c.b16 %v4458, %v4451
        %v5201 = vpack.c.b16 %v4459, %v4452
        %v5202 = vpack.c.b16 %v4467, %v4460
        %v5203 = vpack.c.b16 %v4468, %v4461
        %v5204 = vpack.c.b16 %v4469, %v4462
        %v5205 = vpack.c.b16 %v4470, %v4463
        %v5206 = vpack.c.b16 %v4471, %v4464
        %v5207 = vpack.c.b16 %v4472, %v4465
        %v5208 = vpack.c.b16 %v4473, %v4466
        %v5209 = vpack.c.b16 %v4481, %v4474
        %v5210 = vpack.c.b16 %v4482, %v4475
        %v5211 = vpack.c.b16 %v4483, %v4476
        %v5212 = vpack.c.b16 %v4484, %v4477
        %v5213 = vpack.c.b16 %v4485, %v4478
        %v5214 = vpack.c.b16 %v4486, %v4479
        %v5215 = vpack.c.b16 %v4487, %v4480
        %v5216 = vpack.c.b16 %v4495, %v4488
        %v5217 = vpack.c.b16 %v4496, %v4489
        %v5218 = vpack.c.b16 %v4497, %v4490
        %v5219 = vpack.c.b16 %v4498, %v4491
        %v5220 = vpack.c.b16 %v4499, %v4492
        %v5221 = vpack.c.b16 %v4500, %v4493
        %v5222 = vpack.c.b16 %v4501, %v4494
        %v5223 = vpack.c.b16 %v4509, %v4502
        %v5224 = vpack.c.b16 %v4510, %v4503
        %v5225 = vpack.c.b16 %v4511, %v4504
        %v5226 = vpack.c.b16 %v4512, %v4505
        %v5227 = vpack.c.b16 %v4513, %v4506
        %v5228 = vpack.c.b16 %v4514, %v4507
        %v5229 = vpack.c.b16 %v4515, %v4508
        %v5230 = vpack.c.b16 %v4523, %v4516
        %v5231 = vpack.c.b16 %v4524, %v4517
        %v5232 = vpack.c.b16 %v4525, %v4518
        %v5233 = vpack.c.b16 %v4526, %v4519
        %v5234 = vpack.c.b16 %v4527, %v4520
        %v5235 = vpack.c.b16 %v4528, %v4521
        %v5236 = vpack.c.b16 %v4529, %v4522
        %v5237 = vpack.c.b16 %v4537, %v4530
        %v5238 = vpack.c.b16 %v4538, %v4531
        %v5239 = vpack.c.b16 %v4539, %v4532
        %v5240 = vpack.c.b16 %v4540, %v4533
        %v5241 = vpack.c.b16 %v4541, %v4534
        %v5242 = vpack.c.b16 %v4542, %v4535
        %v5243 = vpack.c.b16 %v4543, %v4536
        %v5244 = vpack.c.b16 %v4551, %v4544
        %v5245 = vpack.c.b16 %v4552, %v4545
        %v5246 = vpack.c.b16 %v4553, %v4546
        %v5247 = vpack.c.b16 %v4554, %v4547
        %v5248 = vpack.c.b16 %v4555, %v4548
        %v5249 = vpack.c.b16 %v4556, %v4549
        %v5250 = vpack.c.b16 %v4557, %v4550
        %v5251 = vpack.c.b16 %v4565, %v4558
        %v5252 = vpack.c.b16 %v4566, %v4559
        %v5253 = vpack.c.b16 %v4567, %v4560
        %v5254 = vpack.c.b16 %v4568, %v4561
        %v5255 = vpack.c.b16 %v4569, %v4562
        %v5256 = vpack.c.b16 %v4570, %v4563
        %v5257 = vpack.c.b16 %v4571, %v4564
        %v5258 = vpack.c.b16 %v4579, %v4572
        %v5259 = vpack.c.b16 %v4580, %v4573
        %v5260 = vpack.c.b16 %v4581, %v4574
        %v5261 = vpack.c.b16 %v4582, %v4575
        %v5262 = vpack.c.b16 %v4583, %v4576
        %v5263 = vpack.c.b16 %v4584, %v4577
        %v5264 = vpack.c.b16 %v4585, %v4578
        %v5265 = vpack.c.b16 %v4593, %v4586
        %v5266 = vpack.c.b16 %v4594, %v4587
        %v5267 = vpack.c.b16 %v4595, %v4588
        %v5268 = vpack.c.b16 %v4596, %v4589
        %v5269 = vpack.c.b16 %v4597, %v4590
        %v5270 = vpack.c.b16 %v4598, %v4591
        %v5271 = vpack.c.b16 %v4599, %v4592
        %v5272 = vpack.c.b16 %v4607, %v4600
        %v5273 = vpack.c.b16 %v4608, %v4601
        %v5274 = vpack.c.b16 %v4609, %v4602
        %v5275 = vpack.c.b16 %v4610, %v4603
        %v5276 = vpack.c.b16 %v4611, %v4604
        %v5277 = vpack.c.b16 %v4612, %v4605
        %v5278 = vpack.c.b16 %v4613, %v4606
        %v5279 = vpack.c.b16 %v4621, %v4614
        %v5280 = vpack.c.b16 %v4622, %v4615
        %v5281 = vpack.c.b16 %v4623, %v4616
        %v5282 = vpack.c.b16 %v4624, %v4617
        %v5283 = vpack.c.b16 %v4625, %v4618
        %v5284 = vpack.c.b16 %v4626, %v4619
        %v5285 = vpack.c.b16 %v4627, %v4620
        %v5286 = vpack.c.b16 %v4635, %v4628
        %v5287 = vpack.c.b16 %v4636, %v4629
        %v5288 = vpack.c.b16 %v4637, %v4630
        %v5289 = vpack.c.b16 %v4638, %v4631
        %v5290 = vpack.c.b16 %v4639, %v4632
        %v5291 = vpack.c.b16 %v4640, %v4633
        %v5292 = vpack.c.b16 %v4641, %v4634
        %v5293 = vpack.c.b16 %v4649, %v4642
        %v5294 = vpack.c.b16 %v4650, %v4643
        %v5295 = vpack.c.b16 %v4651, %v4644
        %v5296 = vpack.c.b16 %v4652, %v4645
        %v5297 = vpack.c.b16 %v4653, %v4646
        %v5298 = vpack.c.b16 %v4654, %v4647
        %v5299 = vpack.c.b16 %v4655, %v4648
        %v5300 = vpack.c.b16 %v4663, %v4656
        %v5301 = vpack.c.b16 %v4664, %v4657
        %v5302 = vpack.c.b16 %v4665, %v4658
        %v5303 = vpack.c.b16 %v4666, %v4659
        %v5304 = vpack.c.b16 %v4667, %v4660
        %v5305 = vpack.c.b16 %v4668, %v4661
        %v5306 = vpack.c.b16 %v4669, %v4662
        %v5307 = vpack.c.b16 %v4677, %v4670
        %v5308 = vpack.c.b16 %v4678, %v4671
        %v5309 = vpack.c.b16 %v4679, %v4672
        %v5310 = vpack.c.b16 %v4680, %v4673
        %v5311 = vpack.c.b16 %v4681, %v4674
        %v5312 = vpack.c.b16 %v4682, %v4675
        %v5313 = vpack.c.b16 %v4683, %v4676
        %v5314 = vpack.c.b16 %v4691, %v4684
        %v5315 = vpack.c.b16 %v4692, %v4685
        %v5316 = vpack.c.b16 %v4693, %v4686
        %v5317 = vpack.c.b16 %v4694, %v4687
        %v5318 = vpack.c.b16 %v4695, %v4688
        %v5319 = vpack.c.b16 %v4696, %v4689
        %v5320 = vpack.c.b16 %v4697, %v4690
        %v5321 = vpack.c.b16 %v4705, %v4698
        %v5322 = vpack.c.b16 %v4706, %v4699
        %v5323 = vpack.c.b16 %v4707, %v4700
        %v5324 = vpack.c.b16 %v4708, %v4701
        %v5325 = vpack.c.b16 %v4709, %v4702
        %v5326 = vpack.c.b16 %v4710, %v4703
        %v5327 = vpack.c.b16 %v4711, %v4704
        %v5328 = vpack.c.b16 %v4719, %v4712
        %v5329 = vpack.c.b16 %v4720, %v4713
        %v5330 = vpack.c.b16 %v4721, %v4714
        %v5331 = vpack.c.b16 %v4722, %v4715
        %v5332 = vpack.c.b16 %v4723, %v4716
        %v5333 = vpack.c.b16 %v4724, %v4717
        %v5334 = vpack.c.b16 %v4725, %v4718
        %v5335 = vpack.c.b16 %v4733, %v4726
        %v5336 = vpack.c.b16 %v4734, %v4727
        %v5337 = vpack.c.b16 %v4735, %v4728
        %v5338 = vpack.c.b16 %v4736, %v4729
        %v5339 = vpack.c.b16 %v4737, %v4730
        %v5340 = vpack.c.b16 %v4738, %v4731
        %v5341 = vpack.c.b16 %v4739, %v4732
        %v5342 = vpack.c.b16 %v4747, %v4740
        %v5343 = vpack.c.b16 %v4748, %v4741
        %v5344 = vpack.c.b16 %v4749, %v4742
        %v5345 = vpack.c.b16 %v4750, %v4743
        %v5346 = vpack.c.b16 %v4751, %v4744
        %v5347 = vpack.c.b16 %v4752, %v4745
        %v5348 = vpack.c.b16 %v4753, %v4746
        %v5349 = vpack.c.b16 %v4761, %v4754
        %v5350 = vpack.c.b16 %v4762, %v4755
        %v5351 = vpack.c.b16 %v4763, %v4756
        %v5352 = vpack.c.b16 %v4764, %v4757
        %v5353 = vpack.c.b16 %v4765, %v4758
        %v5354 = vpack.c.b16 %v4766, %v4759
        %v5355 = vpack.c.b16 %v4767, %v4760
        %v5356 = vpack.c.b16 %v4775, %v4768
        %v5357 = vpack.c.b16 %v4776, %v4769
        %v5358 = vpack.c.b16 %v4777, %v4770
        %v5359 = vpack.c.b16 %v4778, %v4771
        %v5360 = vpack.c.b16 %v4779, %v4772
        %v5361 = vpack.c.b16 %v4780, %v4773
        %v5362 = vpack.c.b16 %v4781, %v4774
        %v5363 = vpack.c.b16 %v4789, %v4782
        %v5364 = vpack.c.b16 %v4790, %v4783
        %v5365 = vpack.c.b16 %v4791, %v4784
        %v5366 = vpack.c.b16 %v4792, %v4785
        %v5367 = vpack.c.b16 %v4793, %v4786
        %v5368 = vpack.c.b16 %v4794, %v4787
        %v5369 = vpack.c.b16 %v4795, %v4788
        %v5370 = vpack.c.b16 %v4803, %v4796
        %v5371 = vpack.c.b16 %v4804, %v4797
        %v5372 = vpack.c.b16 %v4805, %v4798
        %v5373 = vpack.c.b16 %v4806, %v4799
        %v5374 = vpack.c.b16 %v4807, %v4800
        %v5375 = vpack.c.b16 %v4808, %v4801
        %v5376 = vpack.c.b16 %v4809, %v4802
        %v5377 = vpack.c.b16 %v4817, %v4810
        %v5378 = vpack.c.b16 %v4818, %v4811
        %v5379 = vpack.c.b16 %v4819, %v4812
        %v5380 = vpack.c.b16 %v4820, %v4813
        %v5381 = vpack.c.b16 %v4821, %v4814
        %v5382 = vpack.c.b16 %v4822, %v4815
        %v5383 = vpack.c.b16 %v4823, %v4816
        %v5384 = vpack.c.b16 %v4831, %v4824
        %v5385 = vpack.c.b16 %v4832, %v4825
        %v5386 = vpack.c.b16 %v4833, %v4826
        %v5387 = vpack.c.b16 %v4834, %v4827
        %v5388 = vpack.c.b16 %v4835, %v4828
        %v5389 = vpack.c.b16 %v4836, %v4829
        %v5390 = vpack.c.b16 %v4837, %v4830
        %v5391 = vpack.c.b16 %v4845, %v4838
        %v5392 = vpack.c.b16 %v4846, %v4839
        %v5393 = vpack.c.b16 %v4847, %v4840
        %v5394 = vpack.c.b16 %v4848, %v4841
        %v5395 = vpack.c.b16 %v4849, %v4842
        %v5396 = vpack.c.b16 %v4850, %v4843
        %v5397 = vpack.c.b16 %v4851, %v4844
        %v5398 = vpack.c.b16 %v4859, %v4852
        %v5399 = vpack.c.b16 %v4860, %v4853
        %v5400 = vpack.c.b16 %v4861, %v4854
        %v5401 = vpack.c.b16 %v4862, %v4855
        %v5402 = vpack.c.b16 %v4863, %v4856
        %v5403 = vpack.c.b16 %v4864, %v4857
        %v5404 = vpack.c.b16 %v4865, %v4858
        %v5405 = vpack.c.b16 %v4873, %v4866
        %v5406 = vpack.c.b16 %v4874, %v4867
        %v5407 = vpack.c.b16 %v4875, %v4868
        %v5408 = vpack.c.b16 %v4876, %v4869
        %v5409 = vpack.c.b16 %v4877, %v4870
        %v5410 = vpack.c.b16 %v4878, %v4871
        %v5411 = vpack.c.b16 %v4879, %v4872
        %v5412 = vpack.c.b16 %v4887, %v4880
        %v5413 = vpack.c.b16 %v4888, %v4881
        %v5414 = vpack.c.b16 %v4889, %v4882
        %v5415 = vpack.c.b16 %v4890, %v4883
        %v5416 = vpack.c.b16 %v4891, %v4884
        %v5417 = vpack.c.b16 %v4892, %v4885
        %v5418 = vpack.c.b16 %v4893, %v4886
        %v5419 = vpack.c.b16 %v4901, %v4894
        %v5420 = vpack.c.b16 %v4902, %v4895
        %v5421 = vpack.c.b16 %v4903, %v4896
        %v5422 = vpack.c.b16 %v4904, %v4897
        %v5423 = vpack.c.b16 %v4905, %v4898
        %v5424 = vpack.c.b16 %v4906, %v4899
        %v5425 = vpack.c.b16 %v4907, %v4900
        %v5426 = vpack.c.b16 %v4915, %v4908
        %v5427 = vpack.c.b16 %v4916, %v4909
        %v5428 = vpack.c.b16 %v4917, %v4910
        %v5429 = vpack.c.b16 %v4918, %v4911
        %v5430 = vpack.c.b16 %v4919, %v4912
        %v5431 = vpack.c.b16 %v4920, %v4913
        %v5432 = vpack.c.b16 %v4921, %v4914
        %v5433 = vpack.c.b16 %v4929, %v4922
        %v5434 = vpack.c.b16 %v4930, %v4923
        %v5435 = vpack.c.b16 %v4931, %v4924
        %v5436 = vpack.c.b16 %v4932, %v4925
        %v5437 = vpack.c.b16 %v4933, %v4926
        %v5438 = vpack.c.b16 %v4934, %v4927
        %v5439 = vpack.c.b16 %v4935, %v4928
        %v5440 = vpack.c.b16 %v4943, %v4936
        %v5441 = vpack.c.b16 %v4944, %v4937
        %v5442 = vpack.c.b16 %v4945, %v4938
        %v5443 = vpack.c.b16 %v4946, %v4939
        %v5444 = vpack.c.b16 %v4947, %v4940
        %v5445 = vpack.c.b16 %v4948, %v4941
        %v5446 = vpack.c.b16 %v4949, %v4942
        %v5447 = vpack.c.b16 %v4957, %v4950
        %v5448 = vpack.c.b16 %v4958, %v4951
        %v5449 = vpack.c.b16 %v4959, %v4952
        %v5450 = vpack.c.b16 %v4960, %v4953
        %v5451 = vpack.c.b16 %v4961, %v4954
        %v5452 = vpack.c.b16 %v4962, %v4955
        %v5453 = vpack.c.b16 %v4963, %v4956
        %v5454 = vpack.c.b16 %v4971, %v4964
        %v5455 = vpack.c.b16 %v4972, %v4965
        %v5456 = vpack.c.b16 %v4973, %v4966
        %v5457 = vpack.c.b16 %v4974, %v4967
        %v5458 = vpack.c.b16 %v4975, %v4968
        %v5459 = vpack.c.b16 %v4976, %v4969
        %v5460 = vpack.c.b16 %v4977, %v4970
        %v5461 = vpack.c.b16 %v4985, %v4978
        %v5462 = vpack.c.b16 %v4986, %v4979
        %v5463 = vpack.c.b16 %v4987, %v4980
        %v5464 = vpack.c.b16 %v4988, %v4981
        %v5465 = vpack.c.b16 %v4989, %v4982
        %v5466 = vpack.c.b16 %v4990, %v4983
        %v5467 = vpack.c.b16 %v4991, %v4984
        %v5468 = vpack.c.b16 %v4999, %v4992
        %v5469 = vpack.c.b16 %v5000, %v4993
        %v5470 = vpack.c.b16 %v5001, %v4994
        %v5471 = vpack.c.b16 %v5002, %v4995
        %v5472 = vpack.c.b16 %v5003, %v4996
        %v5473 = vpack.c.b16 %v5004, %v4997
        %v5474 = vpack.c.b16 %v5005, %v4998
        %v5475 = vpack.c.b16 %v5013, %v5006
        %v5476 = vpack.c.b16 %v5014, %v5007
        %v5477 = vpack.c.b16 %v5015, %v5008
        %v5478 = vpack.c.b16 %v5016, %v5009
        %v5479 = vpack.c.b16 %v5017, %v5010
        %v5480 = vpack.c.b16 %v5018, %v5011
        %v5481 = vpack.c.b16 %v5019, %v5012
        %v5482 = vpack.c.b16 %v5027, %v5020
        %v5483 = vpack.c.b16 %v5028, %v5021
        %v5484 = vpack.c.b16 %v5029, %v5022
        %v5485 = vpack.c.b16 %v5030, %v5023
        %v5486 = vpack.c.b16 %v5031, %v5024
        %v5487 = vpack.c.b16 %v5032, %v5025
        %v5488 = vpack.c.b16 %v5033, %v5026
        %v5489 = vpack.c.b16 %v5041, %v5034
        %v5490 = vpack.c.b16 %v5042, %v5035
        %v5491 = vpack.c.b16 %v5043, %v5036
        %v5492 = vpack.c.b16 %v5044, %v5037
        %v5493 = vpack.c.b16 %v5045, %v5038
        %v5494 = vpack.c.b16 %v5046, %v5039
        %v5495 = vpack.c.b16 %v5047, %v5040
        %5944 = vmatprep.subr.bf16.mxu0 %v5098
        %5945 = vmatpush1.bf16.msra.mxu0 %v5097
        %5946 = vmatprep.subr.bf16.mxu0 %v5091
        %5947 = vmatpush1.bf16.msra.mxu0 %v5090
        %5948 = vmatprep.subr.bf16.mxu0 %v5084
        %5949 = vmatpush1.bf16.msra.mxu0 %v5083
        %5950 = vmatprep.subr.bf16.mxu0 %v5077
        %5951 = vmatpush1.bf16.msra.mxu0 %v5076
        %5952 = vmatprep.subr.bf16.mxu0 %v5070
        %5953 = vmatpush1.bf16.msra.mxu0 %v5069
        %5954 = vmatprep.subr.bf16.mxu0 %v5063
        %5955 = vmatpush1.bf16.msra.mxu0 %v5062
        %5956 = vmatprep.subr.bf16.mxu0 %v5056
        %5957 = vmatpush1.bf16.msra.mxu0 %v5055
        %5958 = vmatprep.subr.bf16.mxu0 %v5049
        %5959 = vmatpush1.bf16.msra.mxu0 %v5048
        %5960 = vmatprep.subr.bf16.mxu0 %v5154
        %5961 = vmatpush2.bf16.msra.mxu0 %v5153
        %5962 = vmatprep.subr.bf16.mxu0 %v5147
        %5963 = vmatpush2.bf16.msra.mxu0 %v5146
        %5964 = vmatprep.subr.bf16.mxu0 %v5140
        %5965 = vmatpush2.bf16.msra.mxu0 %v5139
        %5966 = vmatprep.subr.bf16.mxu0 %v5133
        %5967 = vmatpush2.bf16.msra.mxu0 %v5132
        %5968 = vmatprep.subr.bf16.mxu0 %v5126
        %5969 = vmatpush2.bf16.msra.mxu0 %v5125
        %5970 = vmatprep.subr.bf16.mxu0 %v5119
        %5971 = vmatpush2.bf16.msra.mxu0 %v5118
        %5972 = vmatprep.subr.bf16.mxu0 %v5112
        %5973 = vmatpush2.bf16.msra.mxu0 %v5111
        %5974 = vmatprep.subr.bf16.mxu0 %v5105
        %5975 = vmatpush2.bf16.msra.mxu0 %v5104
        %5976 = vmatprep.mubr.bf16.mxu0 %v3085
        %5977 = vmatmul.mubr.bf16.gmra.mxu0 %v3084
        %v5978 = vpop.f32.mrf.mxu0
        %v5979 = vadd.f32 %v3608, %v5978
        %v5980 = vpop.f32.mrf.mxu0
        %v5981 = vadd.f32 %v3612, %v5980
        %v5982 = vpop.f32.mrf.mxu0
        %v5983 = vadd.f32 %v3608, %v5982
        %v5984 = vpop.f32.mrf.mxu0
        %v5985 = vadd.f32 %v3612, %v5984
        %5986 = vdwg.mxu0
        %5987 = vmatprep.subr.bf16.mxu0 %v5210
        %5988 = vmatpush1.bf16.msra.mxu0 %v5209
        %5989 = vmatprep.subr.bf16.mxu0 %v5203
        %5990 = vmatpush1.bf16.msra.mxu0 %v5202
        %5991 = vmatprep.subr.bf16.mxu0 %v5196
        %5992 = vmatpush1.bf16.msra.mxu0 %v5195
        %5993 = vmatprep.subr.bf16.mxu0 %v5189
        %5994 = vmatpush1.bf16.msra.mxu0 %v5188
        %5995 = vmatprep.subr.bf16.mxu0 %v5182
        %5996 = vmatpush1.bf16.msra.mxu0 %v5181
        %5997 = vmatprep.subr.bf16.mxu0 %v5175
        %5998 = vmatpush1.bf16.msra.mxu0 %v5174
        %5999 = vmatprep.subr.bf16.mxu0 %v5168
        %6000 = vmatpush1.bf16.msra.mxu0 %v5167
        %6001 = vmatprep.subr.bf16.mxu0 %v5161
        %6002 = vmatpush1.bf16.msra.mxu0 %v5160
        %6003 = vmatprep.subr.bf16.mxu0 %v5266
        %6004 = vmatpush2.bf16.msra.mxu0 %v5265
        %6005 = vmatprep.subr.bf16.mxu0 %v5259
        %6006 = vmatpush2.bf16.msra.mxu0 %v5258
        %6007 = vmatprep.subr.bf16.mxu0 %v5252
        %6008 = vmatpush2.bf16.msra.mxu0 %v5251
        %6009 = vmatprep.subr.bf16.mxu0 %v5245
        %6010 = vmatpush2.bf16.msra.mxu0 %v5244
        %6011 = vmatprep.subr.bf16.mxu0 %v5238
        %6012 = vmatpush2.bf16.msra.mxu0 %v5237
        %6013 = vmatprep.subr.bf16.mxu0 %v5231
        %6014 = vmatpush2.bf16.msra.mxu0 %v5230
        %6015 = vmatprep.subr.bf16.mxu0 %v5224
        %6016 = vmatpush2.bf16.msra.mxu0 %v5223
        %6017 = vmatprep.subr.bf16.mxu0 %v5217
        %6018 = vmatpush2.bf16.msra.mxu0 %v5216
        %6019 = vmatprep.mubr.bf16.mxu0 %v3087
        %6020 = vmatmul.mubr.bf16.gmra.mxu0 %v3086
        %v6021 = vpop.f32.mrf.mxu0
        %v6022 = vadd.f32 %v5979, %v6021
        %v6023 = vpop.f32.mrf.mxu0
        %v6024 = vadd.f32 %v5981, %v6023
        %v6025 = vpop.f32.mrf.mxu0
        %v6026 = vadd.f32 %v5983, %v6025
        %v6027 = vpop.f32.mrf.mxu0
        %v6028 = vadd.f32 %v5985, %v6027
        %6029 = vdwg.mxu0
        %6030 = vmatprep.subr.bf16.mxu0 %v5322
        %6031 = vmatpush1.bf16.msra.mxu0 %v5321
        %6032 = vmatprep.subr.bf16.mxu0 %v5315
        %6033 = vmatpush1.bf16.msra.mxu0 %v5314
        %6034 = vmatprep.subr.bf16.mxu0 %v5308
        %6035 = vmatpush1.bf16.msra.mxu0 %v5307
        %6036 = vmatprep.subr.bf16.mxu0 %v5301
        %6037 = vmatpush1.bf16.msra.mxu0 %v5300
        %6038 = vmatprep.subr.bf16.mxu0 %v5294
        %6039 = vmatpush1.bf16.msra.mxu0 %v5293
        %6040 = vmatprep.subr.bf16.mxu0 %v5287
        %6041 = vmatpush1.bf16.msra.mxu0 %v5286
        %6042 = vmatprep.subr.bf16.mxu0 %v5280
        %6043 = vmatpush1.bf16.msra.mxu0 %v5279
        %6044 = vmatprep.subr.bf16.mxu0 %v5273
        %6045 = vmatpush1.bf16.msra.mxu0 %v5272
        %6046 = vmatprep.subr.bf16.mxu0 %v5378
        %6047 = vmatpush2.bf16.msra.mxu0 %v5377
        %6048 = vmatprep.subr.bf16.mxu0 %v5371
        %6049 = vmatpush2.bf16.msra.mxu0 %v5370
        %6050 = vmatprep.subr.bf16.mxu0 %v5364
        %6051 = vmatpush2.bf16.msra.mxu0 %v5363
        %6052 = vmatprep.subr.bf16.mxu0 %v5357
        %6053 = vmatpush2.bf16.msra.mxu0 %v5356
        %6054 = vmatprep.subr.bf16.mxu0 %v5350
        %6055 = vmatpush2.bf16.msra.mxu0 %v5349
        %6056 = vmatprep.subr.bf16.mxu0 %v5343
        %6057 = vmatpush2.bf16.msra.mxu0 %v5342
        %6058 = vmatprep.subr.bf16.mxu0 %v5336
        %6059 = vmatpush2.bf16.msra.mxu0 %v5335
        %6060 = vmatprep.subr.bf16.mxu0 %v5329
        %6061 = vmatpush2.bf16.msra.mxu0 %v5328
        %6062 = vmatprep.mubr.bf16.mxu0 %v3089
        %6063 = vmatmul.mubr.bf16.gmra.mxu0 %v3088
        %v6064 = vpop.f32.mrf.mxu0
        %v6065 = vadd.f32 %v6022, %v6064
        %v6066 = vpop.f32.mrf.mxu0
        %v6067 = vadd.f32 %v6024, %v6066
        %v6068 = vpop.f32.mrf.mxu0
        %v6069 = vadd.f32 %v6026, %v6068
        %v6070 = vpop.f32.mrf.mxu0
        %v6071 = vadd.f32 %v6028, %v6070
        %6072 = vdwg.mxu0
        %6073 = vmatprep.subr.bf16.mxu0 %v5434
        %6074 = vmatpush1.bf16.msra.mxu0 %v5433
        %6075 = vmatprep.subr.bf16.mxu0 %v5427
        %6076 = vmatpush1.bf16.msra.mxu0 %v5426
        %6077 = vmatprep.subr.bf16.mxu0 %v5420
        %6078 = vmatpush1.bf16.msra.mxu0 %v5419
        %6079 = vmatprep.subr.bf16.mxu0 %v5413
        %6080 = vmatpush1.bf16.msra.mxu0 %v5412
        %6081 = vmatprep.subr.bf16.mxu0 %v5406
        %6082 = vmatpush1.bf16.msra.mxu0 %v5405
        %6083 = vmatprep.subr.bf16.mxu0 %v5399
        %6084 = vmatpush1.bf16.msra.mxu0 %v5398
        %6085 = vmatprep.subr.bf16.mxu0 %v5392
        %6086 = vmatpush1.bf16.msra.mxu0 %v5391
        %6087 = vmatprep.subr.bf16.mxu0 %v5385
        %6088 = vmatpush1.bf16.msra.mxu0 %v5384
        %6089 = vmatprep.subr.bf16.mxu0 %v5490
        %6090 = vmatpush2.bf16.msra.mxu0 %v5489
        %6091 = vmatprep.subr.bf16.mxu0 %v5483
        %6092 = vmatpush2.bf16.msra.mxu0 %v5482
        %6093 = vmatprep.subr.bf16.mxu0 %v5476
        %6094 = vmatpush2.bf16.msra.mxu0 %v5475
        %6095 = vmatprep.subr.bf16.mxu0 %v5469
        %6096 = vmatpush2.bf16.msra.mxu0 %v5468
        %6097 = vmatprep.subr.bf16.mxu0 %v5462
        %6098 = vmatpush2.bf16.msra.mxu0 %v5461
        %6099 = vmatprep.subr.bf16.mxu0 %v5455
        %6100 = vmatpush2.bf16.msra.mxu0 %v5454
        %6101 = vmatprep.subr.bf16.mxu0 %v5448
        %6102 = vmatpush2.bf16.msra.mxu0 %v5447
        %6103 = vmatprep.subr.bf16.mxu0 %v5441
        %6104 = vmatpush2.bf16.msra.mxu0 %v5440
        %6105 = vmatprep.mubr.bf16.mxu0 %v3091
        %6106 = vmatmul.mubr.bf16.gmra.mxu0 %v3090
        %v6107 = vpop.f32.mrf.mxu0
        %v6108 = vadd.f32 %v6065, %v6107
        %v6109 = vpop.f32.mrf.mxu0
        %v6110 = vadd.f32 %v6067, %v6109
        %v6111 = vpop.f32.mrf.mxu0
        %v6112 = vadd.f32 %v6069, %v6111
        %v6113 = vpop.f32.mrf.mxu0
        %v6114 = vadd.f32 %v6071, %v6113
        %6115 = vdwg.mxu0
        %6116 = vmatprep.subr.bf16.mxu0 %v5100
        %6117 = vmatpush1.bf16.msra.mxu0 %v5099
        %6118 = vmatprep.subr.bf16.mxu0 %v5093
        %6119 = vmatpush1.bf16.msra.mxu0 %v5092
        %6120 = vmatprep.subr.bf16.mxu0 %v5086
        %6121 = vmatpush1.bf16.msra.mxu0 %v5085
        %6122 = vmatprep.subr.bf16.mxu0 %v5079
        %6123 = vmatpush1.bf16.msra.mxu0 %v5078
        %6124 = vmatprep.subr.bf16.mxu0 %v5072
        %6125 = vmatpush1.bf16.msra.mxu0 %v5071
        %6126 = vmatprep.subr.bf16.mxu0 %v5065
        %6127 = vmatpush1.bf16.msra.mxu0 %v5064
        %6128 = vmatprep.subr.bf16.mxu0 %v5058
        %6129 = vmatpush1.bf16.msra.mxu0 %v5057
        %6130 = vmatprep.subr.bf16.mxu0 %v5051
        %6131 = vmatpush1.bf16.msra.mxu0 %v5050
        %6132 = vmatprep.subr.bf16.mxu0 %v5156
        %6133 = vmatpush2.bf16.msra.mxu0 %v5155
        %6134 = vmatprep.subr.bf16.mxu0 %v5149
        %6135 = vmatpush2.bf16.msra.mxu0 %v5148
        %6136 = vmatprep.subr.bf16.mxu0 %v5142
        %6137 = vmatpush2.bf16.msra.mxu0 %v5141
        %6138 = vmatprep.subr.bf16.mxu0 %v5135
        %6139 = vmatpush2.bf16.msra.mxu0 %v5134
        %6140 = vmatprep.subr.bf16.mxu0 %v5128
        %6141 = vmatpush2.bf16.msra.mxu0 %v5127
        %6142 = vmatprep.subr.bf16.mxu0 %v5121
        %6143 = vmatpush2.bf16.msra.mxu0 %v5120
        %6144 = vmatprep.subr.bf16.mxu0 %v5114
        %6145 = vmatpush2.bf16.msra.mxu0 %v5113
        %6146 = vmatprep.subr.bf16.mxu0 %v5107
        %6147 = vmatpush2.bf16.msra.mxu0 %v5106
        %6148 = vmatprep.mubr.bf16.mxu0 %v3085
        %6149 = vmatmul.mubr.bf16.gmra.mxu0 %v3084
        %v6150 = vpop.f32.mrf.mxu0
        %v6151 = vadd.f32 %v3616, %v6150
        %v6152 = vpop.f32.mrf.mxu0
        %v6153 = vadd.f32 %v3620, %v6152
        %v6154 = vpop.f32.mrf.mxu0
        %v6155 = vadd.f32 %v3616, %v6154
        %v6156 = vpop.f32.mrf.mxu0
        %v6157 = vadd.f32 %v3620, %v6156
        %6158 = vdwg.mxu0
        %6159 = vmatprep.subr.bf16.mxu0 %v5212
        %6160 = vmatpush1.bf16.msra.mxu0 %v5211
        %6161 = vmatprep.subr.bf16.mxu0 %v5205
        %6162 = vmatpush1.bf16.msra.mxu0 %v5204
        %6163 = vmatprep.subr.bf16.mxu0 %v5198
        %6164 = vmatpush1.bf16.msra.mxu0 %v5197
        %6165 = vmatprep.subr.bf16.mxu0 %v5191
        %6166 = vmatpush1.bf16.msra.mxu0 %v5190
        %6167 = vmatprep.subr.bf16.mxu0 %v5184
        %6168 = vmatpush1.bf16.msra.mxu0 %v5183
        %6169 = vmatprep.subr.bf16.mxu0 %v5177
        %6170 = vmatpush1.bf16.msra.mxu0 %v5176
        %6171 = vmatprep.subr.bf16.mxu0 %v5170
        %6172 = vmatpush1.bf16.msra.mxu0 %v5169
        %6173 = vmatprep.subr.bf16.mxu0 %v5163
        %6174 = vmatpush1.bf16.msra.mxu0 %v5162
        %6175 = vmatprep.subr.bf16.mxu0 %v5268
        %6176 = vmatpush2.bf16.msra.mxu0 %v5267
        %6177 = vmatprep.subr.bf16.mxu0 %v5261
        %6178 = vmatpush2.bf16.msra.mxu0 %v5260
        %6179 = vmatprep.subr.bf16.mxu0 %v5254
        %6180 = vmatpush2.bf16.msra.mxu0 %v5253
        %6181 = vmatprep.subr.bf16.mxu0 %v5247
        %6182 = vmatpush2.bf16.msra.mxu0 %v5246
        %6183 = vmatprep.subr.bf16.mxu0 %v5240
        %6184 = vmatpush2.bf16.msra.mxu0 %v5239
        %6185 = vmatprep.subr.bf16.mxu0 %v5233
        %6186 = vmatpush2.bf16.msra.mxu0 %v5232
        %6187 = vmatprep.subr.bf16.mxu0 %v5226
        %6188 = vmatpush2.bf16.msra.mxu0 %v5225
        %6189 = vmatprep.subr.bf16.mxu0 %v5219
        %6190 = vmatpush2.bf16.msra.mxu0 %v5218
        %6191 = vmatprep.mubr.bf16.mxu0 %v3087
        %6192 = vmatmul.mubr.bf16.gmra.mxu0 %v3086
        %v6193 = vpop.f32.mrf.mxu0
        %v6194 = vadd.f32 %v6151, %v6193
        %v6195 = vpop.f32.mrf.mxu0
        %v6196 = vadd.f32 %v6153, %v6195
        %v6197 = vpop.f32.mrf.mxu0
        %v6198 = vadd.f32 %v6155, %v6197
        %v6199 = vpop.f32.mrf.mxu0
        %v6200 = vadd.f32 %v6157, %v6199
        %6201 = vdwg.mxu0
        %6202 = vmatprep.subr.bf16.mxu0 %v5324
        %6203 = vmatpush1.bf16.msra.mxu0 %v5323
        %6204 = vmatprep.subr.bf16.mxu0 %v5317
        %6205 = vmatpush1.bf16.msra.mxu0 %v5316
        %6206 = vmatprep.subr.bf16.mxu0 %v5310
        %6207 = vmatpush1.bf16.msra.mxu0 %v5309
        %6208 = vmatprep.subr.bf16.mxu0 %v5303
        %6209 = vmatpush1.bf16.msra.mxu0 %v5302
        %6210 = vmatprep.subr.bf16.mxu0 %v5296
        %6211 = vmatpush1.bf16.msra.mxu0 %v5295
        %6212 = vmatprep.subr.bf16.mxu0 %v5289
        %6213 = vmatpush1.bf16.msra.mxu0 %v5288
        %6214 = vmatprep.subr.bf16.mxu0 %v5282
        %6215 = vmatpush1.bf16.msra.mxu0 %v5281
        %6216 = vmatprep.subr.bf16.mxu0 %v5275
        %6217 = vmatpush1.bf16.msra.mxu0 %v5274
        %6218 = vmatprep.subr.bf16.mxu0 %v5380
        %6219 = vmatpush2.bf16.msra.mxu0 %v5379
        %6220 = vmatprep.subr.bf16.mxu0 %v5373
        %6221 = vmatpush2.bf16.msra.mxu0 %v5372
        %6222 = vmatprep.subr.bf16.mxu0 %v5366
        %6223 = vmatpush2.bf16.msra.mxu0 %v5365
        %6224 = vmatprep.subr.bf16.mxu0 %v5359
        %6225 = vmatpush2.bf16.msra.mxu0 %v5358
        %6226 = vmatprep.subr.bf16.mxu0 %v5352
        %6227 = vmatpush2.bf16.msra.mxu0 %v5351
        %6228 = vmatprep.subr.bf16.mxu0 %v5345
        %6229 = vmatpush2.bf16.msra.mxu0 %v5344
        %6230 = vmatprep.subr.bf16.mxu0 %v5338
        %6231 = vmatpush2.bf16.msra.mxu0 %v5337
        %6232 = vmatprep.subr.bf16.mxu0 %v5331
        %6233 = vmatpush2.bf16.msra.mxu0 %v5330
        %6234 = vmatprep.mubr.bf16.mxu0 %v3089
        %6235 = vmatmul.mubr.bf16.gmra.mxu0 %v3088
        %v6236 = vpop.f32.mrf.mxu0
        %v6237 = vadd.f32 %v6194, %v6236
        %v6238 = vpop.f32.mrf.mxu0
        %v6239 = vadd.f32 %v6196, %v6238
        %v6240 = vpop.f32.mrf.mxu0
        %v6241 = vadd.f32 %v6198, %v6240
        %v6242 = vpop.f32.mrf.mxu0
        %v6243 = vadd.f32 %v6200, %v6242
        %6244 = vdwg.mxu0
        %6245 = vmatprep.subr.bf16.mxu0 %v5436
        %6246 = vmatpush1.bf16.msra.mxu0 %v5435
        %6247 = vmatprep.subr.bf16.mxu0 %v5429
        %6248 = vmatpush1.bf16.msra.mxu0 %v5428
        %6249 = vmatprep.subr.bf16.mxu0 %v5422
        %6250 = vmatpush1.bf16.msra.mxu0 %v5421
        %6251 = vmatprep.subr.bf16.mxu0 %v5415
        %6252 = vmatpush1.bf16.msra.mxu0 %v5414
        %6253 = vmatprep.subr.bf16.mxu0 %v5408
        %6254 = vmatpush1.bf16.msra.mxu0 %v5407
        %6255 = vmatprep.subr.bf16.mxu0 %v5401
        %6256 = vmatpush1.bf16.msra.mxu0 %v5400
        %6257 = vmatprep.subr.bf16.mxu0 %v5394
        %6258 = vmatpush1.bf16.msra.mxu0 %v5393
        %6259 = vmatprep.subr.bf16.mxu0 %v5387
        %6260 = vmatpush1.bf16.msra.mxu0 %v5386
        %6261 = vmatprep.subr.bf16.mxu0 %v5492
        %6262 = vmatpush2.bf16.msra.mxu0 %v5491
        %6263 = vmatprep.subr.bf16.mxu0 %v5485
        %6264 = vmatpush2.bf16.msra.mxu0 %v5484
        %6265 = vmatprep.subr.bf16.mxu0 %v5478
        %6266 = vmatpush2.bf16.msra.mxu0 %v5477
        %6267 = vmatprep.subr.bf16.mxu0 %v5471
        %6268 = vmatpush2.bf16.msra.mxu0 %v5470
        %6269 = vmatprep.subr.bf16.mxu0 %v5464
        %6270 = vmatpush2.bf16.msra.mxu0 %v5463
        %6271 = vmatprep.subr.bf16.mxu0 %v5457
        %6272 = vmatpush2.bf16.msra.mxu0 %v5456
        %6273 = vmatprep.subr.bf16.mxu0 %v5450
        %6274 = vmatpush2.bf16.msra.mxu0 %v5449
        %6275 = vmatprep.subr.bf16.mxu0 %v5443
        %6276 = vmatpush2.bf16.msra.mxu0 %v5442
        %6277 = vmatprep.mubr.bf16.mxu0 %v3091
        %6278 = vmatmul.mubr.bf16.gmra.mxu0 %v3090
        %v6279 = vpop.f32.mrf.mxu0
        %v6280 = vadd.f32 %v6237, %v6279
        %v6281 = vpop.f32.mrf.mxu0
        %v6282 = vadd.f32 %v6239, %v6281
        %v6283 = vpop.f32.mrf.mxu0
        %v6284 = vadd.f32 %v6241, %v6283
        %v6285 = vpop.f32.mrf.mxu0
        %v6286 = vadd.f32 %v6243, %v6285
        %6287 = vdwg.mxu0
        %6288 = vmatprep.subr.bf16.mxu0 %v5102
        %6289 = vmatpush1.bf16.msra.mxu0 %v5101
        %6290 = vmatprep.subr.bf16.mxu0 %v5095
        %6291 = vmatpush1.bf16.msra.mxu0 %v5094
        %6292 = vmatprep.subr.bf16.mxu0 %v5088
        %6293 = vmatpush1.bf16.msra.mxu0 %v5087
        %6294 = vmatprep.subr.bf16.mxu0 %v5081
        %6295 = vmatpush1.bf16.msra.mxu0 %v5080
        %6296 = vmatprep.subr.bf16.mxu0 %v5074
        %6297 = vmatpush1.bf16.msra.mxu0 %v5073
        %6298 = vmatprep.subr.bf16.mxu0 %v5067
        %6299 = vmatpush1.bf16.msra.mxu0 %v5066
        %6300 = vmatprep.subr.bf16.mxu0 %v5060
        %6301 = vmatpush1.bf16.msra.mxu0 %v5059
        %6302 = vmatprep.subr.bf16.mxu0 %v5053
        %6303 = vmatpush1.bf16.msra.mxu0 %v5052
        %6304 = vmatprep.subr.bf16.mxu0 %v5158
        %6305 = vmatpush2.bf16.msra.mxu0 %v5157
        %6306 = vmatprep.subr.bf16.mxu0 %v5151
        %6307 = vmatpush2.bf16.msra.mxu0 %v5150
        %6308 = vmatprep.subr.bf16.mxu0 %v5144
        %6309 = vmatpush2.bf16.msra.mxu0 %v5143
        %6310 = vmatprep.subr.bf16.mxu0 %v5137
        %6311 = vmatpush2.bf16.msra.mxu0 %v5136
        %6312 = vmatprep.subr.bf16.mxu0 %v5130
        %6313 = vmatpush2.bf16.msra.mxu0 %v5129
        %6314 = vmatprep.subr.bf16.mxu0 %v5123
        %6315 = vmatpush2.bf16.msra.mxu0 %v5122
        %6316 = vmatprep.subr.bf16.mxu0 %v5116
        %6317 = vmatpush2.bf16.msra.mxu0 %v5115
        %6318 = vmatprep.subr.bf16.mxu0 %v5109
        %6319 = vmatpush2.bf16.msra.mxu0 %v5108
        %6320 = vmatprep.mubr.bf16.mxu0 %v3085
        %6321 = vmatmul.mubr.bf16.gmra.mxu0 %v3084
        %v6322 = vpop.f32.mrf.mxu0
        %v6323 = vadd.f32 %v3624, %v6322
        %v6324 = vpop.f32.mrf.mxu0
        %v6325 = vadd.f32 %v3628, %v6324
        %v6326 = vpop.f32.mrf.mxu0
        %v6327 = vadd.f32 %v3624, %v6326
        %v6328 = vpop.f32.mrf.mxu0
        %v6329 = vadd.f32 %v3628, %v6328
        %6330 = vdwg.mxu0
        %6331 = vmatprep.subr.bf16.mxu0 %v5214
        %6332 = vmatpush1.bf16.msra.mxu0 %v5213
        %6333 = vmatprep.subr.bf16.mxu0 %v5207
        %6334 = vmatpush1.bf16.msra.mxu0 %v5206
        %6335 = vmatprep.subr.bf16.mxu0 %v5200
        %6336 = vmatpush1.bf16.msra.mxu0 %v5199
        %6337 = vmatprep.subr.bf16.mxu0 %v5193
        %6338 = vmatpush1.bf16.msra.mxu0 %v5192
        %6339 = vmatprep.subr.bf16.mxu0 %v5186
        %6340 = vmatpush1.bf16.msra.mxu0 %v5185
        %6341 = vmatprep.subr.bf16.mxu0 %v5179
        %6342 = vmatpush1.bf16.msra.mxu0 %v5178
        %6343 = vmatprep.subr.bf16.mxu0 %v5172
        %6344 = vmatpush1.bf16.msra.mxu0 %v5171
        %6345 = vmatprep.subr.bf16.mxu0 %v5165
        %6346 = vmatpush1.bf16.msra.mxu0 %v5164
        %6347 = vmatprep.subr.bf16.mxu0 %v5270
        %6348 = vmatpush2.bf16.msra.mxu0 %v5269
        %6349 = vmatprep.subr.bf16.mxu0 %v5263
        %6350 = vmatpush2.bf16.msra.mxu0 %v5262
        %6351 = vmatprep.subr.bf16.mxu0 %v5256
        %6352 = vmatpush2.bf16.msra.mxu0 %v5255
        %6353 = vmatprep.subr.bf16.mxu0 %v5249
        %6354 = vmatpush2.bf16.msra.mxu0 %v5248
        %6355 = vmatprep.subr.bf16.mxu0 %v5242
        %6356 = vmatpush2.bf16.msra.mxu0 %v5241
        %6357 = vmatprep.subr.bf16.mxu0 %v5235
        %6358 = vmatpush2.bf16.msra.mxu0 %v5234
        %6359 = vmatprep.subr.bf16.mxu0 %v5228
        %6360 = vmatpush2.bf16.msra.mxu0 %v5227
        %6361 = vmatprep.subr.bf16.mxu0 %v5221
        %6362 = vmatpush2.bf16.msra.mxu0 %v5220
        %6363 = vmatprep.mubr.bf16.mxu0 %v3087
        %6364 = vmatmul.mubr.bf16.gmra.mxu0 %v3086
        %v6365 = vpop.f32.mrf.mxu0
        %v6366 = vadd.f32 %v6323, %v6365
        %v6367 = vpop.f32.mrf.mxu0
        %v6368 = vadd.f32 %v6325, %v6367
        %v6369 = vpop.f32.mrf.mxu0
        %v6370 = vadd.f32 %v6327, %v6369
        %v6371 = vpop.f32.mrf.mxu0
        %v6372 = vadd.f32 %v6329, %v6371
        %6373 = vdwg.mxu0
        %6374 = vmatprep.subr.bf16.mxu0 %v5326
        %6375 = vmatpush1.bf16.msra.mxu0 %v5325
        %6376 = vmatprep.subr.bf16.mxu0 %v5319
        %6377 = vmatpush1.bf16.msra.mxu0 %v5318
        %6378 = vmatprep.subr.bf16.mxu0 %v5312
        %6379 = vmatpush1.bf16.msra.mxu0 %v5311
        %6380 = vmatprep.subr.bf16.mxu0 %v5305
        %6381 = vmatpush1.bf16.msra.mxu0 %v5304
        %6382 = vmatprep.subr.bf16.mxu0 %v5298
        %6383 = vmatpush1.bf16.msra.mxu0 %v5297
        %6384 = vmatprep.subr.bf16.mxu0 %v5291
        %6385 = vmatpush1.bf16.msra.mxu0 %v5290
        %6386 = vmatprep.subr.bf16.mxu0 %v5284
        %6387 = vmatpush1.bf16.msra.mxu0 %v5283
        %6388 = vmatprep.subr.bf16.mxu0 %v5277
        %6389 = vmatpush1.bf16.msra.mxu0 %v5276
        %6390 = vmatprep.subr.bf16.mxu0 %v5382
        %6391 = vmatpush2.bf16.msra.mxu0 %v5381
        %6392 = vmatprep.subr.bf16.mxu0 %v5375
        %6393 = vmatpush2.bf16.msra.mxu0 %v5374
        %6394 = vmatprep.subr.bf16.mxu0 %v5368
        %6395 = vmatpush2.bf16.msra.mxu0 %v5367
        %6396 = vmatprep.subr.bf16.mxu0 %v5361
        %6397 = vmatpush2.bf16.msra.mxu0 %v5360
        %6398 = vmatprep.subr.bf16.mxu0 %v5354
        %6399 = vmatpush2.bf16.msra.mxu0 %v5353
        %6400 = vmatprep.subr.bf16.mxu0 %v5347
        %6401 = vmatpush2.bf16.msra.mxu0 %v5346
        %6402 = vmatprep.subr.bf16.mxu0 %v5340
        %6403 = vmatpush2.bf16.msra.mxu0 %v5339
        %6404 = vmatprep.subr.bf16.mxu0 %v5333
        %6405 = vmatpush2.bf16.msra.mxu0 %v5332
        %6406 = vmatprep.mubr.bf16.mxu0 %v3089
        %6407 = vmatmul.mubr.bf16.gmra.mxu0 %v3088
        %v6408 = vpop.f32.mrf.mxu0
        %v6409 = vadd.f32 %v6366, %v6408
        %v6410 = vpop.f32.mrf.mxu0
        %v6411 = vadd.f32 %v6368, %v6410
        %v6412 = vpop.f32.mrf.mxu0
        %v6413 = vadd.f32 %v6370, %v6412
        %v6414 = vpop.f32.mrf.mxu0
        %v6415 = vadd.f32 %v6372, %v6414
        %6416 = vdwg.mxu0
        %6417 = vmatprep.subr.bf16.mxu0 %v5438
        %6418 = vmatpush1.bf16.msra.mxu0 %v5437
        %6419 = vmatprep.subr.bf16.mxu0 %v5431
        %6420 = vmatpush1.bf16.msra.mxu0 %v5430
        %6421 = vmatprep.subr.bf16.mxu0 %v5424
        %6422 = vmatpush1.bf16.msra.mxu0 %v5423
        %6423 = vmatprep.subr.bf16.mxu0 %v5417
        %6424 = vmatpush1.bf16.msra.mxu0 %v5416
        %6425 = vmatprep.subr.bf16.mxu0 %v5410
        %6426 = vmatpush1.bf16.msra.mxu0 %v5409
        %6427 = vmatprep.subr.bf16.mxu0 %v5403
        %6428 = vmatpush1.bf16.msra.mxu0 %v5402
        %6429 = vmatprep.subr.bf16.mxu0 %v5396
        %6430 = vmatpush1.bf16.msra.mxu0 %v5395
        %6431 = vmatprep.subr.bf16.mxu0 %v5389
        %6432 = vmatpush1.bf16.msra.mxu0 %v5388
        %6433 = vmatprep.subr.bf16.mxu0 %v5494
        %6434 = vmatpush2.bf16.msra.mxu0 %v5493
        %6435 = vmatprep.subr.bf16.mxu0 %v5487
        %6436 = vmatpush2.bf16.msra.mxu0 %v5486
        %6437 = vmatprep.subr.bf16.mxu0 %v5480
        %6438 = vmatpush2.bf16.msra.mxu0 %v5479
        %6439 = vmatprep.subr.bf16.mxu0 %v5473
        %6440 = vmatpush2.bf16.msra.mxu0 %v5472
        %6441 = vmatprep.subr.bf16.mxu0 %v5466
        %6442 = vmatpush2.bf16.msra.mxu0 %v5465
        %6443 = vmatprep.subr.bf16.mxu0 %v5459
        %6444 = vmatpush2.bf16.msra.mxu0 %v5458
        %6445 = vmatprep.subr.bf16.mxu0 %v5452
        %6446 = vmatpush2.bf16.msra.mxu0 %v5451
        %6447 = vmatprep.subr.bf16.mxu0 %v5445
        %6448 = vmatpush2.bf16.msra.mxu0 %v5444
        %6449 = vmatprep.mubr.bf16.mxu0 %v3091
        %6450 = vmatmul.mubr.bf16.gmra.mxu0 %v3090
        %v6451 = vpop.f32.mrf.mxu0
        %v6452 = vadd.f32 %v6409, %v6451
        %v6453 = vpop.f32.mrf.mxu0
        %v6454 = vadd.f32 %v6411, %v6453
        %v6455 = vpop.f32.mrf.mxu0
        %v6456 = vadd.f32 %v6413, %v6455
        %v6457 = vpop.f32.mrf.mxu0
        %v6458 = vadd.f32 %v6415, %v6457
        %6459 = vdwg.mxu0
        %6460 = vmatprep.subr.bf16.mxu0 0
        %6461 = vmatpush1.bf16.msra.mxu0 %v5103
        %6462 = vmatprep.subr.bf16.mxu0 0
        %6463 = vmatpush1.bf16.msra.mxu0 %v5096
        %6464 = vmatprep.subr.bf16.mxu0 0
        %6465 = vmatpush1.bf16.msra.mxu0 %v5089
        %6466 = vmatprep.subr.bf16.mxu0 0
        %6467 = vmatpush1.bf16.msra.mxu0 %v5082
        %6468 = vmatprep.subr.bf16.mxu0 0
        %6469 = vmatpush1.bf16.msra.mxu0 %v5075
        %6470 = vmatprep.subr.bf16.mxu0 0
        %6471 = vmatpush1.bf16.msra.mxu0 %v5068
        %6472 = vmatprep.subr.bf16.mxu0 0
        %6473 = vmatpush1.bf16.msra.mxu0 %v5061
        %6474 = vmatprep.subr.bf16.mxu0 0
        %6475 = vmatpush1.bf16.msra.mxu0 %v5054
        %6476 = vmatprep.subr.bf16.mxu0 0
        %6477 = vmatpush2.bf16.msra.mxu0 %v5159
        %6478 = vmatprep.subr.bf16.mxu0 0
        %6479 = vmatpush2.bf16.msra.mxu0 %v5152
        %6480 = vmatprep.subr.bf16.mxu0 0
        %6481 = vmatpush2.bf16.msra.mxu0 %v5145
        %6482 = vmatprep.subr.bf16.mxu0 0
        %6483 = vmatpush2.bf16.msra.mxu0 %v5138
        %6484 = vmatprep.subr.bf16.mxu0 0
        %6485 = vmatpush2.bf16.msra.mxu0 %v5131
        %6486 = vmatprep.subr.bf16.mxu0 0
        %6487 = vmatpush2.bf16.msra.mxu0 %v5124
        %6488 = vmatprep.subr.bf16.mxu0 0
        %6489 = vmatpush2.bf16.msra.mxu0 %v5117
        %6490 = vmatprep.subr.bf16.mxu0 0
        %6491 = vmatpush2.bf16.msra.mxu0 %v5110
        %6492 = vmatprep.mubr.bf16.mxu0 %v3085
        %6493 = vmatmul.mubr.bf16.gmra.mxu0 %v3084
        %v6494 = vpop.f32.mrf.mxu0
        %v6495 = vadd.f32 %v3632, %v6494
        %v6496 = vpop.f32.mrf.mxu0
        %v6497 = vpop.f32.mrf.mxu0
        %v6498 = vadd.f32 %v3632, %v6497
        %v6499 = vpop.f32.mrf.mxu0
        %6500 = vdwg.mxu0
        %6501 = vmatprep.subr.bf16.mxu0 0
        %6502 = vmatpush1.bf16.msra.mxu0 %v5215
        %6503 = vmatprep.subr.bf16.mxu0 0
        %6504 = vmatpush1.bf16.msra.mxu0 %v5208
        %6505 = vmatprep.subr.bf16.mxu0 0
        %6506 = vmatpush1.bf16.msra.mxu0 %v5201
        %6507 = vmatprep.subr.bf16.mxu0 0
        %6508 = vmatpush1.bf16.msra.mxu0 %v5194
        %6509 = vmatprep.subr.bf16.mxu0 0
        %6510 = vmatpush1.bf16.msra.mxu0 %v5187
        %6511 = vmatprep.subr.bf16.mxu0 0
        %6512 = vmatpush1.bf16.msra.mxu0 %v5180
        %6513 = vmatprep.subr.bf16.mxu0 0
        %6514 = vmatpush1.bf16.msra.mxu0 %v5173
        %6515 = vmatprep.subr.bf16.mxu0 0
        %6516 = vmatpush1.bf16.msra.mxu0 %v5166
        %6517 = vmatprep.subr.bf16.mxu0 0
        %6518 = vmatpush2.bf16.msra.mxu0 %v5271
        %6519 = vmatprep.subr.bf16.mxu0 0
        %6520 = vmatpush2.bf16.msra.mxu0 %v5264
        %6521 = vmatprep.subr.bf16.mxu0 0
        %6522 = vmatpush2.bf16.msra.mxu0 %v5257
        %6523 = vmatprep.subr.bf16.mxu0 0
        %6524 = vmatpush2.bf16.msra.mxu0 %v5250
        %6525 = vmatprep.subr.bf16.mxu0 0
        %6526 = vmatpush2.bf16.msra.mxu0 %v5243
        %6527 = vmatprep.subr.bf16.mxu0 0
        %6528 = vmatpush2.bf16.msra.mxu0 %v5236
        %6529 = vmatprep.subr.bf16.mxu0 0
        %6530 = vmatpush2.bf16.msra.mxu0 %v5229
        %6531 = vmatprep.subr.bf16.mxu0 0
        %6532 = vmatpush2.bf16.msra.mxu0 %v5222
        %6533 = vmatprep.mubr.bf16.mxu0 %v3087
        %6534 = vmatmul.mubr.bf16.gmra.mxu0 %v3086
        %v6535 = vpop.f32.mrf.mxu0
        %v6536 = vadd.f32 %v6495, %v6535
        %v6537 = vpop.f32.mrf.mxu0
        %v6538 = vpop.f32.mrf.mxu0
        %v6539 = vadd.f32 %v6498, %v6538
        %v6540 = vpop.f32.mrf.mxu0
        %6541 = vdwg.mxu0
        %6542 = vmatprep.subr.bf16.mxu0 0
        %6543 = vmatpush1.bf16.msra.mxu0 %v5327
        %6544 = vmatprep.subr.bf16.mxu0 0
        %6545 = vmatpush1.bf16.msra.mxu0 %v5320
        %6546 = vmatprep.subr.bf16.mxu0 0
        %6547 = vmatpush1.bf16.msra.mxu0 %v5313
        %6548 = vmatprep.subr.bf16.mxu0 0
        %6549 = vmatpush1.bf16.msra.mxu0 %v5306
        %6550 = vmatprep.subr.bf16.mxu0 0
        %6551 = vmatpush1.bf16.msra.mxu0 %v5299
        %6552 = vmatprep.subr.bf16.mxu0 0
        %6553 = vmatpush1.bf16.msra.mxu0 %v5292
        %6554 = vmatprep.subr.bf16.mxu0 0
        %6555 = vmatpush1.bf16.msra.mxu0 %v5285
        %6556 = vmatprep.subr.bf16.mxu0 0
        %6557 = vmatpush1.bf16.msra.mxu0 %v5278
        %6558 = vmatprep.subr.bf16.mxu0 0
        %6559 = vmatpush2.bf16.msra.mxu0 %v5383
        %6560 = vmatprep.subr.bf16.mxu0 0
        %6561 = vmatpush2.bf16.msra.mxu0 %v5376
        %6562 = vmatprep.subr.bf16.mxu0 0
        %6563 = vmatpush2.bf16.msra.mxu0 %v5369
        %6564 = vmatprep.subr.bf16.mxu0 0
        %6565 = vmatpush2.bf16.msra.mxu0 %v5362
        %6566 = vmatprep.subr.bf16.mxu0 0
        %6567 = vmatpush2.bf16.msra.mxu0 %v5355
        %6568 = vmatprep.subr.bf16.mxu0 0
        %6569 = vmatpush2.bf16.msra.mxu0 %v5348
        %6570 = vmatprep.subr.bf16.mxu0 0
        %6571 = vmatpush2.bf16.msra.mxu0 %v5341
        %6572 = vmatprep.subr.bf16.mxu0 0
        %6573 = vmatpush2.bf16.msra.mxu0 %v5334
        %6574 = vmatprep.mubr.bf16.mxu0 %v3089
        %6575 = vmatmul.mubr.bf16.gmra.mxu0 %v3088
        %v6576 = vpop.f32.mrf.mxu0
        %v6577 = vadd.f32 %v6536, %v6576
        %v6578 = vpop.f32.mrf.mxu0
        %v6579 = vpop.f32.mrf.mxu0
        %v6580 = vadd.f32 %v6539, %v6579
        %v6581 = vpop.f32.mrf.mxu0
        %6582 = vdwg.mxu0
        %6583 = vmatprep.subr.bf16.mxu0 0
        %6584 = vmatpush1.bf16.msra.mxu0 %v5439
        %6585 = vmatprep.subr.bf16.mxu0 0
        %6586 = vmatpush1.bf16.msra.mxu0 %v5432
        %6587 = vmatprep.subr.bf16.mxu0 0
        %6588 = vmatpush1.bf16.msra.mxu0 %v5425
        %6589 = vmatprep.subr.bf16.mxu0 0
        %6590 = vmatpush1.bf16.msra.mxu0 %v5418
        %6591 = vmatprep.subr.bf16.mxu0 0
        %6592 = vmatpush1.bf16.msra.mxu0 %v5411
        %6593 = vmatprep.subr.bf16.mxu0 0
        %6594 = vmatpush1.bf16.msra.mxu0 %v5404
        %6595 = vmatprep.subr.bf16.mxu0 0
        %6596 = vmatpush1.bf16.msra.mxu0 %v5397
        %6597 = vmatprep.subr.bf16.mxu0 0
        %6598 = vmatpush1.bf16.msra.mxu0 %v5390
        %6599 = vmatprep.subr.bf16.mxu0 0
        %6600 = vmatpush2.bf16.msra.mxu0 %v5495
        %6601 = vmatprep.subr.bf16.mxu0 0
        %6602 = vmatpush2.bf16.msra.mxu0 %v5488
        %6603 = vmatprep.subr.bf16.mxu0 0
        %6604 = vmatpush2.bf16.msra.mxu0 %v5481
        %6605 = vmatprep.subr.bf16.mxu0 0
        %6606 = vmatpush2.bf16.msra.mxu0 %v5474
        %6607 = vmatprep.subr.bf16.mxu0 0
        %6608 = vmatpush2.bf16.msra.mxu0 %v5467
        %6609 = vmatprep.subr.bf16.mxu0 0
        %6610 = vmatpush2.bf16.msra.mxu0 %v5460
        %6611 = vmatprep.subr.bf16.mxu0 0
        %6612 = vmatpush2.bf16.msra.mxu0 %v5453
        %6613 = vmatprep.subr.bf16.mxu0 0
        %6614 = vmatpush2.bf16.msra.mxu0 %v5446
        %6615 = vmatprep.mubr.bf16.mxu0 %v3091
        %6616 = vmatmul.mubr.bf16.gmra.mxu0 %v3090
        %v6617 = vpop.f32.mrf.mxu0
        %v6618 = vadd.f32 %v6577, %v6617
        %v6619 = vpop.f32.mrf.mxu0
        %v6620 = vpop.f32.mrf.mxu0
        %v6621 = vadd.f32 %v6580, %v6620
        %v6622 = vpop.f32.mrf.mxu0
        %6623 = vdwg.mxu0
        %v6624 = vtanh.pop %v6108
        %v6625 = vtanh.pop %v6110
        %v6626 = vtanh.pop %v6280
        %v6627 = vtanh.pop %v6282
        %v6628 = vtanh.pop %v6452
        %v6629 = vtanh.pop %v6454
        %v6630 = vtanh.pop %v6618
        %v6631 = vtanh.pop %v6112
        %v6632 = vtanh.pop %v6114
        %v6633 = vtanh.pop %v6284
        %v6634 = vtanh.pop %v6286
        %v6635 = vtanh.pop %v6456
        %v6636 = vtanh.pop %v6458
        %v6637 = vtanh.pop %v6621
        %v6638 = vpack.c.bf16 %v6631, %v6624
        %v6639 = vpack.c.bf16 %v6632, %v6625
        %v6640 = vpack.c.bf16 %v6633, %v6626
        %v6641 = vpack.c.bf16 %v6634, %v6627
        %v6642 = vpack.c.bf16 %v6635, %v6628
        %v6643 = vpack.c.bf16 %v6636, %v6629
        %v6644 = vpack.c.bf16 %v6637, %v6630
        %v6652 = vunpack.c.l.b16 %v6638
        %v6653 = vunpack.c.l.b16 %v6639
        %v6654 = vunpack.c.l.b16 %v6640
        %v6655 = vunpack.c.l.b16 %v6641
        %v6656 = vunpack.c.l.b16 %v6642
        %v6657 = vunpack.c.l.b16 %v6643
        %v6658 = vunpack.c.l.b16 %v6644
        %v6659 = vunpack.c.h.b16 %v6638
        %v6660 = vunpack.c.h.b16 %v6639
        %v6661 = vunpack.c.h.b16 %v6640
        %v6662 = vunpack.c.h.b16 %v6641
        %v6663 = vunpack.c.h.b16 %v6642
        %v6664 = vunpack.c.h.b16 %v6643
        %v6665 = vunpack.c.h.b16 %v6644
        %v6666 = vpack.c.b16 %v6653, %v6652
        %v6667 = vpack.c.b16 %v6655, %v6654
        %v6668 = vpack.c.b16 %v6657, %v6656
        %v6669 = vpack.c.b16 %v6658, %v6658
        %v6670 = vpack.c.b16 %v6660, %v6659
        %v6671 = vpack.c.b16 %v6662, %v6661
        %v6672 = vpack.c.b16 %v6664, %v6663
        %v6673 = vpack.c.b16 %v6665, %v6665
        %6682 = vst [vmem:[%s445] sm:$0xff] %v6666
        %6683 = vst [vmem:[%s445 + $0x8] sm:$0xff] %v6667
        %6684 = vst [vmem:[%s445 + $0x10] sm:$0xff] %v6668
        %6685 = vst [vmem:[%s445 + $0x18] sm:$0xf] %v6669
        %6686 = vst [vmem:[%s445 + $0x1c] sm:$0xff] %v6670
        %6687 = vst [vmem:[%s445 + $0x24] sm:$0xff] %v6671
        %6688 = vst [vmem:[%s445 + $0x2c] sm:$0xff] %v6672
        %6689 = vst [vmem:[%s445 + $0x34] sm:$0xf] %v6673
        %v6690 = vld [vmem:[%s438 + $0x8] sm:$0xf]
        %v6691 = vld [vmem:[%s438 + $0xc] sm:$0xf]
        %v6692 = vld [vmem:[#allocation2] sm:$0xff]
        %v6693 = vld [vmem:[#allocation2 + $0x8] sm:$0xff]
        %v6694 = vld [vmem:[#allocation2 + $0x10] sm:$0xff]
        %v6695 = vld [vmem:[#allocation2 + $0x18] sm:$0xff]
        %v6696 = vld [vmem:[#allocation2 + $0x20] sm:$0xff]
        %v6697 = vld [vmem:[#allocation2 + $0x28] sm:$0xff]
        %v6698 = vld [vmem:[#allocation2 + $0x30] sm:$0xff]
        %v6699 = vld [vmem:[#allocation2 + $0x38] sm:$0xff]
        %v6700 = vld [vmem:[#allocation2 + $0x40] sm:$0xff]
        %v6701 = vld [vmem:[#allocation2 + $0x48] sm:$0xff]
        %v6702 = vld [vmem:[#allocation2 + $0x50] sm:$0xff]
        %v6703 = vld [vmem:[#allocation2 + $0x58] sm:$0xff]
        %v6704 = vld [vmem:[#allocation2 + $0x60] sm:$0xff]
        %v6705 = vld [vmem:[#allocation2 + $0x68] sm:$0xff]
        %v6706 = vld [vmem:[#allocation2 + $0x70] sm:$0xff]
        %v6707 = vld [vmem:[#allocation2 + $0x78] sm:$0xff]
        %v6710 = vunpack.c.l.b16 %v6690
        %v6711 = vunpack.c.l.b16 %v6691
        %v6712 = vpack.c.b16 %v6711, %v6710
        %v6730 = vunpack.c.l.b16 %v6692
        %v6731 = vunpack.c.h.b16 %v6692
        %v6732 = vunpack.c.l.b16 %v6693
        %v6733 = vunpack.c.h.b16 %v6693
        %v6734 = vunpack.c.l.b16 %v6694
        %v6735 = vunpack.c.h.b16 %v6694
        %v6736 = vunpack.c.l.b16 %v6695
        %v6737 = vunpack.c.h.b16 %v6695
        %v6738 = vunpack.c.l.b16 %v6696
        %v6739 = vunpack.c.h.b16 %v6696
        %v6740 = vunpack.c.l.b16 %v6697
        %v6741 = vunpack.c.h.b16 %v6697
        %v6742 = vunpack.c.l.b16 %v6698
        %v6743 = vunpack.c.h.b16 %v6698
        %v6744 = vunpack.c.l.b16 %v6699
        %v6745 = vunpack.c.h.b16 %v6699
        %v6746 = vunpack.c.l.b16 %v6700
        %v6747 = vunpack.c.h.b16 %v6700
        %v6748 = vunpack.c.l.b16 %v6701
        %v6749 = vunpack.c.h.b16 %v6701
        %v6750 = vunpack.c.l.b16 %v6702
        %v6751 = vunpack.c.h.b16 %v6702
        %v6752 = vunpack.c.l.b16 %v6703
        %v6753 = vunpack.c.h.b16 %v6703
        %v6754 = vunpack.c.l.b16 %v6704
        %v6755 = vunpack.c.h.b16 %v6704
        %v6756 = vunpack.c.l.b16 %v6705
        %v6757 = vunpack.c.h.b16 %v6705
        %v6758 = vunpack.c.l.b16 %v6706
        %v6759 = vunpack.c.h.b16 %v6706
        %v6760 = vunpack.c.l.b16 %v6707
        %v6761 = vunpack.c.h.b16 %v6707
        %v6762 = vpack.c.b16 %v6732, %v6730
        %v6763 = vpack.c.b16 %v6733, %v6731
        %v6764 = vpack.c.b16 %v6736, %v6734
        %v6765 = vpack.c.b16 %v6737, %v6735
        %v6766 = vpack.c.b16 %v6740, %v6738
        %v6767 = vpack.c.b16 %v6741, %v6739
        %v6768 = vpack.c.b16 %v6744, %v6742
        %v6769 = vpack.c.b16 %v6745, %v6743
        %v6770 = vpack.c.b16 %v6748, %v6746
        %v6771 = vpack.c.b16 %v6749, %v6747
        %v6772 = vpack.c.b16 %v6752, %v6750
        %v6773 = vpack.c.b16 %v6753, %v6751
        %v6774 = vpack.c.b16 %v6756, %v6754
        %v6775 = vpack.c.b16 %v6757, %v6755
        %v6776 = vpack.c.b16 %v6760, %v6758
        %v6777 = vpack.c.b16 %v6761, %v6759
        %6794 = vmatprep.subr.bf16.mxu0 %v6777
        %6795 = vmatpush1.bf16.msra.mxu0 %v6776
        %6796 = vmatprep.subr.bf16.mxu0 %v6775
        %6797 = vmatpush1.bf16.msra.mxu0 %v6774
        %6798 = vmatprep.subr.bf16.mxu0 %v6773
        %6799 = vmatpush1.bf16.msra.mxu0 %v6772
        %6800 = vmatprep.subr.bf16.mxu0 %v6771
        %6801 = vmatpush1.bf16.msra.mxu0 %v6770
        %6802 = vmatprep.subr.bf16.mxu0 %v6769
        %6803 = vmatpush1.bf16.msra.mxu0 %v6768
        %6804 = vmatprep.subr.bf16.mxu0 %v6767
        %6805 = vmatpush1.bf16.msra.mxu0 %v6766
        %6806 = vmatprep.subr.bf16.mxu0 %v6765
        %6807 = vmatpush1.bf16.msra.mxu0 %v6764
        %6808 = vmatprep.subr.bf16.mxu0 %v6763
        %6809 = vmatpush1.bf16.msra.mxu0 %v6762
        %6810 = vmatprep.subr.bf16.mxu0 0
        %6811 = vmatpush2.bf16.msra.mxu0 0
        %6812 = vmatprep.subr.bf16.mxu0 0
        %6813 = vmatpush2.bf16.msra.mxu0 0
        %6814 = vmatprep.subr.bf16.mxu0 0
        %6815 = vmatpush2.bf16.msra.mxu0 0
        %6816 = vmatprep.subr.bf16.mxu0 0
        %6817 = vmatpush2.bf16.msra.mxu0 0
        %6818 = vmatprep.subr.bf16.mxu0 0
        %6819 = vmatpush2.bf16.msra.mxu0 0
        %6820 = vmatprep.subr.bf16.mxu0 0
        %6821 = vmatpush2.bf16.msra.mxu0 0
        %6822 = vmatprep.subr.bf16.mxu0 0
        %6823 = vmatpush2.bf16.msra.mxu0 0
        %6824 = vmatprep.subr.bf16.mxu0 0
        %6825 = vmatpush2.bf16.msra.mxu0 0
        %6826 = vmatprep.mubr.bf16.mxu0 0
        %6827 = vmatmul.mubr.bf16.gmra.mxu0 %v6712
        %v6828 = vpop.f32.mrf.mxu0
        %v6829 = vadd.f32 %v474, %v6828
        %v6830 = vpop.f32.mrf.mxu0
        %v6831 = vadd.f32 %v478, %v6830
        %v6832 = vpop.f32.mrf.mxu0
        %v6833 = vadd.f32 %v474, %v6832
        %v6834 = vpop.f32.mrf.mxu0
        %v6835 = vadd.f32 %v478, %v6834
        %6836 = vdwg.mxu0
        %v6837 = vmul.f32 %v6829, 0.2
        %v6838 = vmul.f32 %v6831, 0.2
        %v6839 = vmul.f32 %v6833, 0.2
        %v6840 = vmul.f32 %v6835, 0.2
        %v6841 = vmax.f32 %v6829, %v6837
        %v6842 = vmax.f32 %v6831, %v6838
        %v6843 = vmax.f32 %v6833, %v6839
        %v6844 = vmax.f32 %v6835, %v6840
        %v6845 = vpack.c.bf16 %v6843, %v6841
        %v6846 = vpack.c.bf16 %v6844, %v6842
        %v6847 = vld [vmem:[#allocation6] sm:$0xff]
        %v6848 = vld [vmem:[#allocation6 + $0x8] sm:$0xff]
        %v6849 = vld [vmem:[#allocation6 + $0x10] sm:$0xff]
        %v6850 = vld [vmem:[#allocation6 + $0x18] sm:$0xff]
        %v6851 = vld [vmem:[#allocation6 + $0x20] sm:$0xff]
        %v6852 = vld [vmem:[#allocation6 + $0x28] sm:$0xff]
        %v6853 = vld [vmem:[#allocation6 + $0x30] sm:$0xff]
        %v6854 = vld [vmem:[#allocation6 + $0x38] sm:$0xff]
        %v6855 = vld [vmem:[#allocation6 + $0x40] sm:$0xff]
        %v6856 = vld [vmem:[#allocation6 + $0x48] sm:$0xff]
        %v6857 = vld [vmem:[#allocation6 + $0x50] sm:$0xff]
        %v6858 = vld [vmem:[#allocation6 + $0x58] sm:$0xff]
        %v6859 = vld [vmem:[#allocation6 + $0x60] sm:$0xff]
        %v6860 = vld [vmem:[#allocation6 + $0x68] sm:$0xff]
        %v6861 = vld [vmem:[#allocation6 + $0x70] sm:$0xff]
        %v6862 = vld [vmem:[#allocation6 + $0x78] sm:$0xff]
        %v6863 = vld [vmem:[#allocation6 + $0x80] sm:$0xff]
        %v6864 = vld [vmem:[#allocation6 + $0x88] sm:$0xff]
        %v6865 = vld [vmem:[#allocation6 + $0x90] sm:$0xff]
        %v6866 = vld [vmem:[#allocation6 + $0x98] sm:$0xff]
        %v6867 = vld [vmem:[#allocation6 + $0xa0] sm:$0xff]
        %v6868 = vld [vmem:[#allocation6 + $0xa8] sm:$0xff]
        %v6869 = vld [vmem:[#allocation6 + $0xb0] sm:$0xff]
        %v6870 = vld [vmem:[#allocation6 + $0xb8] sm:$0xff]
        %v6871 = vld [vmem:[#allocation6 + $0xc0] sm:$0xff]
        %v6872 = vld [vmem:[#allocation6 + $0xc8] sm:$0xff]
        %v6873 = vld [vmem:[#allocation6 + $0xd0] sm:$0xff]
        %v6874 = vld [vmem:[#allocation6 + $0xd8] sm:$0xff]
        %v6875 = vld [vmem:[#allocation6 + $0xe0] sm:$0xff]
        %v6876 = vld [vmem:[#allocation6 + $0xe8] sm:$0xff]
        %v6877 = vld [vmem:[#allocation6 + $0xf0] sm:$0xff]
        %v6878 = vld [vmem:[#allocation6 + $0xf8] sm:$0xff]
        %v6879 = vld [vmem:[#allocation6 + $0x100] sm:$0xff]
        %v6880 = vld [vmem:[#allocation6 + $0x108] sm:$0xff]
        %v6881 = vld [vmem:[#allocation6 + $0x110] sm:$0xff]
        %v6882 = vld [vmem:[#allocation6 + $0x118] sm:$0xff]
        %v6883 = vld [vmem:[#allocation6 + $0x120] sm:$0xff]
        %v6884 = vld [vmem:[#allocation6 + $0x128] sm:$0xff]
        %v6885 = vld [vmem:[#allocation6 + $0x130] sm:$0xff]
        %v6886 = vld [vmem:[#allocation6 + $0x138] sm:$0xff]
        %v6887 = vld [vmem:[#allocation6 + $0x140] sm:$0xff]
        %v6888 = vld [vmem:[#allocation6 + $0x148] sm:$0xff]
        %v6889 = vld [vmem:[#allocation6 + $0x150] sm:$0xff]
        %v6890 = vld [vmem:[#allocation6 + $0x158] sm:$0xff]
        %v6891 = vld [vmem:[#allocation6 + $0x160] sm:$0xff]
        %v6892 = vld [vmem:[#allocation6 + $0x168] sm:$0xff]
        %v6893 = vld [vmem:[#allocation6 + $0x170] sm:$0xff]
        %v6894 = vld [vmem:[#allocation6 + $0x178] sm:$0xff]
        %v6895 = vld [vmem:[#allocation6 + $0x180] sm:$0xff]
        %v6896 = vld [vmem:[#allocation6 + $0x188] sm:$0xff]
        %v6897 = vld [vmem:[#allocation6 + $0x190] sm:$0xff]
        %v6898 = vld [vmem:[#allocation6 + $0x198] sm:$0xff]
        %v6899 = vld [vmem:[#allocation6 + $0x1a0] sm:$0xff]
        %v6900 = vld [vmem:[#allocation6 + $0x1a8] sm:$0xff]
        %v6901 = vld [vmem:[#allocation6 + $0x1b0] sm:$0xff]
        %v6902 = vld [vmem:[#allocation6 + $0x1b8] sm:$0xff]
        %v6903 = vld [vmem:[#allocation6 + $0x1c0] sm:$0xff]
        %v6904 = vld [vmem:[#allocation6 + $0x1c8] sm:$0xff]
        %v6905 = vld [vmem:[#allocation6 + $0x1d0] sm:$0xff]
        %v6906 = vld [vmem:[#allocation6 + $0x1d8] sm:$0xff]
        %v6907 = vld [vmem:[#allocation6 + $0x1e0] sm:$0xff]
        %v6908 = vld [vmem:[#allocation6 + $0x1e8] sm:$0xff]
        %v6909 = vld [vmem:[#allocation6 + $0x1f0] sm:$0xff]
        %v6910 = vld [vmem:[#allocation6 + $0x1f8] sm:$0xff]
        %v6975 = vunpack.c.l.b16 %v6847
        %v6976 = vunpack.c.h.b16 %v6847
        %v6977 = vunpack.c.l.b16 %v6848
        %v6978 = vunpack.c.h.b16 %v6848
        %v6979 = vunpack.c.l.b16 %v6849
        %v6980 = vunpack.c.h.b16 %v6849
        %v6981 = vunpack.c.l.b16 %v6850
        %v6982 = vunpack.c.h.b16 %v6850
        %v6983 = vunpack.c.l.b16 %v6851
        %v6984 = vunpack.c.h.b16 %v6851
        %v6985 = vunpack.c.l.b16 %v6852
        %v6986 = vunpack.c.h.b16 %v6852
        %v6987 = vunpack.c.l.b16 %v6853
        %v6988 = vunpack.c.h.b16 %v6853
        %v6989 = vunpack.c.l.b16 %v6854
        %v6990 = vunpack.c.h.b16 %v6854
        %v6991 = vunpack.c.l.b16 %v6855
        %v6992 = vunpack.c.h.b16 %v6855
        %v6993 = vunpack.c.l.b16 %v6856
        %v6994 = vunpack.c.h.b16 %v6856
        %v6995 = vunpack.c.l.b16 %v6857
        %v6996 = vunpack.c.h.b16 %v6857
        %v6997 = vunpack.c.l.b16 %v6858
        %v6998 = vunpack.c.h.b16 %v6858
        %v6999 = vunpack.c.l.b16 %v6859
        %v7000 = vunpack.c.h.b16 %v6859
        %v7001 = vunpack.c.l.b16 %v6860
        %v7002 = vunpack.c.h.b16 %v6860
        %v7003 = vunpack.c.l.b16 %v6861
        %v7004 = vunpack.c.h.b16 %v6861
        %v7005 = vunpack.c.l.b16 %v6862
        %v7006 = vunpack.c.h.b16 %v6862
        %v7007 = vunpack.c.l.b16 %v6863
        %v7008 = vunpack.c.h.b16 %v6863
        %v7009 = vunpack.c.l.b16 %v6864
        %v7010 = vunpack.c.h.b16 %v6864
        %v7011 = vunpack.c.l.b16 %v6865
        %v7012 = vunpack.c.h.b16 %v6865
        %v7013 = vunpack.c.l.b16 %v6866
        %v7014 = vunpack.c.h.b16 %v6866
        %v7015 = vunpack.c.l.b16 %v6867
        %v7016 = vunpack.c.h.b16 %v6867
        %v7017 = vunpack.c.l.b16 %v6868
        %v7018 = vunpack.c.h.b16 %v6868
        %v7019 = vunpack.c.l.b16 %v6869
        %v7020 = vunpack.c.h.b16 %v6869
        %v7021 = vunpack.c.l.b16 %v6870
        %v7022 = vunpack.c.h.b16 %v6870
        %v7023 = vunpack.c.l.b16 %v6871
        %v7024 = vunpack.c.h.b16 %v6871
        %v7025 = vunpack.c.l.b16 %v6872
        %v7026 = vunpack.c.h.b16 %v6872
        %v7027 = vunpack.c.l.b16 %v6873
        %v7028 = vunpack.c.h.b16 %v6873
        %v7029 = vunpack.c.l.b16 %v6874
        %v7030 = vunpack.c.h.b16 %v6874
        %v7031 = vunpack.c.l.b16 %v6875
        %v7032 = vunpack.c.h.b16 %v6875
        %v7033 = vunpack.c.l.b16 %v6876
        %v7034 = vunpack.c.h.b16 %v6876
        %v7035 = vunpack.c.l.b16 %v6877
        %v7036 = vunpack.c.h.b16 %v6877
        %v7037 = vunpack.c.l.b16 %v6878
        %v7038 = vunpack.c.h.b16 %v6878
        %v7039 = vunpack.c.l.b16 %v6879
        %v7040 = vunpack.c.h.b16 %v6879
        %v7041 = vunpack.c.l.b16 %v6880
        %v7042 = vunpack.c.h.b16 %v6880
        %v7043 = vunpack.c.l.b16 %v6881
        %v7044 = vunpack.c.h.b16 %v6881
        %v7045 = vunpack.c.l.b16 %v6882
        %v7046 = vunpack.c.h.b16 %v6882
        %v7047 = vunpack.c.l.b16 %v6883
        %v7048 = vunpack.c.h.b16 %v6883
        %v7049 = vunpack.c.l.b16 %v6884
        %v7050 = vunpack.c.h.b16 %v6884
        %v7051 = vunpack.c.l.b16 %v6885
        %v7052 = vunpack.c.h.b16 %v6885
        %v7053 = vunpack.c.l.b16 %v6886
        %v7054 = vunpack.c.h.b16 %v6886
        %v7055 = vunpack.c.l.b16 %v6887
        %v7056 = vunpack.c.h.b16 %v6887
        %v7057 = vunpack.c.l.b16 %v6888
        %v7058 = vunpack.c.h.b16 %v6888
        %v7059 = vunpack.c.l.b16 %v6889
        %v7060 = vunpack.c.h.b16 %v6889
        %v7061 = vunpack.c.l.b16 %v6890
        %v7062 = vunpack.c.h.b16 %v6890
        %v7063 = vunpack.c.l.b16 %v6891
        %v7064 = vunpack.c.h.b16 %v6891
        %v7065 = vunpack.c.l.b16 %v6892
        %v7066 = vunpack.c.h.b16 %v6892
        %v7067 = vunpack.c.l.b16 %v6893
        %v7068 = vunpack.c.h.b16 %v6893
        %v7069 = vunpack.c.l.b16 %v6894
        %v7070 = vunpack.c.h.b16 %v6894
        %v7071 = vunpack.c.l.b16 %v6895
        %v7072 = vunpack.c.h.b16 %v6895
        %v7073 = vunpack.c.l.b16 %v6896
        %v7074 = vunpack.c.h.b16 %v6896
        %v7075 = vunpack.c.l.b16 %v6897
        %v7076 = vunpack.c.h.b16 %v6897
        %v7077 = vunpack.c.l.b16 %v6898
        %v7078 = vunpack.c.h.b16 %v6898
        %v7079 = vunpack.c.l.b16 %v6899
        %v7080 = vunpack.c.h.b16 %v6899
        %v7081 = vunpack.c.l.b16 %v6900
        %v7082 = vunpack.c.h.b16 %v6900
        %v7083 = vunpack.c.l.b16 %v6901
        %v7084 = vunpack.c.h.b16 %v6901
        %v7085 = vunpack.c.l.b16 %v6902
        %v7086 = vunpack.c.h.b16 %v6902
        %v7087 = vunpack.c.l.b16 %v6903
        %v7088 = vunpack.c.h.b16 %v6903
        %v7089 = vunpack.c.l.b16 %v6904
        %v7090 = vunpack.c.h.b16 %v6904
        %v7091 = vunpack.c.l.b16 %v6905
        %v7092 = vunpack.c.h.b16 %v6905
        %v7093 = vunpack.c.l.b16 %v6906
        %v7094 = vunpack.c.h.b16 %v6906
        %v7095 = vunpack.c.l.b16 %v6907
        %v7096 = vunpack.c.h.b16 %v6907
        %v7097 = vunpack.c.l.b16 %v6908
        %v7098 = vunpack.c.h.b16 %v6908
        %v7099 = vunpack.c.l.b16 %v6909
        %v7100 = vunpack.c.h.b16 %v6909
        %v7101 = vunpack.c.l.b16 %v6910
        %v7102 = vunpack.c.h.b16 %v6910
        %v7103 = vpack.c.b16 %v6979, %v6975
        %v7104 = vpack.c.b16 %v6980, %v6976
        %v7105 = vpack.c.b16 %v6981, %v6977
        %v7106 = vpack.c.b16 %v6982, %v6978
        %v7107 = vpack.c.b16 %v6987, %v6983
        %v7108 = vpack.c.b16 %v6988, %v6984
        %v7109 = vpack.c.b16 %v6989, %v6985
        %v7110 = vpack.c.b16 %v6990, %v6986
        %v7111 = vpack.c.b16 %v6995, %v6991
        %v7112 = vpack.c.b16 %v6996, %v6992
        %v7113 = vpack.c.b16 %v6997, %v6993
        %v7114 = vpack.c.b16 %v6998, %v6994
        %v7115 = vpack.c.b16 %v7003, %v6999
        %v7116 = vpack.c.b16 %v7004, %v7000
        %v7117 = vpack.c.b16 %v7005, %v7001
        %v7118 = vpack.c.b16 %v7006, %v7002
        %v7119 = vpack.c.b16 %v7011, %v7007
        %v7120 = vpack.c.b16 %v7012, %v7008
        %v7121 = vpack.c.b16 %v7013, %v7009
        %v7122 = vpack.c.b16 %v7014, %v7010
        %v7123 = vpack.c.b16 %v7019, %v7015
        %v7124 = vpack.c.b16 %v7020, %v7016
        %v7125 = vpack.c.b16 %v7021, %v7017
        %v7126 = vpack.c.b16 %v7022, %v7018
        %v7127 = vpack.c.b16 %v7027, %v7023
        %v7128 = vpack.c.b16 %v7028, %v7024
        %v7129 = vpack.c.b16 %v7029, %v7025
        %v7130 = vpack.c.b16 %v7030, %v7026
        %v7131 = vpack.c.b16 %v7035, %v7031
        %v7132 = vpack.c.b16 %v7036, %v7032
        %v7133 = vpack.c.b16 %v7037, %v7033
        %v7134 = vpack.c.b16 %v7038, %v7034
        %v7135 = vpack.c.b16 %v7043, %v7039
        %v7136 = vpack.c.b16 %v7044, %v7040
        %v7137 = vpack.c.b16 %v7045, %v7041
        %v7138 = vpack.c.b16 %v7046, %v7042
        %v7139 = vpack.c.b16 %v7051, %v7047
        %v7140 = vpack.c.b16 %v7052, %v7048
        %v7141 = vpack.c.b16 %v7053, %v7049
        %v7142 = vpack.c.b16 %v7054, %v7050
        %v7143 = vpack.c.b16 %v7059, %v7055
        %v7144 = vpack.c.b16 %v7060, %v7056
        %v7145 = vpack.c.b16 %v7061, %v7057
        %v7146 = vpack.c.b16 %v7062, %v7058
        %v7147 = vpack.c.b16 %v7067, %v7063
        %v7148 = vpack.c.b16 %v7068, %v7064
        %v7149 = vpack.c.b16 %v7069, %v7065
        %v7150 = vpack.c.b16 %v7070, %v7066
        %v7151 = vpack.c.b16 %v7075, %v7071
        %v7152 = vpack.c.b16 %v7076, %v7072
        %v7153 = vpack.c.b16 %v7077, %v7073
        %v7154 = vpack.c.b16 %v7078, %v7074
        %v7155 = vpack.c.b16 %v7083, %v7079
        %v7156 = vpack.c.b16 %v7084, %v7080
        %v7157 = vpack.c.b16 %v7085, %v7081
        %v7158 = vpack.c.b16 %v7086, %v7082
        %v7159 = vpack.c.b16 %v7091, %v7087
        %v7160 = vpack.c.b16 %v7092, %v7088
        %v7161 = vpack.c.b16 %v7093, %v7089
        %v7162 = vpack.c.b16 %v7094, %v7090
        %v7163 = vpack.c.b16 %v7099, %v7095
        %v7164 = vpack.c.b16 %v7100, %v7096
        %v7165 = vpack.c.b16 %v7101, %v7097
        %v7166 = vpack.c.b16 %v7102, %v7098
        %7231 = vmatprep.subr.bf16.mxu0 %v7132
        %7232 = vmatpush1.bf16.msra.mxu0 %v7131
        %7233 = vmatprep.subr.bf16.mxu0 %v7128
        %7234 = vmatpush1.bf16.msra.mxu0 %v7127
        %7235 = vmatprep.subr.bf16.mxu0 %v7124
        %7236 = vmatpush1.bf16.msra.mxu0 %v7123
        %7237 = vmatprep.subr.bf16.mxu0 %v7120
        %7238 = vmatpush1.bf16.msra.mxu0 %v7119
        %7239 = vmatprep.subr.bf16.mxu0 %v7116
        %7240 = vmatpush1.bf16.msra.mxu0 %v7115
        %7241 = vmatprep.subr.bf16.mxu0 %v7112
        %7242 = vmatpush1.bf16.msra.mxu0 %v7111
        %7243 = vmatprep.subr.bf16.mxu0 %v7108
        %7244 = vmatpush1.bf16.msra.mxu0 %v7107
        %7245 = vmatprep.subr.bf16.mxu0 %v7104
        %7246 = vmatpush1.bf16.msra.mxu0 %v7103
        %7247 = vmatprep.subr.bf16.mxu0 %v7164
        %7248 = vmatpush2.bf16.msra.mxu0 %v7163
        %7249 = vmatprep.subr.bf16.mxu0 %v7160
        %7250 = vmatpush2.bf16.msra.mxu0 %v7159
        %7251 = vmatprep.subr.bf16.mxu0 %v7156
        %7252 = vmatpush2.bf16.msra.mxu0 %v7155
        %7253 = vmatprep.subr.bf16.mxu0 %v7152
        %7254 = vmatpush2.bf16.msra.mxu0 %v7151
        %7255 = vmatprep.subr.bf16.mxu0 %v7148
        %7256 = vmatpush2.bf16.msra.mxu0 %v7147
        %7257 = vmatprep.subr.bf16.mxu0 %v7144
        %7258 = vmatpush2.bf16.msra.mxu0 %v7143
        %7259 = vmatprep.subr.bf16.mxu0 %v7140
        %7260 = vmatpush2.bf16.msra.mxu0 %v7139
        %7261 = vmatprep.subr.bf16.mxu0 %v7136
        %7262 = vmatpush2.bf16.msra.mxu0 %v7135
        %7263 = vmatprep.mubr.bf16.mxu0 %v6846
        %7264 = vmatmul.mubr.bf16.gmra.mxu0 %v6845
        %v7265 = vpop.f32.mrf.mxu0
        %v7266 = vadd.f32 %v688, %v7265
        %v7267 = vpop.f32.mrf.mxu0
        %v7268 = vadd.f32 %v692, %v7267
        %v7269 = vpop.f32.mrf.mxu0
        %v7270 = vadd.f32 %v688, %v7269
        %v7271 = vpop.f32.mrf.mxu0
        %v7272 = vadd.f32 %v692, %v7271
        %7273 = vdwg.mxu0
        %7274 = vmatprep.subr.bf16.mxu0 %v7134
        %7275 = vmatpush1.bf16.msra.mxu0 %v7133
        %7276 = vmatprep.subr.bf16.mxu0 %v7130
        %7277 = vmatpush1.bf16.msra.mxu0 %v7129
        %7278 = vmatprep.subr.bf16.mxu0 %v7126
        %7279 = vmatpush1.bf16.msra.mxu0 %v7125
        %7280 = vmatprep.subr.bf16.mxu0 %v7122
        %7281 = vmatpush1.bf16.msra.mxu0 %v7121
        %7282 = vmatprep.subr.bf16.mxu0 %v7118
        %7283 = vmatpush1.bf16.msra.mxu0 %v7117
        %7284 = vmatprep.subr.bf16.mxu0 %v7114
        %7285 = vmatpush1.bf16.msra.mxu0 %v7113
        %7286 = vmatprep.subr.bf16.mxu0 %v7110
        %7287 = vmatpush1.bf16.msra.mxu0 %v7109
        %7288 = vmatprep.subr.bf16.mxu0 %v7106
        %7289 = vmatpush1.bf16.msra.mxu0 %v7105
        %7290 = vmatprep.subr.bf16.mxu0 %v7166
        %7291 = vmatpush2.bf16.msra.mxu0 %v7165
        %7292 = vmatprep.subr.bf16.mxu0 %v7162
        %7293 = vmatpush2.bf16.msra.mxu0 %v7161
        %7294 = vmatprep.subr.bf16.mxu0 %v7158
        %7295 = vmatpush2.bf16.msra.mxu0 %v7157
        %7296 = vmatprep.subr.bf16.mxu0 %v7154
        %7297 = vmatpush2.bf16.msra.mxu0 %v7153
        %7298 = vmatprep.subr.bf16.mxu0 %v7150
        %7299 = vmatpush2.bf16.msra.mxu0 %v7149
        %7300 = vmatprep.subr.bf16.mxu0 %v7146
        %7301 = vmatpush2.bf16.msra.mxu0 %v7145
        %7302 = vmatprep.subr.bf16.mxu0 %v7142
        %7303 = vmatpush2.bf16.msra.mxu0 %v7141
        %7304 = vmatprep.subr.bf16.mxu0 %v7138
        %7305 = vmatpush2.bf16.msra.mxu0 %v7137
        %7306 = vmatprep.mubr.bf16.mxu0 %v6846
        %7307 = vmatmul.mubr.bf16.gmra.mxu0 %v6845
        %v7308 = vpop.f32.mrf.mxu0
        %v7309 = vadd.f32 %v696, %v7308
        %v7310 = vpop.f32.mrf.mxu0
        %v7311 = vadd.f32 %v700, %v7310
        %v7312 = vpop.f32.mrf.mxu0
        %v7313 = vadd.f32 %v696, %v7312
        %v7314 = vpop.f32.mrf.mxu0
        %v7315 = vadd.f32 %v700, %v7314
        %7316 = vdwg.mxu0
        %v7317 = vmul.f32 %v7266, 0.2
        %v7318 = vmul.f32 %v7268, 0.2
        %v7319 = vmul.f32 %v7309, 0.2
        %v7320 = vmul.f32 %v7311, 0.2
        %v7321 = vmul.f32 %v7270, 0.2
        %v7322 = vmul.f32 %v7272, 0.2
        %v7323 = vmul.f32 %v7313, 0.2
        %v7324 = vmul.f32 %v7315, 0.2
        %v7325 = vmax.f32 %v7266, %v7317
        %v7326 = vmax.f32 %v7268, %v7318
        %v7327 = vmax.f32 %v7309, %v7319
        %v7328 = vmax.f32 %v7311, %v7320
        %v7329 = vmax.f32 %v7270, %v7321
        %v7330 = vmax.f32 %v7272, %v7322
        %v7331 = vmax.f32 %v7313, %v7323
        %v7332 = vmax.f32 %v7315, %v7324
        %v7333 = vpack.c.bf16 %v7329, %v7325
        %v7334 = vpack.c.bf16 %v7330, %v7326
        %v7335 = vpack.c.bf16 %v7331, %v7327
        %v7336 = vpack.c.bf16 %v7332, %v7328
        %v7337 = vld [vmem:[#allocation9] sm:$0xff]
        %v7338 = vld [vmem:[#allocation9 + $0x8] sm:$0xff]
        %v7339 = vld [vmem:[#allocation9 + $0x10] sm:$0xff]
        %v7340 = vld [vmem:[#allocation9 + $0x18] sm:$0xff]
        %v7341 = vld [vmem:[#allocation9 + $0x20] sm:$0xff]
        %v7342 = vld [vmem:[#allocation9 + $0x28] sm:$0xff]
        %v7343 = vld [vmem:[#allocation9 + $0x30] sm:$0xff]
        %v7344 = vld [vmem:[#allocation9 + $0x38] sm:$0xff]
        %v7345 = vld [vmem:[#allocation9 + $0x40] sm:$0xff]
        %v7346 = vld [vmem:[#allocation9 + $0x48] sm:$0xff]
        %v7347 = vld [vmem:[#allocation9 + $0x50] sm:$0xff]
        %v7348 = vld [vmem:[#allocation9 + $0x58] sm:$0xff]
        %v7349 = vld [vmem:[#allocation9 + $0x60] sm:$0xff]
        %v7350 = vld [vmem:[#allocation9 + $0x68] sm:$0xff]
        %v7351 = vld [vmem:[#allocation9 + $0x70] sm:$0xff]
        %v7352 = vld [vmem:[#allocation9 + $0x78] sm:$0xff]
        %v7353 = vld [vmem:[#allocation9 + $0x80] sm:$0xff]
        %v7354 = vld [vmem:[#allocation9 + $0x88] sm:$0xff]
        %v7355 = vld [vmem:[#allocation9 + $0x90] sm:$0xff]
        %v7356 = vld [vmem:[#allocation9 + $0x98] sm:$0xff]
        %v7357 = vld [vmem:[#allocation9 + $0xa0] sm:$0xff]
        %v7358 = vld [vmem:[#allocation9 + $0xa8] sm:$0xff]
        %v7359 = vld [vmem:[#allocation9 + $0xb0] sm:$0xff]
        %v7360 = vld [vmem:[#allocation9 + $0xb8] sm:$0xff]
        %v7361 = vld [vmem:[#allocation9 + $0xc0] sm:$0xff]
        %v7362 = vld [vmem:[#allocation9 + $0xc8] sm:$0xff]
        %v7363 = vld [vmem:[#allocation9 + $0xd0] sm:$0xff]
        %v7364 = vld [vmem:[#allocation9 + $0xd8] sm:$0xff]
        %v7365 = vld [vmem:[#allocation9 + $0xe0] sm:$0xff]
        %v7366 = vld [vmem:[#allocation9 + $0xe8] sm:$0xff]
        %v7367 = vld [vmem:[#allocation9 + $0xf0] sm:$0xff]
        %v7368 = vld [vmem:[#allocation9 + $0xf8] sm:$0xff]
        %v7369 = vld [vmem:[#allocation9 + $0x100] sm:$0xff]
        %v7370 = vld [vmem:[#allocation9 + $0x108] sm:$0xff]
        %v7371 = vld [vmem:[#allocation9 + $0x110] sm:$0xff]
        %v7372 = vld [vmem:[#allocation9 + $0x118] sm:$0xff]
        %v7373 = vld [vmem:[#allocation9 + $0x120] sm:$0xff]
        %v7374 = vld [vmem:[#allocation9 + $0x128] sm:$0xff]
        %v7375 = vld [vmem:[#allocation9 + $0x130] sm:$0xff]
        %v7376 = vld [vmem:[#allocation9 + $0x138] sm:$0xff]
        %v7377 = vld [vmem:[#allocation9 + $0x140] sm:$0xff]
        %v7378 = vld [vmem:[#allocation9 + $0x148] sm:$0xff]
        %v7379 = vld [vmem:[#allocation9 + $0x150] sm:$0xff]
        %v7380 = vld [vmem:[#allocation9 + $0x158] sm:$0xff]
        %v7381 = vld [vmem:[#allocation9 + $0x160] sm:$0xff]
        %v7382 = vld [vmem:[#allocation9 + $0x168] sm:$0xff]
        %v7383 = vld [vmem:[#allocation9 + $0x170] sm:$0xff]
        %v7384 = vld [vmem:[#allocation9 + $0x178] sm:$0xff]
        %v7385 = vld [vmem:[#allocation9 + $0x180] sm:$0xff]
        %v7386 = vld [vmem:[#allocation9 + $0x188] sm:$0xff]
        %v7387 = vld [vmem:[#allocation9 + $0x190] sm:$0xff]
        %v7388 = vld [vmem:[#allocation9 + $0x198] sm:$0xff]
        %v7389 = vld [vmem:[#allocation9 + $0x1a0] sm:$0xff]
        %v7390 = vld [vmem:[#allocation9 + $0x1a8] sm:$0xff]
        %v7391 = vld [vmem:[#allocation9 + $0x1b0] sm:$0xff]
        %v7392 = vld [vmem:[#allocation9 + $0x1b8] sm:$0xff]
        %v7393 = vld [vmem:[#allocation9 + $0x1c0] sm:$0xff]
        %v7394 = vld [vmem:[#allocation9 + $0x1c8] sm:$0xff]
        %v7395 = vld [vmem:[#allocation9 + $0x1d0] sm:$0xff]
        %v7396 = vld [vmem:[#allocation9 + $0x1d8] sm:$0xff]
        %v7397 = vld [vmem:[#allocation9 + $0x1e0] sm:$0xff]
        %v7398 = vld [vmem:[#allocation9 + $0x1e8] sm:$0xff]
        %v7399 = vld [vmem:[#allocation9 + $0x1f0] sm:$0xff]
        %v7400 = vld [vmem:[#allocation9 + $0x1f8] sm:$0xff]
        %v7401 = vld [vmem:[#allocation9 + $0x200] sm:$0xff]
        %v7402 = vld [vmem:[#allocation9 + $0x208] sm:$0xff]
        %v7403 = vld [vmem:[#allocation9 + $0x210] sm:$0xff]
        %v7404 = vld [vmem:[#allocation9 + $0x218] sm:$0xff]
        %v7405 = vld [vmem:[#allocation9 + $0x220] sm:$0xff]
        %v7406 = vld [vmem:[#allocation9 + $0x228] sm:$0xff]
        %v7407 = vld [vmem:[#allocation9 + $0x230] sm:$0xff]
        %v7408 = vld [vmem:[#allocation9 + $0x238] sm:$0xff]
        %v7409 = vld [vmem:[#allocation9 + $0x240] sm:$0xff]
        %v7410 = vld [vmem:[#allocation9 + $0x248] sm:$0xff]
        %v7411 = vld [vmem:[#allocation9 + $0x250] sm:$0xff]
        %v7412 = vld [vmem:[#allocation9 + $0x258] sm:$0xff]
        %v7413 = vld [vmem:[#allocation9 + $0x260] sm:$0xff]
        %v7414 = vld [vmem:[#allocation9 + $0x268] sm:$0xff]
        %v7415 = vld [vmem:[#allocation9 + $0x270] sm:$0xff]
        %v7416 = vld [vmem:[#allocation9 + $0x278] sm:$0xff]
        %v7417 = vld [vmem:[#allocation9 + $0x280] sm:$0xff]
        %v7418 = vld [vmem:[#allocation9 + $0x288] sm:$0xff]
        %v7419 = vld [vmem:[#allocation9 + $0x290] sm:$0xff]
        %v7420 = vld [vmem:[#allocation9 + $0x298] sm:$0xff]
        %v7421 = vld [vmem:[#allocation9 + $0x2a0] sm:$0xff]
        %v7422 = vld [vmem:[#allocation9 + $0x2a8] sm:$0xff]
        %v7423 = vld [vmem:[#allocation9 + $0x2b0] sm:$0xff]
        %v7424 = vld [vmem:[#allocation9 + $0x2b8] sm:$0xff]
        %v7425 = vld [vmem:[#allocation9 + $0x2c0] sm:$0xff]
        %v7426 = vld [vmem:[#allocation9 + $0x2c8] sm:$0xff]
        %v7427 = vld [vmem:[#allocation9 + $0x2d0] sm:$0xff]
        %v7428 = vld [vmem:[#allocation9 + $0x2d8] sm:$0xff]
        %v7429 = vld [vmem:[#allocation9 + $0x2e0] sm:$0xff]
        %v7430 = vld [vmem:[#allocation9 + $0x2e8] sm:$0xff]
        %v7431 = vld [vmem:[#allocation9 + $0x2f0] sm:$0xff]
        %v7432 = vld [vmem:[#allocation9 + $0x2f8] sm:$0xff]
        %v7433 = vld [vmem:[#allocation9 + $0x300] sm:$0xff]
        %v7434 = vld [vmem:[#allocation9 + $0x308] sm:$0xff]
        %v7435 = vld [vmem:[#allocation9 + $0x310] sm:$0xff]
        %v7436 = vld [vmem:[#allocation9 + $0x318] sm:$0xff]
        %v7437 = vld [vmem:[#allocation9 + $0x320] sm:$0xff]
        %v7438 = vld [vmem:[#allocation9 + $0x328] sm:$0xff]
        %v7439 = vld [vmem:[#allocation9 + $0x330] sm:$0xff]
        %v7440 = vld [vmem:[#allocation9 + $0x338] sm:$0xff]
        %v7441 = vld [vmem:[#allocation9 + $0x340] sm:$0xff]
        %v7442 = vld [vmem:[#allocation9 + $0x348] sm:$0xff]
        %v7443 = vld [vmem:[#allocation9 + $0x350] sm:$0xff]
        %v7444 = vld [vmem:[#allocation9 + $0x358] sm:$0xff]
        %v7445 = vld [vmem:[#allocation9 + $0x360] sm:$0xff]
        %v7446 = vld [vmem:[#allocation9 + $0x368] sm:$0xff]
        %v7447 = vld [vmem:[#allocation9 + $0x370] sm:$0xff]
        %v7448 = vld [vmem:[#allocation9 + $0x378] sm:$0xff]
        %v7449 = vld [vmem:[#allocation9 + $0x380] sm:$0xff]
        %v7450 = vld [vmem:[#allocation9 + $0x388] sm:$0xff]
        %v7451 = vld [vmem:[#allocation9 + $0x390] sm:$0xff]
        %v7452 = vld [vmem:[#allocation9 + $0x398] sm:$0xff]
        %v7453 = vld [vmem:[#allocation9 + $0x3a0] sm:$0xff]
        %v7454 = vld [vmem:[#allocation9 + $0x3a8] sm:$0xff]
        %v7455 = vld [vmem:[#allocation9 + $0x3b0] sm:$0xff]
        %v7456 = vld [vmem:[#allocation9 + $0x3b8] sm:$0xff]
        %v7457 = vld [vmem:[#allocation9 + $0x3c0] sm:$0xff]
        %v7458 = vld [vmem:[#allocation9 + $0x3c8] sm:$0xff]
        %v7459 = vld [vmem:[#allocation9 + $0x3d0] sm:$0xff]
        %v7460 = vld [vmem:[#allocation9 + $0x3d8] sm:$0xff]
        %v7461 = vld [vmem:[#allocation9 + $0x3e0] sm:$0xff]
        %v7462 = vld [vmem:[#allocation9 + $0x3e8] sm:$0xff]
        %v7463 = vld [vmem:[#allocation9 + $0x3f0] sm:$0xff]
        %v7464 = vld [vmem:[#allocation9 + $0x3f8] sm:$0xff]
        %v7465 = vld [vmem:[#allocation9 + $0x400] sm:$0xff]
        %v7466 = vld [vmem:[#allocation9 + $0x408] sm:$0xff]
        %v7467 = vld [vmem:[#allocation9 + $0x410] sm:$0xff]
        %v7468 = vld [vmem:[#allocation9 + $0x418] sm:$0xff]
        %v7469 = vld [vmem:[#allocation9 + $0x420] sm:$0xff]
        %v7470 = vld [vmem:[#allocation9 + $0x428] sm:$0xff]
        %v7471 = vld [vmem:[#allocation9 + $0x430] sm:$0xff]
        %v7472 = vld [vmem:[#allocation9 + $0x438] sm:$0xff]
        %v7473 = vld [vmem:[#allocation9 + $0x440] sm:$0xff]
        %v7474 = vld [vmem:[#allocation9 + $0x448] sm:$0xff]
        %v7475 = vld [vmem:[#allocation9 + $0x450] sm:$0xff]
        %v7476 = vld [vmem:[#allocation9 + $0x458] sm:$0xff]
        %v7477 = vld [vmem:[#allocation9 + $0x460] sm:$0xff]
        %v7478 = vld [vmem:[#allocation9 + $0x468] sm:$0xff]
        %v7479 = vld [vmem:[#allocation9 + $0x470] sm:$0xff]
        %v7480 = vld [vmem:[#allocation9 + $0x478] sm:$0xff]
        %v7481 = vld [vmem:[#allocation9 + $0x480] sm:$0xff]
        %v7482 = vld [vmem:[#allocation9 + $0x488] sm:$0xff]
        %v7483 = vld [vmem:[#allocation9 + $0x490] sm:$0xff]
        %v7484 = vld [vmem:[#allocation9 + $0x498] sm:$0xff]
        %v7485 = vld [vmem:[#allocation9 + $0x4a0] sm:$0xff]
        %v7486 = vld [vmem:[#allocation9 + $0x4a8] sm:$0xff]
        %v7487 = vld [vmem:[#allocation9 + $0x4b0] sm:$0xff]
        %v7488 = vld [vmem:[#allocation9 + $0x4b8] sm:$0xff]
        %v7489 = vld [vmem:[#allocation9 + $0x4c0] sm:$0xff]
        %v7490 = vld [vmem:[#allocation9 + $0x4c8] sm:$0xff]
        %v7491 = vld [vmem:[#allocation9 + $0x4d0] sm:$0xff]
        %v7492 = vld [vmem:[#allocation9 + $0x4d8] sm:$0xff]
        %v7493 = vld [vmem:[#allocation9 + $0x4e0] sm:$0xff]
        %v7494 = vld [vmem:[#allocation9 + $0x4e8] sm:$0xff]
        %v7495 = vld [vmem:[#allocation9 + $0x4f0] sm:$0xff]
        %v7496 = vld [vmem:[#allocation9 + $0x4f8] sm:$0xff]
        %v7497 = vld [vmem:[#allocation9 + $0x500] sm:$0xff]
        %v7498 = vld [vmem:[#allocation9 + $0x508] sm:$0xff]
        %v7499 = vld [vmem:[#allocation9 + $0x510] sm:$0xff]
        %v7500 = vld [vmem:[#allocation9 + $0x518] sm:$0xff]
        %v7501 = vld [vmem:[#allocation9 + $0x520] sm:$0xff]
        %v7502 = vld [vmem:[#allocation9 + $0x528] sm:$0xff]
        %v7503 = vld [vmem:[#allocation9 + $0x530] sm:$0xff]
        %v7504 = vld [vmem:[#allocation9 + $0x538] sm:$0xff]
        %v7505 = vld [vmem:[#allocation9 + $0x540] sm:$0xff]
        %v7506 = vld [vmem:[#allocation9 + $0x548] sm:$0xff]
        %v7507 = vld [vmem:[#allocation9 + $0x550] sm:$0xff]
        %v7508 = vld [vmem:[#allocation9 + $0x558] sm:$0xff]
        %v7509 = vld [vmem:[#allocation9 + $0x560] sm:$0xff]
        %v7510 = vld [vmem:[#allocation9 + $0x568] sm:$0xff]
        %v7511 = vld [vmem:[#allocation9 + $0x570] sm:$0xff]
        %v7512 = vld [vmem:[#allocation9 + $0x578] sm:$0xff]
        %v7513 = vld [vmem:[#allocation9 + $0x580] sm:$0xff]
        %v7514 = vld [vmem:[#allocation9 + $0x588] sm:$0xff]
        %v7515 = vld [vmem:[#allocation9 + $0x590] sm:$0xff]
        %v7516 = vld [vmem:[#allocation9 + $0x598] sm:$0xff]
        %v7517 = vld [vmem:[#allocation9 + $0x5a0] sm:$0xff]
        %v7518 = vld [vmem:[#allocation9 + $0x5a8] sm:$0xff]
        %v7519 = vld [vmem:[#allocation9 + $0x5b0] sm:$0xff]
        %v7520 = vld [vmem:[#allocation9 + $0x5b8] sm:$0xff]
        %v7521 = vld [vmem:[#allocation9 + $0x5c0] sm:$0xff]
        %v7522 = vld [vmem:[#allocation9 + $0x5c8] sm:$0xff]
        %v7523 = vld [vmem:[#allocation9 + $0x5d0] sm:$0xff]
        %v7524 = vld [vmem:[#allocation9 + $0x5d8] sm:$0xff]
        %v7525 = vld [vmem:[#allocation9 + $0x5e0] sm:$0xff]
        %v7526 = vld [vmem:[#allocation9 + $0x5e8] sm:$0xff]
        %v7527 = vld [vmem:[#allocation9 + $0x5f0] sm:$0xff]
        %v7528 = vld [vmem:[#allocation9 + $0x5f8] sm:$0xff]
        %v7529 = vld [vmem:[#allocation9 + $0x600] sm:$0xff]
        %v7530 = vld [vmem:[#allocation9 + $0x608] sm:$0xff]
        %v7531 = vld [vmem:[#allocation9 + $0x610] sm:$0xff]
        %v7532 = vld [vmem:[#allocation9 + $0x618] sm:$0xff]
        %v7533 = vld [vmem:[#allocation9 + $0x620] sm:$0xff]
        %v7534 = vld [vmem:[#allocation9 + $0x628] sm:$0xff]
        %v7535 = vld [vmem:[#allocation9 + $0x630] sm:$0xff]
        %v7536 = vld [vmem:[#allocation9 + $0x638] sm:$0xff]
        %v7537 = vld [vmem:[#allocation9 + $0x640] sm:$0xff]
        %v7538 = vld [vmem:[#allocation9 + $0x648] sm:$0xff]
        %v7539 = vld [vmem:[#allocation9 + $0x650] sm:$0xff]
        %v7540 = vld [vmem:[#allocation9 + $0x658] sm:$0xff]
        %v7541 = vld [vmem:[#allocation9 + $0x660] sm:$0xff]
        %v7542 = vld [vmem:[#allocation9 + $0x668] sm:$0xff]
        %v7543 = vld [vmem:[#allocation9 + $0x670] sm:$0xff]
        %v7544 = vld [vmem:[#allocation9 + $0x678] sm:$0xff]
        %v7545 = vld [vmem:[#allocation9 + $0x680] sm:$0xff]
        %v7546 = vld [vmem:[#allocation9 + $0x688] sm:$0xff]
        %v7547 = vld [vmem:[#allocation9 + $0x690] sm:$0xff]
        %v7548 = vld [vmem:[#allocation9 + $0x698] sm:$0xff]
        %v7549 = vld [vmem:[#allocation9 + $0x6a0] sm:$0xff]
        %v7550 = vld [vmem:[#allocation9 + $0x6a8] sm:$0xff]
        %v7551 = vld [vmem:[#allocation9 + $0x6b0] sm:$0xff]
        %v7552 = vld [vmem:[#allocation9 + $0x6b8] sm:$0xff]
        %v7553 = vld [vmem:[#allocation9 + $0x6c0] sm:$0xff]
        %v7554 = vld [vmem:[#allocation9 + $0x6c8] sm:$0xff]
        %v7555 = vld [vmem:[#allocation9 + $0x6d0] sm:$0xff]
        %v7556 = vld [vmem:[#allocation9 + $0x6d8] sm:$0xff]
        %v7557 = vld [vmem:[#allocation9 + $0x6e0] sm:$0xff]
        %v7558 = vld [vmem:[#allocation9 + $0x6e8] sm:$0xff]
        %v7559 = vld [vmem:[#allocation9 + $0x6f0] sm:$0xff]
        %v7560 = vld [vmem:[#allocation9 + $0x6f8] sm:$0xff]
        %v7561 = vld [vmem:[#allocation9 + $0x700] sm:$0xff]
        %v7562 = vld [vmem:[#allocation9 + $0x708] sm:$0xff]
        %v7563 = vld [vmem:[#allocation9 + $0x710] sm:$0xff]
        %v7564 = vld [vmem:[#allocation9 + $0x718] sm:$0xff]
        %v7565 = vld [vmem:[#allocation9 + $0x720] sm:$0xff]
        %v7566 = vld [vmem:[#allocation9 + $0x728] sm:$0xff]
        %v7567 = vld [vmem:[#allocation9 + $0x730] sm:$0xff]
        %v7568 = vld [vmem:[#allocation9 + $0x738] sm:$0xff]
        %v7569 = vld [vmem:[#allocation9 + $0x740] sm:$0xff]
        %v7570 = vld [vmem:[#allocation9 + $0x748] sm:$0xff]
        %v7571 = vld [vmem:[#allocation9 + $0x750] sm:$0xff]
        %v7572 = vld [vmem:[#allocation9 + $0x758] sm:$0xff]
        %v7573 = vld [vmem:[#allocation9 + $0x760] sm:$0xff]
        %v7574 = vld [vmem:[#allocation9 + $0x768] sm:$0xff]
        %v7575 = vld [vmem:[#allocation9 + $0x770] sm:$0xff]
        %v7576 = vld [vmem:[#allocation9 + $0x778] sm:$0xff]
        %v7577 = vld [vmem:[#allocation9 + $0x780] sm:$0xff]
        %v7578 = vld [vmem:[#allocation9 + $0x788] sm:$0xff]
        %v7579 = vld [vmem:[#allocation9 + $0x790] sm:$0xff]
        %v7580 = vld [vmem:[#allocation9 + $0x798] sm:$0xff]
        %v7581 = vld [vmem:[#allocation9 + $0x7a0] sm:$0xff]
        %v7582 = vld [vmem:[#allocation9 + $0x7a8] sm:$0xff]
        %v7583 = vld [vmem:[#allocation9 + $0x7b0] sm:$0xff]
        %v7584 = vld [vmem:[#allocation9 + $0x7b8] sm:$0xff]
        %v7585 = vld [vmem:[#allocation9 + $0x7c0] sm:$0xff]
        %v7586 = vld [vmem:[#allocation9 + $0x7c8] sm:$0xff]
        %v7587 = vld [vmem:[#allocation9 + $0x7d0] sm:$0xff]
        %v7588 = vld [vmem:[#allocation9 + $0x7d8] sm:$0xff]
        %v7589 = vld [vmem:[#allocation9 + $0x7e0] sm:$0xff]
        %v7590 = vld [vmem:[#allocation9 + $0x7e8] sm:$0xff]
        %v7591 = vld [vmem:[#allocation9 + $0x7f0] sm:$0xff]
        %v7592 = vld [vmem:[#allocation9 + $0x7f8] sm:$0xff]
        %v7849 = vunpack.c.l.b16 %v7337
        %v7850 = vunpack.c.h.b16 %v7337
        %v7851 = vunpack.c.l.b16 %v7338
        %v7852 = vunpack.c.h.b16 %v7338
        %v7853 = vunpack.c.l.b16 %v7339
        %v7854 = vunpack.c.h.b16 %v7339
        %v7855 = vunpack.c.l.b16 %v7340
        %v7856 = vunpack.c.h.b16 %v7340
        %v7857 = vunpack.c.l.b16 %v7341
        %v7858 = vunpack.c.h.b16 %v7341
        %v7859 = vunpack.c.l.b16 %v7342
        %v7860 = vunpack.c.h.b16 %v7342
        %v7861 = vunpack.c.l.b16 %v7343
        %v7862 = vunpack.c.h.b16 %v7343
        %v7863 = vunpack.c.l.b16 %v7344
        %v7864 = vunpack.c.h.b16 %v7344
        %v7865 = vunpack.c.l.b16 %v7345
        %v7866 = vunpack.c.h.b16 %v7345
        %v7867 = vunpack.c.l.b16 %v7346
        %v7868 = vunpack.c.h.b16 %v7346
        %v7869 = vunpack.c.l.b16 %v7347
        %v7870 = vunpack.c.h.b16 %v7347
        %v7871 = vunpack.c.l.b16 %v7348
        %v7872 = vunpack.c.h.b16 %v7348
        %v7873 = vunpack.c.l.b16 %v7349
        %v7874 = vunpack.c.h.b16 %v7349
        %v7875 = vunpack.c.l.b16 %v7350
        %v7876 = vunpack.c.h.b16 %v7350
        %v7877 = vunpack.c.l.b16 %v7351
        %v7878 = vunpack.c.h.b16 %v7351
        %v7879 = vunpack.c.l.b16 %v7352
        %v7880 = vunpack.c.h.b16 %v7352
        %v7881 = vunpack.c.l.b16 %v7353
        %v7882 = vunpack.c.h.b16 %v7353
        %v7883 = vunpack.c.l.b16 %v7354
        %v7884 = vunpack.c.h.b16 %v7354
        %v7885 = vunpack.c.l.b16 %v7355
        %v7886 = vunpack.c.h.b16 %v7355
        %v7887 = vunpack.c.l.b16 %v7356
        %v7888 = vunpack.c.h.b16 %v7356
        %v7889 = vunpack.c.l.b16 %v7357
        %v7890 = vunpack.c.h.b16 %v7357
        %v7891 = vunpack.c.l.b16 %v7358
        %v7892 = vunpack.c.h.b16 %v7358
        %v7893 = vunpack.c.l.b16 %v7359
        %v7894 = vunpack.c.h.b16 %v7359
        %v7895 = vunpack.c.l.b16 %v7360
        %v7896 = vunpack.c.h.b16 %v7360
        %v7897 = vunpack.c.l.b16 %v7361
        %v7898 = vunpack.c.h.b16 %v7361
        %v7899 = vunpack.c.l.b16 %v7362
        %v7900 = vunpack.c.h.b16 %v7362
        %v7901 = vunpack.c.l.b16 %v7363
        %v7902 = vunpack.c.h.b16 %v7363
        %v7903 = vunpack.c.l.b16 %v7364
        %v7904 = vunpack.c.h.b16 %v7364
        %v7905 = vunpack.c.l.b16 %v7365
        %v7906 = vunpack.c.h.b16 %v7365
        %v7907 = vunpack.c.l.b16 %v7366
        %v7908 = vunpack.c.h.b16 %v7366
        %v7909 = vunpack.c.l.b16 %v7367
        %v7910 = vunpack.c.h.b16 %v7367
        %v7911 = vunpack.c.l.b16 %v7368
        %v7912 = vunpack.c.h.b16 %v7368
        %v7913 = vunpack.c.l.b16 %v7369
        %v7914 = vunpack.c.h.b16 %v7369
        %v7915 = vunpack.c.l.b16 %v7370
        %v7916 = vunpack.c.h.b16 %v7370
        %v7917 = vunpack.c.l.b16 %v7371
        %v7918 = vunpack.c.h.b16 %v7371
        %v7919 = vunpack.c.l.b16 %v7372
        %v7920 = vunpack.c.h.b16 %v7372
        %v7921 = vunpack.c.l.b16 %v7373
        %v7922 = vunpack.c.h.b16 %v7373
        %v7923 = vunpack.c.l.b16 %v7374
        %v7924 = vunpack.c.h.b16 %v7374
        %v7925 = vunpack.c.l.b16 %v7375
        %v7926 = vunpack.c.h.b16 %v7375
        %v7927 = vunpack.c.l.b16 %v7376
        %v7928 = vunpack.c.h.b16 %v7376
        %v7929 = vunpack.c.l.b16 %v7377
        %v7930 = vunpack.c.h.b16 %v7377
        %v7931 = vunpack.c.l.b16 %v7378
        %v7932 = vunpack.c.h.b16 %v7378
        %v7933 = vunpack.c.l.b16 %v7379
        %v7934 = vunpack.c.h.b16 %v7379
        %v7935 = vunpack.c.l.b16 %v7380
        %v7936 = vunpack.c.h.b16 %v7380
        %v7937 = vunpack.c.l.b16 %v7381
        %v7938 = vunpack.c.h.b16 %v7381
        %v7939 = vunpack.c.l.b16 %v7382
        %v7940 = vunpack.c.h.b16 %v7382
        %v7941 = vunpack.c.l.b16 %v7383
        %v7942 = vunpack.c.h.b16 %v7383
        %v7943 = vunpack.c.l.b16 %v7384
        %v7944 = vunpack.c.h.b16 %v7384
        %v7945 = vunpack.c.l.b16 %v7385
        %v7946 = vunpack.c.h.b16 %v7385
        %v7947 = vunpack.c.l.b16 %v7386
        %v7948 = vunpack.c.h.b16 %v7386
        %v7949 = vunpack.c.l.b16 %v7387
        %v7950 = vunpack.c.h.b16 %v7387
        %v7951 = vunpack.c.l.b16 %v7388
        %v7952 = vunpack.c.h.b16 %v7388
        %v7953 = vunpack.c.l.b16 %v7389
        %v7954 = vunpack.c.h.b16 %v7389
        %v7955 = vunpack.c.l.b16 %v7390
        %v7956 = vunpack.c.h.b16 %v7390
        %v7957 = vunpack.c.l.b16 %v7391
        %v7958 = vunpack.c.h.b16 %v7391
        %v7959 = vunpack.c.l.b16 %v7392
        %v7960 = vunpack.c.h.b16 %v7392
        %v7961 = vunpack.c.l.b16 %v7393
        %v7962 = vunpack.c.h.b16 %v7393
        %v7963 = vunpack.c.l.b16 %v7394
        %v7964 = vunpack.c.h.b16 %v7394
        %v7965 = vunpack.c.l.b16 %v7395
        %v7966 = vunpack.c.h.b16 %v7395
        %v7967 = vunpack.c.l.b16 %v7396
        %v7968 = vunpack.c.h.b16 %v7396
        %v7969 = vunpack.c.l.b16 %v7397
        %v7970 = vunpack.c.h.b16 %v7397
        %v7971 = vunpack.c.l.b16 %v7398
        %v7972 = vunpack.c.h.b16 %v7398
        %v7973 = vunpack.c.l.b16 %v7399
        %v7974 = vunpack.c.h.b16 %v7399
        %v7975 = vunpack.c.l.b16 %v7400
        %v7976 = vunpack.c.h.b16 %v7400
        %v7977 = vunpack.c.l.b16 %v7401
        %v7978 = vunpack.c.h.b16 %v7401
        %v7979 = vunpack.c.l.b16 %v7402
        %v7980 = vunpack.c.h.b16 %v7402
        %v7981 = vunpack.c.l.b16 %v7403
        %v7982 = vunpack.c.h.b16 %v7403
        %v7983 = vunpack.c.l.b16 %v7404
        %v7984 = vunpack.c.h.b16 %v7404
        %v7985 = vunpack.c.l.b16 %v7405
        %v7986 = vunpack.c.h.b16 %v7405
        %v7987 = vunpack.c.l.b16 %v7406
        %v7988 = vunpack.c.h.b16 %v7406
        %v7989 = vunpack.c.l.b16 %v7407
        %v7990 = vunpack.c.h.b16 %v7407
        %v7991 = vunpack.c.l.b16 %v7408
        %v7992 = vunpack.c.h.b16 %v7408
        %v7993 = vunpack.c.l.b16 %v7409
        %v7994 = vunpack.c.h.b16 %v7409
        %v7995 = vunpack.c.l.b16 %v7410
        %v7996 = vunpack.c.h.b16 %v7410
        %v7997 = vunpack.c.l.b16 %v7411
        %v7998 = vunpack.c.h.b16 %v7411
        %v7999 = vunpack.c.l.b16 %v7412
        %v8000 = vunpack.c.h.b16 %v7412
        %v8001 = vunpack.c.l.b16 %v7413
        %v8002 = vunpack.c.h.b16 %v7413
        %v8003 = vunpack.c.l.b16 %v7414
        %v8004 = vunpack.c.h.b16 %v7414
        %v8005 = vunpack.c.l.b16 %v7415
        %v8006 = vunpack.c.h.b16 %v7415
        %v8007 = vunpack.c.l.b16 %v7416
        %v8008 = vunpack.c.h.b16 %v7416
        %v8009 = vunpack.c.l.b16 %v7417
        %v8010 = vunpack.c.h.b16 %v7417
        %v8011 = vunpack.c.l.b16 %v7418
        %v8012 = vunpack.c.h.b16 %v7418
        %v8013 = vunpack.c.l.b16 %v7419
        %v8014 = vunpack.c.h.b16 %v7419
        %v8015 = vunpack.c.l.b16 %v7420
        %v8016 = vunpack.c.h.b16 %v7420
        %v8017 = vunpack.c.l.b16 %v7421
        %v8018 = vunpack.c.h.b16 %v7421
        %v8019 = vunpack.c.l.b16 %v7422
        %v8020 = vunpack.c.h.b16 %v7422
        %v8021 = vunpack.c.l.b16 %v7423
        %v8022 = vunpack.c.h.b16 %v7423
        %v8023 = vunpack.c.l.b16 %v7424
        %v8024 = vunpack.c.h.b16 %v7424
        %v8025 = vunpack.c.l.b16 %v7425
        %v8026 = vunpack.c.h.b16 %v7425
        %v8027 = vunpack.c.l.b16 %v7426
        %v8028 = vunpack.c.h.b16 %v7426
        %v8029 = vunpack.c.l.b16 %v7427
        %v8030 = vunpack.c.h.b16 %v7427
        %v8031 = vunpack.c.l.b16 %v7428
        %v8032 = vunpack.c.h.b16 %v7428
        %v8033 = vunpack.c.l.b16 %v7429
        %v8034 = vunpack.c.h.b16 %v7429
        %v8035 = vunpack.c.l.b16 %v7430
        %v8036 = vunpack.c.h.b16 %v7430
        %v8037 = vunpack.c.l.b16 %v7431
        %v8038 = vunpack.c.h.b16 %v7431
        %v8039 = vunpack.c.l.b16 %v7432
        %v8040 = vunpack.c.h.b16 %v7432
        %v8041 = vunpack.c.l.b16 %v7433
        %v8042 = vunpack.c.h.b16 %v7433
        %v8043 = vunpack.c.l.b16 %v7434
        %v8044 = vunpack.c.h.b16 %v7434
        %v8045 = vunpack.c.l.b16 %v7435
        %v8046 = vunpack.c.h.b16 %v7435
        %v8047 = vunpack.c.l.b16 %v7436
        %v8048 = vunpack.c.h.b16 %v7436
        %v8049 = vunpack.c.l.b16 %v7437
        %v8050 = vunpack.c.h.b16 %v7437
        %v8051 = vunpack.c.l.b16 %v7438
        %v8052 = vunpack.c.h.b16 %v7438
        %v8053 = vunpack.c.l.b16 %v7439
        %v8054 = vunpack.c.h.b16 %v7439
        %v8055 = vunpack.c.l.b16 %v7440
        %v8056 = vunpack.c.h.b16 %v7440
        %v8057 = vunpack.c.l.b16 %v7441
        %v8058 = vunpack.c.h.b16 %v7441
        %v8059 = vunpack.c.l.b16 %v7442
        %v8060 = vunpack.c.h.b16 %v7442
        %v8061 = vunpack.c.l.b16 %v7443
        %v8062 = vunpack.c.h.b16 %v7443
        %v8063 = vunpack.c.l.b16 %v7444
        %v8064 = vunpack.c.h.b16 %v7444
        %v8065 = vunpack.c.l.b16 %v7445
        %v8066 = vunpack.c.h.b16 %v7445
        %v8067 = vunpack.c.l.b16 %v7446
        %v8068 = vunpack.c.h.b16 %v7446
        %v8069 = vunpack.c.l.b16 %v7447
        %v8070 = vunpack.c.h.b16 %v7447
        %v8071 = vunpack.c.l.b16 %v7448
        %v8072 = vunpack.c.h.b16 %v7448
        %v8073 = vunpack.c.l.b16 %v7449
        %v8074 = vunpack.c.h.b16 %v7449
        %v8075 = vunpack.c.l.b16 %v7450
        %v8076 = vunpack.c.h.b16 %v7450
        %v8077 = vunpack.c.l.b16 %v7451
        %v8078 = vunpack.c.h.b16 %v7451
        %v8079 = vunpack.c.l.b16 %v7452
        %v8080 = vunpack.c.h.b16 %v7452
        %v8081 = vunpack.c.l.b16 %v7453
        %v8082 = vunpack.c.h.b16 %v7453
        %v8083 = vunpack.c.l.b16 %v7454
        %v8084 = vunpack.c.h.b16 %v7454
        %v8085 = vunpack.c.l.b16 %v7455
        %v8086 = vunpack.c.h.b16 %v7455
        %v8087 = vunpack.c.l.b16 %v7456
        %v8088 = vunpack.c.h.b16 %v7456
        %v8089 = vunpack.c.l.b16 %v7457
        %v8090 = vunpack.c.h.b16 %v7457
        %v8091 = vunpack.c.l.b16 %v7458
        %v8092 = vunpack.c.h.b16 %v7458
        %v8093 = vunpack.c.l.b16 %v7459
        %v8094 = vunpack.c.h.b16 %v7459
        %v8095 = vunpack.c.l.b16 %v7460
        %v8096 = vunpack.c.h.b16 %v7460
        %v8097 = vunpack.c.l.b16 %v7461
        %v8098 = vunpack.c.h.b16 %v7461
        %v8099 = vunpack.c.l.b16 %v7462
        %v8100 = vunpack.c.h.b16 %v7462
        %v8101 = vunpack.c.l.b16 %v7463
        %v8102 = vunpack.c.h.b16 %v7463
        %v8103 = vunpack.c.l.b16 %v7464
        %v8104 = vunpack.c.h.b16 %v7464
        %v8105 = vunpack.c.l.b16 %v7465
        %v8106 = vunpack.c.h.b16 %v7465
        %v8107 = vunpack.c.l.b16 %v7466
        %v8108 = vunpack.c.h.b16 %v7466
        %v8109 = vunpack.c.l.b16 %v7467
        %v8110 = vunpack.c.h.b16 %v7467
        %v8111 = vunpack.c.l.b16 %v7468
        %v8112 = vunpack.c.h.b16 %v7468
        %v8113 = vunpack.c.l.b16 %v7469
        %v8114 = vunpack.c.h.b16 %v7469
        %v8115 = vunpack.c.l.b16 %v7470
        %v8116 = vunpack.c.h.b16 %v7470
        %v8117 = vunpack.c.l.b16 %v7471
        %v8118 = vunpack.c.h.b16 %v7471
        %v8119 = vunpack.c.l.b16 %v7472
        %v8120 = vunpack.c.h.b16 %v7472
        %v8121 = vunpack.c.l.b16 %v7473
        %v8122 = vunpack.c.h.b16 %v7473
        %v8123 = vunpack.c.l.b16 %v7474
        %v8124 = vunpack.c.h.b16 %v7474
        %v8125 = vunpack.c.l.b16 %v7475
        %v8126 = vunpack.c.h.b16 %v7475
        %v8127 = vunpack.c.l.b16 %v7476
        %v8128 = vunpack.c.h.b16 %v7476
        %v8129 = vunpack.c.l.b16 %v7477
        %v8130 = vunpack.c.h.b16 %v7477
        %v8131 = vunpack.c.l.b16 %v7478
        %v8132 = vunpack.c.h.b16 %v7478
        %v8133 = vunpack.c.l.b16 %v7479
        %v8134 = vunpack.c.h.b16 %v7479
        %v8135 = vunpack.c.l.b16 %v7480
        %v8136 = vunpack.c.h.b16 %v7480
        %v8137 = vunpack.c.l.b16 %v7481
        %v8138 = vunpack.c.h.b16 %v7481
        %v8139 = vunpack.c.l.b16 %v7482
        %v8140 = vunpack.c.h.b16 %v7482
        %v8141 = vunpack.c.l.b16 %v7483
        %v8142 = vunpack.c.h.b16 %v7483
        %v8143 = vunpack.c.l.b16 %v7484
        %v8144 = vunpack.c.h.b16 %v7484
        %v8145 = vunpack.c.l.b16 %v7485
        %v8146 = vunpack.c.h.b16 %v7485
        %v8147 = vunpack.c.l.b16 %v7486
        %v8148 = vunpack.c.h.b16 %v7486
        %v8149 = vunpack.c.l.b16 %v7487
        %v8150 = vunpack.c.h.b16 %v7487
        %v8151 = vunpack.c.l.b16 %v7488
        %v8152 = vunpack.c.h.b16 %v7488
        %v8153 = vunpack.c.l.b16 %v7489
        %v8154 = vunpack.c.h.b16 %v7489
        %v8155 = vunpack.c.l.b16 %v7490
        %v8156 = vunpack.c.h.b16 %v7490
        %v8157 = vunpack.c.l.b16 %v7491
        %v8158 = vunpack.c.h.b16 %v7491
        %v8159 = vunpack.c.l.b16 %v7492
        %v8160 = vunpack.c.h.b16 %v7492
        %v8161 = vunpack.c.l.b16 %v7493
        %v8162 = vunpack.c.h.b16 %v7493
        %v8163 = vunpack.c.l.b16 %v7494
        %v8164 = vunpack.c.h.b16 %v7494
        %v8165 = vunpack.c.l.b16 %v7495
        %v8166 = vunpack.c.h.b16 %v7495
        %v8167 = vunpack.c.l.b16 %v7496
        %v8168 = vunpack.c.h.b16 %v7496
        %v8169 = vunpack.c.l.b16 %v7497
        %v8170 = vunpack.c.h.b16 %v7497
        %v8171 = vunpack.c.l.b16 %v7498
        %v8172 = vunpack.c.h.b16 %v7498
        %v8173 = vunpack.c.l.b16 %v7499
        %v8174 = vunpack.c.h.b16 %v7499
        %v8175 = vunpack.c.l.b16 %v7500
        %v8176 = vunpack.c.h.b16 %v7500
        %v8177 = vunpack.c.l.b16 %v7501
        %v8178 = vunpack.c.h.b16 %v7501
        %v8179 = vunpack.c.l.b16 %v7502
        %v8180 = vunpack.c.h.b16 %v7502
        %v8181 = vunpack.c.l.b16 %v7503
        %v8182 = vunpack.c.h.b16 %v7503
        %v8183 = vunpack.c.l.b16 %v7504
        %v8184 = vunpack.c.h.b16 %v7504
        %v8185 = vunpack.c.l.b16 %v7505
        %v8186 = vunpack.c.h.b16 %v7505
        %v8187 = vunpack.c.l.b16 %v7506
        %v8188 = vunpack.c.h.b16 %v7506
        %v8189 = vunpack.c.l.b16 %v7507
        %v8190 = vunpack.c.h.b16 %v7507
        %v8191 = vunpack.c.l.b16 %v7508
        %v8192 = vunpack.c.h.b16 %v7508
        %v8193 = vunpack.c.l.b16 %v7509
        %v8194 = vunpack.c.h.b16 %v7509
        %v8195 = vunpack.c.l.b16 %v7510
        %v8196 = vunpack.c.h.b16 %v7510
        %v8197 = vunpack.c.l.b16 %v7511
        %v8198 = vunpack.c.h.b16 %v7511
        %v8199 = vunpack.c.l.b16 %v7512
        %v8200 = vunpack.c.h.b16 %v7512
        %v8201 = vunpack.c.l.b16 %v7513
        %v8202 = vunpack.c.h.b16 %v7513
        %v8203 = vunpack.c.l.b16 %v7514
        %v8204 = vunpack.c.h.b16 %v7514
        %v8205 = vunpack.c.l.b16 %v7515
        %v8206 = vunpack.c.h.b16 %v7515
        %v8207 = vunpack.c.l.b16 %v7516
        %v8208 = vunpack.c.h.b16 %v7516
        %v8209 = vunpack.c.l.b16 %v7517
        %v8210 = vunpack.c.h.b16 %v7517
        %v8211 = vunpack.c.l.b16 %v7518
        %v8212 = vunpack.c.h.b16 %v7518
        %v8213 = vunpack.c.l.b16 %v7519
        %v8214 = vunpack.c.h.b16 %v7519
        %v8215 = vunpack.c.l.b16 %v7520
        %v8216 = vunpack.c.h.b16 %v7520
        %v8217 = vunpack.c.l.b16 %v7521
        %v8218 = vunpack.c.h.b16 %v7521
        %v8219 = vunpack.c.l.b16 %v7522
        %v8220 = vunpack.c.h.b16 %v7522
        %v8221 = vunpack.c.l.b16 %v7523
        %v8222 = vunpack.c.h.b16 %v7523
        %v8223 = vunpack.c.l.b16 %v7524
        %v8224 = vunpack.c.h.b16 %v7524
        %v8225 = vunpack.c.l.b16 %v7525
        %v8226 = vunpack.c.h.b16 %v7525
        %v8227 = vunpack.c.l.b16 %v7526
        %v8228 = vunpack.c.h.b16 %v7526
        %v8229 = vunpack.c.l.b16 %v7527
        %v8230 = vunpack.c.h.b16 %v7527
        %v8231 = vunpack.c.l.b16 %v7528
        %v8232 = vunpack.c.h.b16 %v7528
        %v8233 = vunpack.c.l.b16 %v7529
        %v8234 = vunpack.c.h.b16 %v7529
        %v8235 = vunpack.c.l.b16 %v7530
        %v8236 = vunpack.c.h.b16 %v7530
        %v8237 = vunpack.c.l.b16 %v7531
        %v8238 = vunpack.c.h.b16 %v7531
        %v8239 = vunpack.c.l.b16 %v7532
        %v8240 = vunpack.c.h.b16 %v7532
        %v8241 = vunpack.c.l.b16 %v7533
        %v8242 = vunpack.c.h.b16 %v7533
        %v8243 = vunpack.c.l.b16 %v7534
        %v8244 = vunpack.c.h.b16 %v7534
        %v8245 = vunpack.c.l.b16 %v7535
        %v8246 = vunpack.c.h.b16 %v7535
        %v8247 = vunpack.c.l.b16 %v7536
        %v8248 = vunpack.c.h.b16 %v7536
        %v8249 = vunpack.c.l.b16 %v7537
        %v8250 = vunpack.c.h.b16 %v7537
        %v8251 = vunpack.c.l.b16 %v7538
        %v8252 = vunpack.c.h.b16 %v7538
        %v8253 = vunpack.c.l.b16 %v7539
        %v8254 = vunpack.c.h.b16 %v7539
        %v8255 = vunpack.c.l.b16 %v7540
        %v8256 = vunpack.c.h.b16 %v7540
        %v8257 = vunpack.c.l.b16 %v7541
        %v8258 = vunpack.c.h.b16 %v7541
        %v8259 = vunpack.c.l.b16 %v7542
        %v8260 = vunpack.c.h.b16 %v7542
        %v8261 = vunpack.c.l.b16 %v7543
        %v8262 = vunpack.c.h.b16 %v7543
        %v8263 = vunpack.c.l.b16 %v7544
        %v8264 = vunpack.c.h.b16 %v7544
        %v8265 = vunpack.c.l.b16 %v7545
        %v8266 = vunpack.c.h.b16 %v7545
        %v8267 = vunpack.c.l.b16 %v7546
        %v8268 = vunpack.c.h.b16 %v7546
        %v8269 = vunpack.c.l.b16 %v7547
        %v8270 = vunpack.c.h.b16 %v7547
        %v8271 = vunpack.c.l.b16 %v7548
        %v8272 = vunpack.c.h.b16 %v7548
        %v8273 = vunpack.c.l.b16 %v7549
        %v8274 = vunpack.c.h.b16 %v7549
        %v8275 = vunpack.c.l.b16 %v7550
        %v8276 = vunpack.c.h.b16 %v7550
        %v8277 = vunpack.c.l.b16 %v7551
        %v8278 = vunpack.c.h.b16 %v7551
        %v8279 = vunpack.c.l.b16 %v7552
        %v8280 = vunpack.c.h.b16 %v7552
        %v8281 = vunpack.c.l.b16 %v7553
        %v8282 = vunpack.c.h.b16 %v7553
        %v8283 = vunpack.c.l.b16 %v7554
        %v8284 = vunpack.c.h.b16 %v7554
        %v8285 = vunpack.c.l.b16 %v7555
        %v8286 = vunpack.c.h.b16 %v7555
        %v8287 = vunpack.c.l.b16 %v7556
        %v8288 = vunpack.c.h.b16 %v7556
        %v8289 = vunpack.c.l.b16 %v7557
        %v8290 = vunpack.c.h.b16 %v7557
        %v8291 = vunpack.c.l.b16 %v7558
        %v8292 = vunpack.c.h.b16 %v7558
        %v8293 = vunpack.c.l.b16 %v7559
        %v8294 = vunpack.c.h.b16 %v7559
        %v8295 = vunpack.c.l.b16 %v7560
        %v8296 = vunpack.c.h.b16 %v7560
        %v8297 = vunpack.c.l.b16 %v7561
        %v8298 = vunpack.c.h.b16 %v7561
        %v8299 = vunpack.c.l.b16 %v7562
        %v8300 = vunpack.c.h.b16 %v7562
        %v8301 = vunpack.c.l.b16 %v7563
        %v8302 = vunpack.c.h.b16 %v7563
        %v8303 = vunpack.c.l.b16 %v7564
        %v8304 = vunpack.c.h.b16 %v7564
        %v8305 = vunpack.c.l.b16 %v7565
        %v8306 = vunpack.c.h.b16 %v7565
        %v8307 = vunpack.c.l.b16 %v7566
        %v8308 = vunpack.c.h.b16 %v7566
        %v8309 = vunpack.c.l.b16 %v7567
        %v8310 = vunpack.c.h.b16 %v7567
        %v8311 = vunpack.c.l.b16 %v7568
        %v8312 = vunpack.c.h.b16 %v7568
        %v8313 = vunpack.c.l.b16 %v7569
        %v8314 = vunpack.c.h.b16 %v7569
        %v8315 = vunpack.c.l.b16 %v7570
        %v8316 = vunpack.c.h.b16 %v7570
        %v8317 = vunpack.c.l.b16 %v7571
        %v8318 = vunpack.c.h.b16 %v7571
        %v8319 = vunpack.c.l.b16 %v7572
        %v8320 = vunpack.c.h.b16 %v7572
        %v8321 = vunpack.c.l.b16 %v7573
        %v8322 = vunpack.c.h.b16 %v7573
        %v8323 = vunpack.c.l.b16 %v7574
        %v8324 = vunpack.c.h.b16 %v7574
        %v8325 = vunpack.c.l.b16 %v7575
        %v8326 = vunpack.c.h.b16 %v7575
        %v8327 = vunpack.c.l.b16 %v7576
        %v8328 = vunpack.c.h.b16 %v7576
        %v8329 = vunpack.c.l.b16 %v7577
        %v8330 = vunpack.c.h.b16 %v7577
        %v8331 = vunpack.c.l.b16 %v7578
        %v8332 = vunpack.c.h.b16 %v7578
        %v8333 = vunpack.c.l.b16 %v7579
        %v8334 = vunpack.c.h.b16 %v7579
        %v8335 = vunpack.c.l.b16 %v7580
        %v8336 = vunpack.c.h.b16 %v7580
        %v8337 = vunpack.c.l.b16 %v7581
        %v8338 = vunpack.c.h.b16 %v7581
        %v8339 = vunpack.c.l.b16 %v7582
        %v8340 = vunpack.c.h.b16 %v7582
        %v8341 = vunpack.c.l.b16 %v7583
        %v8342 = vunpack.c.h.b16 %v7583
        %v8343 = vunpack.c.l.b16 %v7584
        %v8344 = vunpack.c.h.b16 %v7584
        %v8345 = vunpack.c.l.b16 %v7585
        %v8346 = vunpack.c.h.b16 %v7585
        %v8347 = vunpack.c.l.b16 %v7586
        %v8348 = vunpack.c.h.b16 %v7586
        %v8349 = vunpack.c.l.b16 %v7587
        %v8350 = vunpack.c.h.b16 %v7587
        %v8351 = vunpack.c.l.b16 %v7588
        %v8352 = vunpack.c.h.b16 %v7588
        %v8353 = vunpack.c.l.b16 %v7589
        %v8354 = vunpack.c.h.b16 %v7589
        %v8355 = vunpack.c.l.b16 %v7590
        %v8356 = vunpack.c.h.b16 %v7590
        %v8357 = vunpack.c.l.b16 %v7591
        %v8358 = vunpack.c.h.b16 %v7591
        %v8359 = vunpack.c.l.b16 %v7592
        %v8360 = vunpack.c.h.b16 %v7592
        %v8361 = vpack.c.b16 %v7857, %v7849
        %v8362 = vpack.c.b16 %v7858, %v7850
        %v8363 = vpack.c.b16 %v7859, %v7851
        %v8364 = vpack.c.b16 %v7860, %v7852
        %v8365 = vpack.c.b16 %v7861, %v7853
        %v8366 = vpack.c.b16 %v7862, %v7854
        %v8367 = vpack.c.b16 %v7863, %v7855
        %v8368 = vpack.c.b16 %v7864, %v7856
        %v8369 = vpack.c.b16 %v7873, %v7865
        %v8370 = vpack.c.b16 %v7874, %v7866
        %v8371 = vpack.c.b16 %v7875, %v7867
        %v8372 = vpack.c.b16 %v7876, %v7868
        %v8373 = vpack.c.b16 %v7877, %v7869
        %v8374 = vpack.c.b16 %v7878, %v7870
        %v8375 = vpack.c.b16 %v7879, %v7871
        %v8376 = vpack.c.b16 %v7880, %v7872
        %v8377 = vpack.c.b16 %v7889, %v7881
        %v8378 = vpack.c.b16 %v7890, %v7882
        %v8379 = vpack.c.b16 %v7891, %v7883
        %v8380 = vpack.c.b16 %v7892, %v7884
        %v8381 = vpack.c.b16 %v7893, %v7885
        %v8382 = vpack.c.b16 %v7894, %v7886
        %v8383 = vpack.c.b16 %v7895, %v7887
        %v8384 = vpack.c.b16 %v7896, %v7888
        %v8385 = vpack.c.b16 %v7905, %v7897
        %v8386 = vpack.c.b16 %v7906, %v7898
        %v8387 = vpack.c.b16 %v7907, %v7899
        %v8388 = vpack.c.b16 %v7908, %v7900
        %v8389 = vpack.c.b16 %v7909, %v7901
        %v8390 = vpack.c.b16 %v7910, %v7902
        %v8391 = vpack.c.b16 %v7911, %v7903
        %v8392 = vpack.c.b16 %v7912, %v7904
        %v8393 = vpack.c.b16 %v7921, %v7913
        %v8394 = vpack.c.b16 %v7922, %v7914
        %v8395 = vpack.c.b16 %v7923, %v7915
        %v8396 = vpack.c.b16 %v7924, %v7916
        %v8397 = vpack.c.b16 %v7925, %v7917
        %v8398 = vpack.c.b16 %v7926, %v7918
        %v8399 = vpack.c.b16 %v7927, %v7919
        %v8400 = vpack.c.b16 %v7928, %v7920
        %v8401 = vpack.c.b16 %v7937, %v7929
        %v8402 = vpack.c.b16 %v7938, %v7930
        %v8403 = vpack.c.b16 %v7939, %v7931
        %v8404 = vpack.c.b16 %v7940, %v7932
        %v8405 = vpack.c.b16 %v7941, %v7933
        %v8406 = vpack.c.b16 %v7942, %v7934
        %v8407 = vpack.c.b16 %v7943, %v7935
        %v8408 = vpack.c.b16 %v7944, %v7936
        %v8409 = vpack.c.b16 %v7953, %v7945
        %v8410 = vpack.c.b16 %v7954, %v7946
        %v8411 = vpack.c.b16 %v7955, %v7947
        %v8412 = vpack.c.b16 %v7956, %v7948
        %v8413 = vpack.c.b16 %v7957, %v7949
        %v8414 = vpack.c.b16 %v7958, %v7950
        %v8415 = vpack.c.b16 %v7959, %v7951
        %v8416 = vpack.c.b16 %v7960, %v7952
        %v8417 = vpack.c.b16 %v7969, %v7961
        %v8418 = vpack.c.b16 %v7970, %v7962
        %v8419 = vpack.c.b16 %v7971, %v7963
        %v8420 = vpack.c.b16 %v7972, %v7964
        %v8421 = vpack.c.b16 %v7973, %v7965
        %v8422 = vpack.c.b16 %v7974, %v7966
        %v8423 = vpack.c.b16 %v7975, %v7967
        %v8424 = vpack.c.b16 %v7976, %v7968
        %v8425 = vpack.c.b16 %v7985, %v7977
        %v8426 = vpack.c.b16 %v7986, %v7978
        %v8427 = vpack.c.b16 %v7987, %v7979
        %v8428 = vpack.c.b16 %v7988, %v7980
        %v8429 = vpack.c.b16 %v7989, %v7981
        %v8430 = vpack.c.b16 %v7990, %v7982
        %v8431 = vpack.c.b16 %v7991, %v7983
        %v8432 = vpack.c.b16 %v7992, %v7984
        %v8433 = vpack.c.b16 %v8001, %v7993
        %v8434 = vpack.c.b16 %v8002, %v7994
        %v8435 = vpack.c.b16 %v8003, %v7995
        %v8436 = vpack.c.b16 %v8004, %v7996
        %v8437 = vpack.c.b16 %v8005, %v7997
        %v8438 = vpack.c.b16 %v8006, %v7998
        %v8439 = vpack.c.b16 %v8007, %v7999
        %v8440 = vpack.c.b16 %v8008, %v8000
        %v8441 = vpack.c.b16 %v8017, %v8009
        %v8442 = vpack.c.b16 %v8018, %v8010
        %v8443 = vpack.c.b16 %v8019, %v8011
        %v8444 = vpack.c.b16 %v8020, %v8012
        %v8445 = vpack.c.b16 %v8021, %v8013
        %v8446 = vpack.c.b16 %v8022, %v8014
        %v8447 = vpack.c.b16 %v8023, %v8015
        %v8448 = vpack.c.b16 %v8024, %v8016
        %v8449 = vpack.c.b16 %v8033, %v8025
        %v8450 = vpack.c.b16 %v8034, %v8026
        %v8451 = vpack.c.b16 %v8035, %v8027
        %v8452 = vpack.c.b16 %v8036, %v8028
        %v8453 = vpack.c.b16 %v8037, %v8029
        %v8454 = vpack.c.b16 %v8038, %v8030
        %v8455 = vpack.c.b16 %v8039, %v8031
        %v8456 = vpack.c.b16 %v8040, %v8032
        %v8457 = vpack.c.b16 %v8049, %v8041
        %v8458 = vpack.c.b16 %v8050, %v8042
        %v8459 = vpack.c.b16 %v8051, %v8043
        %v8460 = vpack.c.b16 %v8052, %v8044
        %v8461 = vpack.c.b16 %v8053, %v8045
        %v8462 = vpack.c.b16 %v8054, %v8046
        %v8463 = vpack.c.b16 %v8055, %v8047
        %v8464 = vpack.c.b16 %v8056, %v8048
        %v8465 = vpack.c.b16 %v8065, %v8057
        %v8466 = vpack.c.b16 %v8066, %v8058
        %v8467 = vpack.c.b16 %v8067, %v8059
        %v8468 = vpack.c.b16 %v8068, %v8060
        %v8469 = vpack.c.b16 %v8069, %v8061
        %v8470 = vpack.c.b16 %v8070, %v8062
        %v8471 = vpack.c.b16 %v8071, %v8063
        %v8472 = vpack.c.b16 %v8072, %v8064
        %v8473 = vpack.c.b16 %v8081, %v8073
        %v8474 = vpack.c.b16 %v8082, %v8074
        %v8475 = vpack.c.b16 %v8083, %v8075
        %v8476 = vpack.c.b16 %v8084, %v8076
        %v8477 = vpack.c.b16 %v8085, %v8077
        %v8478 = vpack.c.b16 %v8086, %v8078
        %v8479 = vpack.c.b16 %v8087, %v8079
        %v8480 = vpack.c.b16 %v8088, %v8080
        %v8481 = vpack.c.b16 %v8097, %v8089
        %v8482 = vpack.c.b16 %v8098, %v8090
        %v8483 = vpack.c.b16 %v8099, %v8091
        %v8484 = vpack.c.b16 %v8100, %v8092
        %v8485 = vpack.c.b16 %v8101, %v8093
        %v8486 = vpack.c.b16 %v8102, %v8094
        %v8487 = vpack.c.b16 %v8103, %v8095
        %v8488 = vpack.c.b16 %v8104, %v8096
        %v8489 = vpack.c.b16 %v8113, %v8105
        %v8490 = vpack.c.b16 %v8114, %v8106
        %v8491 = vpack.c.b16 %v8115, %v8107
        %v8492 = vpack.c.b16 %v8116, %v8108
        %v8493 = vpack.c.b16 %v8117, %v8109
        %v8494 = vpack.c.b16 %v8118, %v8110
        %v8495 = vpack.c.b16 %v8119, %v8111
        %v8496 = vpack.c.b16 %v8120, %v8112
        %v8497 = vpack.c.b16 %v8129, %v8121
        %v8498 = vpack.c.b16 %v8130, %v8122
        %v8499 = vpack.c.b16 %v8131, %v8123
        %v8500 = vpack.c.b16 %v8132, %v8124
        %v8501 = vpack.c.b16 %v8133, %v8125
        %v8502 = vpack.c.b16 %v8134, %v8126
        %v8503 = vpack.c.b16 %v8135, %v8127
        %v8504 = vpack.c.b16 %v8136, %v8128
        %v8505 = vpack.c.b16 %v8145, %v8137
        %v8506 = vpack.c.b16 %v8146, %v8138
        %v8507 = vpack.c.b16 %v8147, %v8139
        %v8508 = vpack.c.b16 %v8148, %v8140
        %v8509 = vpack.c.b16 %v8149, %v8141
        %v8510 = vpack.c.b16 %v8150, %v8142
        %v8511 = vpack.c.b16 %v8151, %v8143
        %v8512 = vpack.c.b16 %v8152, %v8144
        %v8513 = vpack.c.b16 %v8161, %v8153
        %v8514 = vpack.c.b16 %v8162, %v8154
        %v8515 = vpack.c.b16 %v8163, %v8155
        %v8516 = vpack.c.b16 %v8164, %v8156
        %v8517 = vpack.c.b16 %v8165, %v8157
        %v8518 = vpack.c.b16 %v8166, %v8158
        %v8519 = vpack.c.b16 %v8167, %v8159
        %v8520 = vpack.c.b16 %v8168, %v8160
        %v8521 = vpack.c.b16 %v8177, %v8169
        %v8522 = vpack.c.b16 %v8178, %v8170
        %v8523 = vpack.c.b16 %v8179, %v8171
        %v8524 = vpack.c.b16 %v8180, %v8172
        %v8525 = vpack.c.b16 %v8181, %v8173
        %v8526 = vpack.c.b16 %v8182, %v8174
        %v8527 = vpack.c.b16 %v8183, %v8175
        %v8528 = vpack.c.b16 %v8184, %v8176
        %v8529 = vpack.c.b16 %v8193, %v8185
        %v8530 = vpack.c.b16 %v8194, %v8186
        %v8531 = vpack.c.b16 %v8195, %v8187
        %v8532 = vpack.c.b16 %v8196, %v8188
        %v8533 = vpack.c.b16 %v8197, %v8189
        %v8534 = vpack.c.b16 %v8198, %v8190
        %v8535 = vpack.c.b16 %v8199, %v8191
        %v8536 = vpack.c.b16 %v8200, %v8192
        %v8537 = vpack.c.b16 %v8209, %v8201
        %v8538 = vpack.c.b16 %v8210, %v8202
        %v8539 = vpack.c.b16 %v8211, %v8203
        %v8540 = vpack.c.b16 %v8212, %v8204
        %v8541 = vpack.c.b16 %v8213, %v8205
        %v8542 = vpack.c.b16 %v8214, %v8206
        %v8543 = vpack.c.b16 %v8215, %v8207
        %v8544 = vpack.c.b16 %v8216, %v8208
        %v8545 = vpack.c.b16 %v8225, %v8217
        %v8546 = vpack.c.b16 %v8226, %v8218
        %v8547 = vpack.c.b16 %v8227, %v8219
        %v8548 = vpack.c.b16 %v8228, %v8220
        %v8549 = vpack.c.b16 %v8229, %v8221
        %v8550 = vpack.c.b16 %v8230, %v8222
        %v8551 = vpack.c.b16 %v8231, %v8223
        %v8552 = vpack.c.b16 %v8232, %v8224
        %v8553 = vpack.c.b16 %v8241, %v8233
        %v8554 = vpack.c.b16 %v8242, %v8234
        %v8555 = vpack.c.b16 %v8243, %v8235
        %v8556 = vpack.c.b16 %v8244, %v8236
        %v8557 = vpack.c.b16 %v8245, %v8237
        %v8558 = vpack.c.b16 %v8246, %v8238
        %v8559 = vpack.c.b16 %v8247, %v8239
        %v8560 = vpack.c.b16 %v8248, %v8240
        %v8561 = vpack.c.b16 %v8257, %v8249
        %v8562 = vpack.c.b16 %v8258, %v8250
        %v8563 = vpack.c.b16 %v8259, %v8251
        %v8564 = vpack.c.b16 %v8260, %v8252
        %v8565 = vpack.c.b16 %v8261, %v8253
        %v8566 = vpack.c.b16 %v8262, %v8254
        %v8567 = vpack.c.b16 %v8263, %v8255
        %v8568 = vpack.c.b16 %v8264, %v8256
        %v8569 = vpack.c.b16 %v8273, %v8265
        %v8570 = vpack.c.b16 %v8274, %v8266
        %v8571 = vpack.c.b16 %v8275, %v8267
        %v8572 = vpack.c.b16 %v8276, %v8268
        %v8573 = vpack.c.b16 %v8277, %v8269
        %v8574 = vpack.c.b16 %v8278, %v8270
        %v8575 = vpack.c.b16 %v8279, %v8271
        %v8576 = vpack.c.b16 %v8280, %v8272
        %v8577 = vpack.c.b16 %v8289, %v8281
        %v8578 = vpack.c.b16 %v8290, %v8282
        %v8579 = vpack.c.b16 %v8291, %v8283
        %v8580 = vpack.c.b16 %v8292, %v8284
        %v8581 = vpack.c.b16 %v8293, %v8285
        %v8582 = vpack.c.b16 %v8294, %v8286
        %v8583 = vpack.c.b16 %v8295, %v8287
        %v8584 = vpack.c.b16 %v8296, %v8288
        %v8585 = vpack.c.b16 %v8305, %v8297
        %v8586 = vpack.c.b16 %v8306, %v8298
        %v8587 = vpack.c.b16 %v8307, %v8299
        %v8588 = vpack.c.b16 %v8308, %v8300
        %v8589 = vpack.c.b16 %v8309, %v8301
        %v8590 = vpack.c.b16 %v8310, %v8302
        %v8591 = vpack.c.b16 %v8311, %v8303
        %v8592 = vpack.c.b16 %v8312, %v8304
        %v8593 = vpack.c.b16 %v8321, %v8313
        %v8594 = vpack.c.b16 %v8322, %v8314
        %v8595 = vpack.c.b16 %v8323, %v8315
        %v8596 = vpack.c.b16 %v8324, %v8316
        %v8597 = vpack.c.b16 %v8325, %v8317
        %v8598 = vpack.c.b16 %v8326, %v8318
        %v8599 = vpack.c.b16 %v8327, %v8319
        %v8600 = vpack.c.b16 %v8328, %v8320
        %v8601 = vpack.c.b16 %v8337, %v8329
        %v8602 = vpack.c.b16 %v8338, %v8330
        %v8603 = vpack.c.b16 %v8339, %v8331
        %v8604 = vpack.c.b16 %v8340, %v8332
        %v8605 = vpack.c.b16 %v8341, %v8333
        %v8606 = vpack.c.b16 %v8342, %v8334
        %v8607 = vpack.c.b16 %v8343, %v8335
        %v8608 = vpack.c.b16 %v8344, %v8336
        %v8609 = vpack.c.b16 %v8353, %v8345
        %v8610 = vpack.c.b16 %v8354, %v8346
        %v8611 = vpack.c.b16 %v8355, %v8347
        %v8612 = vpack.c.b16 %v8356, %v8348
        %v8613 = vpack.c.b16 %v8357, %v8349
        %v8614 = vpack.c.b16 %v8358, %v8350
        %v8615 = vpack.c.b16 %v8359, %v8351
        %v8616 = vpack.c.b16 %v8360, %v8352
        %8873 = vmatprep.subr.bf16.mxu0 %v8418
        %8874 = vmatpush1.bf16.msra.mxu0 %v8417
        %8875 = vmatprep.subr.bf16.mxu0 %v8410
        %8876 = vmatpush1.bf16.msra.mxu0 %v8409
        %8877 = vmatprep.subr.bf16.mxu0 %v8402
        %8878 = vmatpush1.bf16.msra.mxu0 %v8401
        %8879 = vmatprep.subr.bf16.mxu0 %v8394
        %8880 = vmatpush1.bf16.msra.mxu0 %v8393
        %8881 = vmatprep.subr.bf16.mxu0 %v8386
        %8882 = vmatpush1.bf16.msra.mxu0 %v8385
        %8883 = vmatprep.subr.bf16.mxu0 %v8378
        %8884 = vmatpush1.bf16.msra.mxu0 %v8377
        %8885 = vmatprep.subr.bf16.mxu0 %v8370
        %8886 = vmatpush1.bf16.msra.mxu0 %v8369
        %8887 = vmatprep.subr.bf16.mxu0 %v8362
        %8888 = vmatpush1.bf16.msra.mxu0 %v8361
        %8889 = vmatprep.subr.bf16.mxu0 %v8482
        %8890 = vmatpush2.bf16.msra.mxu0 %v8481
        %8891 = vmatprep.subr.bf16.mxu0 %v8474
        %8892 = vmatpush2.bf16.msra.mxu0 %v8473
        %8893 = vmatprep.subr.bf16.mxu0 %v8466
        %8894 = vmatpush2.bf16.msra.mxu0 %v8465
        %8895 = vmatprep.subr.bf16.mxu0 %v8458
        %8896 = vmatpush2.bf16.msra.mxu0 %v8457
        %8897 = vmatprep.subr.bf16.mxu0 %v8450
        %8898 = vmatpush2.bf16.msra.mxu0 %v8449
        %8899 = vmatprep.subr.bf16.mxu0 %v8442
        %8900 = vmatpush2.bf16.msra.mxu0 %v8441
        %8901 = vmatprep.subr.bf16.mxu0 %v8434
        %8902 = vmatpush2.bf16.msra.mxu0 %v8433
        %8903 = vmatprep.subr.bf16.mxu0 %v8426
        %8904 = vmatpush2.bf16.msra.mxu0 %v8425
        %8905 = vmatprep.mubr.bf16.mxu0 %v7334
        %8906 = vmatmul.mubr.bf16.gmra.mxu0 %v7333
        %v8907 = vpop.f32.mrf.mxu0
        %v8908 = vadd.f32 %v1391, %v8907
        %v8909 = vpop.f32.mrf.mxu0
        %v8910 = vadd.f32 %v1395, %v8909
        %v8911 = vpop.f32.mrf.mxu0
        %v8912 = vadd.f32 %v1391, %v8911
        %v8913 = vpop.f32.mrf.mxu0
        %v8914 = vadd.f32 %v1395, %v8913
        %8915 = vdwg.mxu0
        %8916 = vmatprep.subr.bf16.mxu0 %v8546
        %8917 = vmatpush1.bf16.msra.mxu0 %v8545
        %8918 = vmatprep.subr.bf16.mxu0 %v8538
        %8919 = vmatpush1.bf16.msra.mxu0 %v8537
        %8920 = vmatprep.subr.bf16.mxu0 %v8530
        %8921 = vmatpush1.bf16.msra.mxu0 %v8529
        %8922 = vmatprep.subr.bf16.mxu0 %v8522
        %8923 = vmatpush1.bf16.msra.mxu0 %v8521
        %8924 = vmatprep.subr.bf16.mxu0 %v8514
        %8925 = vmatpush1.bf16.msra.mxu0 %v8513
        %8926 = vmatprep.subr.bf16.mxu0 %v8506
        %8927 = vmatpush1.bf16.msra.mxu0 %v8505
        %8928 = vmatprep.subr.bf16.mxu0 %v8498
        %8929 = vmatpush1.bf16.msra.mxu0 %v8497
        %8930 = vmatprep.subr.bf16.mxu0 %v8490
        %8931 = vmatpush1.bf16.msra.mxu0 %v8489
        %8932 = vmatprep.subr.bf16.mxu0 %v8610
        %8933 = vmatpush2.bf16.msra.mxu0 %v8609
        %8934 = vmatprep.subr.bf16.mxu0 %v8602
        %8935 = vmatpush2.bf16.msra.mxu0 %v8601
        %8936 = vmatprep.subr.bf16.mxu0 %v8594
        %8937 = vmatpush2.bf16.msra.mxu0 %v8593
        %8938 = vmatprep.subr.bf16.mxu0 %v8586
        %8939 = vmatpush2.bf16.msra.mxu0 %v8585
        %8940 = vmatprep.subr.bf16.mxu0 %v8578
        %8941 = vmatpush2.bf16.msra.mxu0 %v8577
        %8942 = vmatprep.subr.bf16.mxu0 %v8570
        %8943 = vmatpush2.bf16.msra.mxu0 %v8569
        %8944 = vmatprep.subr.bf16.mxu0 %v8562
        %8945 = vmatpush2.bf16.msra.mxu0 %v8561
        %8946 = vmatprep.subr.bf16.mxu0 %v8554
        %8947 = vmatpush2.bf16.msra.mxu0 %v8553
        %8948 = vmatprep.mubr.bf16.mxu0 %v7336
        %8949 = vmatmul.mubr.bf16.gmra.mxu0 %v7335
        %v8950 = vpop.f32.mrf.mxu0
        %v8951 = vadd.f32 %v8908, %v8950
        %v8952 = vpop.f32.mrf.mxu0
        %v8953 = vadd.f32 %v8910, %v8952
        %v8954 = vpop.f32.mrf.mxu0
        %v8955 = vadd.f32 %v8912, %v8954
        %v8956 = vpop.f32.mrf.mxu0
        %v8957 = vadd.f32 %v8914, %v8956
        %8958 = vdwg.mxu0
        %8959 = vmatprep.subr.bf16.mxu0 %v8420
        %8960 = vmatpush1.bf16.msra.mxu0 %v8419
        %8961 = vmatprep.subr.bf16.mxu0 %v8412
        %8962 = vmatpush1.bf16.msra.mxu0 %v8411
        %8963 = vmatprep.subr.bf16.mxu0 %v8404
        %8964 = vmatpush1.bf16.msra.mxu0 %v8403
        %8965 = vmatprep.subr.bf16.mxu0 %v8396
        %8966 = vmatpush1.bf16.msra.mxu0 %v8395
        %8967 = vmatprep.subr.bf16.mxu0 %v8388
        %8968 = vmatpush1.bf16.msra.mxu0 %v8387
        %8969 = vmatprep.subr.bf16.mxu0 %v8380
        %8970 = vmatpush1.bf16.msra.mxu0 %v8379
        %8971 = vmatprep.subr.bf16.mxu0 %v8372
        %8972 = vmatpush1.bf16.msra.mxu0 %v8371
        %8973 = vmatprep.subr.bf16.mxu0 %v8364
        %8974 = vmatpush1.bf16.msra.mxu0 %v8363
        %8975 = vmatprep.subr.bf16.mxu0 %v8484
        %8976 = vmatpush2.bf16.msra.mxu0 %v8483
        %8977 = vmatprep.subr.bf16.mxu0 %v8476
        %8978 = vmatpush2.bf16.msra.mxu0 %v8475
        %8979 = vmatprep.subr.bf16.mxu0 %v8468
        %8980 = vmatpush2.bf16.msra.mxu0 %v8467
        %8981 = vmatprep.subr.bf16.mxu0 %v8460
        %8982 = vmatpush2.bf16.msra.mxu0 %v8459
        %8983 = vmatprep.subr.bf16.mxu0 %v8452
        %8984 = vmatpush2.bf16.msra.mxu0 %v8451
        %8985 = vmatprep.subr.bf16.mxu0 %v8444
        %8986 = vmatpush2.bf16.msra.mxu0 %v8443
        %8987 = vmatprep.subr.bf16.mxu0 %v8436
        %8988 = vmatpush2.bf16.msra.mxu0 %v8435
        %8989 = vmatprep.subr.bf16.mxu0 %v8428
        %8990 = vmatpush2.bf16.msra.mxu0 %v8427
        %8991 = vmatprep.mubr.bf16.mxu0 %v7334
        %8992 = vmatmul.mubr.bf16.gmra.mxu0 %v7333
        %v8993 = vpop.f32.mrf.mxu0
        %v8994 = vadd.f32 %v1399, %v8993
        %v8995 = vpop.f32.mrf.mxu0
        %v8996 = vadd.f32 %v1403, %v8995
        %v8997 = vpop.f32.mrf.mxu0
        %v8998 = vadd.f32 %v1399, %v8997
        %v8999 = vpop.f32.mrf.mxu0
        %v9000 = vadd.f32 %v1403, %v8999
        %9001 = vdwg.mxu0
        %9002 = vmatprep.subr.bf16.mxu0 %v8548
        %9003 = vmatpush1.bf16.msra.mxu0 %v8547
        %9004 = vmatprep.subr.bf16.mxu0 %v8540
        %9005 = vmatpush1.bf16.msra.mxu0 %v8539
        %9006 = vmatprep.subr.bf16.mxu0 %v8532
        %9007 = vmatpush1.bf16.msra.mxu0 %v8531
        %9008 = vmatprep.subr.bf16.mxu0 %v8524
        %9009 = vmatpush1.bf16.msra.mxu0 %v8523
        %9010 = vmatprep.subr.bf16.mxu0 %v8516
        %9011 = vmatpush1.bf16.msra.mxu0 %v8515
        %9012 = vmatprep.subr.bf16.mxu0 %v8508
        %9013 = vmatpush1.bf16.msra.mxu0 %v8507
        %9014 = vmatprep.subr.bf16.mxu0 %v8500
        %9015 = vmatpush1.bf16.msra.mxu0 %v8499
        %9016 = vmatprep.subr.bf16.mxu0 %v8492
        %9017 = vmatpush1.bf16.msra.mxu0 %v8491
        %9018 = vmatprep.subr.bf16.mxu0 %v8612
        %9019 = vmatpush2.bf16.msra.mxu0 %v8611
        %9020 = vmatprep.subr.bf16.mxu0 %v8604
        %9021 = vmatpush2.bf16.msra.mxu0 %v8603
        %9022 = vmatprep.subr.bf16.mxu0 %v8596
        %9023 = vmatpush2.bf16.msra.mxu0 %v8595
        %9024 = vmatprep.subr.bf16.mxu0 %v8588
        %9025 = vmatpush2.bf16.msra.mxu0 %v8587
        %9026 = vmatprep.subr.bf16.mxu0 %v8580
        %9027 = vmatpush2.bf16.msra.mxu0 %v8579
        %9028 = vmatprep.subr.bf16.mxu0 %v8572
        %9029 = vmatpush2.bf16.msra.mxu0 %v8571
        %9030 = vmatprep.subr.bf16.mxu0 %v8564
        %9031 = vmatpush2.bf16.msra.mxu0 %v8563
        %9032 = vmatprep.subr.bf16.mxu0 %v8556
        %9033 = vmatpush2.bf16.msra.mxu0 %v8555
        %9034 = vmatprep.mubr.bf16.mxu0 %v7336
        %9035 = vmatmul.mubr.bf16.gmra.mxu0 %v7335
        %v9036 = vpop.f32.mrf.mxu0
        %v9037 = vadd.f32 %v8994, %v9036
        %v9038 = vpop.f32.mrf.mxu0
        %v9039 = vadd.f32 %v8996, %v9038
        %v9040 = vpop.f32.mrf.mxu0
        %v9041 = vadd.f32 %v8998, %v9040
        %v9042 = vpop.f32.mrf.mxu0
        %v9043 = vadd.f32 %v9000, %v9042
        %9044 = vdwg.mxu0
        %9045 = vmatprep.subr.bf16.mxu0 %v8422
        %9046 = vmatpush1.bf16.msra.mxu0 %v8421
        %9047 = vmatprep.subr.bf16.mxu0 %v8414
        %9048 = vmatpush1.bf16.msra.mxu0 %v8413
        %9049 = vmatprep.subr.bf16.mxu0 %v8406
        %9050 = vmatpush1.bf16.msra.mxu0 %v8405
        %9051 = vmatprep.subr.bf16.mxu0 %v8398
        %9052 = vmatpush1.bf16.msra.mxu0 %v8397
        %9053 = vmatprep.subr.bf16.mxu0 %v8390
        %9054 = vmatpush1.bf16.msra.mxu0 %v8389
        %9055 = vmatprep.subr.bf16.mxu0 %v8382
        %9056 = vmatpush1.bf16.msra.mxu0 %v8381
        %9057 = vmatprep.subr.bf16.mxu0 %v8374
        %9058 = vmatpush1.bf16.msra.mxu0 %v8373
        %9059 = vmatprep.subr.bf16.mxu0 %v8366
        %9060 = vmatpush1.bf16.msra.mxu0 %v8365
        %9061 = vmatprep.subr.bf16.mxu0 %v8486
        %9062 = vmatpush2.bf16.msra.mxu0 %v8485
        %9063 = vmatprep.subr.bf16.mxu0 %v8478
        %9064 = vmatpush2.bf16.msra.mxu0 %v8477
        %9065 = vmatprep.subr.bf16.mxu0 %v8470
        %9066 = vmatpush2.bf16.msra.mxu0 %v8469
        %9067 = vmatprep.subr.bf16.mxu0 %v8462
        %9068 = vmatpush2.bf16.msra.mxu0 %v8461
        %9069 = vmatprep.subr.bf16.mxu0 %v8454
        %9070 = vmatpush2.bf16.msra.mxu0 %v8453
        %9071 = vmatprep.subr.bf16.mxu0 %v8446
        %9072 = vmatpush2.bf16.msra.mxu0 %v8445
        %9073 = vmatprep.subr.bf16.mxu0 %v8438
        %9074 = vmatpush2.bf16.msra.mxu0 %v8437
        %9075 = vmatprep.subr.bf16.mxu0 %v8430
        %9076 = vmatpush2.bf16.msra.mxu0 %v8429
        %9077 = vmatprep.mubr.bf16.mxu0 %v7334
        %9078 = vmatmul.mubr.bf16.gmra.mxu0 %v7333
        %v9079 = vpop.f32.mrf.mxu0
        %v9080 = vadd.f32 %v1407, %v9079
        %v9081 = vpop.f32.mrf.mxu0
        %v9082 = vadd.f32 %v1411, %v9081
        %v9083 = vpop.f32.mrf.mxu0
        %v9084 = vadd.f32 %v1407, %v9083
        %v9085 = vpop.f32.mrf.mxu0
        %v9086 = vadd.f32 %v1411, %v9085
        %9087 = vdwg.mxu0
        %9088 = vmatprep.subr.bf16.mxu0 %v8550
        %9089 = vmatpush1.bf16.msra.mxu0 %v8549
        %9090 = vmatprep.subr.bf16.mxu0 %v8542
        %9091 = vmatpush1.bf16.msra.mxu0 %v8541
        %9092 = vmatprep.subr.bf16.mxu0 %v8534
        %9093 = vmatpush1.bf16.msra.mxu0 %v8533
        %9094 = vmatprep.subr.bf16.mxu0 %v8526
        %9095 = vmatpush1.bf16.msra.mxu0 %v8525
        %9096 = vmatprep.subr.bf16.mxu0 %v8518
        %9097 = vmatpush1.bf16.msra.mxu0 %v8517
        %9098 = vmatprep.subr.bf16.mxu0 %v8510
        %9099 = vmatpush1.bf16.msra.mxu0 %v8509
        %9100 = vmatprep.subr.bf16.mxu0 %v8502
        %9101 = vmatpush1.bf16.msra.mxu0 %v8501
        %9102 = vmatprep.subr.bf16.mxu0 %v8494
        %9103 = vmatpush1.bf16.msra.mxu0 %v8493
        %9104 = vmatprep.subr.bf16.mxu0 %v8614
        %9105 = vmatpush2.bf16.msra.mxu0 %v8613
        %9106 = vmatprep.subr.bf16.mxu0 %v8606
        %9107 = vmatpush2.bf16.msra.mxu0 %v8605
        %9108 = vmatprep.subr.bf16.mxu0 %v8598
        %9109 = vmatpush2.bf16.msra.mxu0 %v8597
        %9110 = vmatprep.subr.bf16.mxu0 %v8590
        %9111 = vmatpush2.bf16.msra.mxu0 %v8589
        %9112 = vmatprep.subr.bf16.mxu0 %v8582
        %9113 = vmatpush2.bf16.msra.mxu0 %v8581
        %9114 = vmatprep.subr.bf16.mxu0 %v8574
        %9115 = vmatpush2.bf16.msra.mxu0 %v8573
        %9116 = vmatprep.subr.bf16.mxu0 %v8566
        %9117 = vmatpush2.bf16.msra.mxu0 %v8565
        %9118 = vmatprep.subr.bf16.mxu0 %v8558
        %9119 = vmatpush2.bf16.msra.mxu0 %v8557
        %9120 = vmatprep.mubr.bf16.mxu0 %v7336
        %9121 = vmatmul.mubr.bf16.gmra.mxu0 %v7335
        %v9122 = vpop.f32.mrf.mxu0
        %v9123 = vadd.f32 %v9080, %v9122
        %v9124 = vpop.f32.mrf.mxu0
        %v9125 = vadd.f32 %v9082, %v9124
        %v9126 = vpop.f32.mrf.mxu0
        %v9127 = vadd.f32 %v9084, %v9126
        %v9128 = vpop.f32.mrf.mxu0
        %v9129 = vadd.f32 %v9086, %v9128
        %9130 = vdwg.mxu0
        %9131 = vmatprep.subr.bf16.mxu0 %v8424
        %9132 = vmatpush1.bf16.msra.mxu0 %v8423
        %9133 = vmatprep.subr.bf16.mxu0 %v8416
        %9134 = vmatpush1.bf16.msra.mxu0 %v8415
        %9135 = vmatprep.subr.bf16.mxu0 %v8408
        %9136 = vmatpush1.bf16.msra.mxu0 %v8407
        %9137 = vmatprep.subr.bf16.mxu0 %v8400
        %9138 = vmatpush1.bf16.msra.mxu0 %v8399
        %9139 = vmatprep.subr.bf16.mxu0 %v8392
        %9140 = vmatpush1.bf16.msra.mxu0 %v8391
        %9141 = vmatprep.subr.bf16.mxu0 %v8384
        %9142 = vmatpush1.bf16.msra.mxu0 %v8383
        %9143 = vmatprep.subr.bf16.mxu0 %v8376
        %9144 = vmatpush1.bf16.msra.mxu0 %v8375
        %9145 = vmatprep.subr.bf16.mxu0 %v8368
        %9146 = vmatpush1.bf16.msra.mxu0 %v8367
        %9147 = vmatprep.subr.bf16.mxu0 %v8488
        %9148 = vmatpush2.bf16.msra.mxu0 %v8487
        %9149 = vmatprep.subr.bf16.mxu0 %v8480
        %9150 = vmatpush2.bf16.msra.mxu0 %v8479
        %9151 = vmatprep.subr.bf16.mxu0 %v8472
        %9152 = vmatpush2.bf16.msra.mxu0 %v8471
        %9153 = vmatprep.subr.bf16.mxu0 %v8464
        %9154 = vmatpush2.bf16.msra.mxu0 %v8463
        %9155 = vmatprep.subr.bf16.mxu0 %v8456
        %9156 = vmatpush2.bf16.msra.mxu0 %v8455
        %9157 = vmatprep.subr.bf16.mxu0 %v8448
        %9158 = vmatpush2.bf16.msra.mxu0 %v8447
        %9159 = vmatprep.subr.bf16.mxu0 %v8440
        %9160 = vmatpush2.bf16.msra.mxu0 %v8439
        %9161 = vmatprep.subr.bf16.mxu0 %v8432
        %9162 = vmatpush2.bf16.msra.mxu0 %v8431
        %9163 = vmatprep.mubr.bf16.mxu0 %v7334
        %9164 = vmatmul.mubr.bf16.gmra.mxu0 %v7333
        %v9165 = vpop.f32.mrf.mxu0
        %v9166 = vadd.f32 %v1415, %v9165
        %v9167 = vpop.f32.mrf.mxu0
        %v9168 = vadd.f32 %v1419, %v9167
        %v9169 = vpop.f32.mrf.mxu0
        %v9170 = vadd.f32 %v1415, %v9169
        %v9171 = vpop.f32.mrf.mxu0
        %v9172 = vadd.f32 %v1419, %v9171
        %9173 = vdwg.mxu0
        %9174 = vmatprep.subr.bf16.mxu0 %v8552
        %9175 = vmatpush1.bf16.msra.mxu0 %v8551
        %9176 = vmatprep.subr.bf16.mxu0 %v8544
        %9177 = vmatpush1.bf16.msra.mxu0 %v8543
        %9178 = vmatprep.subr.bf16.mxu0 %v8536
        %9179 = vmatpush1.bf16.msra.mxu0 %v8535
        %9180 = vmatprep.subr.bf16.mxu0 %v8528
        %9181 = vmatpush1.bf16.msra.mxu0 %v8527
        %9182 = vmatprep.subr.bf16.mxu0 %v8520
        %9183 = vmatpush1.bf16.msra.mxu0 %v8519
        %9184 = vmatprep.subr.bf16.mxu0 %v8512
        %9185 = vmatpush1.bf16.msra.mxu0 %v8511
        %9186 = vmatprep.subr.bf16.mxu0 %v8504
        %9187 = vmatpush1.bf16.msra.mxu0 %v8503
        %9188 = vmatprep.subr.bf16.mxu0 %v8496
        %9189 = vmatpush1.bf16.msra.mxu0 %v8495
        %9190 = vmatprep.subr.bf16.mxu0 %v8616
        %9191 = vmatpush2.bf16.msra.mxu0 %v8615
        %9192 = vmatprep.subr.bf16.mxu0 %v8608
        %9193 = vmatpush2.bf16.msra.mxu0 %v8607
        %9194 = vmatprep.subr.bf16.mxu0 %v8600
        %9195 = vmatpush2.bf16.msra.mxu0 %v8599
        %9196 = vmatprep.subr.bf16.mxu0 %v8592
        %9197 = vmatpush2.bf16.msra.mxu0 %v8591
        %9198 = vmatprep.subr.bf16.mxu0 %v8584
        %9199 = vmatpush2.bf16.msra.mxu0 %v8583
        %9200 = vmatprep.subr.bf16.mxu0 %v8576
        %9201 = vmatpush2.bf16.msra.mxu0 %v8575
        %9202 = vmatprep.subr.bf16.mxu0 %v8568
        %9203 = vmatpush2.bf16.msra.mxu0 %v8567
        %9204 = vmatprep.subr.bf16.mxu0 %v8560
        %9205 = vmatpush2.bf16.msra.mxu0 %v8559
        %9206 = vmatprep.mubr.bf16.mxu0 %v7336
        %9207 = vmatmul.mubr.bf16.gmra.mxu0 %v7335
        %v9208 = vpop.f32.mrf.mxu0
        %v9209 = vadd.f32 %v9166, %v9208
        %v9210 = vpop.f32.mrf.mxu0
        %v9211 = vadd.f32 %v9168, %v9210
        %v9212 = vpop.f32.mrf.mxu0
        %v9213 = vadd.f32 %v9170, %v9212
        %v9214 = vpop.f32.mrf.mxu0
        %v9215 = vadd.f32 %v9172, %v9214
        %9216 = vdwg.mxu0
        %v9217 = vmul.f32 %v8951, 0.2
        %v9218 = vmul.f32 %v8953, 0.2
        %v9219 = vmul.f32 %v9037, 0.2
        %v9220 = vmul.f32 %v9039, 0.2
        %v9221 = vmul.f32 %v9123, 0.2
        %v9222 = vmul.f32 %v9125, 0.2
        %v9223 = vmul.f32 %v9209, 0.2
        %v9224 = vmul.f32 %v9211, 0.2
        %v9225 = vmul.f32 %v8955, 0.2
        %v9226 = vmul.f32 %v8957, 0.2
        %v9227 = vmul.f32 %v9041, 0.2
        %v9228 = vmul.f32 %v9043, 0.2
        %v9229 = vmul.f32 %v9127, 0.2
        %v9230 = vmul.f32 %v9129, 0.2
        %v9231 = vmul.f32 %v9213, 0.2
        %v9232 = vmul.f32 %v9215, 0.2
        %v9233 = vmax.f32 %v8951, %v9217
        %v9234 = vmax.f32 %v8953, %v9218
        %v9235 = vmax.f32 %v9037, %v9219
        %v9236 = vmax.f32 %v9039, %v9220
        %v9237 = vmax.f32 %v9123, %v9221
        %v9238 = vmax.f32 %v9125, %v9222
        %v9239 = vmax.f32 %v9209, %v9223
        %v9240 = vmax.f32 %v9211, %v9224
        %v9241 = vmax.f32 %v8955, %v9225
        %v9242 = vmax.f32 %v8957, %v9226
        %v9243 = vmax.f32 %v9041, %v9227
        %v9244 = vmax.f32 %v9043, %v9228
        %v9245 = vmax.f32 %v9127, %v9229
        %v9246 = vmax.f32 %v9129, %v9230
        %v9247 = vmax.f32 %v9213, %v9231
        %v9248 = vmax.f32 %v9215, %v9232
        %v9249 = vpack.c.bf16 %v9241, %v9233
        %v9250 = vpack.c.bf16 %v9242, %v9234
        %v9251 = vpack.c.bf16 %v9243, %v9235
        %v9252 = vpack.c.bf16 %v9244, %v9236
        %v9253 = vpack.c.bf16 %v9245, %v9237
        %v9254 = vpack.c.bf16 %v9246, %v9238
        %v9255 = vpack.c.bf16 %v9247, %v9239
        %v9256 = vpack.c.bf16 %v9248, %v9240
        %v9257 = vld [vmem:[#allocation12] sm:$0xff]
        %v9258 = vld [vmem:[#allocation12 + $0x8] sm:$0xff]
        %v9259 = vld [vmem:[#allocation12 + $0x10] sm:$0xff]
        %v9260 = vld [vmem:[#allocation12 + $0x18] sm:$0xf]
        %v9261 = vld [vmem:[#allocation12 + $0x1c] sm:$0xff]
        %v9262 = vld [vmem:[#allocation12 + $0x24] sm:$0xff]
        %v9263 = vld [vmem:[#allocation12 + $0x2c] sm:$0xff]
        %v9264 = vld [vmem:[#allocation12 + $0x34] sm:$0xf]
        %v9265 = vld [vmem:[#allocation12 + $0x38] sm:$0xff]
        %v9266 = vld [vmem:[#allocation12 + $0x40] sm:$0xff]
        %v9267 = vld [vmem:[#allocation12 + $0x48] sm:$0xff]
        %v9268 = vld [vmem:[#allocation12 + $0x50] sm:$0xf]
        %v9269 = vld [vmem:[#allocation12 + $0x54] sm:$0xff]
        %v9270 = vld [vmem:[#allocation12 + $0x5c] sm:$0xff]
        %v9271 = vld [vmem:[#allocation12 + $0x64] sm:$0xff]
        %v9272 = vld [vmem:[#allocation12 + $0x6c] sm:$0xf]
        %v9273 = vld [vmem:[#allocation12 + $0x70] sm:$0xff]
        %v9274 = vld [vmem:[#allocation12 + $0x78] sm:$0xff]
        %v9275 = vld [vmem:[#allocation12 + $0x80] sm:$0xff]
        %v9276 = vld [vmem:[#allocation12 + $0x88] sm:$0xf]
        %v9277 = vld [vmem:[#allocation12 + $0x8c] sm:$0xff]
        %v9278 = vld [vmem:[#allocation12 + $0x94] sm:$0xff]
        %v9279 = vld [vmem:[#allocation12 + $0x9c] sm:$0xff]
        %v9280 = vld [vmem:[#allocation12 + $0xa4] sm:$0xf]
        %v9281 = vld [vmem:[#allocation12 + $0xa8] sm:$0xff]
        %v9282 = vld [vmem:[#allocation12 + $0xb0] sm:$0xff]
        %v9283 = vld [vmem:[#allocation12 + $0xb8] sm:$0xff]
        %v9284 = vld [vmem:[#allocation12 + $0xc0] sm:$0xf]
        %v9285 = vld [vmem:[#allocation12 + $0xc4] sm:$0xff]
        %v9286 = vld [vmem:[#allocation12 + $0xcc] sm:$0xff]
        %v9287 = vld [vmem:[#allocation12 + $0xd4] sm:$0xff]
        %v9288 = vld [vmem:[#allocation12 + $0xdc] sm:$0xf]
        %v9289 = vld [vmem:[#allocation12 + $0xe0] sm:$0xff]
        %v9290 = vld [vmem:[#allocation12 + $0xe8] sm:$0xff]
        %v9291 = vld [vmem:[#allocation12 + $0xf0] sm:$0xff]
        %v9292 = vld [vmem:[#allocation12 + $0xf8] sm:$0xf]
        %v9293 = vld [vmem:[#allocation12 + $0xfc] sm:$0xff]
        %v9294 = vld [vmem:[#allocation12 + $0x104] sm:$0xff]
        %v9295 = vld [vmem:[#allocation12 + $0x10c] sm:$0xff]
        %v9296 = vld [vmem:[#allocation12 + $0x114] sm:$0xf]
        %v9297 = vld [vmem:[#allocation12 + $0x118] sm:$0xff]
        %v9298 = vld [vmem:[#allocation12 + $0x120] sm:$0xff]
        %v9299 = vld [vmem:[#allocation12 + $0x128] sm:$0xff]
        %v9300 = vld [vmem:[#allocation12 + $0x130] sm:$0xf]
        %v9301 = vld [vmem:[#allocation12 + $0x134] sm:$0xff]
        %v9302 = vld [vmem:[#allocation12 + $0x13c] sm:$0xff]
        %v9303 = vld [vmem:[#allocation12 + $0x144] sm:$0xff]
        %v9304 = vld [vmem:[#allocation12 + $0x14c] sm:$0xf]
        %v9305 = vld [vmem:[#allocation12 + $0x150] sm:$0xff]
        %v9306 = vld [vmem:[#allocation12 + $0x158] sm:$0xff]
        %v9307 = vld [vmem:[#allocation12 + $0x160] sm:$0xff]
        %v9308 = vld [vmem:[#allocation12 + $0x168] sm:$0xf]
        %v9309 = vld [vmem:[#allocation12 + $0x16c] sm:$0xff]
        %v9310 = vld [vmem:[#allocation12 + $0x174] sm:$0xff]
        %v9311 = vld [vmem:[#allocation12 + $0x17c] sm:$0xff]
        %v9312 = vld [vmem:[#allocation12 + $0x184] sm:$0xf]
        %v9313 = vld [vmem:[#allocation12 + $0x188] sm:$0xff]
        %v9314 = vld [vmem:[#allocation12 + $0x190] sm:$0xff]
        %v9315 = vld [vmem:[#allocation12 + $0x198] sm:$0xff]
        %v9316 = vld [vmem:[#allocation12 + $0x1a0] sm:$0xf]
        %v9317 = vld [vmem:[#allocation12 + $0x1a4] sm:$0xff]
        %v9318 = vld [vmem:[#allocation12 + $0x1ac] sm:$0xff]
        %v9319 = vld [vmem:[#allocation12 + $0x1b4] sm:$0xff]
        %v9320 = vld [vmem:[#allocation12 + $0x1bc] sm:$0xf]
        %v9321 = vld [vmem:[#allocation12 + $0x1c0] sm:$0xff]
        %v9322 = vld [vmem:[#allocation12 + $0x1c8] sm:$0xff]
        %v9323 = vld [vmem:[#allocation12 + $0x1d0] sm:$0xff]
        %v9324 = vld [vmem:[#allocation12 + $0x1d8] sm:$0xf]
        %v9325 = vld [vmem:[#allocation12 + $0x1dc] sm:$0xff]
        %v9326 = vld [vmem:[#allocation12 + $0x1e4] sm:$0xff]
        %v9327 = vld [vmem:[#allocation12 + $0x1ec] sm:$0xff]
        %v9328 = vld [vmem:[#allocation12 + $0x1f4] sm:$0xf]
        %v9329 = vld [vmem:[#allocation12 + $0x1f8] sm:$0xff]
        %v9330 = vld [vmem:[#allocation12 + $0x200] sm:$0xff]
        %v9331 = vld [vmem:[#allocation12 + $0x208] sm:$0xff]
        %v9332 = vld [vmem:[#allocation12 + $0x210] sm:$0xf]
        %v9333 = vld [vmem:[#allocation12 + $0x214] sm:$0xff]
        %v9334 = vld [vmem:[#allocation12 + $0x21c] sm:$0xff]
        %v9335 = vld [vmem:[#allocation12 + $0x224] sm:$0xff]
        %v9336 = vld [vmem:[#allocation12 + $0x22c] sm:$0xf]
        %v9337 = vld [vmem:[#allocation12 + $0x230] sm:$0xff]
        %v9338 = vld [vmem:[#allocation12 + $0x238] sm:$0xff]
        %v9339 = vld [vmem:[#allocation12 + $0x240] sm:$0xff]
        %v9340 = vld [vmem:[#allocation12 + $0x248] sm:$0xf]
        %v9341 = vld [vmem:[#allocation12 + $0x24c] sm:$0xff]
        %v9342 = vld [vmem:[#allocation12 + $0x254] sm:$0xff]
        %v9343 = vld [vmem:[#allocation12 + $0x25c] sm:$0xff]
        %v9344 = vld [vmem:[#allocation12 + $0x264] sm:$0xf]
        %v9345 = vld [vmem:[#allocation12 + $0x268] sm:$0xff]
        %v9346 = vld [vmem:[#allocation12 + $0x270] sm:$0xff]
        %v9347 = vld [vmem:[#allocation12 + $0x278] sm:$0xff]
        %v9348 = vld [vmem:[#allocation12 + $0x280] sm:$0xf]
        %v9349 = vld [vmem:[#allocation12 + $0x284] sm:$0xff]
        %v9350 = vld [vmem:[#allocation12 + $0x28c] sm:$0xff]
        %v9351 = vld [vmem:[#allocation12 + $0x294] sm:$0xff]
        %v9352 = vld [vmem:[#allocation12 + $0x29c] sm:$0xf]
        %v9353 = vld [vmem:[#allocation12 + $0x2a0] sm:$0xff]
        %v9354 = vld [vmem:[#allocation12 + $0x2a8] sm:$0xff]
        %v9355 = vld [vmem:[#allocation12 + $0x2b0] sm:$0xff]
        %v9356 = vld [vmem:[#allocation12 + $0x2b8] sm:$0xf]
        %v9357 = vld [vmem:[#allocation12 + $0x2bc] sm:$0xff]
        %v9358 = vld [vmem:[#allocation12 + $0x2c4] sm:$0xff]
        %v9359 = vld [vmem:[#allocation12 + $0x2cc] sm:$0xff]
        %v9360 = vld [vmem:[#allocation12 + $0x2d4] sm:$0xf]
        %v9361 = vld [vmem:[#allocation12 + $0x2d8] sm:$0xff]
        %v9362 = vld [vmem:[#allocation12 + $0x2e0] sm:$0xff]
        %v9363 = vld [vmem:[#allocation12 + $0x2e8] sm:$0xff]
        %v9364 = vld [vmem:[#allocation12 + $0x2f0] sm:$0xf]
        %v9365 = vld [vmem:[#allocation12 + $0x2f4] sm:$0xff]
        %v9366 = vld [vmem:[#allocation12 + $0x2fc] sm:$0xff]
        %v9367 = vld [vmem:[#allocation12 + $0x304] sm:$0xff]
        %v9368 = vld [vmem:[#allocation12 + $0x30c] sm:$0xf]
        %v9369 = vld [vmem:[#allocation12 + $0x310] sm:$0xff]
        %v9370 = vld [vmem:[#allocation12 + $0x318] sm:$0xff]
        %v9371 = vld [vmem:[#allocation12 + $0x320] sm:$0xff]
        %v9372 = vld [vmem:[#allocation12 + $0x328] sm:$0xf]
        %v9373 = vld [vmem:[#allocation12 + $0x32c] sm:$0xff]
        %v9374 = vld [vmem:[#allocation12 + $0x334] sm:$0xff]
        %v9375 = vld [vmem:[#allocation12 + $0x33c] sm:$0xff]
        %v9376 = vld [vmem:[#allocation12 + $0x344] sm:$0xf]
        %v9377 = vld [vmem:[#allocation12 + $0x348] sm:$0xff]
        %v9378 = vld [vmem:[#allocation12 + $0x350] sm:$0xff]
        %v9379 = vld [vmem:[#allocation12 + $0x358] sm:$0xff]
        %v9380 = vld [vmem:[#allocation12 + $0x360] sm:$0xf]
        %v9381 = vld [vmem:[#allocation12 + $0x364] sm:$0xff]
        %v9382 = vld [vmem:[#allocation12 + $0x36c] sm:$0xff]
        %v9383 = vld [vmem:[#allocation12 + $0x374] sm:$0xff]
        %v9384 = vld [vmem:[#allocation12 + $0x37c] sm:$0xf]
        %v9385 = vld [vmem:[#allocation12 + $0x380] sm:$0xff]
        %v9386 = vld [vmem:[#allocation12 + $0x388] sm:$0xff]
        %v9387 = vld [vmem:[#allocation12 + $0x390] sm:$0xff]
        %v9388 = vld [vmem:[#allocation12 + $0x398] sm:$0xf]
        %v9389 = vld [vmem:[#allocation12 + $0x39c] sm:$0xff]
        %v9390 = vld [vmem:[#allocation12 + $0x3a4] sm:$0xff]
        %v9391 = vld [vmem:[#allocation12 + $0x3ac] sm:$0xff]
        %v9392 = vld [vmem:[#allocation12 + $0x3b4] sm:$0xf]
        %v9393 = vld [vmem:[#allocation12 + $0x3b8] sm:$0xff]
        %v9394 = vld [vmem:[#allocation12 + $0x3c0] sm:$0xff]
        %v9395 = vld [vmem:[#allocation12 + $0x3c8] sm:$0xff]
        %v9396 = vld [vmem:[#allocation12 + $0x3d0] sm:$0xf]
        %v9397 = vld [vmem:[#allocation12 + $0x3d4] sm:$0xff]
        %v9398 = vld [vmem:[#allocation12 + $0x3dc] sm:$0xff]
        %v9399 = vld [vmem:[#allocation12 + $0x3e4] sm:$0xff]
        %v9400 = vld [vmem:[#allocation12 + $0x3ec] sm:$0xf]
        %v9401 = vld [vmem:[#allocation12 + $0x3f0] sm:$0xff]
        %v9402 = vld [vmem:[#allocation12 + $0x3f8] sm:$0xff]
        %v9403 = vld [vmem:[#allocation12 + $0x400] sm:$0xff]
        %v9404 = vld [vmem:[#allocation12 + $0x408] sm:$0xf]
        %v9405 = vld [vmem:[#allocation12 + $0x40c] sm:$0xff]
        %v9406 = vld [vmem:[#allocation12 + $0x414] sm:$0xff]
        %v9407 = vld [vmem:[#allocation12 + $0x41c] sm:$0xff]
        %v9408 = vld [vmem:[#allocation12 + $0x424] sm:$0xf]
        %v9409 = vld [vmem:[#allocation12 + $0x428] sm:$0xff]
        %v9410 = vld [vmem:[#allocation12 + $0x430] sm:$0xff]
        %v9411 = vld [vmem:[#allocation12 + $0x438] sm:$0xff]
        %v9412 = vld [vmem:[#allocation12 + $0x440] sm:$0xf]
        %v9413 = vld [vmem:[#allocation12 + $0x444] sm:$0xff]
        %v9414 = vld [vmem:[#allocation12 + $0x44c] sm:$0xff]
        %v9415 = vld [vmem:[#allocation12 + $0x454] sm:$0xff]
        %v9416 = vld [vmem:[#allocation12 + $0x45c] sm:$0xf]
        %v9417 = vld [vmem:[#allocation12 + $0x460] sm:$0xff]
        %v9418 = vld [vmem:[#allocation12 + $0x468] sm:$0xff]
        %v9419 = vld [vmem:[#allocation12 + $0x470] sm:$0xff]
        %v9420 = vld [vmem:[#allocation12 + $0x478] sm:$0xf]
        %v9421 = vld [vmem:[#allocation12 + $0x47c] sm:$0xff]
        %v9422 = vld [vmem:[#allocation12 + $0x484] sm:$0xff]
        %v9423 = vld [vmem:[#allocation12 + $0x48c] sm:$0xff]
        %v9424 = vld [vmem:[#allocation12 + $0x494] sm:$0xf]
        %v9425 = vld [vmem:[#allocation12 + $0x498] sm:$0xff]
        %v9426 = vld [vmem:[#allocation12 + $0x4a0] sm:$0xff]
        %v9427 = vld [vmem:[#allocation12 + $0x4a8] sm:$0xff]
        %v9428 = vld [vmem:[#allocation12 + $0x4b0] sm:$0xf]
        %v9429 = vld [vmem:[#allocation12 + $0x4b4] sm:$0xff]
        %v9430 = vld [vmem:[#allocation12 + $0x4bc] sm:$0xff]
        %v9431 = vld [vmem:[#allocation12 + $0x4c4] sm:$0xff]
        %v9432 = vld [vmem:[#allocation12 + $0x4cc] sm:$0xf]
        %v9433 = vld [vmem:[#allocation12 + $0x4d0] sm:$0xff]
        %v9434 = vld [vmem:[#allocation12 + $0x4d8] sm:$0xff]
        %v9435 = vld [vmem:[#allocation12 + $0x4e0] sm:$0xff]
        %v9436 = vld [vmem:[#allocation12 + $0x4e8] sm:$0xf]
        %v9437 = vld [vmem:[#allocation12 + $0x4ec] sm:$0xff]
        %v9438 = vld [vmem:[#allocation12 + $0x4f4] sm:$0xff]
        %v9439 = vld [vmem:[#allocation12 + $0x4fc] sm:$0xff]
        %v9440 = vld [vmem:[#allocation12 + $0x504] sm:$0xf]
        %v9441 = vld [vmem:[#allocation12 + $0x508] sm:$0xff]
        %v9442 = vld [vmem:[#allocation12 + $0x510] sm:$0xff]
        %v9443 = vld [vmem:[#allocation12 + $0x518] sm:$0xff]
        %v9444 = vld [vmem:[#allocation12 + $0x520] sm:$0xf]
        %v9445 = vld [vmem:[#allocation12 + $0x524] sm:$0xff]
        %v9446 = vld [vmem:[#allocation12 + $0x52c] sm:$0xff]
        %v9447 = vld [vmem:[#allocation12 + $0x534] sm:$0xff]
        %v9448 = vld [vmem:[#allocation12 + $0x53c] sm:$0xf]
        %v9449 = vld [vmem:[#allocation12 + $0x540] sm:$0xff]
        %v9450 = vld [vmem:[#allocation12 + $0x548] sm:$0xff]
        %v9451 = vld [vmem:[#allocation12 + $0x550] sm:$0xff]
        %v9452 = vld [vmem:[#allocation12 + $0x558] sm:$0xf]
        %v9453 = vld [vmem:[#allocation12 + $0x55c] sm:$0xff]
        %v9454 = vld [vmem:[#allocation12 + $0x564] sm:$0xff]
        %v9455 = vld [vmem:[#allocation12 + $0x56c] sm:$0xff]
        %v9456 = vld [vmem:[#allocation12 + $0x574] sm:$0xf]
        %v9457 = vld [vmem:[#allocation12 + $0x578] sm:$0xff]
        %v9458 = vld [vmem:[#allocation12 + $0x580] sm:$0xff]
        %v9459 = vld [vmem:[#allocation12 + $0x588] sm:$0xff]
        %v9460 = vld [vmem:[#allocation12 + $0x590] sm:$0xf]
        %v9461 = vld [vmem:[#allocation12 + $0x594] sm:$0xff]
        %v9462 = vld [vmem:[#allocation12 + $0x59c] sm:$0xff]
        %v9463 = vld [vmem:[#allocation12 + $0x5a4] sm:$0xff]
        %v9464 = vld [vmem:[#allocation12 + $0x5ac] sm:$0xf]
        %v9465 = vld [vmem:[#allocation12 + $0x5b0] sm:$0xff]
        %v9466 = vld [vmem:[#allocation12 + $0x5b8] sm:$0xff]
        %v9467 = vld [vmem:[#allocation12 + $0x5c0] sm:$0xff]
        %v9468 = vld [vmem:[#allocation12 + $0x5c8] sm:$0xf]
        %v9469 = vld [vmem:[#allocation12 + $0x5cc] sm:$0xff]
        %v9470 = vld [vmem:[#allocation12 + $0x5d4] sm:$0xff]
        %v9471 = vld [vmem:[#allocation12 + $0x5dc] sm:$0xff]
        %v9472 = vld [vmem:[#allocation12 + $0x5e4] sm:$0xf]
        %v9473 = vld [vmem:[#allocation12 + $0x5e8] sm:$0xff]
        %v9474 = vld [vmem:[#allocation12 + $0x5f0] sm:$0xff]
        %v9475 = vld [vmem:[#allocation12 + $0x5f8] sm:$0xff]
        %v9476 = vld [vmem:[#allocation12 + $0x600] sm:$0xf]
        %v9477 = vld [vmem:[#allocation12 + $0x604] sm:$0xff]
        %v9478 = vld [vmem:[#allocation12 + $0x60c] sm:$0xff]
        %v9479 = vld [vmem:[#allocation12 + $0x614] sm:$0xff]
        %v9480 = vld [vmem:[#allocation12 + $0x61c] sm:$0xf]
        %v9481 = vld [vmem:[#allocation12 + $0x620] sm:$0xff]
        %v9482 = vld [vmem:[#allocation12 + $0x628] sm:$0xff]
        %v9483 = vld [vmem:[#allocation12 + $0x630] sm:$0xff]
        %v9484 = vld [vmem:[#allocation12 + $0x638] sm:$0xf]
        %v9485 = vld [vmem:[#allocation12 + $0x63c] sm:$0xff]
        %v9486 = vld [vmem:[#allocation12 + $0x644] sm:$0xff]
        %v9487 = vld [vmem:[#allocation12 + $0x64c] sm:$0xff]
        %v9488 = vld [vmem:[#allocation12 + $0x654] sm:$0xf]
        %v9489 = vld [vmem:[#allocation12 + $0x658] sm:$0xff]
        %v9490 = vld [vmem:[#allocation12 + $0x660] sm:$0xff]
        %v9491 = vld [vmem:[#allocation12 + $0x668] sm:$0xff]
        %v9492 = vld [vmem:[#allocation12 + $0x670] sm:$0xf]
        %v9493 = vld [vmem:[#allocation12 + $0x674] sm:$0xff]
        %v9494 = vld [vmem:[#allocation12 + $0x67c] sm:$0xff]
        %v9495 = vld [vmem:[#allocation12 + $0x684] sm:$0xff]
        %v9496 = vld [vmem:[#allocation12 + $0x68c] sm:$0xf]
        %v9497 = vld [vmem:[#allocation12 + $0x690] sm:$0xff]
        %v9498 = vld [vmem:[#allocation12 + $0x698] sm:$0xff]
        %v9499 = vld [vmem:[#allocation12 + $0x6a0] sm:$0xff]
        %v9500 = vld [vmem:[#allocation12 + $0x6a8] sm:$0xf]
        %v9501 = vld [vmem:[#allocation12 + $0x6ac] sm:$0xff]
        %v9502 = vld [vmem:[#allocation12 + $0x6b4] sm:$0xff]
        %v9503 = vld [vmem:[#allocation12 + $0x6bc] sm:$0xff]
        %v9504 = vld [vmem:[#allocation12 + $0x6c4] sm:$0xf]
        %v9505 = vld [vmem:[#allocation12 + $0x6c8] sm:$0xff]
        %v9506 = vld [vmem:[#allocation12 + $0x6d0] sm:$0xff]
        %v9507 = vld [vmem:[#allocation12 + $0x6d8] sm:$0xff]
        %v9508 = vld [vmem:[#allocation12 + $0x6e0] sm:$0xf]
        %v9509 = vld [vmem:[#allocation12 + $0x6e4] sm:$0xff]
        %v9510 = vld [vmem:[#allocation12 + $0x6ec] sm:$0xff]
        %v9511 = vld [vmem:[#allocation12 + $0x6f4] sm:$0xff]
        %v9512 = vld [vmem:[#allocation12 + $0x6fc] sm:$0xf]
        %v9513 = vld [vmem:[#allocation12 + $0x700] sm:$0xff]
        %v9514 = vld [vmem:[#allocation12 + $0x708] sm:$0xff]
        %v9515 = vld [vmem:[#allocation12 + $0x710] sm:$0xff]
        %v9516 = vld [vmem:[#allocation12 + $0x718] sm:$0xf]
        %v9517 = vld [vmem:[#allocation12 + $0x71c] sm:$0xff]
        %v9518 = vld [vmem:[#allocation12 + $0x724] sm:$0xff]
        %v9519 = vld [vmem:[#allocation12 + $0x72c] sm:$0xff]
        %v9520 = vld [vmem:[#allocation12 + $0x734] sm:$0xf]
        %v9521 = vld [vmem:[#allocation12 + $0x738] sm:$0xff]
        %v9522 = vld [vmem:[#allocation12 + $0x740] sm:$0xff]
        %v9523 = vld [vmem:[#allocation12 + $0x748] sm:$0xff]
        %v9524 = vld [vmem:[#allocation12 + $0x750] sm:$0xf]
        %v9525 = vld [vmem:[#allocation12 + $0x754] sm:$0xff]
        %v9526 = vld [vmem:[#allocation12 + $0x75c] sm:$0xff]
        %v9527 = vld [vmem:[#allocation12 + $0x764] sm:$0xff]
        %v9528 = vld [vmem:[#allocation12 + $0x76c] sm:$0xf]
        %v9529 = vld [vmem:[#allocation12 + $0x770] sm:$0xff]
        %v9530 = vld [vmem:[#allocation12 + $0x778] sm:$0xff]
        %v9531 = vld [vmem:[#allocation12 + $0x780] sm:$0xff]
        %v9532 = vld [vmem:[#allocation12 + $0x788] sm:$0xf]
        %v9533 = vld [vmem:[#allocation12 + $0x78c] sm:$0xff]
        %v9534 = vld [vmem:[#allocation12 + $0x794] sm:$0xff]
        %v9535 = vld [vmem:[#allocation12 + $0x79c] sm:$0xff]
        %v9536 = vld [vmem:[#allocation12 + $0x7a4] sm:$0xf]
        %v9537 = vld [vmem:[#allocation12 + $0x7a8] sm:$0xff]
        %v9538 = vld [vmem:[#allocation12 + $0x7b0] sm:$0xff]
        %v9539 = vld [vmem:[#allocation12 + $0x7b8] sm:$0xff]
        %v9540 = vld [vmem:[#allocation12 + $0x7c0] sm:$0xf]
        %v9541 = vld [vmem:[#allocation12 + $0x7c4] sm:$0xff]
        %v9542 = vld [vmem:[#allocation12 + $0x7cc] sm:$0xff]
        %v9543 = vld [vmem:[#allocation12 + $0x7d4] sm:$0xff]
        %v9544 = vld [vmem:[#allocation12 + $0x7dc] sm:$0xf]
        %v9545 = vld [vmem:[#allocation12 + $0x7e0] sm:$0xff]
        %v9546 = vld [vmem:[#allocation12 + $0x7e8] sm:$0xff]
        %v9547 = vld [vmem:[#allocation12 + $0x7f0] sm:$0xff]
        %v9548 = vld [vmem:[#allocation12 + $0x7f8] sm:$0xf]
        %v9549 = vld [vmem:[#allocation12 + $0x7fc] sm:$0xff]
        %v9550 = vld [vmem:[#allocation12 + $0x804] sm:$0xff]
        %v9551 = vld [vmem:[#allocation12 + $0x80c] sm:$0xff]
        %v9552 = vld [vmem:[#allocation12 + $0x814] sm:$0xf]
        %v9553 = vld [vmem:[#allocation12 + $0x818] sm:$0xff]
        %v9554 = vld [vmem:[#allocation12 + $0x820] sm:$0xff]
        %v9555 = vld [vmem:[#allocation12 + $0x828] sm:$0xff]
        %v9556 = vld [vmem:[#allocation12 + $0x830] sm:$0xf]
        %v9557 = vld [vmem:[#allocation12 + $0x834] sm:$0xff]
        %v9558 = vld [vmem:[#allocation12 + $0x83c] sm:$0xff]
        %v9559 = vld [vmem:[#allocation12 + $0x844] sm:$0xff]
        %v9560 = vld [vmem:[#allocation12 + $0x84c] sm:$0xf]
        %v9561 = vld [vmem:[#allocation12 + $0x850] sm:$0xff]
        %v9562 = vld [vmem:[#allocation12 + $0x858] sm:$0xff]
        %v9563 = vld [vmem:[#allocation12 + $0x860] sm:$0xff]
        %v9564 = vld [vmem:[#allocation12 + $0x868] sm:$0xf]
        %v9565 = vld [vmem:[#allocation12 + $0x86c] sm:$0xff]
        %v9566 = vld [vmem:[#allocation12 + $0x874] sm:$0xff]
        %v9567 = vld [vmem:[#allocation12 + $0x87c] sm:$0xff]
        %v9568 = vld [vmem:[#allocation12 + $0x884] sm:$0xf]
        %v9569 = vld [vmem:[#allocation12 + $0x888] sm:$0xff]
        %v9570 = vld [vmem:[#allocation12 + $0x890] sm:$0xff]
        %v9571 = vld [vmem:[#allocation12 + $0x898] sm:$0xff]
        %v9572 = vld [vmem:[#allocation12 + $0x8a0] sm:$0xf]
        %v9573 = vld [vmem:[#allocation12 + $0x8a4] sm:$0xff]
        %v9574 = vld [vmem:[#allocation12 + $0x8ac] sm:$0xff]
        %v9575 = vld [vmem:[#allocation12 + $0x8b4] sm:$0xff]
        %v9576 = vld [vmem:[#allocation12 + $0x8bc] sm:$0xf]
        %v9577 = vld [vmem:[#allocation12 + $0x8c0] sm:$0xff]
        %v9578 = vld [vmem:[#allocation12 + $0x8c8] sm:$0xff]
        %v9579 = vld [vmem:[#allocation12 + $0x8d0] sm:$0xff]
        %v9580 = vld [vmem:[#allocation12 + $0x8d8] sm:$0xf]
        %v9581 = vld [vmem:[#allocation12 + $0x8dc] sm:$0xff]
        %v9582 = vld [vmem:[#allocation12 + $0x8e4] sm:$0xff]
        %v9583 = vld [vmem:[#allocation12 + $0x8ec] sm:$0xff]
        %v9584 = vld [vmem:[#allocation12 + $0x8f4] sm:$0xf]
        %v9585 = vld [vmem:[#allocation12 + $0x8f8] sm:$0xff]
        %v9586 = vld [vmem:[#allocation12 + $0x900] sm:$0xff]
        %v9587 = vld [vmem:[#allocation12 + $0x908] sm:$0xff]
        %v9588 = vld [vmem:[#allocation12 + $0x910] sm:$0xf]
        %v9589 = vld [vmem:[#allocation12 + $0x914] sm:$0xff]
        %v9590 = vld [vmem:[#allocation12 + $0x91c] sm:$0xff]
        %v9591 = vld [vmem:[#allocation12 + $0x924] sm:$0xff]
        %v9592 = vld [vmem:[#allocation12 + $0x92c] sm:$0xf]
        %v9593 = vld [vmem:[#allocation12 + $0x930] sm:$0xff]
        %v9594 = vld [vmem:[#allocation12 + $0x938] sm:$0xff]
        %v9595 = vld [vmem:[#allocation12 + $0x940] sm:$0xff]
        %v9596 = vld [vmem:[#allocation12 + $0x948] sm:$0xf]
        %v9597 = vld [vmem:[#allocation12 + $0x94c] sm:$0xff]
        %v9598 = vld [vmem:[#allocation12 + $0x954] sm:$0xff]
        %v9599 = vld [vmem:[#allocation12 + $0x95c] sm:$0xff]
        %v9600 = vld [vmem:[#allocation12 + $0x964] sm:$0xf]
        %v9601 = vld [vmem:[#allocation12 + $0x968] sm:$0xff]
        %v9602 = vld [vmem:[#allocation12 + $0x970] sm:$0xff]
        %v9603 = vld [vmem:[#allocation12 + $0x978] sm:$0xff]
        %v9604 = vld [vmem:[#allocation12 + $0x980] sm:$0xf]
        %v9605 = vld [vmem:[#allocation12 + $0x984] sm:$0xff]
        %v9606 = vld [vmem:[#allocation12 + $0x98c] sm:$0xff]
        %v9607 = vld [vmem:[#allocation12 + $0x994] sm:$0xff]
        %v9608 = vld [vmem:[#allocation12 + $0x99c] sm:$0xf]
        %v9609 = vld [vmem:[#allocation12 + $0x9a0] sm:$0xff]
        %v9610 = vld [vmem:[#allocation12 + $0x9a8] sm:$0xff]
        %v9611 = vld [vmem:[#allocation12 + $0x9b0] sm:$0xff]
        %v9612 = vld [vmem:[#allocation12 + $0x9b8] sm:$0xf]
        %v9613 = vld [vmem:[#allocation12 + $0x9bc] sm:$0xff]
        %v9614 = vld [vmem:[#allocation12 + $0x9c4] sm:$0xff]
        %v9615 = vld [vmem:[#allocation12 + $0x9cc] sm:$0xff]
        %v9616 = vld [vmem:[#allocation12 + $0x9d4] sm:$0xf]
        %v9617 = vld [vmem:[#allocation12 + $0x9d8] sm:$0xff]
        %v9618 = vld [vmem:[#allocation12 + $0x9e0] sm:$0xff]
        %v9619 = vld [vmem:[#allocation12 + $0x9e8] sm:$0xff]
        %v9620 = vld [vmem:[#allocation12 + $0x9f0] sm:$0xf]
        %v9621 = vld [vmem:[#allocation12 + $0x9f4] sm:$0xff]
        %v9622 = vld [vmem:[#allocation12 + $0x9fc] sm:$0xff]
        %v9623 = vld [vmem:[#allocation12 + $0xa04] sm:$0xff]
        %v9624 = vld [vmem:[#allocation12 + $0xa0c] sm:$0xf]
        %v9625 = vld [vmem:[#allocation12 + $0xa10] sm:$0xff]
        %v9626 = vld [vmem:[#allocation12 + $0xa18] sm:$0xff]
        %v9627 = vld [vmem:[#allocation12 + $0xa20] sm:$0xff]
        %v9628 = vld [vmem:[#allocation12 + $0xa28] sm:$0xf]
        %v9629 = vld [vmem:[#allocation12 + $0xa2c] sm:$0xff]
        %v9630 = vld [vmem:[#allocation12 + $0xa34] sm:$0xff]
        %v9631 = vld [vmem:[#allocation12 + $0xa3c] sm:$0xff]
        %v9632 = vld [vmem:[#allocation12 + $0xa44] sm:$0xf]
        %v9633 = vld [vmem:[#allocation12 + $0xa48] sm:$0xff]
        %v9634 = vld [vmem:[#allocation12 + $0xa50] sm:$0xff]
        %v9635 = vld [vmem:[#allocation12 + $0xa58] sm:$0xff]
        %v9636 = vld [vmem:[#allocation12 + $0xa60] sm:$0xf]
        %v9637 = vld [vmem:[#allocation12 + $0xa64] sm:$0xff]
        %v9638 = vld [vmem:[#allocation12 + $0xa6c] sm:$0xff]
        %v9639 = vld [vmem:[#allocation12 + $0xa74] sm:$0xff]
        %v9640 = vld [vmem:[#allocation12 + $0xa7c] sm:$0xf]
        %v9641 = vld [vmem:[#allocation12 + $0xa80] sm:$0xff]
        %v9642 = vld [vmem:[#allocation12 + $0xa88] sm:$0xff]
        %v9643 = vld [vmem:[#allocation12 + $0xa90] sm:$0xff]
        %v9644 = vld [vmem:[#allocation12 + $0xa98] sm:$0xf]
        %v9645 = vld [vmem:[#allocation12 + $0xa9c] sm:$0xff]
        %v9646 = vld [vmem:[#allocation12 + $0xaa4] sm:$0xff]
        %v9647 = vld [vmem:[#allocation12 + $0xaac] sm:$0xff]
        %v9648 = vld [vmem:[#allocation12 + $0xab4] sm:$0xf]
        %v9649 = vld [vmem:[#allocation12 + $0xab8] sm:$0xff]
        %v9650 = vld [vmem:[#allocation12 + $0xac0] sm:$0xff]
        %v9651 = vld [vmem:[#allocation12 + $0xac8] sm:$0xff]
        %v9652 = vld [vmem:[#allocation12 + $0xad0] sm:$0xf]
        %v9653 = vld [vmem:[#allocation12 + $0xad4] sm:$0xff]
        %v9654 = vld [vmem:[#allocation12 + $0xadc] sm:$0xff]
        %v9655 = vld [vmem:[#allocation12 + $0xae4] sm:$0xff]
        %v9656 = vld [vmem:[#allocation12 + $0xaec] sm:$0xf]
        %v9657 = vld [vmem:[#allocation12 + $0xaf0] sm:$0xff]
        %v9658 = vld [vmem:[#allocation12 + $0xaf8] sm:$0xff]
        %v9659 = vld [vmem:[#allocation12 + $0xb00] sm:$0xff]
        %v9660 = vld [vmem:[#allocation12 + $0xb08] sm:$0xf]
        %v9661 = vld [vmem:[#allocation12 + $0xb0c] sm:$0xff]
        %v9662 = vld [vmem:[#allocation12 + $0xb14] sm:$0xff]
        %v9663 = vld [vmem:[#allocation12 + $0xb1c] sm:$0xff]
        %v9664 = vld [vmem:[#allocation12 + $0xb24] sm:$0xf]
        %v9665 = vld [vmem:[#allocation12 + $0xb28] sm:$0xff]
        %v9666 = vld [vmem:[#allocation12 + $0xb30] sm:$0xff]
        %v9667 = vld [vmem:[#allocation12 + $0xb38] sm:$0xff]
        %v9668 = vld [vmem:[#allocation12 + $0xb40] sm:$0xf]
        %v9669 = vld [vmem:[#allocation12 + $0xb44] sm:$0xff]
        %v9670 = vld [vmem:[#allocation12 + $0xb4c] sm:$0xff]
        %v9671 = vld [vmem:[#allocation12 + $0xb54] sm:$0xff]
        %v9672 = vld [vmem:[#allocation12 + $0xb5c] sm:$0xf]
        %v9673 = vld [vmem:[#allocation12 + $0xb60] sm:$0xff]
        %v9674 = vld [vmem:[#allocation12 + $0xb68] sm:$0xff]
        %v9675 = vld [vmem:[#allocation12 + $0xb70] sm:$0xff]
        %v9676 = vld [vmem:[#allocation12 + $0xb78] sm:$0xf]
        %v9677 = vld [vmem:[#allocation12 + $0xb7c] sm:$0xff]
        %v9678 = vld [vmem:[#allocation12 + $0xb84] sm:$0xff]
        %v9679 = vld [vmem:[#allocation12 + $0xb8c] sm:$0xff]
        %v9680 = vld [vmem:[#allocation12 + $0xb94] sm:$0xf]
        %v9681 = vld [vmem:[#allocation12 + $0xb98] sm:$0xff]
        %v9682 = vld [vmem:[#allocation12 + $0xba0] sm:$0xff]
        %v9683 = vld [vmem:[#allocation12 + $0xba8] sm:$0xff]
        %v9684 = vld [vmem:[#allocation12 + $0xbb0] sm:$0xf]
        %v9685 = vld [vmem:[#allocation12 + $0xbb4] sm:$0xff]
        %v9686 = vld [vmem:[#allocation12 + $0xbbc] sm:$0xff]
        %v9687 = vld [vmem:[#allocation12 + $0xbc4] sm:$0xff]
        %v9688 = vld [vmem:[#allocation12 + $0xbcc] sm:$0xf]
        %v9689 = vld [vmem:[#allocation12 + $0xbd0] sm:$0xff]
        %v9690 = vld [vmem:[#allocation12 + $0xbd8] sm:$0xff]
        %v9691 = vld [vmem:[#allocation12 + $0xbe0] sm:$0xff]
        %v9692 = vld [vmem:[#allocation12 + $0xbe8] sm:$0xf]
        %v9693 = vld [vmem:[#allocation12 + $0xbec] sm:$0xff]
        %v9694 = vld [vmem:[#allocation12 + $0xbf4] sm:$0xff]
        %v9695 = vld [vmem:[#allocation12 + $0xbfc] sm:$0xff]
        %v9696 = vld [vmem:[#allocation12 + $0xc04] sm:$0xf]
        %v9697 = vld [vmem:[#allocation12 + $0xc08] sm:$0xff]
        %v9698 = vld [vmem:[#allocation12 + $0xc10] sm:$0xff]
        %v9699 = vld [vmem:[#allocation12 + $0xc18] sm:$0xff]
        %v9700 = vld [vmem:[#allocation12 + $0xc20] sm:$0xf]
        %v9701 = vld [vmem:[#allocation12 + $0xc24] sm:$0xff]
        %v9702 = vld [vmem:[#allocation12 + $0xc2c] sm:$0xff]
        %v9703 = vld [vmem:[#allocation12 + $0xc34] sm:$0xff]
        %v9704 = vld [vmem:[#allocation12 + $0xc3c] sm:$0xf]
        %v9705 = vld [vmem:[#allocation12 + $0xc40] sm:$0xff]
        %v9706 = vld [vmem:[#allocation12 + $0xc48] sm:$0xff]
        %v9707 = vld [vmem:[#allocation12 + $0xc50] sm:$0xff]
        %v9708 = vld [vmem:[#allocation12 + $0xc58] sm:$0xf]
        %v9709 = vld [vmem:[#allocation12 + $0xc5c] sm:$0xff]
        %v9710 = vld [vmem:[#allocation12 + $0xc64] sm:$0xff]
        %v9711 = vld [vmem:[#allocation12 + $0xc6c] sm:$0xff]
        %v9712 = vld [vmem:[#allocation12 + $0xc74] sm:$0xf]
        %v9713 = vld [vmem:[#allocation12 + $0xc78] sm:$0xff]
        %v9714 = vld [vmem:[#allocation12 + $0xc80] sm:$0xff]
        %v9715 = vld [vmem:[#allocation12 + $0xc88] sm:$0xff]
        %v9716 = vld [vmem:[#allocation12 + $0xc90] sm:$0xf]
        %v9717 = vld [vmem:[#allocation12 + $0xc94] sm:$0xff]
        %v9718 = vld [vmem:[#allocation12 + $0xc9c] sm:$0xff]
        %v9719 = vld [vmem:[#allocation12 + $0xca4] sm:$0xff]
        %v9720 = vld [vmem:[#allocation12 + $0xcac] sm:$0xf]
        %v9721 = vld [vmem:[#allocation12 + $0xcb0] sm:$0xff]
        %v9722 = vld [vmem:[#allocation12 + $0xcb8] sm:$0xff]
        %v9723 = vld [vmem:[#allocation12 + $0xcc0] sm:$0xff]
        %v9724 = vld [vmem:[#allocation12 + $0xcc8] sm:$0xf]
        %v9725 = vld [vmem:[#allocation12 + $0xccc] sm:$0xff]
        %v9726 = vld [vmem:[#allocation12 + $0xcd4] sm:$0xff]
        %v9727 = vld [vmem:[#allocation12 + $0xcdc] sm:$0xff]
        %v9728 = vld [vmem:[#allocation12 + $0xce4] sm:$0xf]
        %v9729 = vld [vmem:[#allocation12 + $0xce8] sm:$0xff]
        %v9730 = vld [vmem:[#allocation12 + $0xcf0] sm:$0xff]
        %v9731 = vld [vmem:[#allocation12 + $0xcf8] sm:$0xff]
        %v9732 = vld [vmem:[#allocation12 + $0xd00] sm:$0xf]
        %v9733 = vld [vmem:[#allocation12 + $0xd04] sm:$0xff]
        %v9734 = vld [vmem:[#allocation12 + $0xd0c] sm:$0xff]
        %v9735 = vld [vmem:[#allocation12 + $0xd14] sm:$0xff]
        %v9736 = vld [vmem:[#allocation12 + $0xd1c] sm:$0xf]
        %v9737 = vld [vmem:[#allocation12 + $0xd20] sm:$0xff]
        %v9738 = vld [vmem:[#allocation12 + $0xd28] sm:$0xff]
        %v9739 = vld [vmem:[#allocation12 + $0xd30] sm:$0xff]
        %v9740 = vld [vmem:[#allocation12 + $0xd38] sm:$0xf]
        %v9741 = vld [vmem:[#allocation12 + $0xd3c] sm:$0xff]
        %v9742 = vld [vmem:[#allocation12 + $0xd44] sm:$0xff]
        %v9743 = vld [vmem:[#allocation12 + $0xd4c] sm:$0xff]
        %v9744 = vld [vmem:[#allocation12 + $0xd54] sm:$0xf]
        %v9745 = vld [vmem:[#allocation12 + $0xd58] sm:$0xff]
        %v9746 = vld [vmem:[#allocation12 + $0xd60] sm:$0xff]
        %v9747 = vld [vmem:[#allocation12 + $0xd68] sm:$0xff]
        %v9748 = vld [vmem:[#allocation12 + $0xd70] sm:$0xf]
        %v9749 = vld [vmem:[#allocation12 + $0xd74] sm:$0xff]
        %v9750 = vld [vmem:[#allocation12 + $0xd7c] sm:$0xff]
        %v9751 = vld [vmem:[#allocation12 + $0xd84] sm:$0xff]
        %v9752 = vld [vmem:[#allocation12 + $0xd8c] sm:$0xf]
        %v9753 = vld [vmem:[#allocation12 + $0xd90] sm:$0xff]
        %v9754 = vld [vmem:[#allocation12 + $0xd98] sm:$0xff]
        %v9755 = vld [vmem:[#allocation12 + $0xda0] sm:$0xff]
        %v9756 = vld [vmem:[#allocation12 + $0xda8] sm:$0xf]
        %v9757 = vld [vmem:[#allocation12 + $0xdac] sm:$0xff]
        %v9758 = vld [vmem:[#allocation12 + $0xdb4] sm:$0xff]
        %v9759 = vld [vmem:[#allocation12 + $0xdbc] sm:$0xff]
        %v9760 = vld [vmem:[#allocation12 + $0xdc4] sm:$0xf]
        %v9761 = vld [vmem:[#allocation12 + $0xdc8] sm:$0xff]
        %v9762 = vld [vmem:[#allocation12 + $0xdd0] sm:$0xff]
        %v9763 = vld [vmem:[#allocation12 + $0xdd8] sm:$0xff]
        %v9764 = vld [vmem:[#allocation12 + $0xde0] sm:$0xf]
        %v9765 = vld [vmem:[#allocation12 + $0xde4] sm:$0xff]
        %v9766 = vld [vmem:[#allocation12 + $0xdec] sm:$0xff]
        %v9767 = vld [vmem:[#allocation12 + $0xdf4] sm:$0xff]
        %v9768 = vld [vmem:[#allocation12 + $0xdfc] sm:$0xf]
        %v10281 = vunpack.c.l.b16 %v9257
        %v10282 = vunpack.c.h.b16 %v9257
        %v10283 = vunpack.c.l.b16 %v9258
        %v10284 = vunpack.c.h.b16 %v9258
        %v10285 = vunpack.c.l.b16 %v9259
        %v10286 = vunpack.c.h.b16 %v9259
        %v10287 = vunpack.c.l.b16 %v9260
        %v10288 = vunpack.c.l.b16 %v9261
        %v10289 = vunpack.c.h.b16 %v9261
        %v10290 = vunpack.c.l.b16 %v9262
        %v10291 = vunpack.c.h.b16 %v9262
        %v10292 = vunpack.c.l.b16 %v9263
        %v10293 = vunpack.c.h.b16 %v9263
        %v10294 = vunpack.c.l.b16 %v9264
        %v10295 = vunpack.c.l.b16 %v9265
        %v10296 = vunpack.c.h.b16 %v9265
        %v10297 = vunpack.c.l.b16 %v9266
        %v10298 = vunpack.c.h.b16 %v9266
        %v10299 = vunpack.c.l.b16 %v9267
        %v10300 = vunpack.c.h.b16 %v9267
        %v10301 = vunpack.c.l.b16 %v9268
        %v10302 = vunpack.c.l.b16 %v9269
        %v10303 = vunpack.c.h.b16 %v9269
        %v10304 = vunpack.c.l.b16 %v9270
        %v10305 = vunpack.c.h.b16 %v9270
        %v10306 = vunpack.c.l.b16 %v9271
        %v10307 = vunpack.c.h.b16 %v9271
        %v10308 = vunpack.c.l.b16 %v9272
        %v10309 = vunpack.c.l.b16 %v9273
        %v10310 = vunpack.c.h.b16 %v9273
        %v10311 = vunpack.c.l.b16 %v9274
        %v10312 = vunpack.c.h.b16 %v9274
        %v10313 = vunpack.c.l.b16 %v9275
        %v10314 = vunpack.c.h.b16 %v9275
        %v10315 = vunpack.c.l.b16 %v9276
        %v10316 = vunpack.c.l.b16 %v9277
        %v10317 = vunpack.c.h.b16 %v9277
        %v10318 = vunpack.c.l.b16 %v9278
        %v10319 = vunpack.c.h.b16 %v9278
        %v10320 = vunpack.c.l.b16 %v9279
        %v10321 = vunpack.c.h.b16 %v9279
        %v10322 = vunpack.c.l.b16 %v9280
        %v10323 = vunpack.c.l.b16 %v9281
        %v10324 = vunpack.c.h.b16 %v9281
        %v10325 = vunpack.c.l.b16 %v9282
        %v10326 = vunpack.c.h.b16 %v9282
        %v10327 = vunpack.c.l.b16 %v9283
        %v10328 = vunpack.c.h.b16 %v9283
        %v10329 = vunpack.c.l.b16 %v9284
        %v10330 = vunpack.c.l.b16 %v9285
        %v10331 = vunpack.c.h.b16 %v9285
        %v10332 = vunpack.c.l.b16 %v9286
        %v10333 = vunpack.c.h.b16 %v9286
        %v10334 = vunpack.c.l.b16 %v9287
        %v10335 = vunpack.c.h.b16 %v9287
        %v10336 = vunpack.c.l.b16 %v9288
        %v10337 = vunpack.c.l.b16 %v9289
        %v10338 = vunpack.c.h.b16 %v9289
        %v10339 = vunpack.c.l.b16 %v9290
        %v10340 = vunpack.c.h.b16 %v9290
        %v10341 = vunpack.c.l.b16 %v9291
        %v10342 = vunpack.c.h.b16 %v9291
        %v10343 = vunpack.c.l.b16 %v9292
        %v10344 = vunpack.c.l.b16 %v9293
        %v10345 = vunpack.c.h.b16 %v9293
        %v10346 = vunpack.c.l.b16 %v9294
        %v10347 = vunpack.c.h.b16 %v9294
        %v10348 = vunpack.c.l.b16 %v9295
        %v10349 = vunpack.c.h.b16 %v9295
        %v10350 = vunpack.c.l.b16 %v9296
        %v10351 = vunpack.c.l.b16 %v9297
        %v10352 = vunpack.c.h.b16 %v9297
        %v10353 = vunpack.c.l.b16 %v9298
        %v10354 = vunpack.c.h.b16 %v9298
        %v10355 = vunpack.c.l.b16 %v9299
        %v10356 = vunpack.c.h.b16 %v9299
        %v10357 = vunpack.c.l.b16 %v9300
        %v10358 = vunpack.c.l.b16 %v9301
        %v10359 = vunpack.c.h.b16 %v9301
        %v10360 = vunpack.c.l.b16 %v9302
        %v10361 = vunpack.c.h.b16 %v9302
        %v10362 = vunpack.c.l.b16 %v9303
        %v10363 = vunpack.c.h.b16 %v9303
        %v10364 = vunpack.c.l.b16 %v9304
        %v10365 = vunpack.c.l.b16 %v9305
        %v10366 = vunpack.c.h.b16 %v9305
        %v10367 = vunpack.c.l.b16 %v9306
        %v10368 = vunpack.c.h.b16 %v9306
        %v10369 = vunpack.c.l.b16 %v9307
        %v10370 = vunpack.c.h.b16 %v9307
        %v10371 = vunpack.c.l.b16 %v9308
        %v10372 = vunpack.c.l.b16 %v9309
        %v10373 = vunpack.c.h.b16 %v9309
        %v10374 = vunpack.c.l.b16 %v9310
        %v10375 = vunpack.c.h.b16 %v9310
        %v10376 = vunpack.c.l.b16 %v9311
        %v10377 = vunpack.c.h.b16 %v9311
        %v10378 = vunpack.c.l.b16 %v9312
        %v10379 = vunpack.c.l.b16 %v9313
        %v10380 = vunpack.c.h.b16 %v9313
        %v10381 = vunpack.c.l.b16 %v9314
        %v10382 = vunpack.c.h.b16 %v9314
        %v10383 = vunpack.c.l.b16 %v9315
        %v10384 = vunpack.c.h.b16 %v9315
        %v10385 = vunpack.c.l.b16 %v9316
        %v10386 = vunpack.c.l.b16 %v9317
        %v10387 = vunpack.c.h.b16 %v9317
        %v10388 = vunpack.c.l.b16 %v9318
        %v10389 = vunpack.c.h.b16 %v9318
        %v10390 = vunpack.c.l.b16 %v9319
        %v10391 = vunpack.c.h.b16 %v9319
        %v10392 = vunpack.c.l.b16 %v9320
        %v10393 = vunpack.c.l.b16 %v9321
        %v10394 = vunpack.c.h.b16 %v9321
        %v10395 = vunpack.c.l.b16 %v9322
        %v10396 = vunpack.c.h.b16 %v9322
        %v10397 = vunpack.c.l.b16 %v9323
        %v10398 = vunpack.c.h.b16 %v9323
        %v10399 = vunpack.c.l.b16 %v9324
        %v10400 = vunpack.c.l.b16 %v9325
        %v10401 = vunpack.c.h.b16 %v9325
        %v10402 = vunpack.c.l.b16 %v9326
        %v10403 = vunpack.c.h.b16 %v9326
        %v10404 = vunpack.c.l.b16 %v9327
        %v10405 = vunpack.c.h.b16 %v9327
        %v10406 = vunpack.c.l.b16 %v9328
        %v10407 = vunpack.c.l.b16 %v9329
        %v10408 = vunpack.c.h.b16 %v9329
        %v10409 = vunpack.c.l.b16 %v9330
        %v10410 = vunpack.c.h.b16 %v9330
        %v10411 = vunpack.c.l.b16 %v9331
        %v10412 = vunpack.c.h.b16 %v9331
        %v10413 = vunpack.c.l.b16 %v9332
        %v10414 = vunpack.c.l.b16 %v9333
        %v10415 = vunpack.c.h.b16 %v9333
        %v10416 = vunpack.c.l.b16 %v9334
        %v10417 = vunpack.c.h.b16 %v9334
        %v10418 = vunpack.c.l.b16 %v9335
        %v10419 = vunpack.c.h.b16 %v9335
        %v10420 = vunpack.c.l.b16 %v9336
        %v10421 = vunpack.c.l.b16 %v9337
        %v10422 = vunpack.c.h.b16 %v9337
        %v10423 = vunpack.c.l.b16 %v9338
        %v10424 = vunpack.c.h.b16 %v9338
        %v10425 = vunpack.c.l.b16 %v9339
        %v10426 = vunpack.c.h.b16 %v9339
        %v10427 = vunpack.c.l.b16 %v9340
        %v10428 = vunpack.c.l.b16 %v9341
        %v10429 = vunpack.c.h.b16 %v9341
        %v10430 = vunpack.c.l.b16 %v9342
        %v10431 = vunpack.c.h.b16 %v9342
        %v10432 = vunpack.c.l.b16 %v9343
        %v10433 = vunpack.c.h.b16 %v9343
        %v10434 = vunpack.c.l.b16 %v9344
        %v10435 = vunpack.c.l.b16 %v9345
        %v10436 = vunpack.c.h.b16 %v9345
        %v10437 = vunpack.c.l.b16 %v9346
        %v10438 = vunpack.c.h.b16 %v9346
        %v10439 = vunpack.c.l.b16 %v9347
        %v10440 = vunpack.c.h.b16 %v9347
        %v10441 = vunpack.c.l.b16 %v9348
        %v10442 = vunpack.c.l.b16 %v9349
        %v10443 = vunpack.c.h.b16 %v9349
        %v10444 = vunpack.c.l.b16 %v9350
        %v10445 = vunpack.c.h.b16 %v9350
        %v10446 = vunpack.c.l.b16 %v9351
        %v10447 = vunpack.c.h.b16 %v9351
        %v10448 = vunpack.c.l.b16 %v9352
        %v10449 = vunpack.c.l.b16 %v9353
        %v10450 = vunpack.c.h.b16 %v9353
        %v10451 = vunpack.c.l.b16 %v9354
        %v10452 = vunpack.c.h.b16 %v9354
        %v10453 = vunpack.c.l.b16 %v9355
        %v10454 = vunpack.c.h.b16 %v9355
        %v10455 = vunpack.c.l.b16 %v9356
        %v10456 = vunpack.c.l.b16 %v9357
        %v10457 = vunpack.c.h.b16 %v9357
        %v10458 = vunpack.c.l.b16 %v9358
        %v10459 = vunpack.c.h.b16 %v9358
        %v10460 = vunpack.c.l.b16 %v9359
        %v10461 = vunpack.c.h.b16 %v9359
        %v10462 = vunpack.c.l.b16 %v9360
        %v10463 = vunpack.c.l.b16 %v9361
        %v10464 = vunpack.c.h.b16 %v9361
        %v10465 = vunpack.c.l.b16 %v9362
        %v10466 = vunpack.c.h.b16 %v9362
        %v10467 = vunpack.c.l.b16 %v9363
        %v10468 = vunpack.c.h.b16 %v9363
        %v10469 = vunpack.c.l.b16 %v9364
        %v10470 = vunpack.c.l.b16 %v9365
        %v10471 = vunpack.c.h.b16 %v9365
        %v10472 = vunpack.c.l.b16 %v9366
        %v10473 = vunpack.c.h.b16 %v9366
        %v10474 = vunpack.c.l.b16 %v9367
        %v10475 = vunpack.c.h.b16 %v9367
        %v10476 = vunpack.c.l.b16 %v9368
        %v10477 = vunpack.c.l.b16 %v9369
        %v10478 = vunpack.c.h.b16 %v9369
        %v10479 = vunpack.c.l.b16 %v9370
        %v10480 = vunpack.c.h.b16 %v9370
        %v10481 = vunpack.c.l.b16 %v9371
        %v10482 = vunpack.c.h.b16 %v9371
        %v10483 = vunpack.c.l.b16 %v9372
        %v10484 = vunpack.c.l.b16 %v9373
        %v10485 = vunpack.c.h.b16 %v9373
        %v10486 = vunpack.c.l.b16 %v9374
        %v10487 = vunpack.c.h.b16 %v9374
        %v10488 = vunpack.c.l.b16 %v9375
        %v10489 = vunpack.c.h.b16 %v9375
        %v10490 = vunpack.c.l.b16 %v9376
        %v10491 = vunpack.c.l.b16 %v9377
        %v10492 = vunpack.c.h.b16 %v9377
        %v10493 = vunpack.c.l.b16 %v9378
        %v10494 = vunpack.c.h.b16 %v9378
        %v10495 = vunpack.c.l.b16 %v9379
        %v10496 = vunpack.c.h.b16 %v9379
        %v10497 = vunpack.c.l.b16 %v9380
        %v10498 = vunpack.c.l.b16 %v9381
        %v10499 = vunpack.c.h.b16 %v9381
        %v10500 = vunpack.c.l.b16 %v9382
        %v10501 = vunpack.c.h.b16 %v9382
        %v10502 = vunpack.c.l.b16 %v9383
        %v10503 = vunpack.c.h.b16 %v9383
        %v10504 = vunpack.c.l.b16 %v9384
        %v10505 = vunpack.c.l.b16 %v9385
        %v10506 = vunpack.c.h.b16 %v9385
        %v10507 = vunpack.c.l.b16 %v9386
        %v10508 = vunpack.c.h.b16 %v9386
        %v10509 = vunpack.c.l.b16 %v9387
        %v10510 = vunpack.c.h.b16 %v9387
        %v10511 = vunpack.c.l.b16 %v9388
        %v10512 = vunpack.c.l.b16 %v9389
        %v10513 = vunpack.c.h.b16 %v9389
        %v10514 = vunpack.c.l.b16 %v9390
        %v10515 = vunpack.c.h.b16 %v9390
        %v10516 = vunpack.c.l.b16 %v9391
        %v10517 = vunpack.c.h.b16 %v9391
        %v10518 = vunpack.c.l.b16 %v9392
        %v10519 = vunpack.c.l.b16 %v9393
        %v10520 = vunpack.c.h.b16 %v9393
        %v10521 = vunpack.c.l.b16 %v9394
        %v10522 = vunpack.c.h.b16 %v9394
        %v10523 = vunpack.c.l.b16 %v9395
        %v10524 = vunpack.c.h.b16 %v9395
        %v10525 = vunpack.c.l.b16 %v9396
        %v10526 = vunpack.c.l.b16 %v9397
        %v10527 = vunpack.c.h.b16 %v9397
        %v10528 = vunpack.c.l.b16 %v9398
        %v10529 = vunpack.c.h.b16 %v9398
        %v10530 = vunpack.c.l.b16 %v9399
        %v10531 = vunpack.c.h.b16 %v9399
        %v10532 = vunpack.c.l.b16 %v9400
        %v10533 = vunpack.c.l.b16 %v9401
        %v10534 = vunpack.c.h.b16 %v9401
        %v10535 = vunpack.c.l.b16 %v9402
        %v10536 = vunpack.c.h.b16 %v9402
        %v10537 = vunpack.c.l.b16 %v9403
        %v10538 = vunpack.c.h.b16 %v9403
        %v10539 = vunpack.c.l.b16 %v9404
        %v10540 = vunpack.c.l.b16 %v9405
        %v10541 = vunpack.c.h.b16 %v9405
        %v10542 = vunpack.c.l.b16 %v9406
        %v10543 = vunpack.c.h.b16 %v9406
        %v10544 = vunpack.c.l.b16 %v9407
        %v10545 = vunpack.c.h.b16 %v9407
        %v10546 = vunpack.c.l.b16 %v9408
        %v10547 = vunpack.c.l.b16 %v9409
        %v10548 = vunpack.c.h.b16 %v9409
        %v10549 = vunpack.c.l.b16 %v9410
        %v10550 = vunpack.c.h.b16 %v9410
        %v10551 = vunpack.c.l.b16 %v9411
        %v10552 = vunpack.c.h.b16 %v9411
        %v10553 = vunpack.c.l.b16 %v9412
        %v10554 = vunpack.c.l.b16 %v9413
        %v10555 = vunpack.c.h.b16 %v9413
        %v10556 = vunpack.c.l.b16 %v9414
        %v10557 = vunpack.c.h.b16 %v9414
        %v10558 = vunpack.c.l.b16 %v9415
        %v10559 = vunpack.c.h.b16 %v9415
        %v10560 = vunpack.c.l.b16 %v9416
        %v10561 = vunpack.c.l.b16 %v9417
        %v10562 = vunpack.c.h.b16 %v9417
        %v10563 = vunpack.c.l.b16 %v9418
        %v10564 = vunpack.c.h.b16 %v9418
        %v10565 = vunpack.c.l.b16 %v9419
        %v10566 = vunpack.c.h.b16 %v9419
        %v10567 = vunpack.c.l.b16 %v9420
        %v10568 = vunpack.c.l.b16 %v9421
        %v10569 = vunpack.c.h.b16 %v9421
        %v10570 = vunpack.c.l.b16 %v9422
        %v10571 = vunpack.c.h.b16 %v9422
        %v10572 = vunpack.c.l.b16 %v9423
        %v10573 = vunpack.c.h.b16 %v9423
        %v10574 = vunpack.c.l.b16 %v9424
        %v10575 = vunpack.c.l.b16 %v9425
        %v10576 = vunpack.c.h.b16 %v9425
        %v10577 = vunpack.c.l.b16 %v9426
        %v10578 = vunpack.c.h.b16 %v9426
        %v10579 = vunpack.c.l.b16 %v9427
        %v10580 = vunpack.c.h.b16 %v9427
        %v10581 = vunpack.c.l.b16 %v9428
        %v10582 = vunpack.c.l.b16 %v9429
        %v10583 = vunpack.c.h.b16 %v9429
        %v10584 = vunpack.c.l.b16 %v9430
        %v10585 = vunpack.c.h.b16 %v9430
        %v10586 = vunpack.c.l.b16 %v9431
        %v10587 = vunpack.c.h.b16 %v9431
        %v10588 = vunpack.c.l.b16 %v9432
        %v10589 = vunpack.c.l.b16 %v9433
        %v10590 = vunpack.c.h.b16 %v9433
        %v10591 = vunpack.c.l.b16 %v9434
        %v10592 = vunpack.c.h.b16 %v9434
        %v10593 = vunpack.c.l.b16 %v9435
        %v10594 = vunpack.c.h.b16 %v9435
        %v10595 = vunpack.c.l.b16 %v9436
        %v10596 = vunpack.c.l.b16 %v9437
        %v10597 = vunpack.c.h.b16 %v9437
        %v10598 = vunpack.c.l.b16 %v9438
        %v10599 = vunpack.c.h.b16 %v9438
        %v10600 = vunpack.c.l.b16 %v9439
        %v10601 = vunpack.c.h.b16 %v9439
        %v10602 = vunpack.c.l.b16 %v9440
        %v10603 = vunpack.c.l.b16 %v9441
        %v10604 = vunpack.c.h.b16 %v9441
        %v10605 = vunpack.c.l.b16 %v9442
        %v10606 = vunpack.c.h.b16 %v9442
        %v10607 = vunpack.c.l.b16 %v9443
        %v10608 = vunpack.c.h.b16 %v9443
        %v10609 = vunpack.c.l.b16 %v9444
        %v10610 = vunpack.c.l.b16 %v9445
        %v10611 = vunpack.c.h.b16 %v9445
        %v10612 = vunpack.c.l.b16 %v9446
        %v10613 = vunpack.c.h.b16 %v9446
        %v10614 = vunpack.c.l.b16 %v9447
        %v10615 = vunpack.c.h.b16 %v9447
        %v10616 = vunpack.c.l.b16 %v9448
        %v10617 = vunpack.c.l.b16 %v9449
        %v10618 = vunpack.c.h.b16 %v9449
        %v10619 = vunpack.c.l.b16 %v9450
        %v10620 = vunpack.c.h.b16 %v9450
        %v10621 = vunpack.c.l.b16 %v9451
        %v10622 = vunpack.c.h.b16 %v9451
        %v10623 = vunpack.c.l.b16 %v9452
        %v10624 = vunpack.c.l.b16 %v9453
        %v10625 = vunpack.c.h.b16 %v9453
        %v10626 = vunpack.c.l.b16 %v9454
        %v10627 = vunpack.c.h.b16 %v9454
        %v10628 = vunpack.c.l.b16 %v9455
        %v10629 = vunpack.c.h.b16 %v9455
        %v10630 = vunpack.c.l.b16 %v9456
        %v10631 = vunpack.c.l.b16 %v9457
        %v10632 = vunpack.c.h.b16 %v9457
        %v10633 = vunpack.c.l.b16 %v9458
        %v10634 = vunpack.c.h.b16 %v9458
        %v10635 = vunpack.c.l.b16 %v9459
        %v10636 = vunpack.c.h.b16 %v9459
        %v10637 = vunpack.c.l.b16 %v9460
        %v10638 = vunpack.c.l.b16 %v9461
        %v10639 = vunpack.c.h.b16 %v9461
        %v10640 = vunpack.c.l.b16 %v9462
        %v10641 = vunpack.c.h.b16 %v9462
        %v10642 = vunpack.c.l.b16 %v9463
        %v10643 = vunpack.c.h.b16 %v9463
        %v10644 = vunpack.c.l.b16 %v9464
        %v10645 = vunpack.c.l.b16 %v9465
        %v10646 = vunpack.c.h.b16 %v9465
        %v10647 = vunpack.c.l.b16 %v9466
        %v10648 = vunpack.c.h.b16 %v9466
        %v10649 = vunpack.c.l.b16 %v9467
        %v10650 = vunpack.c.h.b16 %v9467
        %v10651 = vunpack.c.l.b16 %v9468
        %v10652 = vunpack.c.l.b16 %v9469
        %v10653 = vunpack.c.h.b16 %v9469
        %v10654 = vunpack.c.l.b16 %v9470
        %v10655 = vunpack.c.h.b16 %v9470
        %v10656 = vunpack.c.l.b16 %v9471
        %v10657 = vunpack.c.h.b16 %v9471
        %v10658 = vunpack.c.l.b16 %v9472
        %v10659 = vunpack.c.l.b16 %v9473
        %v10660 = vunpack.c.h.b16 %v9473
        %v10661 = vunpack.c.l.b16 %v9474
        %v10662 = vunpack.c.h.b16 %v9474
        %v10663 = vunpack.c.l.b16 %v9475
        %v10664 = vunpack.c.h.b16 %v9475
        %v10665 = vunpack.c.l.b16 %v9476
        %v10666 = vunpack.c.l.b16 %v9477
        %v10667 = vunpack.c.h.b16 %v9477
        %v10668 = vunpack.c.l.b16 %v9478
        %v10669 = vunpack.c.h.b16 %v9478
        %v10670 = vunpack.c.l.b16 %v9479
        %v10671 = vunpack.c.h.b16 %v9479
        %v10672 = vunpack.c.l.b16 %v9480
        %v10673 = vunpack.c.l.b16 %v9481
        %v10674 = vunpack.c.h.b16 %v9481
        %v10675 = vunpack.c.l.b16 %v9482
        %v10676 = vunpack.c.h.b16 %v9482
        %v10677 = vunpack.c.l.b16 %v9483
        %v10678 = vunpack.c.h.b16 %v9483
        %v10679 = vunpack.c.l.b16 %v9484
        %v10680 = vunpack.c.l.b16 %v9485
        %v10681 = vunpack.c.h.b16 %v9485
        %v10682 = vunpack.c.l.b16 %v9486
        %v10683 = vunpack.c.h.b16 %v9486
        %v10684 = vunpack.c.l.b16 %v9487
        %v10685 = vunpack.c.h.b16 %v9487
        %v10686 = vunpack.c.l.b16 %v9488
        %v10687 = vunpack.c.l.b16 %v9489
        %v10688 = vunpack.c.h.b16 %v9489
        %v10689 = vunpack.c.l.b16 %v9490
        %v10690 = vunpack.c.h.b16 %v9490
        %v10691 = vunpack.c.l.b16 %v9491
        %v10692 = vunpack.c.h.b16 %v9491
        %v10693 = vunpack.c.l.b16 %v9492
        %v10694 = vunpack.c.l.b16 %v9493
        %v10695 = vunpack.c.h.b16 %v9493
        %v10696 = vunpack.c.l.b16 %v9494
        %v10697 = vunpack.c.h.b16 %v9494
        %v10698 = vunpack.c.l.b16 %v9495
        %v10699 = vunpack.c.h.b16 %v9495
        %v10700 = vunpack.c.l.b16 %v9496
        %v10701 = vunpack.c.l.b16 %v9497
        %v10702 = vunpack.c.h.b16 %v9497
        %v10703 = vunpack.c.l.b16 %v9498
        %v10704 = vunpack.c.h.b16 %v9498
        %v10705 = vunpack.c.l.b16 %v9499
        %v10706 = vunpack.c.h.b16 %v9499
        %v10707 = vunpack.c.l.b16 %v9500
        %v10708 = vunpack.c.l.b16 %v9501
        %v10709 = vunpack.c.h.b16 %v9501
        %v10710 = vunpack.c.l.b16 %v9502
        %v10711 = vunpack.c.h.b16 %v9502
        %v10712 = vunpack.c.l.b16 %v9503
        %v10713 = vunpack.c.h.b16 %v9503
        %v10714 = vunpack.c.l.b16 %v9504
        %v10715 = vunpack.c.l.b16 %v9505
        %v10716 = vunpack.c.h.b16 %v9505
        %v10717 = vunpack.c.l.b16 %v9506
        %v10718 = vunpack.c.h.b16 %v9506
        %v10719 = vunpack.c.l.b16 %v9507
        %v10720 = vunpack.c.h.b16 %v9507
        %v10721 = vunpack.c.l.b16 %v9508
        %v10722 = vunpack.c.l.b16 %v9509
        %v10723 = vunpack.c.h.b16 %v9509
        %v10724 = vunpack.c.l.b16 %v9510
        %v10725 = vunpack.c.h.b16 %v9510
        %v10726 = vunpack.c.l.b16 %v9511
        %v10727 = vunpack.c.h.b16 %v9511
        %v10728 = vunpack.c.l.b16 %v9512
        %v10729 = vunpack.c.l.b16 %v9513
        %v10730 = vunpack.c.h.b16 %v9513
        %v10731 = vunpack.c.l.b16 %v9514
        %v10732 = vunpack.c.h.b16 %v9514
        %v10733 = vunpack.c.l.b16 %v9515
        %v10734 = vunpack.c.h.b16 %v9515
        %v10735 = vunpack.c.l.b16 %v9516
        %v10736 = vunpack.c.l.b16 %v9517
        %v10737 = vunpack.c.h.b16 %v9517
        %v10738 = vunpack.c.l.b16 %v9518
        %v10739 = vunpack.c.h.b16 %v9518
        %v10740 = vunpack.c.l.b16 %v9519
        %v10741 = vunpack.c.h.b16 %v9519
        %v10742 = vunpack.c.l.b16 %v9520
        %v10743 = vunpack.c.l.b16 %v9521
        %v10744 = vunpack.c.h.b16 %v9521
        %v10745 = vunpack.c.l.b16 %v9522
        %v10746 = vunpack.c.h.b16 %v9522
        %v10747 = vunpack.c.l.b16 %v9523
        %v10748 = vunpack.c.h.b16 %v9523
        %v10749 = vunpack.c.l.b16 %v9524
        %v10750 = vunpack.c.l.b16 %v9525
        %v10751 = vunpack.c.h.b16 %v9525
        %v10752 = vunpack.c.l.b16 %v9526
        %v10753 = vunpack.c.h.b16 %v9526
        %v10754 = vunpack.c.l.b16 %v9527
        %v10755 = vunpack.c.h.b16 %v9527
        %v10756 = vunpack.c.l.b16 %v9528
        %v10757 = vunpack.c.l.b16 %v9529
        %v10758 = vunpack.c.h.b16 %v9529
        %v10759 = vunpack.c.l.b16 %v9530
        %v10760 = vunpack.c.h.b16 %v9530
        %v10761 = vunpack.c.l.b16 %v9531
        %v10762 = vunpack.c.h.b16 %v9531
        %v10763 = vunpack.c.l.b16 %v9532
        %v10764 = vunpack.c.l.b16 %v9533
        %v10765 = vunpack.c.h.b16 %v9533
        %v10766 = vunpack.c.l.b16 %v9534
        %v10767 = vunpack.c.h.b16 %v9534
        %v10768 = vunpack.c.l.b16 %v9535
        %v10769 = vunpack.c.h.b16 %v9535
        %v10770 = vunpack.c.l.b16 %v9536
        %v10771 = vunpack.c.l.b16 %v9537
        %v10772 = vunpack.c.h.b16 %v9537
        %v10773 = vunpack.c.l.b16 %v9538
        %v10774 = vunpack.c.h.b16 %v9538
        %v10775 = vunpack.c.l.b16 %v9539
        %v10776 = vunpack.c.h.b16 %v9539
        %v10777 = vunpack.c.l.b16 %v9540
        %v10778 = vunpack.c.l.b16 %v9541
        %v10779 = vunpack.c.h.b16 %v9541
        %v10780 = vunpack.c.l.b16 %v9542
        %v10781 = vunpack.c.h.b16 %v9542
        %v10782 = vunpack.c.l.b16 %v9543
        %v10783 = vunpack.c.h.b16 %v9543
        %v10784 = vunpack.c.l.b16 %v9544
        %v10785 = vunpack.c.l.b16 %v9545
        %v10786 = vunpack.c.h.b16 %v9545
        %v10787 = vunpack.c.l.b16 %v9546
        %v10788 = vunpack.c.h.b16 %v9546
        %v10789 = vunpack.c.l.b16 %v9547
        %v10790 = vunpack.c.h.b16 %v9547
        %v10791 = vunpack.c.l.b16 %v9548
        %v10792 = vunpack.c.l.b16 %v9549
        %v10793 = vunpack.c.h.b16 %v9549
        %v10794 = vunpack.c.l.b16 %v9550
        %v10795 = vunpack.c.h.b16 %v9550
        %v10796 = vunpack.c.l.b16 %v9551
        %v10797 = vunpack.c.h.b16 %v9551
        %v10798 = vunpack.c.l.b16 %v9552
        %v10799 = vunpack.c.l.b16 %v9553
        %v10800 = vunpack.c.h.b16 %v9553
        %v10801 = vunpack.c.l.b16 %v9554
        %v10802 = vunpack.c.h.b16 %v9554
        %v10803 = vunpack.c.l.b16 %v9555
        %v10804 = vunpack.c.h.b16 %v9555
        %v10805 = vunpack.c.l.b16 %v9556
        %v10806 = vunpack.c.l.b16 %v9557
        %v10807 = vunpack.c.h.b16 %v9557
        %v10808 = vunpack.c.l.b16 %v9558
        %v10809 = vunpack.c.h.b16 %v9558
        %v10810 = vunpack.c.l.b16 %v9559
        %v10811 = vunpack.c.h.b16 %v9559
        %v10812 = vunpack.c.l.b16 %v9560
        %v10813 = vunpack.c.l.b16 %v9561
        %v10814 = vunpack.c.h.b16 %v9561
        %v10815 = vunpack.c.l.b16 %v9562
        %v10816 = vunpack.c.h.b16 %v9562
        %v10817 = vunpack.c.l.b16 %v9563
        %v10818 = vunpack.c.h.b16 %v9563
        %v10819 = vunpack.c.l.b16 %v9564
        %v10820 = vunpack.c.l.b16 %v9565
        %v10821 = vunpack.c.h.b16 %v9565
        %v10822 = vunpack.c.l.b16 %v9566
        %v10823 = vunpack.c.h.b16 %v9566
        %v10824 = vunpack.c.l.b16 %v9567
        %v10825 = vunpack.c.h.b16 %v9567
        %v10826 = vunpack.c.l.b16 %v9568
        %v10827 = vunpack.c.l.b16 %v9569
        %v10828 = vunpack.c.h.b16 %v9569
        %v10829 = vunpack.c.l.b16 %v9570
        %v10830 = vunpack.c.h.b16 %v9570
        %v10831 = vunpack.c.l.b16 %v9571
        %v10832 = vunpack.c.h.b16 %v9571
        %v10833 = vunpack.c.l.b16 %v9572
        %v10834 = vunpack.c.l.b16 %v9573
        %v10835 = vunpack.c.h.b16 %v9573
        %v10836 = vunpack.c.l.b16 %v9574
        %v10837 = vunpack.c.h.b16 %v9574
        %v10838 = vunpack.c.l.b16 %v9575
        %v10839 = vunpack.c.h.b16 %v9575
        %v10840 = vunpack.c.l.b16 %v9576
        %v10841 = vunpack.c.l.b16 %v9577
        %v10842 = vunpack.c.h.b16 %v9577
        %v10843 = vunpack.c.l.b16 %v9578
        %v10844 = vunpack.c.h.b16 %v9578
        %v10845 = vunpack.c.l.b16 %v9579
        %v10846 = vunpack.c.h.b16 %v9579
        %v10847 = vunpack.c.l.b16 %v9580
        %v10848 = vunpack.c.l.b16 %v9581
        %v10849 = vunpack.c.h.b16 %v9581
        %v10850 = vunpack.c.l.b16 %v9582
        %v10851 = vunpack.c.h.b16 %v9582
        %v10852 = vunpack.c.l.b16 %v9583
        %v10853 = vunpack.c.h.b16 %v9583
        %v10854 = vunpack.c.l.b16 %v9584
        %v10855 = vunpack.c.l.b16 %v9585
        %v10856 = vunpack.c.h.b16 %v9585
        %v10857 = vunpack.c.l.b16 %v9586
        %v10858 = vunpack.c.h.b16 %v9586
        %v10859 = vunpack.c.l.b16 %v9587
        %v10860 = vunpack.c.h.b16 %v9587
        %v10861 = vunpack.c.l.b16 %v9588
        %v10862 = vunpack.c.l.b16 %v9589
        %v10863 = vunpack.c.h.b16 %v9589
        %v10864 = vunpack.c.l.b16 %v9590
        %v10865 = vunpack.c.h.b16 %v9590
        %v10866 = vunpack.c.l.b16 %v9591
        %v10867 = vunpack.c.h.b16 %v9591
        %v10868 = vunpack.c.l.b16 %v9592
        %v10869 = vunpack.c.l.b16 %v9593
        %v10870 = vunpack.c.h.b16 %v9593
        %v10871 = vunpack.c.l.b16 %v9594
        %v10872 = vunpack.c.h.b16 %v9594
        %v10873 = vunpack.c.l.b16 %v9595
        %v10874 = vunpack.c.h.b16 %v9595
        %v10875 = vunpack.c.l.b16 %v9596
        %v10876 = vunpack.c.l.b16 %v9597
        %v10877 = vunpack.c.h.b16 %v9597
        %v10878 = vunpack.c.l.b16 %v9598
        %v10879 = vunpack.c.h.b16 %v9598
        %v10880 = vunpack.c.l.b16 %v9599
        %v10881 = vunpack.c.h.b16 %v9599
        %v10882 = vunpack.c.l.b16 %v9600
        %v10883 = vunpack.c.l.b16 %v9601
        %v10884 = vunpack.c.h.b16 %v9601
        %v10885 = vunpack.c.l.b16 %v9602
        %v10886 = vunpack.c.h.b16 %v9602
        %v10887 = vunpack.c.l.b16 %v9603
        %v10888 = vunpack.c.h.b16 %v9603
        %v10889 = vunpack.c.l.b16 %v9604
        %v10890 = vunpack.c.l.b16 %v9605
        %v10891 = vunpack.c.h.b16 %v9605
        %v10892 = vunpack.c.l.b16 %v9606
        %v10893 = vunpack.c.h.b16 %v9606
        %v10894 = vunpack.c.l.b16 %v9607
        %v10895 = vunpack.c.h.b16 %v9607
        %v10896 = vunpack.c.l.b16 %v9608
        %v10897 = vunpack.c.l.b16 %v9609
        %v10898 = vunpack.c.h.b16 %v9609
        %v10899 = vunpack.c.l.b16 %v9610
        %v10900 = vunpack.c.h.b16 %v9610
        %v10901 = vunpack.c.l.b16 %v9611
        %v10902 = vunpack.c.h.b16 %v9611
        %v10903 = vunpack.c.l.b16 %v9612
        %v10904 = vunpack.c.l.b16 %v9613
        %v10905 = vunpack.c.h.b16 %v9613
        %v10906 = vunpack.c.l.b16 %v9614
        %v10907 = vunpack.c.h.b16 %v9614
        %v10908 = vunpack.c.l.b16 %v9615
        %v10909 = vunpack.c.h.b16 %v9615
        %v10910 = vunpack.c.l.b16 %v9616
        %v10911 = vunpack.c.l.b16 %v9617
        %v10912 = vunpack.c.h.b16 %v9617
        %v10913 = vunpack.c.l.b16 %v9618
        %v10914 = vunpack.c.h.b16 %v9618
        %v10915 = vunpack.c.l.b16 %v9619
        %v10916 = vunpack.c.h.b16 %v9619
        %v10917 = vunpack.c.l.b16 %v9620
        %v10918 = vunpack.c.l.b16 %v9621
        %v10919 = vunpack.c.h.b16 %v9621
        %v10920 = vunpack.c.l.b16 %v9622
        %v10921 = vunpack.c.h.b16 %v9622
        %v10922 = vunpack.c.l.b16 %v9623
        %v10923 = vunpack.c.h.b16 %v9623
        %v10924 = vunpack.c.l.b16 %v9624
        %v10925 = vunpack.c.l.b16 %v9625
        %v10926 = vunpack.c.h.b16 %v9625
        %v10927 = vunpack.c.l.b16 %v9626
        %v10928 = vunpack.c.h.b16 %v9626
        %v10929 = vunpack.c.l.b16 %v9627
        %v10930 = vunpack.c.h.b16 %v9627
        %v10931 = vunpack.c.l.b16 %v9628
        %v10932 = vunpack.c.l.b16 %v9629
        %v10933 = vunpack.c.h.b16 %v9629
        %v10934 = vunpack.c.l.b16 %v9630
        %v10935 = vunpack.c.h.b16 %v9630
        %v10936 = vunpack.c.l.b16 %v9631
        %v10937 = vunpack.c.h.b16 %v9631
        %v10938 = vunpack.c.l.b16 %v9632
        %v10939 = vunpack.c.l.b16 %v9633
        %v10940 = vunpack.c.h.b16 %v9633
        %v10941 = vunpack.c.l.b16 %v9634
        %v10942 = vunpack.c.h.b16 %v9634
        %v10943 = vunpack.c.l.b16 %v9635
        %v10944 = vunpack.c.h.b16 %v9635
        %v10945 = vunpack.c.l.b16 %v9636
        %v10946 = vunpack.c.l.b16 %v9637
        %v10947 = vunpack.c.h.b16 %v9637
        %v10948 = vunpack.c.l.b16 %v9638
        %v10949 = vunpack.c.h.b16 %v9638
        %v10950 = vunpack.c.l.b16 %v9639
        %v10951 = vunpack.c.h.b16 %v9639
        %v10952 = vunpack.c.l.b16 %v9640
        %v10953 = vunpack.c.l.b16 %v9641
        %v10954 = vunpack.c.h.b16 %v9641
        %v10955 = vunpack.c.l.b16 %v9642
        %v10956 = vunpack.c.h.b16 %v9642
        %v10957 = vunpack.c.l.b16 %v9643
        %v10958 = vunpack.c.h.b16 %v9643
        %v10959 = vunpack.c.l.b16 %v9644
        %v10960 = vunpack.c.l.b16 %v9645
        %v10961 = vunpack.c.h.b16 %v9645
        %v10962 = vunpack.c.l.b16 %v9646
        %v10963 = vunpack.c.h.b16 %v9646
        %v10964 = vunpack.c.l.b16 %v9647
        %v10965 = vunpack.c.h.b16 %v9647
        %v10966 = vunpack.c.l.b16 %v9648
        %v10967 = vunpack.c.l.b16 %v9649
        %v10968 = vunpack.c.h.b16 %v9649
        %v10969 = vunpack.c.l.b16 %v9650
        %v10970 = vunpack.c.h.b16 %v9650
        %v10971 = vunpack.c.l.b16 %v9651
        %v10972 = vunpack.c.h.b16 %v9651
        %v10973 = vunpack.c.l.b16 %v9652
        %v10974 = vunpack.c.l.b16 %v9653
        %v10975 = vunpack.c.h.b16 %v9653
        %v10976 = vunpack.c.l.b16 %v9654
        %v10977 = vunpack.c.h.b16 %v9654
        %v10978 = vunpack.c.l.b16 %v9655
        %v10979 = vunpack.c.h.b16 %v9655
        %v10980 = vunpack.c.l.b16 %v9656
        %v10981 = vunpack.c.l.b16 %v9657
        %v10982 = vunpack.c.h.b16 %v9657
        %v10983 = vunpack.c.l.b16 %v9658
        %v10984 = vunpack.c.h.b16 %v9658
        %v10985 = vunpack.c.l.b16 %v9659
        %v10986 = vunpack.c.h.b16 %v9659
        %v10987 = vunpack.c.l.b16 %v9660
        %v10988 = vunpack.c.l.b16 %v9661
        %v10989 = vunpack.c.h.b16 %v9661
        %v10990 = vunpack.c.l.b16 %v9662
        %v10991 = vunpack.c.h.b16 %v9662
        %v10992 = vunpack.c.l.b16 %v9663
        %v10993 = vunpack.c.h.b16 %v9663
        %v10994 = vunpack.c.l.b16 %v9664
        %v10995 = vunpack.c.l.b16 %v9665
        %v10996 = vunpack.c.h.b16 %v9665
        %v10997 = vunpack.c.l.b16 %v9666
        %v10998 = vunpack.c.h.b16 %v9666
        %v10999 = vunpack.c.l.b16 %v9667
        %v11000 = vunpack.c.h.b16 %v9667
        %v11001 = vunpack.c.l.b16 %v9668
        %v11002 = vunpack.c.l.b16 %v9669
        %v11003 = vunpack.c.h.b16 %v9669
        %v11004 = vunpack.c.l.b16 %v9670
        %v11005 = vunpack.c.h.b16 %v9670
        %v11006 = vunpack.c.l.b16 %v9671
        %v11007 = vunpack.c.h.b16 %v9671
        %v11008 = vunpack.c.l.b16 %v9672
        %v11009 = vunpack.c.l.b16 %v9673
        %v11010 = vunpack.c.h.b16 %v9673
        %v11011 = vunpack.c.l.b16 %v9674
        %v11012 = vunpack.c.h.b16 %v9674
        %v11013 = vunpack.c.l.b16 %v9675
        %v11014 = vunpack.c.h.b16 %v9675
        %v11015 = vunpack.c.l.b16 %v9676
        %v11016 = vunpack.c.l.b16 %v9677
        %v11017 = vunpack.c.h.b16 %v9677
        %v11018 = vunpack.c.l.b16 %v9678
        %v11019 = vunpack.c.h.b16 %v9678
        %v11020 = vunpack.c.l.b16 %v9679
        %v11021 = vunpack.c.h.b16 %v9679
        %v11022 = vunpack.c.l.b16 %v9680
        %v11023 = vunpack.c.l.b16 %v9681
        %v11024 = vunpack.c.h.b16 %v9681
        %v11025 = vunpack.c.l.b16 %v9682
        %v11026 = vunpack.c.h.b16 %v9682
        %v11027 = vunpack.c.l.b16 %v9683
        %v11028 = vunpack.c.h.b16 %v9683
        %v11029 = vunpack.c.l.b16 %v9684
        %v11030 = vunpack.c.l.b16 %v9685
        %v11031 = vunpack.c.h.b16 %v9685
        %v11032 = vunpack.c.l.b16 %v9686
        %v11033 = vunpack.c.h.b16 %v9686
        %v11034 = vunpack.c.l.b16 %v9687
        %v11035 = vunpack.c.h.b16 %v9687
        %v11036 = vunpack.c.l.b16 %v9688
        %v11037 = vunpack.c.l.b16 %v9689
        %v11038 = vunpack.c.h.b16 %v9689
        %v11039 = vunpack.c.l.b16 %v9690
        %v11040 = vunpack.c.h.b16 %v9690
        %v11041 = vunpack.c.l.b16 %v9691
        %v11042 = vunpack.c.h.b16 %v9691
        %v11043 = vunpack.c.l.b16 %v9692
        %v11044 = vunpack.c.l.b16 %v9693
        %v11045 = vunpack.c.h.b16 %v9693
        %v11046 = vunpack.c.l.b16 %v9694
        %v11047 = vunpack.c.h.b16 %v9694
        %v11048 = vunpack.c.l.b16 %v9695
        %v11049 = vunpack.c.h.b16 %v9695
        %v11050 = vunpack.c.l.b16 %v9696
        %v11051 = vunpack.c.l.b16 %v9697
        %v11052 = vunpack.c.h.b16 %v9697
        %v11053 = vunpack.c.l.b16 %v9698
        %v11054 = vunpack.c.h.b16 %v9698
        %v11055 = vunpack.c.l.b16 %v9699
        %v11056 = vunpack.c.h.b16 %v9699
        %v11057 = vunpack.c.l.b16 %v9700
        %v11058 = vunpack.c.l.b16 %v9701
        %v11059 = vunpack.c.h.b16 %v9701
        %v11060 = vunpack.c.l.b16 %v9702
        %v11061 = vunpack.c.h.b16 %v9702
        %v11062 = vunpack.c.l.b16 %v9703
        %v11063 = vunpack.c.h.b16 %v9703
        %v11064 = vunpack.c.l.b16 %v9704
        %v11065 = vunpack.c.l.b16 %v9705
        %v11066 = vunpack.c.h.b16 %v9705
        %v11067 = vunpack.c.l.b16 %v9706
        %v11068 = vunpack.c.h.b16 %v9706
        %v11069 = vunpack.c.l.b16 %v9707
        %v11070 = vunpack.c.h.b16 %v9707
        %v11071 = vunpack.c.l.b16 %v9708
        %v11072 = vunpack.c.l.b16 %v9709
        %v11073 = vunpack.c.h.b16 %v9709
        %v11074 = vunpack.c.l.b16 %v9710
        %v11075 = vunpack.c.h.b16 %v9710
        %v11076 = vunpack.c.l.b16 %v9711
        %v11077 = vunpack.c.h.b16 %v9711
        %v11078 = vunpack.c.l.b16 %v9712
        %v11079 = vunpack.c.l.b16 %v9713
        %v11080 = vunpack.c.h.b16 %v9713
        %v11081 = vunpack.c.l.b16 %v9714
        %v11082 = vunpack.c.h.b16 %v9714
        %v11083 = vunpack.c.l.b16 %v9715
        %v11084 = vunpack.c.h.b16 %v9715
        %v11085 = vunpack.c.l.b16 %v9716
        %v11086 = vunpack.c.l.b16 %v9717
        %v11087 = vunpack.c.h.b16 %v9717
        %v11088 = vunpack.c.l.b16 %v9718
        %v11089 = vunpack.c.h.b16 %v9718
        %v11090 = vunpack.c.l.b16 %v9719
        %v11091 = vunpack.c.h.b16 %v9719
        %v11092 = vunpack.c.l.b16 %v9720
        %v11093 = vunpack.c.l.b16 %v9721
        %v11094 = vunpack.c.h.b16 %v9721
        %v11095 = vunpack.c.l.b16 %v9722
        %v11096 = vunpack.c.h.b16 %v9722
        %v11097 = vunpack.c.l.b16 %v9723
        %v11098 = vunpack.c.h.b16 %v9723
        %v11099 = vunpack.c.l.b16 %v9724
        %v11100 = vunpack.c.l.b16 %v9725
        %v11101 = vunpack.c.h.b16 %v9725
        %v11102 = vunpack.c.l.b16 %v9726
        %v11103 = vunpack.c.h.b16 %v9726
        %v11104 = vunpack.c.l.b16 %v9727
        %v11105 = vunpack.c.h.b16 %v9727
        %v11106 = vunpack.c.l.b16 %v9728
        %v11107 = vunpack.c.l.b16 %v9729
        %v11108 = vunpack.c.h.b16 %v9729
        %v11109 = vunpack.c.l.b16 %v9730
        %v11110 = vunpack.c.h.b16 %v9730
        %v11111 = vunpack.c.l.b16 %v9731
        %v11112 = vunpack.c.h.b16 %v9731
        %v11113 = vunpack.c.l.b16 %v9732
        %v11114 = vunpack.c.l.b16 %v9733
        %v11115 = vunpack.c.h.b16 %v9733
        %v11116 = vunpack.c.l.b16 %v9734
        %v11117 = vunpack.c.h.b16 %v9734
        %v11118 = vunpack.c.l.b16 %v9735
        %v11119 = vunpack.c.h.b16 %v9735
        %v11120 = vunpack.c.l.b16 %v9736
        %v11121 = vunpack.c.l.b16 %v9737
        %v11122 = vunpack.c.h.b16 %v9737
        %v11123 = vunpack.c.l.b16 %v9738
        %v11124 = vunpack.c.h.b16 %v9738
        %v11125 = vunpack.c.l.b16 %v9739
        %v11126 = vunpack.c.h.b16 %v9739
        %v11127 = vunpack.c.l.b16 %v9740
        %v11128 = vunpack.c.l.b16 %v9741
        %v11129 = vunpack.c.h.b16 %v9741
        %v11130 = vunpack.c.l.b16 %v9742
        %v11131 = vunpack.c.h.b16 %v9742
        %v11132 = vunpack.c.l.b16 %v9743
        %v11133 = vunpack.c.h.b16 %v9743
        %v11134 = vunpack.c.l.b16 %v9744
        %v11135 = vunpack.c.l.b16 %v9745
        %v11136 = vunpack.c.h.b16 %v9745
        %v11137 = vunpack.c.l.b16 %v9746
        %v11138 = vunpack.c.h.b16 %v9746
        %v11139 = vunpack.c.l.b16 %v9747
        %v11140 = vunpack.c.h.b16 %v9747
        %v11141 = vunpack.c.l.b16 %v9748
        %v11142 = vunpack.c.l.b16 %v9749
        %v11143 = vunpack.c.h.b16 %v9749
        %v11144 = vunpack.c.l.b16 %v9750
        %v11145 = vunpack.c.h.b16 %v9750
        %v11146 = vunpack.c.l.b16 %v9751
        %v11147 = vunpack.c.h.b16 %v9751
        %v11148 = vunpack.c.l.b16 %v9752
        %v11149 = vunpack.c.l.b16 %v9753
        %v11150 = vunpack.c.h.b16 %v9753
        %v11151 = vunpack.c.l.b16 %v9754
        %v11152 = vunpack.c.h.b16 %v9754
        %v11153 = vunpack.c.l.b16 %v9755
        %v11154 = vunpack.c.h.b16 %v9755
        %v11155 = vunpack.c.l.b16 %v9756
        %v11156 = vunpack.c.l.b16 %v9757
        %v11157 = vunpack.c.h.b16 %v9757
        %v11158 = vunpack.c.l.b16 %v9758
        %v11159 = vunpack.c.h.b16 %v9758
        %v11160 = vunpack.c.l.b16 %v9759
        %v11161 = vunpack.c.h.b16 %v9759
        %v11162 = vunpack.c.l.b16 %v9760
        %v11163 = vunpack.c.l.b16 %v9761
        %v11164 = vunpack.c.h.b16 %v9761
        %v11165 = vunpack.c.l.b16 %v9762
        %v11166 = vunpack.c.h.b16 %v9762
        %v11167 = vunpack.c.l.b16 %v9763
        %v11168 = vunpack.c.h.b16 %v9763
        %v11169 = vunpack.c.l.b16 %v9764
        %v11170 = vunpack.c.l.b16 %v9765
        %v11171 = vunpack.c.h.b16 %v9765
        %v11172 = vunpack.c.l.b16 %v9766
        %v11173 = vunpack.c.h.b16 %v9766
        %v11174 = vunpack.c.l.b16 %v9767
        %v11175 = vunpack.c.h.b16 %v9767
        %v11176 = vunpack.c.l.b16 %v9768
        %v11177 = vpack.c.b16 %v10288, %v10281
        %v11178 = vpack.c.b16 %v10289, %v10282
        %v11179 = vpack.c.b16 %v10290, %v10283
        %v11180 = vpack.c.b16 %v10291, %v10284
        %v11181 = vpack.c.b16 %v10292, %v10285
        %v11182 = vpack.c.b16 %v10293, %v10286
        %v11183 = vpack.c.b16 %v10294, %v10287
        %v11184 = vpack.c.b16 %v10302, %v10295
        %v11185 = vpack.c.b16 %v10303, %v10296
        %v11186 = vpack.c.b16 %v10304, %v10297
        %v11187 = vpack.c.b16 %v10305, %v10298
        %v11188 = vpack.c.b16 %v10306, %v10299
        %v11189 = vpack.c.b16 %v10307, %v10300
        %v11190 = vpack.c.b16 %v10308, %v10301
        %v11191 = vpack.c.b16 %v10316, %v10309
        %v11192 = vpack.c.b16 %v10317, %v10310
        %v11193 = vpack.c.b16 %v10318, %v10311
        %v11194 = vpack.c.b16 %v10319, %v10312
        %v11195 = vpack.c.b16 %v10320, %v10313
        %v11196 = vpack.c.b16 %v10321, %v10314
        %v11197 = vpack.c.b16 %v10322, %v10315
        %v11198 = vpack.c.b16 %v10330, %v10323
        %v11199 = vpack.c.b16 %v10331, %v10324
        %v11200 = vpack.c.b16 %v10332, %v10325
        %v11201 = vpack.c.b16 %v10333, %v10326
        %v11202 = vpack.c.b16 %v10334, %v10327
        %v11203 = vpack.c.b16 %v10335, %v10328
        %v11204 = vpack.c.b16 %v10336, %v10329
        %v11205 = vpack.c.b16 %v10344, %v10337
        %v11206 = vpack.c.b16 %v10345, %v10338
        %v11207 = vpack.c.b16 %v10346, %v10339
        %v11208 = vpack.c.b16 %v10347, %v10340
        %v11209 = vpack.c.b16 %v10348, %v10341
        %v11210 = vpack.c.b16 %v10349, %v10342
        %v11211 = vpack.c.b16 %v10350, %v10343
        %v11212 = vpack.c.b16 %v10358, %v10351
        %v11213 = vpack.c.b16 %v10359, %v10352
        %v11214 = vpack.c.b16 %v10360, %v10353
        %v11215 = vpack.c.b16 %v10361, %v10354
        %v11216 = vpack.c.b16 %v10362, %v10355
        %v11217 = vpack.c.b16 %v10363, %v10356
        %v11218 = vpack.c.b16 %v10364, %v10357
        %v11219 = vpack.c.b16 %v10372, %v10365
        %v11220 = vpack.c.b16 %v10373, %v10366
        %v11221 = vpack.c.b16 %v10374, %v10367
        %v11222 = vpack.c.b16 %v10375, %v10368
        %v11223 = vpack.c.b16 %v10376, %v10369
        %v11224 = vpack.c.b16 %v10377, %v10370
        %v11225 = vpack.c.b16 %v10378, %v10371
        %v11226 = vpack.c.b16 %v10386, %v10379
        %v11227 = vpack.c.b16 %v10387, %v10380
        %v11228 = vpack.c.b16 %v10388, %v10381
        %v11229 = vpack.c.b16 %v10389, %v10382
        %v11230 = vpack.c.b16 %v10390, %v10383
        %v11231 = vpack.c.b16 %v10391, %v10384
        %v11232 = vpack.c.b16 %v10392, %v10385
        %v11233 = vpack.c.b16 %v10400, %v10393
        %v11234 = vpack.c.b16 %v10401, %v10394
        %v11235 = vpack.c.b16 %v10402, %v10395
        %v11236 = vpack.c.b16 %v10403, %v10396
        %v11237 = vpack.c.b16 %v10404, %v10397
        %v11238 = vpack.c.b16 %v10405, %v10398
        %v11239 = vpack.c.b16 %v10406, %v10399
        %v11240 = vpack.c.b16 %v10414, %v10407
        %v11241 = vpack.c.b16 %v10415, %v10408
        %v11242 = vpack.c.b16 %v10416, %v10409
        %v11243 = vpack.c.b16 %v10417, %v10410
        %v11244 = vpack.c.b16 %v10418, %v10411
        %v11245 = vpack.c.b16 %v10419, %v10412
        %v11246 = vpack.c.b16 %v10420, %v10413
        %v11247 = vpack.c.b16 %v10428, %v10421
        %v11248 = vpack.c.b16 %v10429, %v10422
        %v11249 = vpack.c.b16 %v10430, %v10423
        %v11250 = vpack.c.b16 %v10431, %v10424
        %v11251 = vpack.c.b16 %v10432, %v10425
        %v11252 = vpack.c.b16 %v10433, %v10426
        %v11253 = vpack.c.b16 %v10434, %v10427
        %v11254 = vpack.c.b16 %v10442, %v10435
        %v11255 = vpack.c.b16 %v10443, %v10436
        %v11256 = vpack.c.b16 %v10444, %v10437
        %v11257 = vpack.c.b16 %v10445, %v10438
        %v11258 = vpack.c.b16 %v10446, %v10439
        %v11259 = vpack.c.b16 %v10447, %v10440
        %v11260 = vpack.c.b16 %v10448, %v10441
        %v11261 = vpack.c.b16 %v10456, %v10449
        %v11262 = vpack.c.b16 %v10457, %v10450
        %v11263 = vpack.c.b16 %v10458, %v10451
        %v11264 = vpack.c.b16 %v10459, %v10452
        %v11265 = vpack.c.b16 %v10460, %v10453
        %v11266 = vpack.c.b16 %v10461, %v10454
        %v11267 = vpack.c.b16 %v10462, %v10455
        %v11268 = vpack.c.b16 %v10470, %v10463
        %v11269 = vpack.c.b16 %v10471, %v10464
        %v11270 = vpack.c.b16 %v10472, %v10465
        %v11271 = vpack.c.b16 %v10473, %v10466
        %v11272 = vpack.c.b16 %v10474, %v10467
        %v11273 = vpack.c.b16 %v10475, %v10468
        %v11274 = vpack.c.b16 %v10476, %v10469
        %v11275 = vpack.c.b16 %v10484, %v10477
        %v11276 = vpack.c.b16 %v10485, %v10478
        %v11277 = vpack.c.b16 %v10486, %v10479
        %v11278 = vpack.c.b16 %v10487, %v10480
        %v11279 = vpack.c.b16 %v10488, %v10481
        %v11280 = vpack.c.b16 %v10489, %v10482
        %v11281 = vpack.c.b16 %v10490, %v10483
        %v11282 = vpack.c.b16 %v10498, %v10491
        %v11283 = vpack.c.b16 %v10499, %v10492
        %v11284 = vpack.c.b16 %v10500, %v10493
        %v11285 = vpack.c.b16 %v10501, %v10494
        %v11286 = vpack.c.b16 %v10502, %v10495
        %v11287 = vpack.c.b16 %v10503, %v10496
        %v11288 = vpack.c.b16 %v10504, %v10497
        %v11289 = vpack.c.b16 %v10512, %v10505
        %v11290 = vpack.c.b16 %v10513, %v10506
        %v11291 = vpack.c.b16 %v10514, %v10507
        %v11292 = vpack.c.b16 %v10515, %v10508
        %v11293 = vpack.c.b16 %v10516, %v10509
        %v11294 = vpack.c.b16 %v10517, %v10510
        %v11295 = vpack.c.b16 %v10518, %v10511
        %v11296 = vpack.c.b16 %v10526, %v10519
        %v11297 = vpack.c.b16 %v10527, %v10520
        %v11298 = vpack.c.b16 %v10528, %v10521
        %v11299 = vpack.c.b16 %v10529, %v10522
        %v11300 = vpack.c.b16 %v10530, %v10523
        %v11301 = vpack.c.b16 %v10531, %v10524
        %v11302 = vpack.c.b16 %v10532, %v10525
        %v11303 = vpack.c.b16 %v10540, %v10533
        %v11304 = vpack.c.b16 %v10541, %v10534
        %v11305 = vpack.c.b16 %v10542, %v10535
        %v11306 = vpack.c.b16 %v10543, %v10536
        %v11307 = vpack.c.b16 %v10544, %v10537
        %v11308 = vpack.c.b16 %v10545, %v10538
        %v11309 = vpack.c.b16 %v10546, %v10539
        %v11310 = vpack.c.b16 %v10554, %v10547
        %v11311 = vpack.c.b16 %v10555, %v10548
        %v11312 = vpack.c.b16 %v10556, %v10549
        %v11313 = vpack.c.b16 %v10557, %v10550
        %v11314 = vpack.c.b16 %v10558, %v10551
        %v11315 = vpack.c.b16 %v10559, %v10552
        %v11316 = vpack.c.b16 %v10560, %v10553
        %v11317 = vpack.c.b16 %v10568, %v10561
        %v11318 = vpack.c.b16 %v10569, %v10562
        %v11319 = vpack.c.b16 %v10570, %v10563
        %v11320 = vpack.c.b16 %v10571, %v10564
        %v11321 = vpack.c.b16 %v10572, %v10565
        %v11322 = vpack.c.b16 %v10573, %v10566
        %v11323 = vpack.c.b16 %v10574, %v10567
        %v11324 = vpack.c.b16 %v10582, %v10575
        %v11325 = vpack.c.b16 %v10583, %v10576
        %v11326 = vpack.c.b16 %v10584, %v10577
        %v11327 = vpack.c.b16 %v10585, %v10578
        %v11328 = vpack.c.b16 %v10586, %v10579
        %v11329 = vpack.c.b16 %v10587, %v10580
        %v11330 = vpack.c.b16 %v10588, %v10581
        %v11331 = vpack.c.b16 %v10596, %v10589
        %v11332 = vpack.c.b16 %v10597, %v10590
        %v11333 = vpack.c.b16 %v10598, %v10591
        %v11334 = vpack.c.b16 %v10599, %v10592
        %v11335 = vpack.c.b16 %v10600, %v10593
        %v11336 = vpack.c.b16 %v10601, %v10594
        %v11337 = vpack.c.b16 %v10602, %v10595
        %v11338 = vpack.c.b16 %v10610, %v10603
        %v11339 = vpack.c.b16 %v10611, %v10604
        %v11340 = vpack.c.b16 %v10612, %v10605
        %v11341 = vpack.c.b16 %v10613, %v10606
        %v11342 = vpack.c.b16 %v10614, %v10607
        %v11343 = vpack.c.b16 %v10615, %v10608
        %v11344 = vpack.c.b16 %v10616, %v10609
        %v11345 = vpack.c.b16 %v10624, %v10617
        %v11346 = vpack.c.b16 %v10625, %v10618
        %v11347 = vpack.c.b16 %v10626, %v10619
        %v11348 = vpack.c.b16 %v10627, %v10620
        %v11349 = vpack.c.b16 %v10628, %v10621
        %v11350 = vpack.c.b16 %v10629, %v10622
        %v11351 = vpack.c.b16 %v10630, %v10623
        %v11352 = vpack.c.b16 %v10638, %v10631
        %v11353 = vpack.c.b16 %v10639, %v10632
        %v11354 = vpack.c.b16 %v10640, %v10633
        %v11355 = vpack.c.b16 %v10641, %v10634
        %v11356 = vpack.c.b16 %v10642, %v10635
        %v11357 = vpack.c.b16 %v10643, %v10636
        %v11358 = vpack.c.b16 %v10644, %v10637
        %v11359 = vpack.c.b16 %v10652, %v10645
        %v11360 = vpack.c.b16 %v10653, %v10646
        %v11361 = vpack.c.b16 %v10654, %v10647
        %v11362 = vpack.c.b16 %v10655, %v10648
        %v11363 = vpack.c.b16 %v10656, %v10649
        %v11364 = vpack.c.b16 %v10657, %v10650
        %v11365 = vpack.c.b16 %v10658, %v10651
        %v11366 = vpack.c.b16 %v10666, %v10659
        %v11367 = vpack.c.b16 %v10667, %v10660
        %v11368 = vpack.c.b16 %v10668, %v10661
        %v11369 = vpack.c.b16 %v10669, %v10662
        %v11370 = vpack.c.b16 %v10670, %v10663
        %v11371 = vpack.c.b16 %v10671, %v10664
        %v11372 = vpack.c.b16 %v10672, %v10665
        %v11373 = vpack.c.b16 %v10680, %v10673
        %v11374 = vpack.c.b16 %v10681, %v10674
        %v11375 = vpack.c.b16 %v10682, %v10675
        %v11376 = vpack.c.b16 %v10683, %v10676
        %v11377 = vpack.c.b16 %v10684, %v10677
        %v11378 = vpack.c.b16 %v10685, %v10678
        %v11379 = vpack.c.b16 %v10686, %v10679
        %v11380 = vpack.c.b16 %v10694, %v10687
        %v11381 = vpack.c.b16 %v10695, %v10688
        %v11382 = vpack.c.b16 %v10696, %v10689
        %v11383 = vpack.c.b16 %v10697, %v10690
        %v11384 = vpack.c.b16 %v10698, %v10691
        %v11385 = vpack.c.b16 %v10699, %v10692
        %v11386 = vpack.c.b16 %v10700, %v10693
        %v11387 = vpack.c.b16 %v10708, %v10701
        %v11388 = vpack.c.b16 %v10709, %v10702
        %v11389 = vpack.c.b16 %v10710, %v10703
        %v11390 = vpack.c.b16 %v10711, %v10704
        %v11391 = vpack.c.b16 %v10712, %v10705
        %v11392 = vpack.c.b16 %v10713, %v10706
        %v11393 = vpack.c.b16 %v10714, %v10707
        %v11394 = vpack.c.b16 %v10722, %v10715
        %v11395 = vpack.c.b16 %v10723, %v10716
        %v11396 = vpack.c.b16 %v10724, %v10717
        %v11397 = vpack.c.b16 %v10725, %v10718
        %v11398 = vpack.c.b16 %v10726, %v10719
        %v11399 = vpack.c.b16 %v10727, %v10720
        %v11400 = vpack.c.b16 %v10728, %v10721
        %v11401 = vpack.c.b16 %v10736, %v10729
        %v11402 = vpack.c.b16 %v10737, %v10730
        %v11403 = vpack.c.b16 %v10738, %v10731
        %v11404 = vpack.c.b16 %v10739, %v10732
        %v11405 = vpack.c.b16 %v10740, %v10733
        %v11406 = vpack.c.b16 %v10741, %v10734
        %v11407 = vpack.c.b16 %v10742, %v10735
        %v11408 = vpack.c.b16 %v10750, %v10743
        %v11409 = vpack.c.b16 %v10751, %v10744
        %v11410 = vpack.c.b16 %v10752, %v10745
        %v11411 = vpack.c.b16 %v10753, %v10746
        %v11412 = vpack.c.b16 %v10754, %v10747
        %v11413 = vpack.c.b16 %v10755, %v10748
        %v11414 = vpack.c.b16 %v10756, %v10749
        %v11415 = vpack.c.b16 %v10764, %v10757
        %v11416 = vpack.c.b16 %v10765, %v10758
        %v11417 = vpack.c.b16 %v10766, %v10759
        %v11418 = vpack.c.b16 %v10767, %v10760
        %v11419 = vpack.c.b16 %v10768, %v10761
        %v11420 = vpack.c.b16 %v10769, %v10762
        %v11421 = vpack.c.b16 %v10770, %v10763
        %v11422 = vpack.c.b16 %v10778, %v10771
        %v11423 = vpack.c.b16 %v10779, %v10772
        %v11424 = vpack.c.b16 %v10780, %v10773
        %v11425 = vpack.c.b16 %v10781, %v10774
        %v11426 = vpack.c.b16 %v10782, %v10775
        %v11427 = vpack.c.b16 %v10783, %v10776
        %v11428 = vpack.c.b16 %v10784, %v10777
        %v11429 = vpack.c.b16 %v10792, %v10785
        %v11430 = vpack.c.b16 %v10793, %v10786
        %v11431 = vpack.c.b16 %v10794, %v10787
        %v11432 = vpack.c.b16 %v10795, %v10788
        %v11433 = vpack.c.b16 %v10796, %v10789
        %v11434 = vpack.c.b16 %v10797, %v10790
        %v11435 = vpack.c.b16 %v10798, %v10791
        %v11436 = vpack.c.b16 %v10806, %v10799
        %v11437 = vpack.c.b16 %v10807, %v10800
        %v11438 = vpack.c.b16 %v10808, %v10801
        %v11439 = vpack.c.b16 %v10809, %v10802
        %v11440 = vpack.c.b16 %v10810, %v10803
        %v11441 = vpack.c.b16 %v10811, %v10804
        %v11442 = vpack.c.b16 %v10812, %v10805
        %v11443 = vpack.c.b16 %v10820, %v10813
        %v11444 = vpack.c.b16 %v10821, %v10814
        %v11445 = vpack.c.b16 %v10822, %v10815
        %v11446 = vpack.c.b16 %v10823, %v10816
        %v11447 = vpack.c.b16 %v10824, %v10817
        %v11448 = vpack.c.b16 %v10825, %v10818
        %v11449 = vpack.c.b16 %v10826, %v10819
        %v11450 = vpack.c.b16 %v10834, %v10827
        %v11451 = vpack.c.b16 %v10835, %v10828
        %v11452 = vpack.c.b16 %v10836, %v10829
        %v11453 = vpack.c.b16 %v10837, %v10830
        %v11454 = vpack.c.b16 %v10838, %v10831
        %v11455 = vpack.c.b16 %v10839, %v10832
        %v11456 = vpack.c.b16 %v10840, %v10833
        %v11457 = vpack.c.b16 %v10848, %v10841
        %v11458 = vpack.c.b16 %v10849, %v10842
        %v11459 = vpack.c.b16 %v10850, %v10843
        %v11460 = vpack.c.b16 %v10851, %v10844
        %v11461 = vpack.c.b16 %v10852, %v10845
        %v11462 = vpack.c.b16 %v10853, %v10846
        %v11463 = vpack.c.b16 %v10854, %v10847
        %v11464 = vpack.c.b16 %v10862, %v10855
        %v11465 = vpack.c.b16 %v10863, %v10856
        %v11466 = vpack.c.b16 %v10864, %v10857
        %v11467 = vpack.c.b16 %v10865, %v10858
        %v11468 = vpack.c.b16 %v10866, %v10859
        %v11469 = vpack.c.b16 %v10867, %v10860
        %v11470 = vpack.c.b16 %v10868, %v10861
        %v11471 = vpack.c.b16 %v10876, %v10869
        %v11472 = vpack.c.b16 %v10877, %v10870
        %v11473 = vpack.c.b16 %v10878, %v10871
        %v11474 = vpack.c.b16 %v10879, %v10872
        %v11475 = vpack.c.b16 %v10880, %v10873
        %v11476 = vpack.c.b16 %v10881, %v10874
        %v11477 = vpack.c.b16 %v10882, %v10875
        %v11478 = vpack.c.b16 %v10890, %v10883
        %v11479 = vpack.c.b16 %v10891, %v10884
        %v11480 = vpack.c.b16 %v10892, %v10885
        %v11481 = vpack.c.b16 %v10893, %v10886
        %v11482 = vpack.c.b16 %v10894, %v10887
        %v11483 = vpack.c.b16 %v10895, %v10888
        %v11484 = vpack.c.b16 %v10896, %v10889
        %v11485 = vpack.c.b16 %v10904, %v10897
        %v11486 = vpack.c.b16 %v10905, %v10898
        %v11487 = vpack.c.b16 %v10906, %v10899
        %v11488 = vpack.c.b16 %v10907, %v10900
        %v11489 = vpack.c.b16 %v10908, %v10901
        %v11490 = vpack.c.b16 %v10909, %v10902
        %v11491 = vpack.c.b16 %v10910, %v10903
        %v11492 = vpack.c.b16 %v10918, %v10911
        %v11493 = vpack.c.b16 %v10919, %v10912
        %v11494 = vpack.c.b16 %v10920, %v10913
        %v11495 = vpack.c.b16 %v10921, %v10914
        %v11496 = vpack.c.b16 %v10922, %v10915
        %v11497 = vpack.c.b16 %v10923, %v10916
        %v11498 = vpack.c.b16 %v10924, %v10917
        %v11499 = vpack.c.b16 %v10932, %v10925
        %v11500 = vpack.c.b16 %v10933, %v10926
        %v11501 = vpack.c.b16 %v10934, %v10927
        %v11502 = vpack.c.b16 %v10935, %v10928
        %v11503 = vpack.c.b16 %v10936, %v10929
        %v11504 = vpack.c.b16 %v10937, %v10930
        %v11505 = vpack.c.b16 %v10938, %v10931
        %v11506 = vpack.c.b16 %v10946, %v10939
        %v11507 = vpack.c.b16 %v10947, %v10940
        %v11508 = vpack.c.b16 %v10948, %v10941
        %v11509 = vpack.c.b16 %v10949, %v10942
        %v11510 = vpack.c.b16 %v10950, %v10943
        %v11511 = vpack.c.b16 %v10951, %v10944
        %v11512 = vpack.c.b16 %v10952, %v10945
        %v11513 = vpack.c.b16 %v10960, %v10953
        %v11514 = vpack.c.b16 %v10961, %v10954
        %v11515 = vpack.c.b16 %v10962, %v10955
        %v11516 = vpack.c.b16 %v10963, %v10956
        %v11517 = vpack.c.b16 %v10964, %v10957
        %v11518 = vpack.c.b16 %v10965, %v10958
        %v11519 = vpack.c.b16 %v10966, %v10959
        %v11520 = vpack.c.b16 %v10974, %v10967
        %v11521 = vpack.c.b16 %v10975, %v10968
        %v11522 = vpack.c.b16 %v10976, %v10969
        %v11523 = vpack.c.b16 %v10977, %v10970
        %v11524 = vpack.c.b16 %v10978, %v10971
        %v11525 = vpack.c.b16 %v10979, %v10972
        %v11526 = vpack.c.b16 %v10980, %v10973
        %v11527 = vpack.c.b16 %v10988, %v10981
        %v11528 = vpack.c.b16 %v10989, %v10982
        %v11529 = vpack.c.b16 %v10990, %v10983
        %v11530 = vpack.c.b16 %v10991, %v10984
        %v11531 = vpack.c.b16 %v10992, %v10985
        %v11532 = vpack.c.b16 %v10993, %v10986
        %v11533 = vpack.c.b16 %v10994, %v10987
        %v11534 = vpack.c.b16 %v11002, %v10995
        %v11535 = vpack.c.b16 %v11003, %v10996
        %v11536 = vpack.c.b16 %v11004, %v10997
        %v11537 = vpack.c.b16 %v11005, %v10998
        %v11538 = vpack.c.b16 %v11006, %v10999
        %v11539 = vpack.c.b16 %v11007, %v11000
        %v11540 = vpack.c.b16 %v11008, %v11001
        %v11541 = vpack.c.b16 %v11016, %v11009
        %v11542 = vpack.c.b16 %v11017, %v11010
        %v11543 = vpack.c.b16 %v11018, %v11011
        %v11544 = vpack.c.b16 %v11019, %v11012
        %v11545 = vpack.c.b16 %v11020, %v11013
        %v11546 = vpack.c.b16 %v11021, %v11014
        %v11547 = vpack.c.b16 %v11022, %v11015
        %v11548 = vpack.c.b16 %v11030, %v11023
        %v11549 = vpack.c.b16 %v11031, %v11024
        %v11550 = vpack.c.b16 %v11032, %v11025
        %v11551 = vpack.c.b16 %v11033, %v11026
        %v11552 = vpack.c.b16 %v11034, %v11027
        %v11553 = vpack.c.b16 %v11035, %v11028
        %v11554 = vpack.c.b16 %v11036, %v11029
        %v11555 = vpack.c.b16 %v11044, %v11037
        %v11556 = vpack.c.b16 %v11045, %v11038
        %v11557 = vpack.c.b16 %v11046, %v11039
        %v11558 = vpack.c.b16 %v11047, %v11040
        %v11559 = vpack.c.b16 %v11048, %v11041
        %v11560 = vpack.c.b16 %v11049, %v11042
        %v11561 = vpack.c.b16 %v11050, %v11043
        %v11562 = vpack.c.b16 %v11058, %v11051
        %v11563 = vpack.c.b16 %v11059, %v11052
        %v11564 = vpack.c.b16 %v11060, %v11053
        %v11565 = vpack.c.b16 %v11061, %v11054
        %v11566 = vpack.c.b16 %v11062, %v11055
        %v11567 = vpack.c.b16 %v11063, %v11056
        %v11568 = vpack.c.b16 %v11064, %v11057
        %v11569 = vpack.c.b16 %v11072, %v11065
        %v11570 = vpack.c.b16 %v11073, %v11066
        %v11571 = vpack.c.b16 %v11074, %v11067
        %v11572 = vpack.c.b16 %v11075, %v11068
        %v11573 = vpack.c.b16 %v11076, %v11069
        %v11574 = vpack.c.b16 %v11077, %v11070
        %v11575 = vpack.c.b16 %v11078, %v11071
        %v11576 = vpack.c.b16 %v11086, %v11079
        %v11577 = vpack.c.b16 %v11087, %v11080
        %v11578 = vpack.c.b16 %v11088, %v11081
        %v11579 = vpack.c.b16 %v11089, %v11082
        %v11580 = vpack.c.b16 %v11090, %v11083
        %v11581 = vpack.c.b16 %v11091, %v11084
        %v11582 = vpack.c.b16 %v11092, %v11085
        %v11583 = vpack.c.b16 %v11100, %v11093
        %v11584 = vpack.c.b16 %v11101, %v11094
        %v11585 = vpack.c.b16 %v11102, %v11095
        %v11586 = vpack.c.b16 %v11103, %v11096
        %v11587 = vpack.c.b16 %v11104, %v11097
        %v11588 = vpack.c.b16 %v11105, %v11098
        %v11589 = vpack.c.b16 %v11106, %v11099
        %v11590 = vpack.c.b16 %v11114, %v11107
        %v11591 = vpack.c.b16 %v11115, %v11108
        %v11592 = vpack.c.b16 %v11116, %v11109
        %v11593 = vpack.c.b16 %v11117, %v11110
        %v11594 = vpack.c.b16 %v11118, %v11111
        %v11595 = vpack.c.b16 %v11119, %v11112
        %v11596 = vpack.c.b16 %v11120, %v11113
        %v11597 = vpack.c.b16 %v11128, %v11121
        %v11598 = vpack.c.b16 %v11129, %v11122
        %v11599 = vpack.c.b16 %v11130, %v11123
        %v11600 = vpack.c.b16 %v11131, %v11124
        %v11601 = vpack.c.b16 %v11132, %v11125
        %v11602 = vpack.c.b16 %v11133, %v11126
        %v11603 = vpack.c.b16 %v11134, %v11127
        %v11604 = vpack.c.b16 %v11142, %v11135
        %v11605 = vpack.c.b16 %v11143, %v11136
        %v11606 = vpack.c.b16 %v11144, %v11137
        %v11607 = vpack.c.b16 %v11145, %v11138
        %v11608 = vpack.c.b16 %v11146, %v11139
        %v11609 = vpack.c.b16 %v11147, %v11140
        %v11610 = vpack.c.b16 %v11148, %v11141
        %v11611 = vpack.c.b16 %v11156, %v11149
        %v11612 = vpack.c.b16 %v11157, %v11150
        %v11613 = vpack.c.b16 %v11158, %v11151
        %v11614 = vpack.c.b16 %v11159, %v11152
        %v11615 = vpack.c.b16 %v11160, %v11153
        %v11616 = vpack.c.b16 %v11161, %v11154
        %v11617 = vpack.c.b16 %v11162, %v11155
        %v11618 = vpack.c.b16 %v11170, %v11163
        %v11619 = vpack.c.b16 %v11171, %v11164
        %v11620 = vpack.c.b16 %v11172, %v11165
        %v11621 = vpack.c.b16 %v11173, %v11166
        %v11622 = vpack.c.b16 %v11174, %v11167
        %v11623 = vpack.c.b16 %v11175, %v11168
        %v11624 = vpack.c.b16 %v11176, %v11169
        %12073 = vmatprep.subr.bf16.mxu0 %v11227
        %12074 = vmatpush1.bf16.msra.mxu0 %v11226
        %12075 = vmatprep.subr.bf16.mxu0 %v11220
        %12076 = vmatpush1.bf16.msra.mxu0 %v11219
        %12077 = vmatprep.subr.bf16.mxu0 %v11213
        %12078 = vmatpush1.bf16.msra.mxu0 %v11212
        %12079 = vmatprep.subr.bf16.mxu0 %v11206
        %12080 = vmatpush1.bf16.msra.mxu0 %v11205
        %12081 = vmatprep.subr.bf16.mxu0 %v11199
        %12082 = vmatpush1.bf16.msra.mxu0 %v11198
        %12083 = vmatprep.subr.bf16.mxu0 %v11192
        %12084 = vmatpush1.bf16.msra.mxu0 %v11191
        %12085 = vmatprep.subr.bf16.mxu0 %v11185
        %12086 = vmatpush1.bf16.msra.mxu0 %v11184
        %12087 = vmatprep.subr.bf16.mxu0 %v11178
        %12088 = vmatpush1.bf16.msra.mxu0 %v11177
        %12089 = vmatprep.subr.bf16.mxu0 %v11283
        %12090 = vmatpush2.bf16.msra.mxu0 %v11282
        %12091 = vmatprep.subr.bf16.mxu0 %v11276
        %12092 = vmatpush2.bf16.msra.mxu0 %v11275
        %12093 = vmatprep.subr.bf16.mxu0 %v11269
        %12094 = vmatpush2.bf16.msra.mxu0 %v11268
        %12095 = vmatprep.subr.bf16.mxu0 %v11262
        %12096 = vmatpush2.bf16.msra.mxu0 %v11261
        %12097 = vmatprep.subr.bf16.mxu0 %v11255
        %12098 = vmatpush2.bf16.msra.mxu0 %v11254
        %12099 = vmatprep.subr.bf16.mxu0 %v11248
        %12100 = vmatpush2.bf16.msra.mxu0 %v11247
        %12101 = vmatprep.subr.bf16.mxu0 %v11241
        %12102 = vmatpush2.bf16.msra.mxu0 %v11240
        %12103 = vmatprep.subr.bf16.mxu0 %v11234
        %12104 = vmatpush2.bf16.msra.mxu0 %v11233
        %12105 = vmatprep.mubr.bf16.mxu0 %v9250
        %12106 = vmatmul.mubr.bf16.gmra.mxu0 %v9249
        %v12107 = vpop.f32.mrf.mxu0
        %v12108 = vadd.f32 %v3608, %v12107
        %v12109 = vpop.f32.mrf.mxu0
        %v12110 = vadd.f32 %v3612, %v12109
        %v12111 = vpop.f32.mrf.mxu0
        %v12112 = vadd.f32 %v3608, %v12111
        %v12113 = vpop.f32.mrf.mxu0
        %v12114 = vadd.f32 %v3612, %v12113
        %12115 = vdwg.mxu0
        %12116 = vmatprep.subr.bf16.mxu0 %v11339
        %12117 = vmatpush1.bf16.msra.mxu0 %v11338
        %12118 = vmatprep.subr.bf16.mxu0 %v11332
        %12119 = vmatpush1.bf16.msra.mxu0 %v11331
        %12120 = vmatprep.subr.bf16.mxu0 %v11325
        %12121 = vmatpush1.bf16.msra.mxu0 %v11324
        %12122 = vmatprep.subr.bf16.mxu0 %v11318
        %12123 = vmatpush1.bf16.msra.mxu0 %v11317
        %12124 = vmatprep.subr.bf16.mxu0 %v11311
        %12125 = vmatpush1.bf16.msra.mxu0 %v11310
        %12126 = vmatprep.subr.bf16.mxu0 %v11304
        %12127 = vmatpush1.bf16.msra.mxu0 %v11303
        %12128 = vmatprep.subr.bf16.mxu0 %v11297
        %12129 = vmatpush1.bf16.msra.mxu0 %v11296
        %12130 = vmatprep.subr.bf16.mxu0 %v11290
        %12131 = vmatpush1.bf16.msra.mxu0 %v11289
        %12132 = vmatprep.subr.bf16.mxu0 %v11395
        %12133 = vmatpush2.bf16.msra.mxu0 %v11394
        %12134 = vmatprep.subr.bf16.mxu0 %v11388
        %12135 = vmatpush2.bf16.msra.mxu0 %v11387
        %12136 = vmatprep.subr.bf16.mxu0 %v11381
        %12137 = vmatpush2.bf16.msra.mxu0 %v11380
        %12138 = vmatprep.subr.bf16.mxu0 %v11374
        %12139 = vmatpush2.bf16.msra.mxu0 %v11373
        %12140 = vmatprep.subr.bf16.mxu0 %v11367
        %12141 = vmatpush2.bf16.msra.mxu0 %v11366
        %12142 = vmatprep.subr.bf16.mxu0 %v11360
        %12143 = vmatpush2.bf16.msra.mxu0 %v11359
        %12144 = vmatprep.subr.bf16.mxu0 %v11353
        %12145 = vmatpush2.bf16.msra.mxu0 %v11352
        %12146 = vmatprep.subr.bf16.mxu0 %v11346
        %12147 = vmatpush2.bf16.msra.mxu0 %v11345
        %12148 = vmatprep.mubr.bf16.mxu0 %v9252
        %12149 = vmatmul.mubr.bf16.gmra.mxu0 %v9251
        %v12150 = vpop.f32.mrf.mxu0
        %v12151 = vadd.f32 %v12108, %v12150
        %v12152 = vpop.f32.mrf.mxu0
        %v12153 = vadd.f32 %v12110, %v12152
        %v12154 = vpop.f32.mrf.mxu0
        %v12155 = vadd.f32 %v12112, %v12154
        %v12156 = vpop.f32.mrf.mxu0
        %v12157 = vadd.f32 %v12114, %v12156
        %12158 = vdwg.mxu0
        %12159 = vmatprep.subr.bf16.mxu0 %v11451
        %12160 = vmatpush1.bf16.msra.mxu0 %v11450
        %12161 = vmatprep.subr.bf16.mxu0 %v11444
        %12162 = vmatpush1.bf16.msra.mxu0 %v11443
        %12163 = vmatprep.subr.bf16.mxu0 %v11437
        %12164 = vmatpush1.bf16.msra.mxu0 %v11436
        %12165 = vmatprep.subr.bf16.mxu0 %v11430
        %12166 = vmatpush1.bf16.msra.mxu0 %v11429
        %12167 = vmatprep.subr.bf16.mxu0 %v11423
        %12168 = vmatpush1.bf16.msra.mxu0 %v11422
        %12169 = vmatprep.subr.bf16.mxu0 %v11416
        %12170 = vmatpush1.bf16.msra.mxu0 %v11415
        %12171 = vmatprep.subr.bf16.mxu0 %v11409
        %12172 = vmatpush1.bf16.msra.mxu0 %v11408
        %12173 = vmatprep.subr.bf16.mxu0 %v11402
        %12174 = vmatpush1.bf16.msra.mxu0 %v11401
        %12175 = vmatprep.subr.bf16.mxu0 %v11507
        %12176 = vmatpush2.bf16.msra.mxu0 %v11506
        %12177 = vmatprep.subr.bf16.mxu0 %v11500
        %12178 = vmatpush2.bf16.msra.mxu0 %v11499
        %12179 = vmatprep.subr.bf16.mxu0 %v11493
        %12180 = vmatpush2.bf16.msra.mxu0 %v11492
        %12181 = vmatprep.subr.bf16.mxu0 %v11486
        %12182 = vmatpush2.bf16.msra.mxu0 %v11485
        %12183 = vmatprep.subr.bf16.mxu0 %v11479
        %12184 = vmatpush2.bf16.msra.mxu0 %v11478
        %12185 = vmatprep.subr.bf16.mxu0 %v11472
        %12186 = vmatpush2.bf16.msra.mxu0 %v11471
        %12187 = vmatprep.subr.bf16.mxu0 %v11465
        %12188 = vmatpush2.bf16.msra.mxu0 %v11464
        %12189 = vmatprep.subr.bf16.mxu0 %v11458
        %12190 = vmatpush2.bf16.msra.mxu0 %v11457
        %12191 = vmatprep.mubr.bf16.mxu0 %v9254
        %12192 = vmatmul.mubr.bf16.gmra.mxu0 %v9253
        %v12193 = vpop.f32.mrf.mxu0
        %v12194 = vadd.f32 %v12151, %v12193
        %v12195 = vpop.f32.mrf.mxu0
        %v12196 = vadd.f32 %v12153, %v12195
        %v12197 = vpop.f32.mrf.mxu0
        %v12198 = vadd.f32 %v12155, %v12197
        %v12199 = vpop.f32.mrf.mxu0
        %v12200 = vadd.f32 %v12157, %v12199
        %12201 = vdwg.mxu0
        %12202 = vmatprep.subr.bf16.mxu0 %v11563
        %12203 = vmatpush1.bf16.msra.mxu0 %v11562
        %12204 = vmatprep.subr.bf16.mxu0 %v11556
        %12205 = vmatpush1.bf16.msra.mxu0 %v11555
        %12206 = vmatprep.subr.bf16.mxu0 %v11549
        %12207 = vmatpush1.bf16.msra.mxu0 %v11548
        %12208 = vmatprep.subr.bf16.mxu0 %v11542
        %12209 = vmatpush1.bf16.msra.mxu0 %v11541
        %12210 = vmatprep.subr.bf16.mxu0 %v11535
        %12211 = vmatpush1.bf16.msra.mxu0 %v11534
        %12212 = vmatprep.subr.bf16.mxu0 %v11528
        %12213 = vmatpush1.bf16.msra.mxu0 %v11527
        %12214 = vmatprep.subr.bf16.mxu0 %v11521
        %12215 = vmatpush1.bf16.msra.mxu0 %v11520
        %12216 = vmatprep.subr.bf16.mxu0 %v11514
        %12217 = vmatpush1.bf16.msra.mxu0 %v11513
        %12218 = vmatprep.subr.bf16.mxu0 %v11619
        %12219 = vmatpush2.bf16.msra.mxu0 %v11618
        %12220 = vmatprep.subr.bf16.mxu0 %v11612
        %12221 = vmatpush2.bf16.msra.mxu0 %v11611
        %12222 = vmatprep.subr.bf16.mxu0 %v11605
        %12223 = vmatpush2.bf16.msra.mxu0 %v11604
        %12224 = vmatprep.subr.bf16.mxu0 %v11598
        %12225 = vmatpush2.bf16.msra.mxu0 %v11597
        %12226 = vmatprep.subr.bf16.mxu0 %v11591
        %12227 = vmatpush2.bf16.msra.mxu0 %v11590
        %12228 = vmatprep.subr.bf16.mxu0 %v11584
        %12229 = vmatpush2.bf16.msra.mxu0 %v11583
        %12230 = vmatprep.subr.bf16.mxu0 %v11577
        %12231 = vmatpush2.bf16.msra.mxu0 %v11576
        %12232 = vmatprep.subr.bf16.mxu0 %v11570
        %12233 = vmatpush2.bf16.msra.mxu0 %v11569
        %12234 = vmatprep.mubr.bf16.mxu0 %v9256
        %12235 = vmatmul.mubr.bf16.gmra.mxu0 %v9255
        %v12236 = vpop.f32.mrf.mxu0
        %v12237 = vadd.f32 %v12194, %v12236
        %v12238 = vpop.f32.mrf.mxu0
        %v12239 = vadd.f32 %v12196, %v12238
        %v12240 = vpop.f32.mrf.mxu0
        %v12241 = vadd.f32 %v12198, %v12240
        %v12242 = vpop.f32.mrf.mxu0
        %v12243 = vadd.f32 %v12200, %v12242
        %12244 = vdwg.mxu0
        %12245 = vmatprep.subr.bf16.mxu0 %v11229
        %12246 = vmatpush1.bf16.msra.mxu0 %v11228
        %12247 = vmatprep.subr.bf16.mxu0 %v11222
        %12248 = vmatpush1.bf16.msra.mxu0 %v11221
        %12249 = vmatprep.subr.bf16.mxu0 %v11215
        %12250 = vmatpush1.bf16.msra.mxu0 %v11214
        %12251 = vmatprep.subr.bf16.mxu0 %v11208
        %12252 = vmatpush1.bf16.msra.mxu0 %v11207
        %12253 = vmatprep.subr.bf16.mxu0 %v11201
        %12254 = vmatpush1.bf16.msra.mxu0 %v11200
        %12255 = vmatprep.subr.bf16.mxu0 %v11194
        %12256 = vmatpush1.bf16.msra.mxu0 %v11193
        %12257 = vmatprep.subr.bf16.mxu0 %v11187
        %12258 = vmatpush1.bf16.msra.mxu0 %v11186
        %12259 = vmatprep.subr.bf16.mxu0 %v11180
        %12260 = vmatpush1.bf16.msra.mxu0 %v11179
        %12261 = vmatprep.subr.bf16.mxu0 %v11285
        %12262 = vmatpush2.bf16.msra.mxu0 %v11284
        %12263 = vmatprep.subr.bf16.mxu0 %v11278
        %12264 = vmatpush2.bf16.msra.mxu0 %v11277
        %12265 = vmatprep.subr.bf16.mxu0 %v11271
        %12266 = vmatpush2.bf16.msra.mxu0 %v11270
        %12267 = vmatprep.subr.bf16.mxu0 %v11264
        %12268 = vmatpush2.bf16.msra.mxu0 %v11263
        %12269 = vmatprep.subr.bf16.mxu0 %v11257
        %12270 = vmatpush2.bf16.msra.mxu0 %v11256
        %12271 = vmatprep.subr.bf16.mxu0 %v11250
        %12272 = vmatpush2.bf16.msra.mxu0 %v11249
        %12273 = vmatprep.subr.bf16.mxu0 %v11243
        %12274 = vmatpush2.bf16.msra.mxu0 %v11242
        %12275 = vmatprep.subr.bf16.mxu0 %v11236
        %12276 = vmatpush2.bf16.msra.mxu0 %v11235
        %12277 = vmatprep.mubr.bf16.mxu0 %v9250
        %12278 = vmatmul.mubr.bf16.gmra.mxu0 %v9249
        %v12279 = vpop.f32.mrf.mxu0
        %v12280 = vadd.f32 %v3616, %v12279
        %v12281 = vpop.f32.mrf.mxu0
        %v12282 = vadd.f32 %v3620, %v12281
        %v12283 = vpop.f32.mrf.mxu0
        %v12284 = vadd.f32 %v3616, %v12283
        %v12285 = vpop.f32.mrf.mxu0
        %v12286 = vadd.f32 %v3620, %v12285
        %12287 = vdwg.mxu0
        %12288 = vmatprep.subr.bf16.mxu0 %v11341
        %12289 = vmatpush1.bf16.msra.mxu0 %v11340
        %12290 = vmatprep.subr.bf16.mxu0 %v11334
        %12291 = vmatpush1.bf16.msra.mxu0 %v11333
        %12292 = vmatprep.subr.bf16.mxu0 %v11327
        %12293 = vmatpush1.bf16.msra.mxu0 %v11326
        %12294 = vmatprep.subr.bf16.mxu0 %v11320
        %12295 = vmatpush1.bf16.msra.mxu0 %v11319
        %12296 = vmatprep.subr.bf16.mxu0 %v11313
        %12297 = vmatpush1.bf16.msra.mxu0 %v11312
        %12298 = vmatprep.subr.bf16.mxu0 %v11306
        %12299 = vmatpush1.bf16.msra.mxu0 %v11305
        %12300 = vmatprep.subr.bf16.mxu0 %v11299
        %12301 = vmatpush1.bf16.msra.mxu0 %v11298
        %12302 = vmatprep.subr.bf16.mxu0 %v11292
        %12303 = vmatpush1.bf16.msra.mxu0 %v11291
        %12304 = vmatprep.subr.bf16.mxu0 %v11397
        %12305 = vmatpush2.bf16.msra.mxu0 %v11396
        %12306 = vmatprep.subr.bf16.mxu0 %v11390
        %12307 = vmatpush2.bf16.msra.mxu0 %v11389
        %12308 = vmatprep.subr.bf16.mxu0 %v11383
        %12309 = vmatpush2.bf16.msra.mxu0 %v11382
        %12310 = vmatprep.subr.bf16.mxu0 %v11376
        %12311 = vmatpush2.bf16.msra.mxu0 %v11375
        %12312 = vmatprep.subr.bf16.mxu0 %v11369
        %12313 = vmatpush2.bf16.msra.mxu0 %v11368
        %12314 = vmatprep.subr.bf16.mxu0 %v11362
        %12315 = vmatpush2.bf16.msra.mxu0 %v11361
        %12316 = vmatprep.subr.bf16.mxu0 %v11355
        %12317 = vmatpush2.bf16.msra.mxu0 %v11354
        %12318 = vmatprep.subr.bf16.mxu0 %v11348
        %12319 = vmatpush2.bf16.msra.mxu0 %v11347
        %12320 = vmatprep.mubr.bf16.mxu0 %v9252
        %12321 = vmatmul.mubr.bf16.gmra.mxu0 %v9251
        %v12322 = vpop.f32.mrf.mxu0
        %v12323 = vadd.f32 %v12280, %v12322
        %v12324 = vpop.f32.mrf.mxu0
        %v12325 = vadd.f32 %v12282, %v12324
        %v12326 = vpop.f32.mrf.mxu0
        %v12327 = vadd.f32 %v12284, %v12326
        %v12328 = vpop.f32.mrf.mxu0
        %v12329 = vadd.f32 %v12286, %v12328
        %12330 = vdwg.mxu0
        %12331 = vmatprep.subr.bf16.mxu0 %v11453
        %12332 = vmatpush1.bf16.msra.mxu0 %v11452
        %12333 = vmatprep.subr.bf16.mxu0 %v11446
        %12334 = vmatpush1.bf16.msra.mxu0 %v11445
        %12335 = vmatprep.subr.bf16.mxu0 %v11439
        %12336 = vmatpush1.bf16.msra.mxu0 %v11438
        %12337 = vmatprep.subr.bf16.mxu0 %v11432
        %12338 = vmatpush1.bf16.msra.mxu0 %v11431
        %12339 = vmatprep.subr.bf16.mxu0 %v11425
        %12340 = vmatpush1.bf16.msra.mxu0 %v11424
        %12341 = vmatprep.subr.bf16.mxu0 %v11418
        %12342 = vmatpush1.bf16.msra.mxu0 %v11417
        %12343 = vmatprep.subr.bf16.mxu0 %v11411
        %12344 = vmatpush1.bf16.msra.mxu0 %v11410
        %12345 = vmatprep.subr.bf16.mxu0 %v11404
        %12346 = vmatpush1.bf16.msra.mxu0 %v11403
        %12347 = vmatprep.subr.bf16.mxu0 %v11509
        %12348 = vmatpush2.bf16.msra.mxu0 %v11508
        %12349 = vmatprep.subr.bf16.mxu0 %v11502
        %12350 = vmatpush2.bf16.msra.mxu0 %v11501
        %12351 = vmatprep.subr.bf16.mxu0 %v11495
        %12352 = vmatpush2.bf16.msra.mxu0 %v11494
        %12353 = vmatprep.subr.bf16.mxu0 %v11488
        %12354 = vmatpush2.bf16.msra.mxu0 %v11487
        %12355 = vmatprep.subr.bf16.mxu0 %v11481
        %12356 = vmatpush2.bf16.msra.mxu0 %v11480
        %12357 = vmatprep.subr.bf16.mxu0 %v11474
        %12358 = vmatpush2.bf16.msra.mxu0 %v11473
        %12359 = vmatprep.subr.bf16.mxu0 %v11467
        %12360 = vmatpush2.bf16.msra.mxu0 %v11466
        %12361 = vmatprep.subr.bf16.mxu0 %v11460
        %12362 = vmatpush2.bf16.msra.mxu0 %v11459
        %12363 = vmatprep.mubr.bf16.mxu0 %v9254
        %12364 = vmatmul.mubr.bf16.gmra.mxu0 %v9253
        %v12365 = vpop.f32.mrf.mxu0
        %v12366 = vadd.f32 %v12323, %v12365
        %v12367 = vpop.f32.mrf.mxu0
        %v12368 = vadd.f32 %v12325, %v12367
        %v12369 = vpop.f32.mrf.mxu0
        %v12370 = vadd.f32 %v12327, %v12369
        %v12371 = vpop.f32.mrf.mxu0
        %v12372 = vadd.f32 %v12329, %v12371
        %12373 = vdwg.mxu0
        %12374 = vmatprep.subr.bf16.mxu0 %v11565
        %12375 = vmatpush1.bf16.msra.mxu0 %v11564
        %12376 = vmatprep.subr.bf16.mxu0 %v11558
        %12377 = vmatpush1.bf16.msra.mxu0 %v11557
        %12378 = vmatprep.subr.bf16.mxu0 %v11551
        %12379 = vmatpush1.bf16.msra.mxu0 %v11550
        %12380 = vmatprep.subr.bf16.mxu0 %v11544
        %12381 = vmatpush1.bf16.msra.mxu0 %v11543
        %12382 = vmatprep.subr.bf16.mxu0 %v11537
        %12383 = vmatpush1.bf16.msra.mxu0 %v11536
        %12384 = vmatprep.subr.bf16.mxu0 %v11530
        %12385 = vmatpush1.bf16.msra.mxu0 %v11529
        %12386 = vmatprep.subr.bf16.mxu0 %v11523
        %12387 = vmatpush1.bf16.msra.mxu0 %v11522
        %12388 = vmatprep.subr.bf16.mxu0 %v11516
        %12389 = vmatpush1.bf16.msra.mxu0 %v11515
        %12390 = vmatprep.subr.bf16.mxu0 %v11621
        %12391 = vmatpush2.bf16.msra.mxu0 %v11620
        %12392 = vmatprep.subr.bf16.mxu0 %v11614
        %12393 = vmatpush2.bf16.msra.mxu0 %v11613
        %12394 = vmatprep.subr.bf16.mxu0 %v11607
        %12395 = vmatpush2.bf16.msra.mxu0 %v11606
        %12396 = vmatprep.subr.bf16.mxu0 %v11600
        %12397 = vmatpush2.bf16.msra.mxu0 %v11599
        %12398 = vmatprep.subr.bf16.mxu0 %v11593
        %12399 = vmatpush2.bf16.msra.mxu0 %v11592
        %12400 = vmatprep.subr.bf16.mxu0 %v11586
        %12401 = vmatpush2.bf16.msra.mxu0 %v11585
        %12402 = vmatprep.subr.bf16.mxu0 %v11579
        %12403 = vmatpush2.bf16.msra.mxu0 %v11578
        %12404 = vmatprep.subr.bf16.mxu0 %v11572
        %12405 = vmatpush2.bf16.msra.mxu0 %v11571
        %12406 = vmatprep.mubr.bf16.mxu0 %v9256
        %12407 = vmatmul.mubr.bf16.gmra.mxu0 %v9255
        %v12408 = vpop.f32.mrf.mxu0
        %v12409 = vadd.f32 %v12366, %v12408
        %v12410 = vpop.f32.mrf.mxu0
        %v12411 = vadd.f32 %v12368, %v12410
        %v12412 = vpop.f32.mrf.mxu0
        %v12413 = vadd.f32 %v12370, %v12412
        %v12414 = vpop.f32.mrf.mxu0
        %v12415 = vadd.f32 %v12372, %v12414
        %12416 = vdwg.mxu0
        %12417 = vmatprep.subr.bf16.mxu0 %v11231
        %12418 = vmatpush1.bf16.msra.mxu0 %v11230
        %12419 = vmatprep.subr.bf16.mxu0 %v11224
        %12420 = vmatpush1.bf16.msra.mxu0 %v11223
        %12421 = vmatprep.subr.bf16.mxu0 %v11217
        %12422 = vmatpush1.bf16.msra.mxu0 %v11216
        %12423 = vmatprep.subr.bf16.mxu0 %v11210
        %12424 = vmatpush1.bf16.msra.mxu0 %v11209
        %12425 = vmatprep.subr.bf16.mxu0 %v11203
        %12426 = vmatpush1.bf16.msra.mxu0 %v11202
        %12427 = vmatprep.subr.bf16.mxu0 %v11196
        %12428 = vmatpush1.bf16.msra.mxu0 %v11195
        %12429 = vmatprep.subr.bf16.mxu0 %v11189
        %12430 = vmatpush1.bf16.msra.mxu0 %v11188
        %12431 = vmatprep.subr.bf16.mxu0 %v11182
        %12432 = vmatpush1.bf16.msra.mxu0 %v11181
        %12433 = vmatprep.subr.bf16.mxu0 %v11287
        %12434 = vmatpush2.bf16.msra.mxu0 %v11286
        %12435 = vmatprep.subr.bf16.mxu0 %v11280
        %12436 = vmatpush2.bf16.msra.mxu0 %v11279
        %12437 = vmatprep.subr.bf16.mxu0 %v11273
        %12438 = vmatpush2.bf16.msra.mxu0 %v11272
        %12439 = vmatprep.subr.bf16.mxu0 %v11266
        %12440 = vmatpush2.bf16.msra.mxu0 %v11265
        %12441 = vmatprep.subr.bf16.mxu0 %v11259
        %12442 = vmatpush2.bf16.msra.mxu0 %v11258
        %12443 = vmatprep.subr.bf16.mxu0 %v11252
        %12444 = vmatpush2.bf16.msra.mxu0 %v11251
        %12445 = vmatprep.subr.bf16.mxu0 %v11245
        %12446 = vmatpush2.bf16.msra.mxu0 %v11244
        %12447 = vmatprep.subr.bf16.mxu0 %v11238
        %12448 = vmatpush2.bf16.msra.mxu0 %v11237
        %12449 = vmatprep.mubr.bf16.mxu0 %v9250
        %12450 = vmatmul.mubr.bf16.gmra.mxu0 %v9249
        %v12451 = vpop.f32.mrf.mxu0
        %v12452 = vadd.f32 %v3624, %v12451
        %v12453 = vpop.f32.mrf.mxu0
        %v12454 = vadd.f32 %v3628, %v12453
        %v12455 = vpop.f32.mrf.mxu0
        %v12456 = vadd.f32 %v3624, %v12455
        %v12457 = vpop.f32.mrf.mxu0
        %v12458 = vadd.f32 %v3628, %v12457
        %12459 = vdwg.mxu0
        %12460 = vmatprep.subr.bf16.mxu0 %v11343
        %12461 = vmatpush1.bf16.msra.mxu0 %v11342
        %12462 = vmatprep.subr.bf16.mxu0 %v11336
        %12463 = vmatpush1.bf16.msra.mxu0 %v11335
        %12464 = vmatprep.subr.bf16.mxu0 %v11329
        %12465 = vmatpush1.bf16.msra.mxu0 %v11328
        %12466 = vmatprep.subr.bf16.mxu0 %v11322
        %12467 = vmatpush1.bf16.msra.mxu0 %v11321
        %12468 = vmatprep.subr.bf16.mxu0 %v11315
        %12469 = vmatpush1.bf16.msra.mxu0 %v11314
        %12470 = vmatprep.subr.bf16.mxu0 %v11308
        %12471 = vmatpush1.bf16.msra.mxu0 %v11307
        %12472 = vmatprep.subr.bf16.mxu0 %v11301
        %12473 = vmatpush1.bf16.msra.mxu0 %v11300
        %12474 = vmatprep.subr.bf16.mxu0 %v11294
        %12475 = vmatpush1.bf16.msra.mxu0 %v11293
        %12476 = vmatprep.subr.bf16.mxu0 %v11399
        %12477 = vmatpush2.bf16.msra.mxu0 %v11398
        %12478 = vmatprep.subr.bf16.mxu0 %v11392
        %12479 = vmatpush2.bf16.msra.mxu0 %v11391
        %12480 = vmatprep.subr.bf16.mxu0 %v11385
        %12481 = vmatpush2.bf16.msra.mxu0 %v11384
        %12482 = vmatprep.subr.bf16.mxu0 %v11378
        %12483 = vmatpush2.bf16.msra.mxu0 %v11377
        %12484 = vmatprep.subr.bf16.mxu0 %v11371
        %12485 = vmatpush2.bf16.msra.mxu0 %v11370
        %12486 = vmatprep.subr.bf16.mxu0 %v11364
        %12487 = vmatpush2.bf16.msra.mxu0 %v11363
        %12488 = vmatprep.subr.bf16.mxu0 %v11357
        %12489 = vmatpush2.bf16.msra.mxu0 %v11356
        %12490 = vmatprep.subr.bf16.mxu0 %v11350
        %12491 = vmatpush2.bf16.msra.mxu0 %v11349
        %12492 = vmatprep.mubr.bf16.mxu0 %v9252
        %12493 = vmatmul.mubr.bf16.gmra.mxu0 %v9251
        %v12494 = vpop.f32.mrf.mxu0
        %v12495 = vadd.f32 %v12452, %v12494
        %v12496 = vpop.f32.mrf.mxu0
        %v12497 = vadd.f32 %v12454, %v12496
        %v12498 = vpop.f32.mrf.mxu0
        %v12499 = vadd.f32 %v12456, %v12498
        %v12500 = vpop.f32.mrf.mxu0
        %v12501 = vadd.f32 %v12458, %v12500
        %12502 = vdwg.mxu0
        %12503 = vmatprep.subr.bf16.mxu0 %v11455
        %12504 = vmatpush1.bf16.msra.mxu0 %v11454
        %12505 = vmatprep.subr.bf16.mxu0 %v11448
        %12506 = vmatpush1.bf16.msra.mxu0 %v11447
        %12507 = vmatprep.subr.bf16.mxu0 %v11441
        %12508 = vmatpush1.bf16.msra.mxu0 %v11440
        %12509 = vmatprep.subr.bf16.mxu0 %v11434
        %12510 = vmatpush1.bf16.msra.mxu0 %v11433
        %12511 = vmatprep.subr.bf16.mxu0 %v11427
        %12512 = vmatpush1.bf16.msra.mxu0 %v11426
        %12513 = vmatprep.subr.bf16.mxu0 %v11420
        %12514 = vmatpush1.bf16.msra.mxu0 %v11419
        %12515 = vmatprep.subr.bf16.mxu0 %v11413
        %12516 = vmatpush1.bf16.msra.mxu0 %v11412
        %12517 = vmatprep.subr.bf16.mxu0 %v11406
        %12518 = vmatpush1.bf16.msra.mxu0 %v11405
        %12519 = vmatprep.subr.bf16.mxu0 %v11511
        %12520 = vmatpush2.bf16.msra.mxu0 %v11510
        %12521 = vmatprep.subr.bf16.mxu0 %v11504
        %12522 = vmatpush2.bf16.msra.mxu0 %v11503
        %12523 = vmatprep.subr.bf16.mxu0 %v11497
        %12524 = vmatpush2.bf16.msra.mxu0 %v11496
        %12525 = vmatprep.subr.bf16.mxu0 %v11490
        %12526 = vmatpush2.bf16.msra.mxu0 %v11489
        %12527 = vmatprep.subr.bf16.mxu0 %v11483
        %12528 = vmatpush2.bf16.msra.mxu0 %v11482
        %12529 = vmatprep.subr.bf16.mxu0 %v11476
        %12530 = vmatpush2.bf16.msra.mxu0 %v11475
        %12531 = vmatprep.subr.bf16.mxu0 %v11469
        %12532 = vmatpush2.bf16.msra.mxu0 %v11468
        %12533 = vmatprep.subr.bf16.mxu0 %v11462
        %12534 = vmatpush2.bf16.msra.mxu0 %v11461
        %12535 = vmatprep.mubr.bf16.mxu0 %v9254
        %12536 = vmatmul.mubr.bf16.gmra.mxu0 %v9253
        %v12537 = vpop.f32.mrf.mxu0
        %v12538 = vadd.f32 %v12495, %v12537
        %v12539 = vpop.f32.mrf.mxu0
        %v12540 = vadd.f32 %v12497, %v12539
        %v12541 = vpop.f32.mrf.mxu0
        %v12542 = vadd.f32 %v12499, %v12541
        %v12543 = vpop.f32.mrf.mxu0
        %v12544 = vadd.f32 %v12501, %v12543
        %12545 = vdwg.mxu0
        %12546 = vmatprep.subr.bf16.mxu0 %v11567
        %12547 = vmatpush1.bf16.msra.mxu0 %v11566
        %12548 = vmatprep.subr.bf16.mxu0 %v11560
        %12549 = vmatpush1.bf16.msra.mxu0 %v11559
        %12550 = vmatprep.subr.bf16.mxu0 %v11553
        %12551 = vmatpush1.bf16.msra.mxu0 %v11552
        %12552 = vmatprep.subr.bf16.mxu0 %v11546
        %12553 = vmatpush1.bf16.msra.mxu0 %v11545
        %12554 = vmatprep.subr.bf16.mxu0 %v11539
        %12555 = vmatpush1.bf16.msra.mxu0 %v11538
        %12556 = vmatprep.subr.bf16.mxu0 %v11532
        %12557 = vmatpush1.bf16.msra.mxu0 %v11531
        %12558 = vmatprep.subr.bf16.mxu0 %v11525
        %12559 = vmatpush1.bf16.msra.mxu0 %v11524
        %12560 = vmatprep.subr.bf16.mxu0 %v11518
        %12561 = vmatpush1.bf16.msra.mxu0 %v11517
        %12562 = vmatprep.subr.bf16.mxu0 %v11623
        %12563 = vmatpush2.bf16.msra.mxu0 %v11622
        %12564 = vmatprep.subr.bf16.mxu0 %v11616
        %12565 = vmatpush2.bf16.msra.mxu0 %v11615
        %12566 = vmatprep.subr.bf16.mxu0 %v11609
        %12567 = vmatpush2.bf16.msra.mxu0 %v11608
        %12568 = vmatprep.subr.bf16.mxu0 %v11602
        %12569 = vmatpush2.bf16.msra.mxu0 %v11601
        %12570 = vmatprep.subr.bf16.mxu0 %v11595
        %12571 = vmatpush2.bf16.msra.mxu0 %v11594
        %12572 = vmatprep.subr.bf16.mxu0 %v11588
        %12573 = vmatpush2.bf16.msra.mxu0 %v11587
        %12574 = vmatprep.subr.bf16.mxu0 %v11581
        %12575 = vmatpush2.bf16.msra.mxu0 %v11580
        %12576 = vmatprep.subr.bf16.mxu0 %v11574
        %12577 = vmatpush2.bf16.msra.mxu0 %v11573
        %12578 = vmatprep.mubr.bf16.mxu0 %v9256
        %12579 = vmatmul.mubr.bf16.gmra.mxu0 %v9255
        %v12580 = vpop.f32.mrf.mxu0
        %v12581 = vadd.f32 %v12538, %v12580
        %v12582 = vpop.f32.mrf.mxu0
        %v12583 = vadd.f32 %v12540, %v12582
        %v12584 = vpop.f32.mrf.mxu0
        %v12585 = vadd.f32 %v12542, %v12584
        %v12586 = vpop.f32.mrf.mxu0
        %v12587 = vadd.f32 %v12544, %v12586
        %12588 = vdwg.mxu0
        %12589 = vmatprep.subr.bf16.mxu0 0
        %12590 = vmatpush1.bf16.msra.mxu0 %v11232
        %12591 = vmatprep.subr.bf16.mxu0 0
        %12592 = vmatpush1.bf16.msra.mxu0 %v11225
        %12593 = vmatprep.subr.bf16.mxu0 0
        %12594 = vmatpush1.bf16.msra.mxu0 %v11218
        %12595 = vmatprep.subr.bf16.mxu0 0
        %12596 = vmatpush1.bf16.msra.mxu0 %v11211
        %12597 = vmatprep.subr.bf16.mxu0 0
        %12598 = vmatpush1.bf16.msra.mxu0 %v11204
        %12599 = vmatprep.subr.bf16.mxu0 0
        %12600 = vmatpush1.bf16.msra.mxu0 %v11197
        %12601 = vmatprep.subr.bf16.mxu0 0
        %12602 = vmatpush1.bf16.msra.mxu0 %v11190
        %12603 = vmatprep.subr.bf16.mxu0 0
        %12604 = vmatpush1.bf16.msra.mxu0 %v11183
        %12605 = vmatprep.subr.bf16.mxu0 0
        %12606 = vmatpush2.bf16.msra.mxu0 %v11288
        %12607 = vmatprep.subr.bf16.mxu0 0
        %12608 = vmatpush2.bf16.msra.mxu0 %v11281
        %12609 = vmatprep.subr.bf16.mxu0 0
        %12610 = vmatpush2.bf16.msra.mxu0 %v11274
        %12611 = vmatprep.subr.bf16.mxu0 0
        %12612 = vmatpush2.bf16.msra.mxu0 %v11267
        %12613 = vmatprep.subr.bf16.mxu0 0
        %12614 = vmatpush2.bf16.msra.mxu0 %v11260
        %12615 = vmatprep.subr.bf16.mxu0 0
        %12616 = vmatpush2.bf16.msra.mxu0 %v11253
        %12617 = vmatprep.subr.bf16.mxu0 0
        %12618 = vmatpush2.bf16.msra.mxu0 %v11246
        %12619 = vmatprep.subr.bf16.mxu0 0
        %12620 = vmatpush2.bf16.msra.mxu0 %v11239
        %12621 = vmatprep.mubr.bf16.mxu0 %v9250
        %12622 = vmatmul.mubr.bf16.gmra.mxu0 %v9249
        %v12623 = vpop.f32.mrf.mxu0
        %v12624 = vadd.f32 %v3632, %v12623
        %v12625 = vpop.f32.mrf.mxu0
        %v12626 = vpop.f32.mrf.mxu0
        %v12627 = vadd.f32 %v3632, %v12626
        %v12628 = vpop.f32.mrf.mxu0
        %12629 = vdwg.mxu0
        %12630 = vmatprep.subr.bf16.mxu0 0
        %12631 = vmatpush1.bf16.msra.mxu0 %v11344
        %12632 = vmatprep.subr.bf16.mxu0 0
        %12633 = vmatpush1.bf16.msra.mxu0 %v11337
        %12634 = vmatprep.subr.bf16.mxu0 0
        %12635 = vmatpush1.bf16.msra.mxu0 %v11330
        %12636 = vmatprep.subr.bf16.mxu0 0
        %12637 = vmatpush1.bf16.msra.mxu0 %v11323
        %12638 = vmatprep.subr.bf16.mxu0 0
        %12639 = vmatpush1.bf16.msra.mxu0 %v11316
        %12640 = vmatprep.subr.bf16.mxu0 0
        %12641 = vmatpush1.bf16.msra.mxu0 %v11309
        %12642 = vmatprep.subr.bf16.mxu0 0
        %12643 = vmatpush1.bf16.msra.mxu0 %v11302
        %12644 = vmatprep.subr.bf16.mxu0 0
        %12645 = vmatpush1.bf16.msra.mxu0 %v11295
        %12646 = vmatprep.subr.bf16.mxu0 0
        %12647 = vmatpush2.bf16.msra.mxu0 %v11400
        %12648 = vmatprep.subr.bf16.mxu0 0
        %12649 = vmatpush2.bf16.msra.mxu0 %v11393
        %12650 = vmatprep.subr.bf16.mxu0 0
        %12651 = vmatpush2.bf16.msra.mxu0 %v11386
        %12652 = vmatprep.subr.bf16.mxu0 0
        %12653 = vmatpush2.bf16.msra.mxu0 %v11379
        %12654 = vmatprep.subr.bf16.mxu0 0
        %12655 = vmatpush2.bf16.msra.mxu0 %v11372
        %12656 = vmatprep.subr.bf16.mxu0 0
        %12657 = vmatpush2.bf16.msra.mxu0 %v11365
        %12658 = vmatprep.subr.bf16.mxu0 0
        %12659 = vmatpush2.bf16.msra.mxu0 %v11358
        %12660 = vmatprep.subr.bf16.mxu0 0
        %12661 = vmatpush2.bf16.msra.mxu0 %v11351
        %12662 = vmatprep.mubr.bf16.mxu0 %v9252
        %12663 = vmatmul.mubr.bf16.gmra.mxu0 %v9251
        %v12664 = vpop.f32.mrf.mxu0
        %v12665 = vadd.f32 %v12624, %v12664
        %v12666 = vpop.f32.mrf.mxu0
        %v12667 = vpop.f32.mrf.mxu0
        %v12668 = vadd.f32 %v12627, %v12667
        %v12669 = vpop.f32.mrf.mxu0
        %12670 = vdwg.mxu0
        %12671 = vmatprep.subr.bf16.mxu0 0
        %12672 = vmatpush1.bf16.msra.mxu0 %v11456
        %12673 = vmatprep.subr.bf16.mxu0 0
        %12674 = vmatpush1.bf16.msra.mxu0 %v11449
        %12675 = vmatprep.subr.bf16.mxu0 0
        %12676 = vmatpush1.bf16.msra.mxu0 %v11442
        %12677 = vmatprep.subr.bf16.mxu0 0
        %12678 = vmatpush1.bf16.msra.mxu0 %v11435
        %12679 = vmatprep.subr.bf16.mxu0 0
        %12680 = vmatpush1.bf16.msra.mxu0 %v11428
        %12681 = vmatprep.subr.bf16.mxu0 0
        %12682 = vmatpush1.bf16.msra.mxu0 %v11421
        %12683 = vmatprep.subr.bf16.mxu0 0
        %12684 = vmatpush1.bf16.msra.mxu0 %v11414
        %12685 = vmatprep.subr.bf16.mxu0 0
        %12686 = vmatpush1.bf16.msra.mxu0 %v11407
        %12687 = vmatprep.subr.bf16.mxu0 0
        %12688 = vmatpush2.bf16.msra.mxu0 %v11512
        %12689 = vmatprep.subr.bf16.mxu0 0
        %12690 = vmatpush2.bf16.msra.mxu0 %v11505
        %12691 = vmatprep.subr.bf16.mxu0 0
        %12692 = vmatpush2.bf16.msra.mxu0 %v11498
        %12693 = vmatprep.subr.bf16.mxu0 0
        %12694 = vmatpush2.bf16.msra.mxu0 %v11491
        %12695 = vmatprep.subr.bf16.mxu0 0
        %12696 = vmatpush2.bf16.msra.mxu0 %v11484
        %12697 = vmatprep.subr.bf16.mxu0 0
        %12698 = vmatpush2.bf16.msra.mxu0 %v11477
        %12699 = vmatprep.subr.bf16.mxu0 0
        %12700 = vmatpush2.bf16.msra.mxu0 %v11470
        %12701 = vmatprep.subr.bf16.mxu0 0
        %12702 = vmatpush2.bf16.msra.mxu0 %v11463
        %12703 = vmatprep.mubr.bf16.mxu0 %v9254
        %12704 = vmatmul.mubr.bf16.gmra.mxu0 %v9253
        %v12705 = vpop.f32.mrf.mxu0
        %v12706 = vadd.f32 %v12665, %v12705
        %v12707 = vpop.f32.mrf.mxu0
        %v12708 = vpop.f32.mrf.mxu0
        %v12709 = vadd.f32 %v12668, %v12708
        %v12710 = vpop.f32.mrf.mxu0
        %12711 = vdwg.mxu0
        %12712 = vmatprep.subr.bf16.mxu0 0
        %12713 = vmatpush1.bf16.msra.mxu0 %v11568
        %12714 = vmatprep.subr.bf16.mxu0 0
        %12715 = vmatpush1.bf16.msra.mxu0 %v11561
        %12716 = vmatprep.subr.bf16.mxu0 0
        %12717 = vmatpush1.bf16.msra.mxu0 %v11554
        %12718 = vmatprep.subr.bf16.mxu0 0
        %12719 = vmatpush1.bf16.msra.mxu0 %v11547
        %12720 = vmatprep.subr.bf16.mxu0 0
        %12721 = vmatpush1.bf16.msra.mxu0 %v11540
        %12722 = vmatprep.subr.bf16.mxu0 0
        %12723 = vmatpush1.bf16.msra.mxu0 %v11533
        %12724 = vmatprep.subr.bf16.mxu0 0
        %12725 = vmatpush1.bf16.msra.mxu0 %v11526
        %12726 = vmatprep.subr.bf16.mxu0 0
        %12727 = vmatpush1.bf16.msra.mxu0 %v11519
        %12728 = vmatprep.subr.bf16.mxu0 0
        %12729 = vmatpush2.bf16.msra.mxu0 %v11624
        %12730 = vmatprep.subr.bf16.mxu0 0
        %12731 = vmatpush2.bf16.msra.mxu0 %v11617
        %12732 = vmatprep.subr.bf16.mxu0 0
        %12733 = vmatpush2.bf16.msra.mxu0 %v11610
        %12734 = vmatprep.subr.bf16.mxu0 0
        %12735 = vmatpush2.bf16.msra.mxu0 %v11603
        %12736 = vmatprep.subr.bf16.mxu0 0
        %12737 = vmatpush2.bf16.msra.mxu0 %v11596
        %12738 = vmatprep.subr.bf16.mxu0 0
        %12739 = vmatpush2.bf16.msra.mxu0 %v11589
        %12740 = vmatprep.subr.bf16.mxu0 0
        %12741 = vmatpush2.bf16.msra.mxu0 %v11582
        %12742 = vmatprep.subr.bf16.mxu0 0
        %12743 = vmatpush2.bf16.msra.mxu0 %v11575
        %12744 = vmatprep.mubr.bf16.mxu0 %v9256
        %12745 = vmatmul.mubr.bf16.gmra.mxu0 %v9255
        %v12746 = vpop.f32.mrf.mxu0
        %v12747 = vadd.f32 %v12706, %v12746
        %v12748 = vpop.f32.mrf.mxu0
        %v12749 = vpop.f32.mrf.mxu0
        %v12750 = vadd.f32 %v12709, %v12749
        %v12751 = vpop.f32.mrf.mxu0
        %12752 = vdwg.mxu0
        %v12753 = vtanh.pop %v12237
        %v12754 = vtanh.pop %v12239
        %v12755 = vtanh.pop %v12409
        %v12756 = vtanh.pop %v12411
        %v12757 = vtanh.pop %v12581
        %v12758 = vtanh.pop %v12583
        %v12759 = vtanh.pop %v12747
        %v12760 = vtanh.pop %v12241
        %v12761 = vtanh.pop %v12243
        %v12762 = vtanh.pop %v12413
        %v12763 = vtanh.pop %v12415
        %v12764 = vtanh.pop %v12585
        %v12765 = vtanh.pop %v12587
        %v12766 = vtanh.pop %v12750
        %v12767 = vpack.c.bf16 %v12760, %v12753
        %v12768 = vpack.c.bf16 %v12761, %v12754
        %v12769 = vpack.c.bf16 %v12762, %v12755
        %v12770 = vpack.c.bf16 %v12763, %v12756
        %v12771 = vpack.c.bf16 %v12764, %v12757
        %v12772 = vpack.c.bf16 %v12765, %v12758
        %v12773 = vpack.c.bf16 %v12766, %v12759
        %v12781 = vunpack.c.l.b16 %v12767
        %v12782 = vunpack.c.l.b16 %v12768
        %v12783 = vunpack.c.l.b16 %v12769
        %v12784 = vunpack.c.l.b16 %v12770
        %v12785 = vunpack.c.l.b16 %v12771
        %v12786 = vunpack.c.l.b16 %v12772
        %v12787 = vunpack.c.l.b16 %v12773
        %v12788 = vunpack.c.h.b16 %v12767
        %v12789 = vunpack.c.h.b16 %v12768
        %v12790 = vunpack.c.h.b16 %v12769
        %v12791 = vunpack.c.h.b16 %v12770
        %v12792 = vunpack.c.h.b16 %v12771
        %v12793 = vunpack.c.h.b16 %v12772
        %v12794 = vunpack.c.h.b16 %v12773
        %v12795 = vpack.c.b16 %v12782, %v12781
        %v12796 = vpack.c.b16 %v12784, %v12783
        %v12797 = vpack.c.b16 %v12786, %v12785
        %v12798 = vpack.c.b16 %v12787, %v12787
        %v12799 = vpack.c.b16 %v12789, %v12788
        %v12800 = vpack.c.b16 %v12791, %v12790
        %v12801 = vpack.c.b16 %v12793, %v12792
        %v12802 = vpack.c.b16 %v12794, %v12794
        %12811 = vst [vmem:[%s445 + $0x38] sm:$0xff] %v12795
        %12812 = vst [vmem:[%s445 + $0x40] sm:$0xff] %v12796
        %12813 = vst [vmem:[%s445 + $0x48] sm:$0xff] %v12797
        %12814 = vst [vmem:[%s445 + $0x50] sm:$0xf] %v12798
        %12815 = vst [vmem:[%s445 + $0x54] sm:$0xff] %v12799
        %12816 = vst [vmem:[%s445 + $0x5c] sm:$0xff] %v12800
        %12817 = vst [vmem:[%s445 + $0x64] sm:$0xff] %v12801
        %12818 = vst [vmem:[%s445 + $0x6c] sm:$0xf] %v12802
        %s12819 = smul.u32 4, %s25
        %p12820 = scmp.lt.s32.totalorder %s12819, 7
        %s12821 = scalar_select %p12820, %s12819, 7
        %s12822 = smul.addr %s12821, 7
        %s12823 = smul.addr %s12822, 4
        %s12824 = scalar_lea.vmem %s9, %s12823
        // Predicated region
        $region89: #{generator_forward.1} parent=55 // pred_check
          %p12825 = pneg %p237
        $region90: #{generator_forward.1} parent=55 // pred_check_branch
          %12827 = sbr.rel (%p12825) target = $region92
        $region91: #{generator_forward.1} parent=55 // pred_region
          %s12828 = smul.u32 4, %s25
        $region92: #{generator_forward.1} parent=55 // pred_fallthru
          _
      $region56: #{generator_forward.1} parent=5 // pred_fallthru
        _
      %p12829 = scmp.le.s32.totalorder 2, %s20
      // Predicated region
      $region93: #{generator_forward.1} parent=5 // pred_check
        %p12830 = pneg %p12829
      $region94: #{generator_forward.1} parent=5 // pred_check_branch
        %12832 = sbr.rel (%p12830) target = $region96
      $region95: #{generator_forward.1} parent=5 // pred_region
        %s12833 = ssub.s32 %s20, 2
        // Predicated region
        $region97: #{generator_forward.1} parent=95 // pred_check
          %p12834 = pneg %p243
        $region98: #{generator_forward.1} parent=95 // pred_check_branch
          %12836 = sbr.rel (%p12834) target = $region100
        $region99: #{generator_forward.1} parent=95 // pred_region
          %s12837 = smul.u32 4, %s26
          %p12838 = scmp.lt.s32.totalorder %s12837, 7
          %s12839 = scalar_select %p12838, %s12837, 7
          %s12840 = smul.addr %s12839, 7
          %s12841 = smul.addr %s12840, 4
          %s12842 = scalar_lea.vmem %s9, %s12841
        $region100: #{generator_forward.1} parent=95 // pred_fallthru
          _
      $region96: #{generator_forward.1} parent=5 // pred_fallthru
        _
    $region6: #{generator_forward.1} parent=1 // loop_footer
      %s24 = sadd.s32 1, %s20
    $region7: #{generator_forward.1} parent=1 // loop_footer_branch
      %19 = sbr.rel target = $region3
    $region8: #{generator_forward.1} parent=1 // loop_exit
      _
    %12843 = vsyncpa [#allocation3], 1
    %s12844 = scalar_lea.sflag [#allocation3], 1
    %12845 = vsyncpa %s12844, 1
    %12846 = vsyncpa [#allocation5], 1
    %12847 = vsyncpa [#allocation8], 1
    %12848 = vsyncpa [#allocation11], 1
    %12849 = vsyncpa [#allocation14], 1

</llo_original>
